<compile_context>
chip_gen: v7x
topology: tpu7x:2x2x1
jax: 0.10.0
libtpu: 0.0.40
codegen_flags: <defaults>
</compile_context>

<pallas_src>
import functools

import jax
import jax.numpy as jnp
from jax import lax
from jax.experimental import pallas as pl
from jax.experimental.pallas import tpu as pltpu


# ----------------------------------------------------------------------------
# Hardware-aware budgets
# ----------------------------------------------------------------------------
def _vmem_capacity_bytes():
    try:
        info = pltpu.get_tpu_info()
        cap = int(getattr(info, "vmem_capacity_bytes", 0) or 0)
        if cap > 0:
            return cap
    except Exception:
        pass
    return 64 * 1024 * 1024          # conservative default (v7x per-TensorCore)


_VMEM_CAP = _vmem_capacity_bytes()
# Working-set budget for one pallas_call (fused-BN residency check + tiling):
#   v7x (64 MiB VMEM) -> 16 MiB;  v5e / v6e (128 MiB) -> 32 MiB.
_PALLAS_VMEM_BUDGET = min(_VMEM_CAP // 4, 32 * 1024 * 1024)
# Scoped-VMEM limit for Mosaic (v5e default 16 MiB is too small for our tiles).
_VMEM_LIMIT = int(max(32 * 1024 * 1024,
                      min(3 * _VMEM_CAP // 4, 96 * 1024 * 1024)))

_COMP_PARALLEL = pltpu.CompilerParams(
    dimension_semantics=("parallel",), vmem_limit_bytes=_VMEM_LIMIT)
_COMP_ARBITRARY = pltpu.CompilerParams(
    dimension_semantics=("arbitrary",), vmem_limit_bytes=_VMEM_LIMIT)


def _round_up(x, m):
    return (x + m - 1) // m * m


def _pick_tile_m(m, kd, cpad, budget=_PALLAS_VMEM_BUDGET):
    """Largest multiple-of-128 row tile whose double-buffered working set fits
    the budget (x tile + bf16 output tile, plus weights / stats overhead)."""
    per_row = 2 * kd * 2 + 2 * cpad * 2 + cpad * 4      # dbl x, dbl out, f32 acc
    fixed = 2 * kd * cpad * 2 + 4 * 8 * cpad * 4        # dbl weights + stats
    cap = (budget - fixed) // max(per_row, 1)
    cap = max(128, min(2048, (cap // 128) * 128))
    return int(min(cap, _round_up(m, 128)))


def _pick_tile_k(kd):
    """Multiple-of-128 divisor of Kd, sized so the Kd grid has >= ~4 steps."""
    target = min(512, max(128, kd // 4))
    for t in range(target - target % 128, 127, -128):
        if kd % t == 0:
            return t
    return kd


# ----------------------------------------------------------------------------
# Pallas kernels
# ----------------------------------------------------------------------------
def gemm_bias_leaky_kernel(x_ref, w_ref, b_ref, o_ref, *, slope):
    """Conv-GEMM tile + bias + LeakyReLU (non-BN layer).  bf16 output."""
    acc = jnp.dot(x_ref[...], w_ref[...], preferred_element_type=jnp.float32)
    y = acc + b_ref[...]
    y = jnp.where(y >= 0.0, y, slope * y)
    o_ref[...] = y.astype(o_ref.dtype)


def gemm_stats_kernel(x_ref, w_ref, raw_ref, sum_ref, ssq_ref):
    """Large-BN-layer fallback: Conv-GEMM tile (bias dropped -- it cancels
    under training-mode BN), bf16 pre-activation output, per-tile f32
    sum / sum-sq partials broadcast over 8 sublanes (unmasked stores).
    Per-tile partials keep the M grid axis 'parallel' (megacore on v7x);
    they are reduced in JAX.  Zero-padded rows contribute exactly zero."""
    acc = jnp.dot(x_ref[...], w_ref[...], preferred_element_type=jnp.float32)
    raw_ref[...] = acc.astype(raw_ref.dtype)
    s = jnp.sum(acc, axis=0, keepdims=True)
    ss = jnp.sum(acc * acc, axis=0, keepdims=True)
    sum_ref[...] = jnp.broadcast_to(s, sum_ref.shape)
    ssq_ref[...] = jnp.broadcast_to(ss, ssq_ref.shape)


def bn_gemm_fused_kernel(x_ref, w_ref, g_ref, bt_ref, o_ref, acc_ref,
                         *, slope, eps, m_rows):
    """Fused Conv-GEMM + training-mode BatchNorm + LeakyReLU.
    The grid runs over the Kd (= K*K*Cin) reduction so patch DMAs are
    double-buffered against MXU work; the f32 accumulator and bf16 output are
    VMEM resident and the activations hit HBM exactly once.
    Variance is two-pass (mean-centred) to avoid E[x^2]-E[x]^2 cancellation.
    Conv bias is dropped: it cancels exactly under batch-stat BN."""
    k = pl.program_id(0)

    @pl.when(k == 0)
    def _():
        acc_ref[...] = jnp.zeros_like(acc_ref)

    acc_ref[...] += jnp.dot(x_ref[...], w_ref[...],
                            preferred_element_type=jnp.float32)

    @pl.when(k == pl.num_programs(0) - 1)
    def _():
        acc = acc_ref[...]
        inv_m = 1.0 / m_rows
        mean = jnp.sum(acc, axis=0, keepdims=True) * inv_m
        cen = acc - mean
        var = jnp.sum(cen * cen, axis=0, keepdims=True) * inv_m   # biased var
        scale = g_ref[...] * lax.rsqrt(var + eps)
        y = cen * scale + bt_ref[...]
        y = jnp.where(y >= 0.0, y, slope * y)
        o_ref[...] = y.astype(o_ref.dtype)


def affine_leaky_kernel(x_ref, scale_ref, shift_ref, o_ref, *, slope):
    """y = leaky(x * scale + shift), f32 math, bf16 in/out, in-place aliased."""
    y = x_ref[...].astype(jnp.float32) * scale_ref[...] + shift_ref[...]
    y = jnp.where(y >= 0.0, y, slope * y)
    o_ref[...] = y.astype(o_ref.dtype)


# ----------------------------------------------------------------------------
# Pallas wrappers
# ----------------------------------------------------------------------------
def gemm_bias_leaky(patches, w_mat, bias_row, *, slope):
    M, Kd = patches.shape
    Cpad = w_mat.shape[1]
    tm = _pick_tile_m(M, Kd, Cpad)
    Mp = _round_up(M, tm)
    if Mp != M:
        patches = jnp.pad(patches, ((0, Mp - M), (0, 0)))
    out = pl.pallas_call(
        functools.partial(gemm_bias_leaky_kernel, slope=slope),
        out_shape=jax.ShapeDtypeStruct((Mp, Cpad), jnp.bfloat16),
        grid=(Mp // tm,),
        in_specs=[
            pl.BlockSpec((tm, Kd), lambda i: (i, 0)),
            pl.BlockSpec((Kd, Cpad), lambda i: (0, 0)),
            pl.BlockSpec((1, Cpad), lambda i: (0, 0)),
        ],
        out_specs=pl.BlockSpec((tm, Cpad), lambda i: (i, 0)),
        compiler_params=_COMP_PARALLEL,
    )(patches, w_mat, bias_row)
    return out[:M]


def bn_gemm_fused(patches, w_mat, g_row, bt_row, *, slope, eps, tk):
    M, Kd = patches.shape
    Cpad = w_mat.shape[1]
    return pl.pallas_call(
        functools.partial(bn_gemm_fused_kernel, slope=slope, eps=eps,
                          m_rows=float(M)),
        out_shape=jax.ShapeDtypeStruct((M, Cpad), jnp.bfloat16),
        grid=(Kd // tk,),
        in_specs=[
            pl.BlockSpec((M, tk), lambda k: (0, k)),
            pl.BlockSpec((tk, Cpad), lambda k: (k, 0)),
            pl.BlockSpec((1, Cpad), lambda k: (0, 0)),
            pl.BlockSpec((1, Cpad), lambda k: (0, 0)),
        ],
        out_specs=pl.BlockSpec((M, Cpad), lambda k: (0, 0)),
        scratch_shapes=[pltpu.VMEM((M, Cpad), jnp.float32)],
        compiler_params=_COMP_ARBITRARY,
    )(patches, w_mat, g_row, bt_row)


def bn_tiled(patches, w_mat, g_row, bt_row, *, slope, eps):
    """Fallback for layers whose full accumulator does not fit VMEM."""
    M, Kd = patches.shape
    Cpad = w_mat.shape[1]
    tm = _pick_tile_m(M, Kd, Cpad)
    Mp = _round_up(M, tm)
    if Mp != M:
        patches = jnp.pad(patches, ((0, Mp - M), (0, 0)))
    nt = Mp // tm

    raw, psum, pssq = pl.pallas_call(
        gemm_stats_kernel,
        out_shape=(
            jax.ShapeDtypeStruct((Mp, Cpad), jnp.bfloat16),
            jax.ShapeDtypeStruct((nt * 8, Cpad), jnp.float32),
            jax.ShapeDtypeStruct((nt * 8, Cpad), jnp.float32),
        ),
        grid=(nt,),
        in_specs=[
            pl.BlockSpec((tm, Kd), lambda i: (i, 0)),
            pl.BlockSpec((Kd, Cpad), lambda i: (0, 0)),
        ],
        out_specs=(
            pl.BlockSpec((tm, Cpad), lambda i: (i, 0)),
            pl.BlockSpec((8, Cpad), lambda i: (i, 0)),
            pl.BlockSpec((8, Cpad), lambda i: (i, 0)),
        ),
        compiler_params=_COMP_PARALLEL,
    )(patches, w_mat)

    s = psum.reshape(nt, 8, Cpad)[:, 0, :].sum(axis=0, keepdims=True)
    ss = pssq.reshape(nt, 8, Cpad)[:, 0, :].sum(axis=0, keepdims=True)
    mean = s / M
    # E[x^2]-E[x]^2 in f32 from the f32 accumulator, clamped at zero.
    var = jnp.maximum(ss / M - mean * mean, 0.0)
    scale = g_row * lax.rsqrt(var + eps)
    shift = bt_row - mean * scale

    out = pl.pallas_call(
        functools.partial(affine_leaky_kernel, slope=slope),
        out_shape=jax.ShapeDtypeStruct((Mp, Cpad), jnp.bfloat16),
        grid=(nt,),
        in_specs=[
            pl.BlockSpec((tm, Cpad), lambda i: (i, 0)),
            pl.BlockSpec((1, Cpad), lambda i: (0, 0)),
            pl.BlockSpec((1, Cpad), lambda i: (0, 0)),
        ],
        out_specs=pl.BlockSpec((tm, Cpad), lambda i: (i, 0)),
        input_output_aliases={0: 0},          # in-place: no extra HBM buffer
        compiler_params=_COMP_PARALLEL,
    )(raw, scale, shift)
    return out[:M]


# ----------------------------------------------------------------------------
# Glue: im2col + per-layer composition
# ----------------------------------------------------------------------------
def im2col(x_nhwc, K, stride, pad):
    """bf16-preserving patch extraction.  (ki, kj, cin) feature ordering."""
    N, H, W, C = x_nhwc.shape
    xp = jnp.pad(x_nhwc, ((0, 0), (pad, pad), (pad, pad), (0, 0)))
    Ho = (H + 2 * pad - K) // stride + 1
    Wo = (W + 2 * pad - K) // stride + 1
    cols = []
    for ki in range(K):
        for kj in range(K):
            cols.append(xp[:, ki:ki + stride * (Ho - 1) + 1:stride,
                              kj:kj + stride * (Wo - 1) + 1:stride, :])
    patches = jnp.stack(cols, axis=3)              # (N, Ho, Wo, K*K, C)
    return patches.reshape(N * Ho * Wo, K * K * C), Ho, Wo


def conv_block(x_nhwc, w_oihw, bias, *, stride, pad, slope, bn=None, eps=1e-5,
               force_tiled_bn=False):
    N, H, W, Cin_x = x_nhwc.shape
    Cout, Cin_w, K, _ = w_oihw.shape
    if Cin_w < Cin_x:                               # input was channel-padded
        w_oihw = jnp.pad(w_oihw, ((0, 0), (0, Cin_x - Cin_w), (0, 0), (0, 0)))
    Cpad = _round_up(max(Cout, 1), 128)             # lane-dense output stores

    patches, Ho, Wo = im2col(x_nhwc, K, stride, pad)        # bf16 (M, Kd)
    M, Kd = patches.shape
    # [ki, kj, cin] row ordering matches im2col; zero-pad the Cout dim.
    w_mat = jnp.transpose(w_oihw, (2, 3, 1, 0)).reshape(Kd, Cout)
    w_mat = jnp.pad(w_mat, ((0, 0), (0, Cpad - Cout))).astype(jnp.bfloat16)

    if bn is None:
        bias_row = jnp.pad(bias.reshape(1, Cout),
                           ((0, 0), (0, Cpad - Cout))).astype(jnp.float32)
        out = gemm_bias_leaky(patches, w_mat, bias_row, slope=slope)
    else:
        # Conv bias cancels exactly under training-mode BN -> dropped.
        gamma, beta = bn
        g_row = jnp.pad(gamma.reshape(1, Cout),
                        ((0, 0), (0, Cpad - Cout))).astype(jnp.float32)
        bt_row = jnp.pad(beta.reshape(1, Cout),
                         ((0, 0), (0, Cpad - Cout))).astype(jnp.float32)
        tk = _pick_tile_k(Kd)
        fused_bytes = (M * Cpad * 4            # f32 accumulator scratch
                       + 2 * M * Cpad * 2      # bf16 output (buffered)
                       + 2 * M * tk * 2        # double-buffered patch tiles
                       + 2 * tk * Cpad * 2     # double-buffered weight tiles
                       + 8 * Cpad * 4)
        if (not force_tiled_bn) and fused_bytes <= _PALLAS_VMEM_BUDGET:
            out = bn_gemm_fused(patches, w_mat, g_row, bt_row,
                                slope=slope, eps=eps, tk=tk)
        else:
            out = bn_tiled(patches, w_mat, g_row, bt_row, slope=slope, eps=eps)

    # Padded channels are exact zeros; slice them off before the next layer.
    return out.reshape(N, Ho, Wo, Cpad)[..., :Cout]


def init_params(key, input_dim, hidden_dim):
    dims_in = [input_dim, hidden_dim, hidden_dim * 2, hidden_dim * 4,
               hidden_dim * 8]
    dims_out = [hidden_dim, hidden_dim * 2, hidden_dim * 4, hidden_dim * 8, 1]
    params = {}
    for li, (ci, co) in enumerate(zip(dims_in, dims_out)):
        key, wk = jax.random.split(key)
        params[f"w{li}"] = 0.02 * jax.random.normal(wk, (co, ci, 4, 4),
                                                    jnp.float32)
        params[f"b{li}"] = jnp.zeros((co,), jnp.float32)
        if li in (1, 2, 3):                          # BatchNorm2d layers
            params[f"gamma{li}"] = jnp.ones((co,), jnp.float32)
            params[f"beta{li}"] = jnp.zeros((co,), jnp.float32)
    return params


@functools.partial(jax.jit, static_argnames=("force_tiled_bn",))
def discriminator_forward(img_nchw, params, *, force_tiled_bn=False):
    x = jnp.transpose(img_nchw, (0, 2, 3, 1)).astype(jnp.bfloat16)  # NCHW->NHWC
    # Pad the image channels (3 -> 8) so layer-0's contraction Kd = 16*8 = 128.
    cin = x.shape[-1]
    cin_pad = _round_up(max(cin, 8), 8)
    if cin_pad != cin:
        x = jnp.pad(x, ((0, 0), (0, 0), (0, 0), (0, cin_pad - cin)))

    # Conv(4,2,1) + LeakyReLU(0.2)
    x = conv_block(x, params["w0"], params["b0"], stride=2, pad=1, slope=0.2)
    # Conv(4,2,1) + BatchNorm (training-mode batch stats) + LeakyReLU(0.2), x3
    for li in (1, 2, 3):
        x = conv_block(x, params[f"w{li}"], params[f"b{li}"], stride=2, pad=1,
                       slope=0.2,
                       bn=(params[f"gamma{li}"], params[f"beta{li}"]),
                       force_tiled_bn=force_tiled_bn)
    # Final Conv(4,1,0), Cout=1: tiny (N,K*K*C)x(K*K*C,1) GEMM -> plain dot
    # (a pallas_call here would be pure launch overhead).
    patches, _, _ = im2col(x, 4, 1, 0)
    w4 = jnp.transpose(params["w4"], (2, 3, 1, 0)).reshape(-1, 1)
    out = jnp.dot(patches, w4.astype(jnp.bfloat16),
                  preferred_element_type=jnp.float32) + params["b4"].reshape(1, 1)
    return out.reshape(-1, 1)                        # .view(-1, 1)


if __name__ == "__main__":
    key = jax.random.PRNGKey(0)
    key, xk = jax.random.split(key)

    # spatial=64 so the final 4x4 valid conv reduces to 1x1 (as the module assumes)
    batch, input_dim, hidden_dim, spatial = 2, 3, 8, 64
    img = jax.random.normal(xk, (batch, input_dim, spatial, spatial),
                            jnp.float32)
    params = init_params(key, input_dim, hidden_dim)

    # Main path: fused Conv+BN+LeakyReLU kernels (everything fits VMEM here).
    out = jax.block_until_ready(discriminator_forward(img, params))
    assert out.shape == (batch, 1), out.shape
    assert bool(jnp.all(jnp.isfinite(out)))

    # Also exercise the large-layer fallback (tiled GEMM with per-tile stats
    # partials + in-place affine) and check it matches the fused path.
    out_tiled = jax.block_until_ready(
        discriminator_forward(img, params, force_tiled_bn=True))
    assert out_tiled.shape == (batch, 1), out_tiled.shape
    assert bool(jnp.all(jnp.isfinite(out_tiled)))
    assert bool(jnp.allclose(out, out_tiled, rtol=3e-2, atol=3e-2)), (
        out, out_tiled)

    print("KERNEL_OK")
</pallas_src>

<mosaic_0001>
module attributes {stable_mosaic.version = 11 : i64} {
  func.func @gemm_bias_leaky_kernel(%arg0: i32, %arg1: memref<2048x128xbf16, #tpu.memory_space<vmem>>, %arg2: memref<128x128xbf16, #tpu.memory_space<vmem>>, %arg3: memref<1x128xf32, #tpu.memory_space<vmem>>, %arg4: memref<2048x128xbf16, #tpu.memory_space<vmem>>) attributes {dimension_semantics = [#tpu.dimension_semantics<parallel>], iteration_bounds = array<i64: 1>, scalar_prefetch = 0 : i64, scratch_operands = 0 : i64, tpu.core_type = #tpu.core_type<tc>, window_params = [{transform_indices = @transform_0, window_bounds = array<i64: 2048, 128>}, {pipeline_mode = #tpu.pipeline_mode<synchronous>, transform_indices = @transform_1, window_bounds = array<i64: 128, 128>}, {pipeline_mode = #tpu.pipeline_mode<synchronous>, transform_indices = @transform_2, window_bounds = array<i64: 1, 128>}, {transform_indices = @transform_3, window_bounds = array<i64: 2048, 128>}]} {
    %c0 = arith.constant 0 : index
    %c0_0 = arith.constant 0 : index
    %0 = vector.load %arg1[%c0, %c0_0] : memref<2048x128xbf16, #tpu.memory_space<vmem>>, vector<2048x128xbf16>
    %c0_1 = arith.constant 0 : index
    %c0_2 = arith.constant 0 : index
    %1 = vector.load %arg2[%c0_1, %c0_2] : memref<128x128xbf16, #tpu.memory_space<vmem>>, vector<128x128xbf16>
    %cst = arith.constant dense<0.000000e+00> : vector<2048x128xf32>
    %2 = tpu.matmul %0, %1, %cst {dimension_numbers = #tpu.dot_dimension_numbers<[1], [0], [0], [1], [0, 0, 1, 1], [], []>} : vector<2048x128xbf16>, vector<128x128xbf16>, vector<2048x128xf32> -> vector<2048x128xf32>
    %c0_3 = arith.constant 0 : index
    %c0_4 = arith.constant 0 : index
    %3 = vector.load %arg3[%c0_3, %c0_4] : memref<1x128xf32, #tpu.memory_space<vmem>>, vector<1x128xf32>
    %4 = vector.broadcast %3 : vector<1x128xf32> to vector<2048x128xf32>
    %5 = arith.addf %2, %4 : vector<2048x128xf32>
    %cst_5 = arith.constant 0.000000e+00 : f32
    %6 = vector.broadcast %cst_5 : f32 to vector<2048x128xf32>
    %7 = arith.cmpf oge, %5, %6 : vector<2048x128xf32>
    %cst_6 = arith.constant 2.000000e-01 : f32
    %8 = vector.broadcast %cst_6 : f32 to vector<2048x128xf32>
    %9 = arith.mulf %8, %5 : vector<2048x128xf32>
    %10 = arith.select %7, %5, %9 : vector<2048x128xi1>, vector<2048x128xf32>
    %11 = arith.truncf %10 : vector<2048x128xf32> to vector<2048x128xbf16>
    %c0_7 = arith.constant 0 : index
    %c0_8 = arith.constant 0 : index
    %12 = vector.load %arg4[%c0_7, %c0_8] : memref<2048x128xbf16, #tpu.memory_space<vmem>>, vector<2048x128xbf16>
    tpu.vector_store %arg4[%c0_7, %c0_8], %11 {strides = array<i32>} : memref<2048x128xbf16, #tpu.memory_space<vmem>>, vector<2048x128xbf16>,
    return
  }
  func.func @transform_0(%arg0: i32) -> (i32, i32) {
    %c0_i32 = arith.constant 0 : i32
    %c0_i32_0 = arith.constant 0 : i32
    return %arg0, %c0_i32 : i32, i32
  }
  func.func @transform_1(%arg0: i32) -> (i32, i32) {
    %c0_i32 = arith.constant 0 : i32
    %c0_i32_0 = arith.constant 0 : i32
    %c0_i32_1 = arith.constant 0 : i32
    return %c0_i32, %c0_i32_0 : i32, i32
  }
  func.func @transform_2(%arg0: i32) -> (i32, i32) {
    %c0_i32 = arith.constant 0 : i32
    %c0_i32_0 = arith.constant 0 : i32
    %c0_i32_1 = arith.constant 0 : i32
    return %c0_i32, %c0_i32_0 : i32, i32
  }
  func.func @transform_3(%arg0: i32) -> (i32, i32) {
    %c0_i32 = arith.constant 0 : i32
    %c0_i32_0 = arith.constant 0 : i32
    return %arg0, %c0_i32 : i32, i32
  }
}

module attributes {stable_mosaic.version = 11 : i64} {
  func.func @bn_gemm_fused_kernel(%arg0: i32, %arg1: memref<512x128xbf16, #tpu.memory_space<vmem>>, %arg2: memref<128x128xbf16, #tpu.memory_space<vmem>>, %arg3: memref<1x128xf32, #tpu.memory_space<vmem>>, %arg4: memref<1x128xf32, #tpu.memory_space<vmem>>, %arg5: memref<512x128xbf16, #tpu.memory_space<vmem>>, %arg6: memref<512x128xf32, #tpu.memory_space<vmem>>) attributes {dimension_semantics = [#tpu.dimension_semantics<arbitrary>], iteration_bounds = array<i64: 1>, scalar_prefetch = 0 : i64, scratch_operands = 1 : i64, tpu.core_type = #tpu.core_type<tc>, window_params = [{transform_indices = @transform_0, window_bounds = array<i64: 512, 128>}, {transform_indices = @transform_1, window_bounds = array<i64: 128, 128>}, {pipeline_mode = #tpu.pipeline_mode<synchronous>, transform_indices = @transform_2, window_bounds = array<i64: 1, 128>}, {pipeline_mode = #tpu.pipeline_mode<synchronous>, transform_indices = @transform_3, window_bounds = array<i64: 1, 128>}, {pipeline_mode = #tpu.pipeline_mode<synchronous>, transform_indices = @transform_4, window_bounds = array<i64: 512, 128>}]} {
    %c0_i32 = arith.constant 0 : i32
    %0 = arith.cmpi eq, %arg0, %c0_i32 : i32
    %1 = arith.extui %0 : i1 to i32
    %c0_i32_0 = arith.constant 0 : i32
    %2 = arith.cmpi ne, %1, %c0_i32_0 : i32
    scf.if %2 {
      %cst_10 = arith.constant 0.000000e+00 : f32
      %12 = vector.broadcast %cst_10 : f32 to vector<512x128xf32>
      %c0_11 = arith.constant 0 : index
      %c0_12 = arith.constant 0 : index
      %13 = vector.load %arg6[%c0_11, %c0_12] : memref<512x128xf32, #tpu.memory_space<vmem>>, vector<512x128xf32>
      tpu.vector_store %arg6[%c0_11, %c0_12], %12 {strides = array<i32>} : memref<512x128xf32, #tpu.memory_space<vmem>>, vector<512x128xf32>,
    } else {
    }
    %c0 = arith.constant 0 : index
    %c0_1 = arith.constant 0 : index
    %3 = vector.load %arg6[%c0, %c0_1] : memref<512x128xf32, #tpu.memory_space<vmem>>, vector<512x128xf32>
    %c0_2 = arith.constant 0 : index
    %c0_3 = arith.constant 0 : index
    %4 = vector.load %arg1[%c0_2, %c0_3] : memref<512x128xbf16, #tpu.memory_space<vmem>>, vector<512x128xbf16>
    %c0_4 = arith.constant 0 : index
    %c0_5 = arith.constant 0 : index
    %5 = vector.load %arg2[%c0_4, %c0_5] : memref<128x128xbf16, #tpu.memory_space<vmem>>, vector<128x128xbf16>
    %cst = arith.constant dense<0.000000e+00> : vector<512x128xf32>
    %6 = tpu.matmul %4, %5, %cst {dimension_numbers = #tpu.dot_dimension_numbers<[1], [0], [0], [1], [0, 0, 1, 1], [], []>} : vector<512x128xbf16>, vector<128x128xbf16>, vector<512x128xf32> -> vector<512x128xf32>
    %7 = arith.addf %3, %6 : vector<512x128xf32>
    %c0_6 = arith.constant 0 : index
    %c0_7 = arith.constant 0 : index
    %8 = vector.load %arg6[%c0_6, %c0_7] : memref<512x128xf32, #tpu.memory_space<vmem>>, vector<512x128xf32>
    tpu.vector_store %arg6[%c0_6, %c0_7], %7 {strides = array<i32>} : memref<512x128xf32, #tpu.memory_space<vmem>>, vector<512x128xf32>,
    %c0_i32_8 = arith.constant 0 : i32
    %9 = arith.cmpi eq, %arg0, %c0_i32_8 : i32
    %10 = arith.extui %9 : i1 to i32
    %c0_i32_9 = arith.constant 0 : i32
    %11 = arith.cmpi ne, %10, %c0_i32_9 : i32
    scf.if %11 {
      %c0_10 = arith.constant 0 : index
      %c0_11 = arith.constant 0 : index
      %12 = vector.load %arg6[%c0_10, %c0_11] : memref<512x128xf32, #tpu.memory_space<vmem>>, vector<512x128xf32>
      %cst_12 = arith.constant dense<0.000000e+00> : vector<128xf32>
      %13 = vector.multi_reduction <add>, %12, %cst_12 [0] : vector<512x128xf32> to vector<128xf32>
      %14 = vector.shape_cast %13 : vector<128xf32> to vector<1x128xf32>
      %cst_13 = arith.constant 0.001953125 : f32
      %15 = vector.broadcast %cst_13 : f32 to vector<1x128xf32>
      %16 = arith.mulf %14, %15 : vector<1x128xf32>
      %17 = vector.broadcast %16 : vector<1x128xf32> to vector<512x128xf32>
      %18 = arith.subf %12, %17 : vector<512x128xf32>
      %19 = arith.mulf %18, %18 : vector<512x128xf32>
      %cst_14 = arith.constant dense<0.000000e+00> : vector<128xf32>
      %20 = vector.multi_reduction <add>, %19, %cst_14 [0] : vector<512x128xf32> to vector<128xf32>
      %21 = vector.shape_cast %20 : vector<128xf32> to vector<1x128xf32>
      %cst_15 = arith.constant 0.001953125 : f32
      %22 = vector.broadcast %cst_15 : f32 to vector<1x128xf32>
      %23 = arith.mulf %21, %22 : vector<1x128xf32>
      %c0_16 = arith.constant 0 : index
      %c0_17 = arith.constant 0 : index
      %24 = vector.load %arg3[%c0_16, %c0_17] : memref<1x128xf32, #tpu.memory_space<vmem>>, vector<1x128xf32>
      %cst_18 = arith.constant 9.99999974E-6 : f32
      %25 = vector.broadcast %cst_18 : f32 to vector<1x128xf32>
      %26 = arith.addf %23, %25 : vector<1x128xf32>
      %27 = math.rsqrt %26 : vector<1x128xf32>
      %28 = arith.mulf %24, %27 : vector<1x128xf32>
      %29 = vector.broadcast %28 : vector<1x128xf32> to vector<512x128xf32>
      %30 = arith.mulf %18, %29 : vector<512x128xf32>
      %c0_19 = arith.constant 0 : index
      %c0_20 = arith.constant 0 : index
      %31 = vector.load %arg4[%c0_19, %c0_20] : memref<1x128xf32, #tpu.memory_space<vmem>>, vector<1x128xf32>
      %32 = vector.broadcast %31 : vector<1x128xf32> to vector<512x128xf32>
      %33 = arith.addf %30, %32 : vector<512x128xf32>
      %cst_21 = arith.constant 0.000000e+00 : f32
      %34 = vector.broadcast %cst_21 : f32 to vector<512x128xf32>
      %35 = arith.cmpf oge, %33, %34 : vector<512x128xf32>
      %cst_22 = arith.constant 2.000000e-01 : f32
      %36 = vector.broadcast %cst_22 : f32 to vector<512x128xf32>
      %37 = arith.mulf %36, %33 : vector<512x128xf32>
      %38 = arith.select %35, %33, %37 : vector<512x128xi1>, vector<512x128xf32>
      %39 = arith.truncf %38 : vector<512x128xf32> to vector<512x128xbf16>
      %c0_23 = arith.constant 0 : index
      %c0_24 = arith.constant 0 : index
      %40 = vector.load %arg5[%c0_23, %c0_24] : memref<512x128xbf16, #tpu.memory_space<vmem>>, vector<512x128xbf16>
      tpu.vector_store %arg5[%c0_23, %c0_24], %39 {strides = array<i32>} : memref<512x128xbf16, #tpu.memory_space<vmem>>, vector<512x128xbf16>,
    } else {
    }
    return
  }
  func.func @transform_0(%arg0: i32) -> (i32, i32) {
    %c0_i32 = arith.constant 0 : i32
    %c0_i32_0 = arith.constant 0 : i32
    return %c0_i32, %arg0 : i32, i32
  }
  func.func @transform_1(%arg0: i32) -> (i32, i32) {
    %c0_i32 = arith.constant 0 : i32
    %c0_i32_0 = arith.constant 0 : i32
    return %arg0, %c0_i32 : i32, i32
  }
  func.func @transform_2(%arg0: i32) -> (i32, i32) {
    %c0_i32 = arith.constant 0 : i32
    %c0_i32_0 = arith.constant 0 : i32
    %c0_i32_1 = arith.constant 0 : i32
    return %c0_i32, %c0_i32_0 : i32, i32
  }
  func.func @transform_3(%arg0: i32) -> (i32, i32) {
    %c0_i32 = arith.constant 0 : i32
    %c0_i32_0 = arith.constant 0 : i32
    %c0_i32_1 = arith.constant 0 : i32
    return %c0_i32, %c0_i32_0 : i32, i32
  }
  func.func @transform_4(%arg0: i32) -> (i32, i32) {
    %c0_i32 = arith.constant 0 : i32
    %c0_i32_0 = arith.constant 0 : i32
    %c0_i32_1 = arith.constant 0 : i32
    return %c0_i32, %c0_i32_0 : i32, i32
  }
}

module attributes {stable_mosaic.version = 11 : i64} {
  func.func @bn_gemm_fused_kernel(%arg0: i32, %arg1: memref<128x128xbf16, #tpu.memory_space<vmem>>, %arg2: memref<128x128xbf16, #tpu.memory_space<vmem>>, %arg3: memref<1x128xf32, #tpu.memory_space<vmem>>, %arg4: memref<1x128xf32, #tpu.memory_space<vmem>>, %arg5: memref<128x128xbf16, #tpu.memory_space<vmem>>, %arg6: memref<128x128xf32, #tpu.memory_space<vmem>>) attributes {dimension_semantics = [#tpu.dimension_semantics<arbitrary>], iteration_bounds = array<i64: 2>, scalar_prefetch = 0 : i64, scratch_operands = 1 : i64, tpu.core_type = #tpu.core_type<tc>, window_params = [{transform_indices = @transform_0, window_bounds = array<i64: 128, 128>}, {transform_indices = @transform_1, window_bounds = array<i64: 128, 128>}, {pipeline_mode = #tpu.pipeline_mode<synchronous>, transform_indices = @transform_2, window_bounds = array<i64: 1, 128>}, {pipeline_mode = #tpu.pipeline_mode<synchronous>, transform_indices = @transform_3, window_bounds = array<i64: 1, 128>}, {pipeline_mode = #tpu.pipeline_mode<synchronous>, transform_indices = @transform_4, window_bounds = array<i64: 128, 128>}]} {
    %c0_i32 = arith.constant 0 : i32
    %0 = arith.cmpi eq, %arg0, %c0_i32 : i32
    %1 = arith.extui %0 : i1 to i32
    %c0_i32_0 = arith.constant 0 : i32
    %2 = arith.cmpi ne, %1, %c0_i32_0 : i32
    scf.if %2 {
      %cst_9 = arith.constant 0.000000e+00 : f32
      %12 = vector.broadcast %cst_9 : f32 to vector<128x128xf32>
      %c0_10 = arith.constant 0 : index
      %c0_11 = arith.constant 0 : index
      %13 = vector.load %arg6[%c0_10, %c0_11] : memref<128x128xf32, #tpu.memory_space<vmem>>, vector<128x128xf32>
      tpu.vector_store %arg6[%c0_10, %c0_11], %12 {strides = array<i32>} : memref<128x128xf32, #tpu.memory_space<vmem>>, vector<128x128xf32>,
    } else {
    }
    %c0 = arith.constant 0 : index
    %c0_1 = arith.constant 0 : index
    %3 = vector.load %arg6[%c0, %c0_1] : memref<128x128xf32, #tpu.memory_space<vmem>>, vector<128x128xf32>
    %c0_2 = arith.constant 0 : index
    %c0_3 = arith.constant 0 : index
    %4 = vector.load %arg1[%c0_2, %c0_3] : memref<128x128xbf16, #tpu.memory_space<vmem>>, vector<128x128xbf16>
    %c0_4 = arith.constant 0 : index
    %c0_5 = arith.constant 0 : index
    %5 = vector.load %arg2[%c0_4, %c0_5] : memref<128x128xbf16, #tpu.memory_space<vmem>>, vector<128x128xbf16>
    %cst = arith.constant dense<0.000000e+00> : vector<128x128xf32>
    %6 = tpu.matmul %4, %5, %cst {dimension_numbers = #tpu.dot_dimension_numbers<[1], [0], [0], [1], [0, 0, 1, 1], [], []>} : vector<128x128xbf16>, vector<128x128xbf16>, vector<128x128xf32> -> vector<128x128xf32>
    %7 = arith.addf %3, %6 : vector<128x128xf32>
    %c0_6 = arith.constant 0 : index
    %c0_7 = arith.constant 0 : index
    %8 = vector.load %arg6[%c0_6, %c0_7] : memref<128x128xf32, #tpu.memory_space<vmem>>, vector<128x128xf32>
    tpu.vector_store %arg6[%c0_6, %c0_7], %7 {strides = array<i32>} : memref<128x128xf32, #tpu.memory_space<vmem>>, vector<128x128xf32>,
    %c1_i32 = arith.constant 1 : i32
    %9 = arith.cmpi eq, %arg0, %c1_i32 : i32
    %10 = arith.extui %9 : i1 to i32
    %c0_i32_8 = arith.constant 0 : i32
    %11 = arith.cmpi ne, %10, %c0_i32_8 : i32
    scf.if %11 {
      %c0_9 = arith.constant 0 : index
      %c0_10 = arith.constant 0 : index
      %12 = vector.load %arg6[%c0_9, %c0_10] : memref<128x128xf32, #tpu.memory_space<vmem>>, vector<128x128xf32>
      %cst_11 = arith.constant dense<0.000000e+00> : vector<128xf32>
      %13 = vector.multi_reduction <add>, %12, %cst_11 [0] : vector<128x128xf32> to vector<128xf32>
      %14 = vector.shape_cast %13 : vector<128xf32> to vector<1x128xf32>
      %cst_12 = arith.constant 7.812500e-03 : f32
      %15 = vector.broadcast %cst_12 : f32 to vector<1x128xf32>
      %16 = arith.mulf %14, %15 : vector<1x128xf32>
      %17 = vector.broadcast %16 : vector<1x128xf32> to vector<128x128xf32>
      %18 = arith.subf %12, %17 : vector<128x128xf32>
      %19 = arith.mulf %18, %18 : vector<128x128xf32>
      %cst_13 = arith.constant dense<0.000000e+00> : vector<128xf32>
      %20 = vector.multi_reduction <add>, %19, %cst_13 [0] : vector<128x128xf32> to vector<128xf32>
      %21 = vector.shape_cast %20 : vector<128xf32> to vector<1x128xf32>
      %cst_14 = arith.constant 7.812500e-03 : f32
      %22 = vector.broadcast %cst_14 : f32 to vector<1x128xf32>
      %23 = arith.mulf %21, %22 : vector<1x128xf32>
      %c0_15 = arith.constant 0 : index
      %c0_16 = arith.constant 0 : index
      %24 = vector.load %arg3[%c0_15, %c0_16] : memref<1x128xf32, #tpu.memory_space<vmem>>, vector<1x128xf32>
      %cst_17 = arith.constant 9.99999974E-6 : f32
      %25 = vector.broadcast %cst_17 : f32 to vector<1x128xf32>
      %26 = arith.addf %23, %25 : vector<1x128xf32>
      %27 = math.rsqrt %26 : vector<1x128xf32>
      %28 = arith.mulf %24, %27 : vector<1x128xf32>
      %29 = vector.broadcast %28 : vector<1x128xf32> to vector<128x128xf32>
      %30 = arith.mulf %18, %29 : vector<128x128xf32>
      %c0_18 = arith.constant 0 : index
      %c0_19 = arith.constant 0 : index
      %31 = vector.load %arg4[%c0_18, %c0_19] : memref<1x128xf32, #tpu.memory_space<vmem>>, vector<1x128xf32>
      %32 = vector.broadcast %31 : vector<1x128xf32> to vector<128x128xf32>
      %33 = arith.addf %30, %32 : vector<128x128xf32>
      %cst_20 = arith.constant 0.000000e+00 : f32
      %34 = vector.broadcast %cst_20 : f32 to vector<128x128xf32>
      %35 = arith.cmpf oge, %33, %34 : vector<128x128xf32>
      %cst_21 = arith.constant 2.000000e-01 : f32
      %36 = vector.broadcast %cst_21 : f32 to vector<128x128xf32>
      %37 = arith.mulf %36, %33 : vector<128x128xf32>
      %38 = arith.select %35, %33, %37 : vector<128x128xi1>, vector<128x128xf32>
      %39 = arith.truncf %38 : vector<128x128xf32> to vector<128x128xbf16>
      %c0_22 = arith.constant 0 : index
      %c0_23 = arith.constant 0 : index
      %40 = vector.load %arg5[%c0_22, %c0_23] : memref<128x128xbf16, #tpu.memory_space<vmem>>, vector<128x128xbf16>
      tpu.vector_store %arg5[%c0_22, %c0_23], %39 {strides = array<i32>} : memref<128x128xbf16, #tpu.memory_space<vmem>>, vector<128x128xbf16>,
    } else {
    }
    return
  }
  func.func @transform_0(%arg0: i32) -> (i32, i32) {
    %c0_i32 = arith.constant 0 : i32
    %c0_i32_0 = arith.constant 0 : i32
    return %c0_i32, %arg0 : i32, i32
  }
  func.func @transform_1(%arg0: i32) -> (i32, i32) {
    %c0_i32 = arith.constant 0 : i32
    %c0_i32_0 = arith.constant 0 : i32
    return %arg0, %c0_i32 : i32, i32
  }
  func.func @transform_2(%arg0: i32) -> (i32, i32) {
    %c0_i32 = arith.constant 0 : i32
    %c0_i32_0 = arith.constant 0 : i32
    %c0_i32_1 = arith.constant 0 : i32
    return %c0_i32, %c0_i32_0 : i32, i32
  }
  func.func @transform_3(%arg0: i32) -> (i32, i32) {
    %c0_i32 = arith.constant 0 : i32
    %c0_i32_0 = arith.constant 0 : i32
    %c0_i32_1 = arith.constant 0 : i32
    return %c0_i32, %c0_i32_0 : i32, i32
  }
  func.func @transform_4(%arg0: i32) -> (i32, i32) {
    %c0_i32 = arith.constant 0 : i32
    %c0_i32_0 = arith.constant 0 : i32
    %c0_i32_1 = arith.constant 0 : i32
    return %c0_i32, %c0_i32_0 : i32, i32
  }
}

module attributes {stable_mosaic.version = 11 : i64} {
  func.func @bn_gemm_fused_kernel(%arg0: i32, %arg1: memref<32x128xbf16, #tpu.memory_space<vmem>>, %arg2: memref<128x128xbf16, #tpu.memory_space<vmem>>, %arg3: memref<1x128xf32, #tpu.memory_space<vmem>>, %arg4: memref<1x128xf32, #tpu.memory_space<vmem>>, %arg5: memref<32x128xbf16, #tpu.memory_space<vmem>>, %arg6: memref<32x128xf32, #tpu.memory_space<vmem>>) attributes {dimension_semantics = [#tpu.dimension_semantics<arbitrary>], iteration_bounds = array<i64: 4>, scalar_prefetch = 0 : i64, scratch_operands = 1 : i64, tpu.core_type = #tpu.core_type<tc>, window_params = [{transform_indices = @transform_0, window_bounds = array<i64: 32, 128>}, {transform_indices = @transform_1, window_bounds = array<i64: 128, 128>}, {pipeline_mode = #tpu.pipeline_mode<synchronous>, transform_indices = @transform_2, window_bounds = array<i64: 1, 128>}, {pipeline_mode = #tpu.pipeline_mode<synchronous>, transform_indices = @transform_3, window_bounds = array<i64: 1, 128>}, {pipeline_mode = #tpu.pipeline_mode<synchronous>, transform_indices = @transform_4, window_bounds = array<i64: 32, 128>}]} {
    %c0_i32 = arith.constant 0 : i32
    %0 = arith.cmpi eq, %arg0, %c0_i32 : i32
    %1 = arith.extui %0 : i1 to i32
    %c0_i32_0 = arith.constant 0 : i32
    %2 = arith.cmpi ne, %1, %c0_i32_0 : i32
    scf.if %2 {
      %cst_9 = arith.constant 0.000000e+00 : f32
      %12 = vector.broadcast %cst_9 : f32 to vector<32x128xf32>
      %c0_10 = arith.constant 0 : index
      %c0_11 = arith.constant 0 : index
      %13 = vector.load %arg6[%c0_10, %c0_11] : memref<32x128xf32, #tpu.memory_space<vmem>>, vector<32x128xf32>
      tpu.vector_store %arg6[%c0_10, %c0_11], %12 {strides = array<i32>} : memref<32x128xf32, #tpu.memory_space<vmem>>, vector<32x128xf32>,
    } else {
    }
    %c0 = arith.constant 0 : index
    %c0_1 = arith.constant 0 : index
    %3 = vector.load %arg6[%c0, %c0_1] : memref<32x128xf32, #tpu.memory_space<vmem>>, vector<32x128xf32>
    %c0_2 = arith.constant 0 : index
    %c0_3 = arith.constant 0 : index
    %4 = vector.load %arg1[%c0_2, %c0_3] : memref<32x128xbf16, #tpu.memory_space<vmem>>, vector<32x128xbf16>
    %c0_4 = arith.constant 0 : index
    %c0_5 = arith.constant 0 : index
    %5 = vector.load %arg2[%c0_4, %c0_5] : memref<128x128xbf16, #tpu.memory_space<vmem>>, vector<128x128xbf16>
    %cst = arith.constant dense<0.000000e+00> : vector<32x128xf32>
    %6 = tpu.matmul %4, %5, %cst {dimension_numbers = #tpu.dot_dimension_numbers<[1], [0], [0], [1], [0, 0, 1, 1], [], []>} : vector<32x128xbf16>, vector<128x128xbf16>, vector<32x128xf32> -> vector<32x128xf32>
    %7 = arith.addf %3, %6 : vector<32x128xf32>
    %c0_6 = arith.constant 0 : index
    %c0_7 = arith.constant 0 : index
    %8 = vector.load %arg6[%c0_6, %c0_7] : memref<32x128xf32, #tpu.memory_space<vmem>>, vector<32x128xf32>
    tpu.vector_store %arg6[%c0_6, %c0_7], %7 {strides = array<i32>} : memref<32x128xf32, #tpu.memory_space<vmem>>, vector<32x128xf32>,
    %c3_i32 = arith.constant 3 : i32
    %9 = arith.cmpi eq, %arg0, %c3_i32 : i32
    %10 = arith.extui %9 : i1 to i32
    %c0_i32_8 = arith.constant 0 : i32
    %11 = arith.cmpi ne, %10, %c0_i32_8 : i32
    scf.if %11 {
      %c0_9 = arith.constant 0 : index
      %c0_10 = arith.constant 0 : index
      %12 = vector.load %arg6[%c0_9, %c0_10] : memref<32x128xf32, #tpu.memory_space<vmem>>, vector<32x128xf32>
      %cst_11 = arith.constant dense<0.000000e+00> : vector<128xf32>
      %13 = vector.multi_reduction <add>, %12, %cst_11 [0] : vector<32x128xf32> to vector<128xf32>
      %14 = vector.shape_cast %13 : vector<128xf32> to vector<1x128xf32>
      %cst_12 = arith.constant 3.125000e-02 : f32
      %15 = vector.broadcast %cst_12 : f32 to vector<1x128xf32>
      %16 = arith.mulf %14, %15 : vector<1x128xf32>
      %17 = vector.broadcast %16 : vector<1x128xf32> to vector<32x128xf32>
      %18 = arith.subf %12, %17 : vector<32x128xf32>
      %19 = arith.mulf %18, %18 : vector<32x128xf32>
      %cst_13 = arith.constant dense<0.000000e+00> : vector<128xf32>
      %20 = vector.multi_reduction <add>, %19, %cst_13 [0] : vector<32x128xf32> to vector<128xf32>
      %21 = vector.shape_cast %20 : vector<128xf32> to vector<1x128xf32>
      %cst_14 = arith.constant 3.125000e-02 : f32
      %22 = vector.broadcast %cst_14 : f32 to vector<1x128xf32>
      %23 = arith.mulf %21, %22 : vector<1x128xf32>
      %c0_15 = arith.constant 0 : index
      %c0_16 = arith.constant 0 : index
      %24 = vector.load %arg3[%c0_15, %c0_16] : memref<1x128xf32, #tpu.memory_space<vmem>>, vector<1x128xf32>
      %cst_17 = arith.constant 9.99999974E-6 : f32
      %25 = vector.broadcast %cst_17 : f32 to vector<1x128xf32>
      %26 = arith.addf %23, %25 : vector<1x128xf32>
      %27 = math.rsqrt %26 : vector<1x128xf32>
      %28 = arith.mulf %24, %27 : vector<1x128xf32>
      %29 = vector.broadcast %28 : vector<1x128xf32> to vector<32x128xf32>
      %30 = arith.mulf %18, %29 : vector<32x128xf32>
      %c0_18 = arith.constant 0 : index
      %c0_19 = arith.constant 0 : index
      %31 = vector.load %arg4[%c0_18, %c0_19] : memref<1x128xf32, #tpu.memory_space<vmem>>, vector<1x128xf32>
      %32 = vector.broadcast %31 : vector<1x128xf32> to vector<32x128xf32>
      %33 = arith.addf %30, %32 : vector<32x128xf32>
      %cst_20 = arith.constant 0.000000e+00 : f32
      %34 = vector.broadcast %cst_20 : f32 to vector<32x128xf32>
      %35 = arith.cmpf oge, %33, %34 : vector<32x128xf32>
      %cst_21 = arith.constant 2.000000e-01 : f32
      %36 = vector.broadcast %cst_21 : f32 to vector<32x128xf32>
      %37 = arith.mulf %36, %33 : vector<32x128xf32>
      %38 = arith.select %35, %33, %37 : vector<32x128xi1>, vector<32x128xf32>
      %39 = arith.truncf %38 : vector<32x128xf32> to vector<32x128xbf16>
      %c0_22 = arith.constant 0 : index
      %c0_23 = arith.constant 0 : index
      %40 = vector.load %arg5[%c0_22, %c0_23] : memref<32x128xbf16, #tpu.memory_space<vmem>>, vector<32x128xbf16>
      tpu.vector_store %arg5[%c0_22, %c0_23], %39 {strides = array<i32>} : memref<32x128xbf16, #tpu.memory_space<vmem>>, vector<32x128xbf16>,
    } else {
    }
    return
  }
  func.func @transform_0(%arg0: i32) -> (i32, i32) {
    %c0_i32 = arith.constant 0 : i32
    %c0_i32_0 = arith.constant 0 : i32
    return %c0_i32, %arg0 : i32, i32
  }
  func.func @transform_1(%arg0: i32) -> (i32, i32) {
    %c0_i32 = arith.constant 0 : i32
    %c0_i32_0 = arith.constant 0 : i32
    return %arg0, %c0_i32 : i32, i32
  }
  func.func @transform_2(%arg0: i32) -> (i32, i32) {
    %c0_i32 = arith.constant 0 : i32
    %c0_i32_0 = arith.constant 0 : i32
    %c0_i32_1 = arith.constant 0 : i32
    return %c0_i32, %c0_i32_0 : i32, i32
  }
  func.func @transform_3(%arg0: i32) -> (i32, i32) {
    %c0_i32 = arith.constant 0 : i32
    %c0_i32_0 = arith.constant 0 : i32
    %c0_i32_1 = arith.constant 0 : i32
    return %c0_i32, %c0_i32_0 : i32, i32
  }
  func.func @transform_4(%arg0: i32) -> (i32, i32) {
    %c0_i32 = arith.constant 0 : i32
    %c0_i32_0 = arith.constant 0 : i32
    %c0_i32_1 = arith.constant 0 : i32
    return %c0_i32, %c0_i32_0 : i32, i32
  }
}

</mosaic_0001>

<llo_original>
// kernel: discriminator_forward.4
$region0: #{discriminator_forward.4}
  #allocation0 [shape = 'u32[]', space=smem, size = 0x4, offset = 0x4, fixed_abs, tag = 'smem constant byte address 0x4 - core index']
  #allocation1 [shape = 'u32[144,128]{1,0:T(1,128)}', space=vmem, size = 0x12000, scoped, tag = 'internal scratch']
  %s0 = inlined_call_operand.vmem [shape: bf16[2048,128], index: 0, kind: input, shape index: {}]
  %s1 = inlined_call_operand.vmem [shape: bf16[128,128], index: 1, kind: input, shape index: {}]
  %s2 = inlined_call_operand.vmem [shape: f32[1,128], index: 2, kind: input, shape index: {}]
  %s3 = inlined_call_operand.vmem [shape: bf16[2048,128], index: 3, kind: output, shape index: {}]
  %s4 = sld [smem:[#allocation0]]
  $region22: #{discriminator_forward.4} parent=0
    _
  %s6 = ssub.s32 1, %s4
  %s7 = scalar_select 0, %s6, %s4
  // Predicated region
  $region2: #{discriminator_forward.4} parent=0 // pred_check
    _
  $region3: #{discriminator_forward.4} parent=0 // pred_check_branch
    %9 = sbr.rel (0) target = $region5
  $region4: #{discriminator_forward.4} parent=0 // pred_region
    _
  $region5: #{discriminator_forward.4} parent=0 // pred_fallthru
    _
  // Predicated region
  $region6: #{discriminator_forward.4} parent=0 // pred_check
    _
  $region7: #{discriminator_forward.4} parent=0 // pred_check_branch
    %11 = sbr.rel (0) target = $region9
  $region8: #{discriminator_forward.4} parent=0 // pred_region
    _
  $region9: #{discriminator_forward.4} parent=0 // pred_fallthru
    _
  // Predicated region
  $region10: #{discriminator_forward.4} parent=0 // pred_check
    _
  $region11: #{discriminator_forward.4} parent=0 // pred_check_branch
    %13 = sbr.rel (0) target = $region13
  $region12: #{discriminator_forward.4} parent=0 // pred_region
    _
  $region13: #{discriminator_forward.4} parent=0 // pred_fallthru
    _
  %v15 = vld [vmem:[%s0] sm:$0xf]
  %v16 = vld [vmem:[%s0 + $0x4] sm:$0xf]
  %v17 = vld [vmem:[%s0 + $0x8] sm:$0xf]
  %v18 = vld [vmem:[%s0 + $0xc] sm:$0xf]
  %v19 = vld [vmem:[%s0 + $0x10] sm:$0xf]
  %v20 = vld [vmem:[%s0 + $0x14] sm:$0xf]
  %v21 = vld [vmem:[%s0 + $0x18] sm:$0xf]
  %v22 = vld [vmem:[%s0 + $0x1c] sm:$0xf]
  %v23 = vld [vmem:[%s0 + $0x20] sm:$0xf]
  %v24 = vld [vmem:[%s0 + $0x24] sm:$0xf]
  %v25 = vld [vmem:[%s0 + $0x28] sm:$0xf]
  %v26 = vld [vmem:[%s0 + $0x2c] sm:$0xf]
  %v27 = vld [vmem:[%s0 + $0x30] sm:$0xf]
  %v28 = vld [vmem:[%s0 + $0x34] sm:$0xf]
  %v29 = vld [vmem:[%s0 + $0x38] sm:$0xf]
  %v30 = vld [vmem:[%s0 + $0x3c] sm:$0xf]
  %v31 = vld [vmem:[%s0 + $0x40] sm:$0xf]
  %v32 = vld [vmem:[%s0 + $0x44] sm:$0xf]
  %v33 = vld [vmem:[%s0 + $0x48] sm:$0xf]
  %v34 = vld [vmem:[%s0 + $0x4c] sm:$0xf]
  %v35 = vld [vmem:[%s0 + $0x50] sm:$0xf]
  %v36 = vld [vmem:[%s0 + $0x54] sm:$0xf]
  %v37 = vld [vmem:[%s0 + $0x58] sm:$0xf]
  %v38 = vld [vmem:[%s0 + $0x5c] sm:$0xf]
  %v39 = vld [vmem:[%s0 + $0x60] sm:$0xf]
  %v40 = vld [vmem:[%s0 + $0x64] sm:$0xf]
  %v41 = vld [vmem:[%s0 + $0x68] sm:$0xf]
  %v42 = vld [vmem:[%s0 + $0x6c] sm:$0xf]
  %v43 = vld [vmem:[%s0 + $0x70] sm:$0xf]
  %v44 = vld [vmem:[%s0 + $0x74] sm:$0xf]
  %v45 = vld [vmem:[%s0 + $0x78] sm:$0xf]
  %v46 = vld [vmem:[%s0 + $0x7c] sm:$0xf]
  %v47 = vld [vmem:[%s0 + $0x80] sm:$0xf]
  %v48 = vld [vmem:[%s0 + $0x84] sm:$0xf]
  %v49 = vld [vmem:[%s0 + $0x88] sm:$0xf]
  %v50 = vld [vmem:[%s0 + $0x8c] sm:$0xf]
  %v51 = vld [vmem:[%s0 + $0x90] sm:$0xf]
  %v52 = vld [vmem:[%s0 + $0x94] sm:$0xf]
  %v53 = vld [vmem:[%s0 + $0x98] sm:$0xf]
  %v54 = vld [vmem:[%s0 + $0x9c] sm:$0xf]
  %v55 = vld [vmem:[%s0 + $0xa0] sm:$0xf]
  %v56 = vld [vmem:[%s0 + $0xa4] sm:$0xf]
  %v57 = vld [vmem:[%s0 + $0xa8] sm:$0xf]
  %v58 = vld [vmem:[%s0 + $0xac] sm:$0xf]
  %v59 = vld [vmem:[%s0 + $0xb0] sm:$0xf]
  %v60 = vld [vmem:[%s0 + $0xb4] sm:$0xf]
  %v61 = vld [vmem:[%s0 + $0xb8] sm:$0xf]
  %v62 = vld [vmem:[%s0 + $0xbc] sm:$0xf]
  %v63 = vld [vmem:[%s0 + $0xc0] sm:$0xf]
  %v64 = vld [vmem:[%s0 + $0xc4] sm:$0xf]
  %v65 = vld [vmem:[%s0 + $0xc8] sm:$0xf]
  %v66 = vld [vmem:[%s0 + $0xcc] sm:$0xf]
  %v67 = vld [vmem:[%s0 + $0xd0] sm:$0xf]
  %v68 = vld [vmem:[%s0 + $0xd4] sm:$0xf]
  %v69 = vld [vmem:[%s0 + $0xd8] sm:$0xf]
  %v70 = vld [vmem:[%s0 + $0xdc] sm:$0xf]
  %v71 = vld [vmem:[%s0 + $0xe0] sm:$0xf]
  %v72 = vld [vmem:[%s0 + $0xe4] sm:$0xf]
  %v73 = vld [vmem:[%s0 + $0xe8] sm:$0xf]
  %v74 = vld [vmem:[%s0 + $0xec] sm:$0xf]
  %v75 = vld [vmem:[%s0 + $0xf0] sm:$0xf]
  %v76 = vld [vmem:[%s0 + $0xf4] sm:$0xf]
  %v77 = vld [vmem:[%s0 + $0xf8] sm:$0xf]
  %v78 = vld [vmem:[%s0 + $0xfc] sm:$0xf]
  %v79 = vld [vmem:[%s0 + $0x100] sm:$0xf]
  %v80 = vld [vmem:[%s0 + $0x104] sm:$0xf]
  %v81 = vld [vmem:[%s0 + $0x108] sm:$0xf]
  %v82 = vld [vmem:[%s0 + $0x10c] sm:$0xf]
  %v83 = vld [vmem:[%s0 + $0x110] sm:$0xf]
  %v84 = vld [vmem:[%s0 + $0x114] sm:$0xf]
  %v85 = vld [vmem:[%s0 + $0x118] sm:$0xf]
  %v86 = vld [vmem:[%s0 + $0x11c] sm:$0xf]
  %v87 = vld [vmem:[%s0 + $0x120] sm:$0xf]
  %v88 = vld [vmem:[%s0 + $0x124] sm:$0xf]
  %v89 = vld [vmem:[%s0 + $0x128] sm:$0xf]
  %v90 = vld [vmem:[%s0 + $0x12c] sm:$0xf]
  %v91 = vld [vmem:[%s0 + $0x130] sm:$0xf]
  %v92 = vld [vmem:[%s0 + $0x134] sm:$0xf]
  %v93 = vld [vmem:[%s0 + $0x138] sm:$0xf]
  %v94 = vld [vmem:[%s0 + $0x13c] sm:$0xf]
  %v95 = vld [vmem:[%s0 + $0x140] sm:$0xf]
  %v96 = vld [vmem:[%s0 + $0x144] sm:$0xf]
  %v97 = vld [vmem:[%s0 + $0x148] sm:$0xf]
  %v98 = vld [vmem:[%s0 + $0x14c] sm:$0xf]
  %v99 = vld [vmem:[%s0 + $0x150] sm:$0xf]
  %v100 = vld [vmem:[%s0 + $0x154] sm:$0xf]
  %v101 = vld [vmem:[%s0 + $0x158] sm:$0xf]
  %v102 = vld [vmem:[%s0 + $0x15c] sm:$0xf]
  %v103 = vld [vmem:[%s0 + $0x160] sm:$0xf]
  %v104 = vld [vmem:[%s0 + $0x164] sm:$0xf]
  %v105 = vld [vmem:[%s0 + $0x168] sm:$0xf]
  %v106 = vld [vmem:[%s0 + $0x16c] sm:$0xf]
  %v107 = vld [vmem:[%s0 + $0x170] sm:$0xf]
  %v108 = vld [vmem:[%s0 + $0x174] sm:$0xf]
  %v109 = vld [vmem:[%s0 + $0x178] sm:$0xf]
  %v110 = vld [vmem:[%s0 + $0x17c] sm:$0xf]
  %v111 = vld [vmem:[%s0 + $0x180] sm:$0xf]
  %v112 = vld [vmem:[%s0 + $0x184] sm:$0xf]
  %v113 = vld [vmem:[%s0 + $0x188] sm:$0xf]
  %v114 = vld [vmem:[%s0 + $0x18c] sm:$0xf]
  %v115 = vld [vmem:[%s0 + $0x190] sm:$0xf]
  %v116 = vld [vmem:[%s0 + $0x194] sm:$0xf]
  %v117 = vld [vmem:[%s0 + $0x198] sm:$0xf]
  %v118 = vld [vmem:[%s0 + $0x19c] sm:$0xf]
  %v119 = vld [vmem:[%s0 + $0x1a0] sm:$0xf]
  %v120 = vld [vmem:[%s0 + $0x1a4] sm:$0xf]
  %v121 = vld [vmem:[%s0 + $0x1a8] sm:$0xf]
  %v122 = vld [vmem:[%s0 + $0x1ac] sm:$0xf]
  %v123 = vld [vmem:[%s0 + $0x1b0] sm:$0xf]
  %v124 = vld [vmem:[%s0 + $0x1b4] sm:$0xf]
  %v125 = vld [vmem:[%s0 + $0x1b8] sm:$0xf]
  %v126 = vld [vmem:[%s0 + $0x1bc] sm:$0xf]
  %v127 = vld [vmem:[%s0 + $0x1c0] sm:$0xf]
  %v128 = vld [vmem:[%s0 + $0x1c4] sm:$0xf]
  %v129 = vld [vmem:[%s0 + $0x1c8] sm:$0xf]
  %v130 = vld [vmem:[%s0 + $0x1cc] sm:$0xf]
  %v131 = vld [vmem:[%s0 + $0x1d0] sm:$0xf]
  %v132 = vld [vmem:[%s0 + $0x1d4] sm:$0xf]
  %v133 = vld [vmem:[%s0 + $0x1d8] sm:$0xf]
  %v134 = vld [vmem:[%s0 + $0x1dc] sm:$0xf]
  %v135 = vld [vmem:[%s0 + $0x1e0] sm:$0xf]
  %v136 = vld [vmem:[%s0 + $0x1e4] sm:$0xf]
  %v137 = vld [vmem:[%s0 + $0x1e8] sm:$0xf]
  %v138 = vld [vmem:[%s0 + $0x1ec] sm:$0xf]
  %v139 = vld [vmem:[%s0 + $0x1f0] sm:$0xf]
  %v140 = vld [vmem:[%s0 + $0x1f4] sm:$0xf]
  %v141 = vld [vmem:[%s0 + $0x1f8] sm:$0xf]
  %v142 = vld [vmem:[%s0 + $0x1fc] sm:$0xf]
  %v143 = vld [vmem:[%s0 + $0x200] sm:$0xf]
  %v144 = vld [vmem:[%s0 + $0x204] sm:$0xf]
  %v145 = vld [vmem:[%s0 + $0x208] sm:$0xf]
  %v146 = vld [vmem:[%s0 + $0x20c] sm:$0xf]
  %v147 = vld [vmem:[%s0 + $0x210] sm:$0xf]
  %v148 = vld [vmem:[%s0 + $0x214] sm:$0xf]
  %v149 = vld [vmem:[%s0 + $0x218] sm:$0xf]
  %v150 = vld [vmem:[%s0 + $0x21c] sm:$0xf]
  %v151 = vld [vmem:[%s0 + $0x220] sm:$0xf]
  %v152 = vld [vmem:[%s0 + $0x224] sm:$0xf]
  %v153 = vld [vmem:[%s0 + $0x228] sm:$0xf]
  %v154 = vld [vmem:[%s0 + $0x22c] sm:$0xf]
  %v155 = vld [vmem:[%s0 + $0x230] sm:$0xf]
  %v156 = vld [vmem:[%s0 + $0x234] sm:$0xf]
  %v157 = vld [vmem:[%s0 + $0x238] sm:$0xf]
  %v158 = vld [vmem:[%s0 + $0x23c] sm:$0xf]
  %v159 = vld [vmem:[%s0 + $0x240] sm:$0xf]
  %v160 = vld [vmem:[%s0 + $0x244] sm:$0xf]
  %v161 = vld [vmem:[%s0 + $0x248] sm:$0xf]
  %v162 = vld [vmem:[%s0 + $0x24c] sm:$0xf]
  %v163 = vld [vmem:[%s0 + $0x250] sm:$0xf]
  %v164 = vld [vmem:[%s0 + $0x254] sm:$0xf]
  %v165 = vld [vmem:[%s0 + $0x258] sm:$0xf]
  %v166 = vld [vmem:[%s0 + $0x25c] sm:$0xf]
  %v167 = vld [vmem:[%s0 + $0x260] sm:$0xf]
  %v168 = vld [vmem:[%s0 + $0x264] sm:$0xf]
  %v169 = vld [vmem:[%s0 + $0x268] sm:$0xf]
  %v170 = vld [vmem:[%s0 + $0x26c] sm:$0xf]
  %v171 = vld [vmem:[%s0 + $0x270] sm:$0xf]
  %v172 = vld [vmem:[%s0 + $0x274] sm:$0xf]
  %v173 = vld [vmem:[%s0 + $0x278] sm:$0xf]
  %v174 = vld [vmem:[%s0 + $0x27c] sm:$0xf]
  %v175 = vld [vmem:[%s0 + $0x280] sm:$0xf]
  %v176 = vld [vmem:[%s0 + $0x284] sm:$0xf]
  %v177 = vld [vmem:[%s0 + $0x288] sm:$0xf]
  %v178 = vld [vmem:[%s0 + $0x28c] sm:$0xf]
  %v179 = vld [vmem:[%s0 + $0x290] sm:$0xf]
  %v180 = vld [vmem:[%s0 + $0x294] sm:$0xf]
  %v181 = vld [vmem:[%s0 + $0x298] sm:$0xf]
  %v182 = vld [vmem:[%s0 + $0x29c] sm:$0xf]
  %v183 = vld [vmem:[%s0 + $0x2a0] sm:$0xf]
  %v184 = vld [vmem:[%s0 + $0x2a4] sm:$0xf]
  %v185 = vld [vmem:[%s0 + $0x2a8] sm:$0xf]
  %v186 = vld [vmem:[%s0 + $0x2ac] sm:$0xf]
  %v187 = vld [vmem:[%s0 + $0x2b0] sm:$0xf]
  %v188 = vld [vmem:[%s0 + $0x2b4] sm:$0xf]
  %v189 = vld [vmem:[%s0 + $0x2b8] sm:$0xf]
  %v190 = vld [vmem:[%s0 + $0x2bc] sm:$0xf]
  %v191 = vld [vmem:[%s0 + $0x2c0] sm:$0xf]
  %v192 = vld [vmem:[%s0 + $0x2c4] sm:$0xf]
  %v193 = vld [vmem:[%s0 + $0x2c8] sm:$0xf]
  %v194 = vld [vmem:[%s0 + $0x2cc] sm:$0xf]
  %v195 = vld [vmem:[%s0 + $0x2d0] sm:$0xf]
  %v196 = vld [vmem:[%s0 + $0x2d4] sm:$0xf]
  %v197 = vld [vmem:[%s0 + $0x2d8] sm:$0xf]
  %v198 = vld [vmem:[%s0 + $0x2dc] sm:$0xf]
  %v199 = vld [vmem:[%s0 + $0x2e0] sm:$0xf]
  %v200 = vld [vmem:[%s0 + $0x2e4] sm:$0xf]
  %v201 = vld [vmem:[%s0 + $0x2e8] sm:$0xf]
  %v202 = vld [vmem:[%s0 + $0x2ec] sm:$0xf]
  %v203 = vld [vmem:[%s0 + $0x2f0] sm:$0xf]
  %v204 = vld [vmem:[%s0 + $0x2f4] sm:$0xf]
  %v205 = vld [vmem:[%s0 + $0x2f8] sm:$0xf]
  %v206 = vld [vmem:[%s0 + $0x2fc] sm:$0xf]
  %v207 = vld [vmem:[%s0 + $0x300] sm:$0xf]
  %v208 = vld [vmem:[%s0 + $0x304] sm:$0xf]
  %v209 = vld [vmem:[%s0 + $0x308] sm:$0xf]
  %v210 = vld [vmem:[%s0 + $0x30c] sm:$0xf]
  %v211 = vld [vmem:[%s0 + $0x310] sm:$0xf]
  %v212 = vld [vmem:[%s0 + $0x314] sm:$0xf]
  %v213 = vld [vmem:[%s0 + $0x318] sm:$0xf]
  %v214 = vld [vmem:[%s0 + $0x31c] sm:$0xf]
  %v215 = vld [vmem:[%s0 + $0x320] sm:$0xf]
  %v216 = vld [vmem:[%s0 + $0x324] sm:$0xf]
  %v217 = vld [vmem:[%s0 + $0x328] sm:$0xf]
  %v218 = vld [vmem:[%s0 + $0x32c] sm:$0xf]
  %v219 = vld [vmem:[%s0 + $0x330] sm:$0xf]
  %v220 = vld [vmem:[%s0 + $0x334] sm:$0xf]
  %v221 = vld [vmem:[%s0 + $0x338] sm:$0xf]
  %v222 = vld [vmem:[%s0 + $0x33c] sm:$0xf]
  %v223 = vld [vmem:[%s0 + $0x340] sm:$0xf]
  %v224 = vld [vmem:[%s0 + $0x344] sm:$0xf]
  %v225 = vld [vmem:[%s0 + $0x348] sm:$0xf]
  %v226 = vld [vmem:[%s0 + $0x34c] sm:$0xf]
  %v227 = vld [vmem:[%s0 + $0x350] sm:$0xf]
  %v228 = vld [vmem:[%s0 + $0x354] sm:$0xf]
  %v229 = vld [vmem:[%s0 + $0x358] sm:$0xf]
  %v230 = vld [vmem:[%s0 + $0x35c] sm:$0xf]
  %v231 = vld [vmem:[%s0 + $0x360] sm:$0xf]
  %v232 = vld [vmem:[%s0 + $0x364] sm:$0xf]
  %v233 = vld [vmem:[%s0 + $0x368] sm:$0xf]
  %v234 = vld [vmem:[%s0 + $0x36c] sm:$0xf]
  %v235 = vld [vmem:[%s0 + $0x370] sm:$0xf]
  %v236 = vld [vmem:[%s0 + $0x374] sm:$0xf]
  %v237 = vld [vmem:[%s0 + $0x378] sm:$0xf]
  %v238 = vld [vmem:[%s0 + $0x37c] sm:$0xf]
  %v239 = vld [vmem:[%s0 + $0x380] sm:$0xf]
  %v240 = vld [vmem:[%s0 + $0x384] sm:$0xf]
  %v241 = vld [vmem:[%s0 + $0x388] sm:$0xf]
  %v242 = vld [vmem:[%s0 + $0x38c] sm:$0xf]
  %v243 = vld [vmem:[%s0 + $0x390] sm:$0xf]
  %v244 = vld [vmem:[%s0 + $0x394] sm:$0xf]
  %v245 = vld [vmem:[%s0 + $0x398] sm:$0xf]
  %v246 = vld [vmem:[%s0 + $0x39c] sm:$0xf]
  %v247 = vld [vmem:[%s0 + $0x3a0] sm:$0xf]
  %v248 = vld [vmem:[%s0 + $0x3a4] sm:$0xf]
  %v249 = vld [vmem:[%s0 + $0x3a8] sm:$0xf]
  %v250 = vld [vmem:[%s0 + $0x3ac] sm:$0xf]
  %v251 = vld [vmem:[%s0 + $0x3b0] sm:$0xf]
  %v252 = vld [vmem:[%s0 + $0x3b4] sm:$0xf]
  %v253 = vld [vmem:[%s0 + $0x3b8] sm:$0xf]
  %v254 = vld [vmem:[%s0 + $0x3bc] sm:$0xf]
  %v255 = vld [vmem:[%s0 + $0x3c0] sm:$0xf]
  %v256 = vld [vmem:[%s0 + $0x3c4] sm:$0xf]
  %v257 = vld [vmem:[%s0 + $0x3c8] sm:$0xf]
  %v258 = vld [vmem:[%s0 + $0x3cc] sm:$0xf]
  %v259 = vld [vmem:[%s0 + $0x3d0] sm:$0xf]
  %v260 = vld [vmem:[%s0 + $0x3d4] sm:$0xf]
  %v261 = vld [vmem:[%s0 + $0x3d8] sm:$0xf]
  %v262 = vld [vmem:[%s0 + $0x3dc] sm:$0xf]
  %v263 = vld [vmem:[%s0 + $0x3e0] sm:$0xf]
  %v264 = vld [vmem:[%s0 + $0x3e4] sm:$0xf]
  %v265 = vld [vmem:[%s0 + $0x3e8] sm:$0xf]
  %v266 = vld [vmem:[%s0 + $0x3ec] sm:$0xf]
  %v267 = vld [vmem:[%s0 + $0x3f0] sm:$0xf]
  %v268 = vld [vmem:[%s0 + $0x3f4] sm:$0xf]
  %v269 = vld [vmem:[%s0 + $0x3f8] sm:$0xf]
  %v270 = vld [vmem:[%s0 + $0x3fc] sm:$0xf]
  %v271 = vld [vmem:[%s1] sm:$0xf]
  %v272 = vld [vmem:[%s1 + $0x4] sm:$0xf]
  %v273 = vld [vmem:[%s1 + $0x8] sm:$0xf]
  %v274 = vld [vmem:[%s1 + $0xc] sm:$0xf]
  %v275 = vld [vmem:[%s1 + $0x10] sm:$0xf]
  %v276 = vld [vmem:[%s1 + $0x14] sm:$0xf]
  %v277 = vld [vmem:[%s1 + $0x18] sm:$0xf]
  %v278 = vld [vmem:[%s1 + $0x1c] sm:$0xf]
  %v279 = vld [vmem:[%s1 + $0x20] sm:$0xf]
  %v280 = vld [vmem:[%s1 + $0x24] sm:$0xf]
  %v281 = vld [vmem:[%s1 + $0x28] sm:$0xf]
  %v282 = vld [vmem:[%s1 + $0x2c] sm:$0xf]
  %v283 = vld [vmem:[%s1 + $0x30] sm:$0xf]
  %v284 = vld [vmem:[%s1 + $0x34] sm:$0xf]
  %v285 = vld [vmem:[%s1 + $0x38] sm:$0xf]
  %v286 = vld [vmem:[%s1 + $0x3c] sm:$0xf]
  %v287 = vld [vmem:[%s2] sm:$0x1]
  %v289 = vlaneseq
  %v290 = vshrl.u32 %v289, 7
  %v291 = vsub.s32 0, %v290
  %v292 = vrot.slane %v287, %v291
  %v550 = vunpack.c.l.b16 %v15
  %v551 = vunpack.c.l.b16 %v16
  %v552 = vunpack.c.l.b16 %v17
  %v553 = vunpack.c.l.b16 %v18
  %v554 = vunpack.c.l.b16 %v19
  %v555 = vunpack.c.l.b16 %v20
  %v556 = vunpack.c.l.b16 %v21
  %v557 = vunpack.c.l.b16 %v22
  %v558 = vunpack.c.l.b16 %v23
  %v559 = vunpack.c.l.b16 %v24
  %v560 = vunpack.c.l.b16 %v25
  %v561 = vunpack.c.l.b16 %v26
  %v562 = vunpack.c.l.b16 %v27
  %v563 = vunpack.c.l.b16 %v28
  %v564 = vunpack.c.l.b16 %v29
  %v565 = vunpack.c.l.b16 %v30
  %v566 = vunpack.c.l.b16 %v31
  %v567 = vunpack.c.l.b16 %v32
  %v568 = vunpack.c.l.b16 %v33
  %v569 = vunpack.c.l.b16 %v34
  %v570 = vunpack.c.l.b16 %v35
  %v571 = vunpack.c.l.b16 %v36
  %v572 = vunpack.c.l.b16 %v37
  %v573 = vunpack.c.l.b16 %v38
  %v574 = vunpack.c.l.b16 %v39
  %v575 = vunpack.c.l.b16 %v40
  %v576 = vunpack.c.l.b16 %v41
  %v577 = vunpack.c.l.b16 %v42
  %v578 = vunpack.c.l.b16 %v43
  %v579 = vunpack.c.l.b16 %v44
  %v580 = vunpack.c.l.b16 %v45
  %v581 = vunpack.c.l.b16 %v46
  %v582 = vunpack.c.l.b16 %v47
  %v583 = vunpack.c.l.b16 %v48
  %v584 = vunpack.c.l.b16 %v49
  %v585 = vunpack.c.l.b16 %v50
  %v586 = vunpack.c.l.b16 %v51
  %v587 = vunpack.c.l.b16 %v52
  %v588 = vunpack.c.l.b16 %v53
  %v589 = vunpack.c.l.b16 %v54
  %v590 = vunpack.c.l.b16 %v55
  %v591 = vunpack.c.l.b16 %v56
  %v592 = vunpack.c.l.b16 %v57
  %v593 = vunpack.c.l.b16 %v58
  %v594 = vunpack.c.l.b16 %v59
  %v595 = vunpack.c.l.b16 %v60
  %v596 = vunpack.c.l.b16 %v61
  %v597 = vunpack.c.l.b16 %v62
  %v598 = vunpack.c.l.b16 %v63
  %v599 = vunpack.c.l.b16 %v64
  %v600 = vunpack.c.l.b16 %v65
  %v601 = vunpack.c.l.b16 %v66
  %v602 = vunpack.c.l.b16 %v67
  %v603 = vunpack.c.l.b16 %v68
  %v604 = vunpack.c.l.b16 %v69
  %v605 = vunpack.c.l.b16 %v70
  %v606 = vunpack.c.l.b16 %v71
  %v607 = vunpack.c.l.b16 %v72
  %v608 = vunpack.c.l.b16 %v73
  %v609 = vunpack.c.l.b16 %v74
  %v610 = vunpack.c.l.b16 %v75
  %v611 = vunpack.c.l.b16 %v76
  %v612 = vunpack.c.l.b16 %v77
  %v613 = vunpack.c.l.b16 %v78
  %v614 = vunpack.c.l.b16 %v79
  %v615 = vunpack.c.l.b16 %v80
  %v616 = vunpack.c.l.b16 %v81
  %v617 = vunpack.c.l.b16 %v82
  %v618 = vunpack.c.l.b16 %v83
  %v619 = vunpack.c.l.b16 %v84
  %v620 = vunpack.c.l.b16 %v85
  %v621 = vunpack.c.l.b16 %v86
  %v622 = vunpack.c.l.b16 %v87
  %v623 = vunpack.c.l.b16 %v88
  %v624 = vunpack.c.l.b16 %v89
  %v625 = vunpack.c.l.b16 %v90
  %v626 = vunpack.c.l.b16 %v91
  %v627 = vunpack.c.l.b16 %v92
  %v628 = vunpack.c.l.b16 %v93
  %v629 = vunpack.c.l.b16 %v94
  %v630 = vunpack.c.l.b16 %v95
  %v631 = vunpack.c.l.b16 %v96
  %v632 = vunpack.c.l.b16 %v97
  %v633 = vunpack.c.l.b16 %v98
  %v634 = vunpack.c.l.b16 %v99
  %v635 = vunpack.c.l.b16 %v100
  %v636 = vunpack.c.l.b16 %v101
  %v637 = vunpack.c.l.b16 %v102
  %v638 = vunpack.c.l.b16 %v103
  %v639 = vunpack.c.l.b16 %v104
  %v640 = vunpack.c.l.b16 %v105
  %v641 = vunpack.c.l.b16 %v106
  %v642 = vunpack.c.l.b16 %v107
  %v643 = vunpack.c.l.b16 %v108
  %v644 = vunpack.c.l.b16 %v109
  %v645 = vunpack.c.l.b16 %v110
  %v646 = vunpack.c.l.b16 %v111
  %v647 = vunpack.c.l.b16 %v112
  %v648 = vunpack.c.l.b16 %v113
  %v649 = vunpack.c.l.b16 %v114
  %v650 = vunpack.c.l.b16 %v115
  %v651 = vunpack.c.l.b16 %v116
  %v652 = vunpack.c.l.b16 %v117
  %v653 = vunpack.c.l.b16 %v118
  %v654 = vunpack.c.l.b16 %v119
  %v655 = vunpack.c.l.b16 %v120
  %v656 = vunpack.c.l.b16 %v121
  %v657 = vunpack.c.l.b16 %v122
  %v658 = vunpack.c.l.b16 %v123
  %v659 = vunpack.c.l.b16 %v124
  %v660 = vunpack.c.l.b16 %v125
  %v661 = vunpack.c.l.b16 %v126
  %v662 = vunpack.c.l.b16 %v127
  %v663 = vunpack.c.l.b16 %v128
  %v664 = vunpack.c.l.b16 %v129
  %v665 = vunpack.c.l.b16 %v130
  %v666 = vunpack.c.l.b16 %v131
  %v667 = vunpack.c.l.b16 %v132
  %v668 = vunpack.c.l.b16 %v133
  %v669 = vunpack.c.l.b16 %v134
  %v670 = vunpack.c.l.b16 %v135
  %v671 = vunpack.c.l.b16 %v136
  %v672 = vunpack.c.l.b16 %v137
  %v673 = vunpack.c.l.b16 %v138
  %v674 = vunpack.c.l.b16 %v139
  %v675 = vunpack.c.l.b16 %v140
  %v676 = vunpack.c.l.b16 %v141
  %v677 = vunpack.c.l.b16 %v142
  %v678 = vunpack.c.l.b16 %v143
  %v679 = vunpack.c.l.b16 %v144
  %v680 = vunpack.c.l.b16 %v145
  %v681 = vunpack.c.l.b16 %v146
  %v682 = vunpack.c.l.b16 %v147
  %v683 = vunpack.c.l.b16 %v148
  %v684 = vunpack.c.l.b16 %v149
  %v685 = vunpack.c.l.b16 %v150
  %v686 = vunpack.c.l.b16 %v151
  %v687 = vunpack.c.l.b16 %v152
  %v688 = vunpack.c.l.b16 %v153
  %v689 = vunpack.c.l.b16 %v154
  %v690 = vunpack.c.l.b16 %v155
  %v691 = vunpack.c.l.b16 %v156
  %v692 = vunpack.c.l.b16 %v157
  %v693 = vunpack.c.l.b16 %v158
  %v694 = vunpack.c.l.b16 %v159
  %v695 = vunpack.c.l.b16 %v160
  %v696 = vunpack.c.l.b16 %v161
  %v697 = vunpack.c.l.b16 %v162
  %v698 = vunpack.c.l.b16 %v163
  %v699 = vunpack.c.l.b16 %v164
  %v700 = vunpack.c.l.b16 %v165
  %v701 = vunpack.c.l.b16 %v166
  %v702 = vunpack.c.l.b16 %v167
  %v703 = vunpack.c.l.b16 %v168
  %v704 = vunpack.c.l.b16 %v169
  %v705 = vunpack.c.l.b16 %v170
  %v706 = vunpack.c.l.b16 %v171
  %v707 = vunpack.c.l.b16 %v172
  %v708 = vunpack.c.l.b16 %v173
  %v709 = vunpack.c.l.b16 %v174
  %v710 = vunpack.c.l.b16 %v175
  %v711 = vunpack.c.l.b16 %v176
  %v712 = vunpack.c.l.b16 %v177
  %v713 = vunpack.c.l.b16 %v178
  %v714 = vunpack.c.l.b16 %v179
  %v715 = vunpack.c.l.b16 %v180
  %v716 = vunpack.c.l.b16 %v181
  %v717 = vunpack.c.l.b16 %v182
  %v718 = vunpack.c.l.b16 %v183
  %v719 = vunpack.c.l.b16 %v184
  %v720 = vunpack.c.l.b16 %v185
  %v721 = vunpack.c.l.b16 %v186
  %v722 = vunpack.c.l.b16 %v187
  %v723 = vunpack.c.l.b16 %v188
  %v724 = vunpack.c.l.b16 %v189
  %v725 = vunpack.c.l.b16 %v190
  %v726 = vunpack.c.l.b16 %v191
  %v727 = vunpack.c.l.b16 %v192
  %v728 = vunpack.c.l.b16 %v193
  %v729 = vunpack.c.l.b16 %v194
  %v730 = vunpack.c.l.b16 %v195
  %v731 = vunpack.c.l.b16 %v196
  %v732 = vunpack.c.l.b16 %v197
  %v733 = vunpack.c.l.b16 %v198
  %v734 = vunpack.c.l.b16 %v199
  %v735 = vunpack.c.l.b16 %v200
  %v736 = vunpack.c.l.b16 %v201
  %v737 = vunpack.c.l.b16 %v202
  %v738 = vunpack.c.l.b16 %v203
  %v739 = vunpack.c.l.b16 %v204
  %v740 = vunpack.c.l.b16 %v205
  %v741 = vunpack.c.l.b16 %v206
  %v742 = vunpack.c.l.b16 %v207
  %v743 = vunpack.c.l.b16 %v208
  %v744 = vunpack.c.l.b16 %v209
  %v745 = vunpack.c.l.b16 %v210
  %v746 = vunpack.c.l.b16 %v211
  %v747 = vunpack.c.l.b16 %v212
  %v748 = vunpack.c.l.b16 %v213
  %v749 = vunpack.c.l.b16 %v214
  %v750 = vunpack.c.l.b16 %v215
  %v751 = vunpack.c.l.b16 %v216
  %v752 = vunpack.c.l.b16 %v217
  %v753 = vunpack.c.l.b16 %v218
  %v754 = vunpack.c.l.b16 %v219
  %v755 = vunpack.c.l.b16 %v220
  %v756 = vunpack.c.l.b16 %v221
  %v757 = vunpack.c.l.b16 %v222
  %v758 = vunpack.c.l.b16 %v223
  %v759 = vunpack.c.l.b16 %v224
  %v760 = vunpack.c.l.b16 %v225
  %v761 = vunpack.c.l.b16 %v226
  %v762 = vunpack.c.l.b16 %v227
  %v763 = vunpack.c.l.b16 %v228
  %v764 = vunpack.c.l.b16 %v229
  %v765 = vunpack.c.l.b16 %v230
  %v766 = vunpack.c.l.b16 %v231
  %v767 = vunpack.c.l.b16 %v232
  %v768 = vunpack.c.l.b16 %v233
  %v769 = vunpack.c.l.b16 %v234
  %v770 = vunpack.c.l.b16 %v235
  %v771 = vunpack.c.l.b16 %v236
  %v772 = vunpack.c.l.b16 %v237
  %v773 = vunpack.c.l.b16 %v238
  %v774 = vunpack.c.l.b16 %v239
  %v775 = vunpack.c.l.b16 %v240
  %v776 = vunpack.c.l.b16 %v241
  %v777 = vunpack.c.l.b16 %v242
  %v778 = vunpack.c.l.b16 %v243
  %v779 = vunpack.c.l.b16 %v244
  %v780 = vunpack.c.l.b16 %v245
  %v781 = vunpack.c.l.b16 %v246
  %v782 = vunpack.c.l.b16 %v247
  %v783 = vunpack.c.l.b16 %v248
  %v784 = vunpack.c.l.b16 %v249
  %v785 = vunpack.c.l.b16 %v250
  %v786 = vunpack.c.l.b16 %v251
  %v787 = vunpack.c.l.b16 %v252
  %v788 = vunpack.c.l.b16 %v253
  %v789 = vunpack.c.l.b16 %v254
  %v790 = vunpack.c.l.b16 %v255
  %v791 = vunpack.c.l.b16 %v256
  %v792 = vunpack.c.l.b16 %v257
  %v793 = vunpack.c.l.b16 %v258
  %v794 = vunpack.c.l.b16 %v259
  %v795 = vunpack.c.l.b16 %v260
  %v796 = vunpack.c.l.b16 %v261
  %v797 = vunpack.c.l.b16 %v262
  %v798 = vunpack.c.l.b16 %v263
  %v799 = vunpack.c.l.b16 %v264
  %v800 = vunpack.c.l.b16 %v265
  %v801 = vunpack.c.l.b16 %v266
  %v802 = vunpack.c.l.b16 %v267
  %v803 = vunpack.c.l.b16 %v268
  %v804 = vunpack.c.l.b16 %v269
  %v805 = vunpack.c.l.b16 %v270
  %v806 = vpack.c.b16 %v551, %v550
  %v807 = vpack.c.b16 %v553, %v552
  %v808 = vpack.c.b16 %v555, %v554
  %v809 = vpack.c.b16 %v557, %v556
  %v810 = vpack.c.b16 %v559, %v558
  %v811 = vpack.c.b16 %v561, %v560
  %v812 = vpack.c.b16 %v563, %v562
  %v813 = vpack.c.b16 %v565, %v564
  %v814 = vpack.c.b16 %v567, %v566
  %v815 = vpack.c.b16 %v569, %v568
  %v816 = vpack.c.b16 %v571, %v570
  %v817 = vpack.c.b16 %v573, %v572
  %v818 = vpack.c.b16 %v575, %v574
  %v819 = vpack.c.b16 %v577, %v576
  %v820 = vpack.c.b16 %v579, %v578
  %v821 = vpack.c.b16 %v581, %v580
  %v822 = vpack.c.b16 %v583, %v582
  %v823 = vpack.c.b16 %v585, %v584
  %v824 = vpack.c.b16 %v587, %v586
  %v825 = vpack.c.b16 %v589, %v588
  %v826 = vpack.c.b16 %v591, %v590
  %v827 = vpack.c.b16 %v593, %v592
  %v828 = vpack.c.b16 %v595, %v594
  %v829 = vpack.c.b16 %v597, %v596
  %v830 = vpack.c.b16 %v599, %v598
  %v831 = vpack.c.b16 %v601, %v600
  %v832 = vpack.c.b16 %v603, %v602
  %v833 = vpack.c.b16 %v605, %v604
  %v834 = vpack.c.b16 %v607, %v606
  %v835 = vpack.c.b16 %v609, %v608
  %v836 = vpack.c.b16 %v611, %v610
  %v837 = vpack.c.b16 %v613, %v612
  %v838 = vpack.c.b16 %v615, %v614
  %v839 = vpack.c.b16 %v617, %v616
  %v840 = vpack.c.b16 %v619, %v618
  %v841 = vpack.c.b16 %v621, %v620
  %v842 = vpack.c.b16 %v623, %v622
  %v843 = vpack.c.b16 %v625, %v624
  %v844 = vpack.c.b16 %v627, %v626
  %v845 = vpack.c.b16 %v629, %v628
  %v846 = vpack.c.b16 %v631, %v630
  %v847 = vpack.c.b16 %v633, %v632
  %v848 = vpack.c.b16 %v635, %v634
  %v849 = vpack.c.b16 %v637, %v636
  %v850 = vpack.c.b16 %v639, %v638
  %v851 = vpack.c.b16 %v641, %v640
  %v852 = vpack.c.b16 %v643, %v642
  %v853 = vpack.c.b16 %v645, %v644
  %v854 = vpack.c.b16 %v647, %v646
  %v855 = vpack.c.b16 %v649, %v648
  %v856 = vpack.c.b16 %v651, %v650
  %v857 = vpack.c.b16 %v653, %v652
  %v858 = vpack.c.b16 %v655, %v654
  %v859 = vpack.c.b16 %v657, %v656
  %v860 = vpack.c.b16 %v659, %v658
  %v861 = vpack.c.b16 %v661, %v660
  %v862 = vpack.c.b16 %v663, %v662
  %v863 = vpack.c.b16 %v665, %v664
  %v864 = vpack.c.b16 %v667, %v666
  %v865 = vpack.c.b16 %v669, %v668
  %v866 = vpack.c.b16 %v671, %v670
  %v867 = vpack.c.b16 %v673, %v672
  %v868 = vpack.c.b16 %v675, %v674
  %v869 = vpack.c.b16 %v677, %v676
  %v870 = vpack.c.b16 %v679, %v678
  %v871 = vpack.c.b16 %v681, %v680
  %v872 = vpack.c.b16 %v683, %v682
  %v873 = vpack.c.b16 %v685, %v684
  %v874 = vpack.c.b16 %v687, %v686
  %v875 = vpack.c.b16 %v689, %v688
  %v876 = vpack.c.b16 %v691, %v690
  %v877 = vpack.c.b16 %v693, %v692
  %v878 = vpack.c.b16 %v695, %v694
  %v879 = vpack.c.b16 %v697, %v696
  %v880 = vpack.c.b16 %v699, %v698
  %v881 = vpack.c.b16 %v701, %v700
  %v882 = vpack.c.b16 %v703, %v702
  %v883 = vpack.c.b16 %v705, %v704
  %v884 = vpack.c.b16 %v707, %v706
  %v885 = vpack.c.b16 %v709, %v708
  %v886 = vpack.c.b16 %v711, %v710
  %v887 = vpack.c.b16 %v713, %v712
  %v888 = vpack.c.b16 %v715, %v714
  %v889 = vpack.c.b16 %v717, %v716
  %v890 = vpack.c.b16 %v719, %v718
  %v891 = vpack.c.b16 %v721, %v720
  %v892 = vpack.c.b16 %v723, %v722
  %v893 = vpack.c.b16 %v725, %v724
  %v894 = vpack.c.b16 %v727, %v726
  %v895 = vpack.c.b16 %v729, %v728
  %v896 = vpack.c.b16 %v731, %v730
  %v897 = vpack.c.b16 %v733, %v732
  %v898 = vpack.c.b16 %v735, %v734
  %v899 = vpack.c.b16 %v737, %v736
  %v900 = vpack.c.b16 %v739, %v738
  %v901 = vpack.c.b16 %v741, %v740
  %v902 = vpack.c.b16 %v743, %v742
  %v903 = vpack.c.b16 %v745, %v744
  %v904 = vpack.c.b16 %v747, %v746
  %v905 = vpack.c.b16 %v749, %v748
  %v906 = vpack.c.b16 %v751, %v750
  %v907 = vpack.c.b16 %v753, %v752
  %v908 = vpack.c.b16 %v755, %v754
  %v909 = vpack.c.b16 %v757, %v756
  %v910 = vpack.c.b16 %v759, %v758
  %v911 = vpack.c.b16 %v761, %v760
  %v912 = vpack.c.b16 %v763, %v762
  %v913 = vpack.c.b16 %v765, %v764
  %v914 = vpack.c.b16 %v767, %v766
  %v915 = vpack.c.b16 %v769, %v768
  %v916 = vpack.c.b16 %v771, %v770
  %v917 = vpack.c.b16 %v773, %v772
  %v918 = vpack.c.b16 %v775, %v774
  %v919 = vpack.c.b16 %v777, %v776
  %v920 = vpack.c.b16 %v779, %v778
  %v921 = vpack.c.b16 %v781, %v780
  %v922 = vpack.c.b16 %v783, %v782
  %v923 = vpack.c.b16 %v785, %v784
  %v924 = vpack.c.b16 %v787, %v786
  %v925 = vpack.c.b16 %v789, %v788
  %v926 = vpack.c.b16 %v791, %v790
  %v927 = vpack.c.b16 %v793, %v792
  %v928 = vpack.c.b16 %v795, %v794
  %v929 = vpack.c.b16 %v797, %v796
  %v930 = vpack.c.b16 %v799, %v798
  %v931 = vpack.c.b16 %v801, %v800
  %v932 = vpack.c.b16 %v803, %v802
  %v933 = vpack.c.b16 %v805, %v804
  %v1078 = vunpack.c.l.b16 %v271
  %v1079 = vunpack.c.l.b16 %v272
  %v1080 = vunpack.c.l.b16 %v273
  %v1081 = vunpack.c.l.b16 %v274
  %v1082 = vunpack.c.l.b16 %v275
  %v1083 = vunpack.c.l.b16 %v276
  %v1084 = vunpack.c.l.b16 %v277
  %v1085 = vunpack.c.l.b16 %v278
  %v1086 = vunpack.c.l.b16 %v279
  %v1087 = vunpack.c.l.b16 %v280
  %v1088 = vunpack.c.l.b16 %v281
  %v1089 = vunpack.c.l.b16 %v282
  %v1090 = vunpack.c.l.b16 %v283
  %v1091 = vunpack.c.l.b16 %v284
  %v1092 = vunpack.c.l.b16 %v285
  %v1093 = vunpack.c.l.b16 %v286
  %v1094 = vpack.c.b16 %v1079, %v1078
  %v1095 = vpack.c.b16 %v1081, %v1080
  %v1096 = vpack.c.b16 %v1083, %v1082
  %v1097 = vpack.c.b16 %v1085, %v1084
  %v1098 = vpack.c.b16 %v1087, %v1086
  %v1099 = vpack.c.b16 %v1089, %v1088
  %v1100 = vpack.c.b16 %v1091, %v1090
  %v1101 = vpack.c.b16 %v1093, %v1092
  %1110 = vmatprep.subr.bf16.mxu0 0
  %1111 = vmatpush1.bf16.msra.mxu0 %v1094
  %1112 = vmatprep.subr.bf16.mxu0 0
  %1113 = vmatpush1.bf16.msra.mxu0 %v1095
  %1114 = vmatprep.subr.bf16.mxu0 0
  %1115 = vmatpush1.bf16.msra.mxu0 %v1096
  %1116 = vmatprep.subr.bf16.mxu0 0
  %1117 = vmatpush1.bf16.msra.mxu0 %v1097
  %1118 = vmatprep.subr.bf16.mxu0 0
  %1119 = vmatpush1.bf16.msra.mxu0 %v1098
  %1120 = vmatprep.subr.bf16.mxu0 0
  %1121 = vmatpush1.bf16.msra.mxu0 %v1099
  %1122 = vmatprep.subr.bf16.mxu0 0
  %1123 = vmatpush1.bf16.msra.mxu0 %v1100
  %1124 = vmatprep.subr.bf16.mxu0 0
  %1125 = vmatpush1.bf16.msra.mxu0 %v1101
  %1126 = vmatprep.subr.bf16.mxu0 0
  %1127 = vmatpush1.bf16.msra.mxu0 0
  %1128 = vmatprep.subr.bf16.mxu0 0
  %1129 = vmatpush1.bf16.msra.mxu0 0
  %1130 = vmatprep.subr.bf16.mxu0 0
  %1131 = vmatpush1.bf16.msra.mxu0 0
  %1132 = vmatprep.subr.bf16.mxu0 0
  %1133 = vmatpush1.bf16.msra.mxu0 0
  %1134 = vmatprep.subr.bf16.mxu0 0
  %1135 = vmatpush1.bf16.msra.mxu0 0
  %1136 = vmatprep.subr.bf16.mxu0 0
  %1137 = vmatpush1.bf16.msra.mxu0 0
  %1138 = vmatprep.subr.bf16.mxu0 0
  %1139 = vmatpush1.bf16.msra.mxu0 0
  %1140 = vmatprep.subr.bf16.mxu0 0
  %1141 = vmatpush1.bf16.msra.mxu0 0
  %1142 = vmatprep.mubr.bf16.mxu0 0
  %1143 = vmatmul.mubr.bf16.gmra.mrb[0].mxu0 %v806
  %v1144 = vpop.f32.mrb[0].mxu0
  %v1145 = vadd.f32 %v292, %v1144
  %v1146 = vpop.f32.mrb[0].mxu0
  %v1147 = vpop.f32.mrb[0].mxu0
  %v1148 = vadd.f32 %v292, %v1147
  %v1149 = vpop.f32.mrb[0].mxu0
  %1150 = vmatprep.mubr.bf16.mxu0 0
  %1151 = vmatmul.mubr.bf16.gmra.mrb[0].mxu0 %v807
  %v1152 = vpop.f32.mrb[0].mxu0
  %v1153 = vadd.f32 %v292, %v1152
  %v1154 = vpop.f32.mrb[0].mxu0
  %v1155 = vpop.f32.mrb[0].mxu0
  %v1156 = vadd.f32 %v292, %v1155
  %v1157 = vpop.f32.mrb[0].mxu0
  %1158 = vmatprep.mubr.bf16.mxu0 0
  %1159 = vmatmul.mubr.bf16.gmra.mrb[0].mxu0 %v808
  %v1160 = vpop.f32.mrb[0].mxu0
  %v1161 = vadd.f32 %v292, %v1160
  %v1162 = vpop.f32.mrb[0].mxu0
  %v1163 = vpop.f32.mrb[0].mxu0
  %v1164 = vadd.f32 %v292, %v1163
  %v1165 = vpop.f32.mrb[0].mxu0
  %1166 = vmatprep.mubr.bf16.mxu0 0
  %1167 = vmatmul.mubr.bf16.gmra.mrb[0].mxu0 %v809
  %v1168 = vpop.f32.mrb[0].mxu0
  %v1169 = vadd.f32 %v292, %v1168
  %v1170 = vpop.f32.mrb[0].mxu0
  %v1171 = vpop.f32.mrb[0].mxu0
  %v1172 = vadd.f32 %v292, %v1171
  %v1173 = vpop.f32.mrb[0].mxu0
  %1174 = vmatprep.mubr.bf16.mxu0 0
  %1175 = vmatmul.mubr.bf16.gmra.mrb[0].mxu0 %v810
  %v1176 = vpop.f32.mrb[0].mxu0
  %v1177 = vadd.f32 %v292, %v1176
  %v1178 = vpop.f32.mrb[0].mxu0
  %v1179 = vpop.f32.mrb[0].mxu0
  %v1180 = vadd.f32 %v292, %v1179
  %v1181 = vpop.f32.mrb[0].mxu0
  %1182 = vmatprep.mubr.bf16.mxu0 0
  %1183 = vmatmul.mubr.bf16.gmra.mrb[0].mxu0 %v811
  %v1184 = vpop.f32.mrb[0].mxu0
  %v1185 = vadd.f32 %v292, %v1184
  %v1186 = vpop.f32.mrb[0].mxu0
  %v1187 = vpop.f32.mrb[0].mxu0
  %v1188 = vadd.f32 %v292, %v1187
  %v1189 = vpop.f32.mrb[0].mxu0
  %1190 = vmatprep.mubr.bf16.mxu0 0
  %1191 = vmatmul.mubr.bf16.gmra.mrb[0].mxu0 %v812
  %v1192 = vpop.f32.mrb[0].mxu0
  %v1193 = vadd.f32 %v292, %v1192
  %v1194 = vpop.f32.mrb[0].mxu0
  %v1195 = vpop.f32.mrb[0].mxu0
  %v1196 = vadd.f32 %v292, %v1195
  %v1197 = vpop.f32.mrb[0].mxu0
  %1198 = vmatprep.mubr.bf16.mxu0 0
  %1199 = vmatmul.mubr.bf16.gmra.mrb[0].mxu0 %v813
  %v1200 = vpop.f32.mrb[0].mxu0
  %v1201 = vadd.f32 %v292, %v1200
  %v1202 = vpop.f32.mrb[0].mxu0
  %v1203 = vpop.f32.mrb[0].mxu0
  %v1204 = vadd.f32 %v292, %v1203
  %v1205 = vpop.f32.mrb[0].mxu0
  %1206 = vmatprep.mubr.bf16.mxu0 0
  %1207 = vmatmul.mubr.bf16.gmra.mrb[0].mxu0 %v814
  %v1208 = vpop.f32.mrb[0].mxu0
  %v1209 = vadd.f32 %v292, %v1208
  %v1210 = vpop.f32.mrb[0].mxu0
  %v1211 = vpop.f32.mrb[0].mxu0
  %v1212 = vadd.f32 %v292, %v1211
  %v1213 = vpop.f32.mrb[0].mxu0
  %1214 = vmatprep.mubr.bf16.mxu0 0
  %1215 = vmatmul.mubr.bf16.gmra.mrb[0].mxu0 %v815
  %v1216 = vpop.f32.mrb[0].mxu0
  %v1217 = vadd.f32 %v292, %v1216
  %v1218 = vpop.f32.mrb[0].mxu0
  %v1219 = vpop.f32.mrb[0].mxu0
  %v1220 = vadd.f32 %v292, %v1219
  %v1221 = vpop.f32.mrb[0].mxu0
  %1222 = vmatprep.mubr.bf16.mxu0 0
  %1223 = vmatmul.mubr.bf16.gmra.mrb[0].mxu0 %v816
  %v1224 = vpop.f32.mrb[0].mxu0
  %v1225 = vadd.f32 %v292, %v1224
  %v1226 = vpop.f32.mrb[0].mxu0
  %v1227 = vpop.f32.mrb[0].mxu0
  %v1228 = vadd.f32 %v292, %v1227
  %v1229 = vpop.f32.mrb[0].mxu0
  %1230 = vmatprep.mubr.bf16.mxu0 0
  %1231 = vmatmul.mubr.bf16.gmra.mrb[0].mxu0 %v817
  %v1232 = vpop.f32.mrb[0].mxu0
  %v1233 = vadd.f32 %v292, %v1232
  %v1234 = vpop.f32.mrb[0].mxu0
  %v1235 = vpop.f32.mrb[0].mxu0
  %v1236 = vadd.f32 %v292, %v1235
  %v1237 = vpop.f32.mrb[0].mxu0
  %1238 = vmatprep.mubr.bf16.mxu0 0
  %1239 = vmatmul.mubr.bf16.gmra.mrb[0].mxu0 %v818
  %v1240 = vpop.f32.mrb[0].mxu0
  %v1241 = vadd.f32 %v292, %v1240
  %v1242 = vpop.f32.mrb[0].mxu0
  %v1243 = vpop.f32.mrb[0].mxu0
  %v1244 = vadd.f32 %v292, %v1243
  %v1245 = vpop.f32.mrb[0].mxu0
  %1246 = vmatprep.mubr.bf16.mxu0 0
  %1247 = vmatmul.mubr.bf16.gmra.mrb[0].mxu0 %v819
  %v1248 = vpop.f32.mrb[0].mxu0
  %v1249 = vadd.f32 %v292, %v1248
  %v1250 = vpop.f32.mrb[0].mxu0
  %v1251 = vpop.f32.mrb[0].mxu0
  %v1252 = vadd.f32 %v292, %v1251
  %v1253 = vpop.f32.mrb[0].mxu0
  %1254 = vmatprep.mubr.bf16.mxu0 0
  %1255 = vmatmul.mubr.bf16.gmra.mrb[0].mxu0 %v820
  %v1256 = vpop.f32.mrb[0].mxu0
  %v1257 = vadd.f32 %v292, %v1256
  %v1258 = vpop.f32.mrb[0].mxu0
  %v1259 = vpop.f32.mrb[0].mxu0
  %v1260 = vadd.f32 %v292, %v1259
  %v1261 = vpop.f32.mrb[0].mxu0
  %1262 = vmatprep.mubr.bf16.mxu0 0
  %1263 = vmatmul.mubr.bf16.gmra.mrb[0].mxu0 %v821
  %v1264 = vpop.f32.mrb[0].mxu0
  %v1265 = vadd.f32 %v292, %v1264
  %v1266 = vpop.f32.mrb[0].mxu0
  %v1267 = vpop.f32.mrb[0].mxu0
  %v1268 = vadd.f32 %v292, %v1267
  %v1269 = vpop.f32.mrb[0].mxu0
  %1270 = vmatprep.mubr.bf16.mxu0 0
  %1271 = vmatmul.mubr.bf16.gmra.mrb[0].mxu0 %v822
  %v1272 = vpop.f32.mrb[0].mxu0
  %v1273 = vadd.f32 %v292, %v1272
  %v1274 = vpop.f32.mrb[0].mxu0
  %v1275 = vpop.f32.mrb[0].mxu0
  %v1276 = vadd.f32 %v292, %v1275
  %v1277 = vpop.f32.mrb[0].mxu0
  %1278 = vmatprep.mubr.bf16.mxu0 0
  %1279 = vmatmul.mubr.bf16.gmra.mrb[0].mxu0 %v823
  %v1280 = vpop.f32.mrb[0].mxu0
  %v1281 = vadd.f32 %v292, %v1280
  %v1282 = vpop.f32.mrb[0].mxu0
  %v1283 = vpop.f32.mrb[0].mxu0
  %v1284 = vadd.f32 %v292, %v1283
  %v1285 = vpop.f32.mrb[0].mxu0
  %1286 = vmatprep.mubr.bf16.mxu0 0
  %1287 = vmatmul.mubr.bf16.gmra.mrb[0].mxu0 %v824
  %v1288 = vpop.f32.mrb[0].mxu0
  %v1289 = vadd.f32 %v292, %v1288
  %v1290 = vpop.f32.mrb[0].mxu0
  %v1291 = vpop.f32.mrb[0].mxu0
  %v1292 = vadd.f32 %v292, %v1291
  %v1293 = vpop.f32.mrb[0].mxu0
  %1294 = vmatprep.mubr.bf16.mxu0 0
  %1295 = vmatmul.mubr.bf16.gmra.mrb[0].mxu0 %v825
  %v1296 = vpop.f32.mrb[0].mxu0
  %v1297 = vadd.f32 %v292, %v1296
  %v1298 = vpop.f32.mrb[0].mxu0
  %v1299 = vpop.f32.mrb[0].mxu0
  %v1300 = vadd.f32 %v292, %v1299
  %v1301 = vpop.f32.mrb[0].mxu0
  %1302 = vmatprep.mubr.bf16.mxu0 0
  %1303 = vmatmul.mubr.bf16.gmra.mrb[0].mxu0 %v826
  %v1304 = vpop.f32.mrb[0].mxu0
  %v1305 = vadd.f32 %v292, %v1304
  %v1306 = vpop.f32.mrb[0].mxu0
  %v1307 = vpop.f32.mrb[0].mxu0
  %v1308 = vadd.f32 %v292, %v1307
  %v1309 = vpop.f32.mrb[0].mxu0
  %1310 = vmatprep.mubr.bf16.mxu0 0
  %1311 = vmatmul.mubr.bf16.gmra.mrb[0].mxu0 %v827
  %v1312 = vpop.f32.mrb[0].mxu0
  %v1313 = vadd.f32 %v292, %v1312
  %v1314 = vpop.f32.mrb[0].mxu0
  %v1315 = vpop.f32.mrb[0].mxu0
  %v1316 = vadd.f32 %v292, %v1315
  %v1317 = vpop.f32.mrb[0].mxu0
  %1318 = vmatprep.mubr.bf16.mxu0 0
  %1319 = vmatmul.mubr.bf16.gmra.mrb[0].mxu0 %v828
  %v1320 = vpop.f32.mrb[0].mxu0
  %v1321 = vadd.f32 %v292, %v1320
  %v1322 = vpop.f32.mrb[0].mxu0
  %v1323 = vpop.f32.mrb[0].mxu0
  %v1324 = vadd.f32 %v292, %v1323
  %v1325 = vpop.f32.mrb[0].mxu0
  %1326 = vmatprep.mubr.bf16.mxu0 0
  %1327 = vmatmul.mubr.bf16.gmra.mrb[0].mxu0 %v829
  %v1328 = vpop.f32.mrb[0].mxu0
  %v1329 = vadd.f32 %v292, %v1328
  %v1330 = vpop.f32.mrb[0].mxu0
  %v1331 = vpop.f32.mrb[0].mxu0
  %v1332 = vadd.f32 %v292, %v1331
  %v1333 = vpop.f32.mrb[0].mxu0
  %1334 = vmatprep.mubr.bf16.mxu0 0
  %1335 = vmatmul.mubr.bf16.gmra.mrb[0].mxu0 %v830
  %v1336 = vpop.f32.mrb[0].mxu0
  %v1337 = vadd.f32 %v292, %v1336
  %v1338 = vpop.f32.mrb[0].mxu0
  %v1339 = vpop.f32.mrb[0].mxu0
  %v1340 = vadd.f32 %v292, %v1339
  %v1341 = vpop.f32.mrb[0].mxu0
  %1342 = vmatprep.mubr.bf16.mxu0 0
  %1343 = vmatmul.mubr.bf16.gmra.mrb[0].mxu0 %v831
  %v1344 = vpop.f32.mrb[0].mxu0
  %v1345 = vadd.f32 %v292, %v1344
  %v1346 = vpop.f32.mrb[0].mxu0
  %v1347 = vpop.f32.mrb[0].mxu0
  %v1348 = vadd.f32 %v292, %v1347
  %v1349 = vpop.f32.mrb[0].mxu0
  %1350 = vmatprep.mubr.bf16.mxu0 0
  %1351 = vmatmul.mubr.bf16.gmra.mrb[0].mxu0 %v832
  %v1352 = vpop.f32.mrb[0].mxu0
  %v1353 = vadd.f32 %v292, %v1352
  %v1354 = vpop.f32.mrb[0].mxu0
  %v1355 = vpop.f32.mrb[0].mxu0
  %v1356 = vadd.f32 %v292, %v1355
  %v1357 = vpop.f32.mrb[0].mxu0
  %1358 = vmatprep.mubr.bf16.mxu0 0
  %1359 = vmatmul.mubr.bf16.gmra.mrb[0].mxu0 %v833
  %v1360 = vpop.f32.mrb[0].mxu0
  %v1361 = vadd.f32 %v292, %v1360
  %v1362 = vpop.f32.mrb[0].mxu0
  %v1363 = vpop.f32.mrb[0].mxu0
  %v1364 = vadd.f32 %v292, %v1363
  %v1365 = vpop.f32.mrb[0].mxu0
  %1366 = vmatprep.mubr.bf16.mxu0 0
  %1367 = vmatmul.mubr.bf16.gmra.mrb[0].mxu0 %v834
  %v1368 = vpop.f32.mrb[0].mxu0
  %v1369 = vadd.f32 %v292, %v1368
  %v1370 = vpop.f32.mrb[0].mxu0
  %v1371 = vpop.f32.mrb[0].mxu0
  %v1372 = vadd.f32 %v292, %v1371
  %v1373 = vpop.f32.mrb[0].mxu0
  %1374 = vmatprep.mubr.bf16.mxu0 0
  %1375 = vmatmul.mubr.bf16.gmra.mrb[0].mxu0 %v835
  %v1376 = vpop.f32.mrb[0].mxu0
  %v1377 = vadd.f32 %v292, %v1376
  %v1378 = vpop.f32.mrb[0].mxu0
  %v1379 = vpop.f32.mrb[0].mxu0
  %v1380 = vadd.f32 %v292, %v1379
  %v1381 = vpop.f32.mrb[0].mxu0
  %1382 = vmatprep.mubr.bf16.mxu0 0
  %1383 = vmatmul.mubr.bf16.gmra.mrb[0].mxu0 %v836
  %v1384 = vpop.f32.mrb[0].mxu0
  %v1385 = vadd.f32 %v292, %v1384
  %v1386 = vpop.f32.mrb[0].mxu0
  %v1387 = vpop.f32.mrb[0].mxu0
  %v1388 = vadd.f32 %v292, %v1387
  %v1389 = vpop.f32.mrb[0].mxu0
  %1390 = vmatprep.mubr.bf16.mxu0 0
  %1391 = vmatmul.mubr.bf16.gmra.mrb[0].mxu0 %v837
  %v1392 = vpop.f32.mrb[0].mxu0
  %v1393 = vadd.f32 %v292, %v1392
  %v1394 = vpop.f32.mrb[0].mxu0
  %v1395 = vpop.f32.mrb[0].mxu0
  %v1396 = vadd.f32 %v292, %v1395
  %v1397 = vpop.f32.mrb[0].mxu0
  %1398 = vmatprep.mubr.bf16.mxu0 0
  %1399 = vmatmul.mubr.bf16.gmra.mrb[0].mxu0 %v838
  %v1400 = vpop.f32.mrb[0].mxu0
  %v1401 = vadd.f32 %v292, %v1400
  %v1402 = vpop.f32.mrb[0].mxu0
  %v1403 = vpop.f32.mrb[0].mxu0
  %v1404 = vadd.f32 %v292, %v1403
  %v1405 = vpop.f32.mrb[0].mxu0
  %1406 = vmatprep.mubr.bf16.mxu0 0
  %1407 = vmatmul.mubr.bf16.gmra.mrb[0].mxu0 %v839
  %v1408 = vpop.f32.mrb[0].mxu0
  %v1409 = vadd.f32 %v292, %v1408
  %v1410 = vpop.f32.mrb[0].mxu0
  %v1411 = vpop.f32.mrb[0].mxu0
  %v1412 = vadd.f32 %v292, %v1411
  %v1413 = vpop.f32.mrb[0].mxu0
  %1414 = vmatprep.mubr.bf16.mxu0 0
  %1415 = vmatmul.mubr.bf16.gmra.mrb[0].mxu0 %v840
  %v1416 = vpop.f32.mrb[0].mxu0
  %v1417 = vadd.f32 %v292, %v1416
  %v1418 = vpop.f32.mrb[0].mxu0
  %v1419 = vpop.f32.mrb[0].mxu0
  %v1420 = vadd.f32 %v292, %v1419
  %v1421 = vpop.f32.mrb[0].mxu0
  %1422 = vmatprep.mubr.bf16.mxu0 0
  %1423 = vmatmul.mubr.bf16.gmra.mrb[0].mxu0 %v841
  %v1424 = vpop.f32.mrb[0].mxu0
  %v1425 = vadd.f32 %v292, %v1424
  %v1426 = vpop.f32.mrb[0].mxu0
  %v1427 = vpop.f32.mrb[0].mxu0
  %v1428 = vadd.f32 %v292, %v1427
  %v1429 = vpop.f32.mrb[0].mxu0
  %1430 = vmatprep.mubr.bf16.mxu0 0
  %1431 = vmatmul.mubr.bf16.gmra.mrb[0].mxu0 %v842
  %v1432 = vpop.f32.mrb[0].mxu0
  %v1433 = vadd.f32 %v292, %v1432
  %v1434 = vpop.f32.mrb[0].mxu0
  %v1435 = vpop.f32.mrb[0].mxu0
  %v1436 = vadd.f32 %v292, %v1435
  %v1437 = vpop.f32.mrb[0].mxu0
  %1438 = vmatprep.mubr.bf16.mxu0 0
  %1439 = vmatmul.mubr.bf16.gmra.mrb[0].mxu0 %v843
  %v1440 = vpop.f32.mrb[0].mxu0
  %v1441 = vadd.f32 %v292, %v1440
  %v1442 = vpop.f32.mrb[0].mxu0
  %v1443 = vpop.f32.mrb[0].mxu0
  %v1444 = vadd.f32 %v292, %v1443
  %v1445 = vpop.f32.mrb[0].mxu0
  %1446 = vmatprep.mubr.bf16.mxu0 0
  %1447 = vmatmul.mubr.bf16.gmra.mrb[0].mxu0 %v844
  %v1448 = vpop.f32.mrb[0].mxu0
  %v1449 = vadd.f32 %v292, %v1448
  %v1450 = vpop.f32.mrb[0].mxu0
  %v1451 = vpop.f32.mrb[0].mxu0
  %v1452 = vadd.f32 %v292, %v1451
  %v1453 = vpop.f32.mrb[0].mxu0
  %1454 = vmatprep.mubr.bf16.mxu0 0
  %1455 = vmatmul.mubr.bf16.gmra.mrb[0].mxu0 %v845
  %v1456 = vpop.f32.mrb[0].mxu0
  %v1457 = vadd.f32 %v292, %v1456
  %v1458 = vpop.f32.mrb[0].mxu0
  %v1459 = vpop.f32.mrb[0].mxu0
  %v1460 = vadd.f32 %v292, %v1459
  %v1461 = vpop.f32.mrb[0].mxu0
  %1462 = vmatprep.mubr.bf16.mxu0 0
  %1463 = vmatmul.mubr.bf16.gmra.mrb[0].mxu0 %v846
  %v1464 = vpop.f32.mrb[0].mxu0
  %v1465 = vadd.f32 %v292, %v1464
  %v1466 = vpop.f32.mrb[0].mxu0
  %v1467 = vpop.f32.mrb[0].mxu0
  %v1468 = vadd.f32 %v292, %v1467
  %v1469 = vpop.f32.mrb[0].mxu0
  %1470 = vmatprep.mubr.bf16.mxu0 0
  %1471 = vmatmul.mubr.bf16.gmra.mrb[0].mxu0 %v847
  %v1472 = vpop.f32.mrb[0].mxu0
  %v1473 = vadd.f32 %v292, %v1472
  %v1474 = vpop.f32.mrb[0].mxu0
  %v1475 = vpop.f32.mrb[0].mxu0
  %v1476 = vadd.f32 %v292, %v1475
  %v1477 = vpop.f32.mrb[0].mxu0
  %1478 = vmatprep.mubr.bf16.mxu0 0
  %1479 = vmatmul.mubr.bf16.gmra.mrb[0].mxu0 %v848
  %v1480 = vpop.f32.mrb[0].mxu0
  %v1481 = vadd.f32 %v292, %v1480
  %v1482 = vpop.f32.mrb[0].mxu0
  %v1483 = vpop.f32.mrb[0].mxu0
  %v1484 = vadd.f32 %v292, %v1483
  %v1485 = vpop.f32.mrb[0].mxu0
  %1486 = vmatprep.mubr.bf16.mxu0 0
  %1487 = vmatmul.mubr.bf16.gmra.mrb[0].mxu0 %v849
  %v1488 = vpop.f32.mrb[0].mxu0
  %v1489 = vadd.f32 %v292, %v1488
  %v1490 = vpop.f32.mrb[0].mxu0
  %v1491 = vpop.f32.mrb[0].mxu0
  %v1492 = vadd.f32 %v292, %v1491
  %v1493 = vpop.f32.mrb[0].mxu0
  %1494 = vmatprep.mubr.bf16.mxu0 0
  %1495 = vmatmul.mubr.bf16.gmra.mrb[0].mxu0 %v850
  %v1496 = vpop.f32.mrb[0].mxu0
  %v1497 = vadd.f32 %v292, %v1496
  %v1498 = vpop.f32.mrb[0].mxu0
  %v1499 = vpop.f32.mrb[0].mxu0
  %v1500 = vadd.f32 %v292, %v1499
  %v1501 = vpop.f32.mrb[0].mxu0
  %1502 = vmatprep.mubr.bf16.mxu0 0
  %1503 = vmatmul.mubr.bf16.gmra.mrb[0].mxu0 %v851
  %v1504 = vpop.f32.mrb[0].mxu0
  %v1505 = vadd.f32 %v292, %v1504
  %v1506 = vpop.f32.mrb[0].mxu0
  %v1507 = vpop.f32.mrb[0].mxu0
  %v1508 = vadd.f32 %v292, %v1507
  %v1509 = vpop.f32.mrb[0].mxu0
  %1510 = vmatprep.mubr.bf16.mxu0 0
  %1511 = vmatmul.mubr.bf16.gmra.mrb[0].mxu0 %v852
  %v1512 = vpop.f32.mrb[0].mxu0
  %v1513 = vadd.f32 %v292, %v1512
  %v1514 = vpop.f32.mrb[0].mxu0
  %v1515 = vpop.f32.mrb[0].mxu0
  %v1516 = vadd.f32 %v292, %v1515
  %v1517 = vpop.f32.mrb[0].mxu0
  %1518 = vmatprep.mubr.bf16.mxu0 0
  %1519 = vmatmul.mubr.bf16.gmra.mrb[0].mxu0 %v853
  %v1520 = vpop.f32.mrb[0].mxu0
  %v1521 = vadd.f32 %v292, %v1520
  %v1522 = vpop.f32.mrb[0].mxu0
  %v1523 = vpop.f32.mrb[0].mxu0
  %v1524 = vadd.f32 %v292, %v1523
  %v1525 = vpop.f32.mrb[0].mxu0
  %1526 = vmatprep.mubr.bf16.mxu0 0
  %1527 = vmatmul.mubr.bf16.gmra.mrb[0].mxu0 %v854
  %v1528 = vpop.f32.mrb[0].mxu0
  %v1529 = vadd.f32 %v292, %v1528
  %v1530 = vpop.f32.mrb[0].mxu0
  %v1531 = vpop.f32.mrb[0].mxu0
  %v1532 = vadd.f32 %v292, %v1531
  %v1533 = vpop.f32.mrb[0].mxu0
  %1534 = vmatprep.mubr.bf16.mxu0 0
  %1535 = vmatmul.mubr.bf16.gmra.mrb[0].mxu0 %v855
  %v1536 = vpop.f32.mrb[0].mxu0
  %v1537 = vadd.f32 %v292, %v1536
  %v1538 = vpop.f32.mrb[0].mxu0
  %v1539 = vpop.f32.mrb[0].mxu0
  %v1540 = vadd.f32 %v292, %v1539
  %v1541 = vpop.f32.mrb[0].mxu0
  %1542 = vmatprep.mubr.bf16.mxu0 0
  %1543 = vmatmul.mubr.bf16.gmra.mrb[0].mxu0 %v856
  %v1544 = vpop.f32.mrb[0].mxu0
  %v1545 = vadd.f32 %v292, %v1544
  %v1546 = vpop.f32.mrb[0].mxu0
  %v1547 = vpop.f32.mrb[0].mxu0
  %v1548 = vadd.f32 %v292, %v1547
  %v1549 = vpop.f32.mrb[0].mxu0
  %1550 = vmatprep.mubr.bf16.mxu0 0
  %1551 = vmatmul.mubr.bf16.gmra.mrb[0].mxu0 %v857
  %v1552 = vpop.f32.mrb[0].mxu0
  %v1553 = vadd.f32 %v292, %v1552
  %v1554 = vpop.f32.mrb[0].mxu0
  %v1555 = vpop.f32.mrb[0].mxu0
  %v1556 = vadd.f32 %v292, %v1555
  %v1557 = vpop.f32.mrb[0].mxu0
  %1558 = vmatprep.mubr.bf16.mxu0 0
  %1559 = vmatmul.mubr.bf16.gmra.mrb[0].mxu0 %v858
  %v1560 = vpop.f32.mrb[0].mxu0
  %v1561 = vadd.f32 %v292, %v1560
  %v1562 = vpop.f32.mrb[0].mxu0
  %v1563 = vpop.f32.mrb[0].mxu0
  %v1564 = vadd.f32 %v292, %v1563
  %v1565 = vpop.f32.mrb[0].mxu0
  %1566 = vmatprep.mubr.bf16.mxu0 0
  %1567 = vmatmul.mubr.bf16.gmra.mrb[0].mxu0 %v859
  %v1568 = vpop.f32.mrb[0].mxu0
  %v1569 = vadd.f32 %v292, %v1568
  %v1570 = vpop.f32.mrb[0].mxu0
  %v1571 = vpop.f32.mrb[0].mxu0
  %v1572 = vadd.f32 %v292, %v1571
  %v1573 = vpop.f32.mrb[0].mxu0
  %1574 = vmatprep.mubr.bf16.mxu0 0
  %1575 = vmatmul.mubr.bf16.gmra.mrb[0].mxu0 %v860
  %v1576 = vpop.f32.mrb[0].mxu0
  %v1577 = vadd.f32 %v292, %v1576
  %v1578 = vpop.f32.mrb[0].mxu0
  %v1579 = vpop.f32.mrb[0].mxu0
  %v1580 = vadd.f32 %v292, %v1579
  %v1581 = vpop.f32.mrb[0].mxu0
  %1582 = vmatprep.mubr.bf16.mxu0 0
  %1583 = vmatmul.mubr.bf16.gmra.mrb[0].mxu0 %v861
  %v1584 = vpop.f32.mrb[0].mxu0
  %v1585 = vadd.f32 %v292, %v1584
  %v1586 = vpop.f32.mrb[0].mxu0
  %v1587 = vpop.f32.mrb[0].mxu0
  %v1588 = vadd.f32 %v292, %v1587
  %v1589 = vpop.f32.mrb[0].mxu0
  %1590 = vmatprep.mubr.bf16.mxu0 0
  %1591 = vmatmul.mubr.bf16.gmra.mrb[0].mxu0 %v862
  %v1592 = vpop.f32.mrb[0].mxu0
  %v1593 = vadd.f32 %v292, %v1592
  %v1594 = vpop.f32.mrb[0].mxu0
  %v1595 = vpop.f32.mrb[0].mxu0
  %v1596 = vadd.f32 %v292, %v1595
  %v1597 = vpop.f32.mrb[0].mxu0
  %1598 = vmatprep.mubr.bf16.mxu0 0
  %1599 = vmatmul.mubr.bf16.gmra.mrb[0].mxu0 %v863
  %v1600 = vpop.f32.mrb[0].mxu0
  %v1601 = vadd.f32 %v292, %v1600
  %v1602 = vpop.f32.mrb[0].mxu0
  %v1603 = vpop.f32.mrb[0].mxu0
  %v1604 = vadd.f32 %v292, %v1603
  %v1605 = vpop.f32.mrb[0].mxu0
  %1606 = vmatprep.mubr.bf16.mxu0 0
  %1607 = vmatmul.mubr.bf16.gmra.mrb[0].mxu0 %v864
  %v1608 = vpop.f32.mrb[0].mxu0
  %v1609 = vadd.f32 %v292, %v1608
  %v1610 = vpop.f32.mrb[0].mxu0
  %v1611 = vpop.f32.mrb[0].mxu0
  %v1612 = vadd.f32 %v292, %v1611
  %v1613 = vpop.f32.mrb[0].mxu0
  %1614 = vmatprep.mubr.bf16.mxu0 0
  %1615 = vmatmul.mubr.bf16.gmra.mrb[0].mxu0 %v865
  %v1616 = vpop.f32.mrb[0].mxu0
  %v1617 = vadd.f32 %v292, %v1616
  %v1618 = vpop.f32.mrb[0].mxu0
  %v1619 = vpop.f32.mrb[0].mxu0
  %v1620 = vadd.f32 %v292, %v1619
  %v1621 = vpop.f32.mrb[0].mxu0
  %1622 = vmatprep.mubr.bf16.mxu0 0
  %1623 = vmatmul.mubr.bf16.gmra.mrb[0].mxu0 %v866
  %v1624 = vpop.f32.mrb[0].mxu0
  %v1625 = vadd.f32 %v292, %v1624
  %v1626 = vpop.f32.mrb[0].mxu0
  %v1627 = vpop.f32.mrb[0].mxu0
  %v1628 = vadd.f32 %v292, %v1627
  %v1629 = vpop.f32.mrb[0].mxu0
  %1630 = vmatprep.mubr.bf16.mxu0 0
  %1631 = vmatmul.mubr.bf16.gmra.mrb[0].mxu0 %v867
  %v1632 = vpop.f32.mrb[0].mxu0
  %v1633 = vadd.f32 %v292, %v1632
  %v1634 = vpop.f32.mrb[0].mxu0
  %v1635 = vpop.f32.mrb[0].mxu0
  %v1636 = vadd.f32 %v292, %v1635
  %v1637 = vpop.f32.mrb[0].mxu0
  %1638 = vmatprep.mubr.bf16.mxu0 0
  %1639 = vmatmul.mubr.bf16.gmra.mrb[0].mxu0 %v868
  %v1640 = vpop.f32.mrb[0].mxu0
  %v1641 = vadd.f32 %v292, %v1640
  %v1642 = vpop.f32.mrb[0].mxu0
  %v1643 = vpop.f32.mrb[0].mxu0
  %v1644 = vadd.f32 %v292, %v1643
  %v1645 = vpop.f32.mrb[0].mxu0
  %1646 = vmatprep.mubr.bf16.mxu0 0
  %1647 = vmatmul.mubr.bf16.gmra.mrb[0].mxu0 %v869
  %v1648 = vpop.f32.mrb[0].mxu0
  %v1649 = vadd.f32 %v292, %v1648
  %v1650 = vpop.f32.mrb[0].mxu0
  %v1651 = vpop.f32.mrb[0].mxu0
  %v1652 = vadd.f32 %v292, %v1651
  %v1653 = vpop.f32.mrb[0].mxu0
  %1654 = vmatprep.mubr.bf16.mxu0 0
  %1655 = vmatmul.mubr.bf16.gmra.mrb[0].mxu0 %v870
  %v1656 = vpop.f32.mrb[0].mxu0
  %v1657 = vadd.f32 %v292, %v1656
  %v1658 = vpop.f32.mrb[0].mxu0
  %v1659 = vpop.f32.mrb[0].mxu0
  %v1660 = vadd.f32 %v292, %v1659
  %v1661 = vpop.f32.mrb[0].mxu0
  %1662 = vmatprep.mubr.bf16.mxu0 0
  %1663 = vmatmul.mubr.bf16.gmra.mrb[0].mxu0 %v871
  %v1664 = vpop.f32.mrb[0].mxu0
  %v1665 = vadd.f32 %v292, %v1664
  %v1666 = vpop.f32.mrb[0].mxu0
  %v1667 = vpop.f32.mrb[0].mxu0
  %v1668 = vadd.f32 %v292, %v1667
  %v1669 = vpop.f32.mrb[0].mxu0
  %1670 = vmatprep.mubr.bf16.mxu0 0
  %1671 = vmatmul.mubr.bf16.gmra.mrb[0].mxu0 %v872
  %v1672 = vpop.f32.mrb[0].mxu0
  %v1673 = vadd.f32 %v292, %v1672
  %v1674 = vpop.f32.mrb[0].mxu0
  %v1675 = vpop.f32.mrb[0].mxu0
  %v1676 = vadd.f32 %v292, %v1675
  %v1677 = vpop.f32.mrb[0].mxu0
  %1678 = vmatprep.mubr.bf16.mxu0 0
  %1679 = vmatmul.mubr.bf16.gmra.mrb[0].mxu0 %v873
  %v1680 = vpop.f32.mrb[0].mxu0
  %v1681 = vadd.f32 %v292, %v1680
  %v1682 = vpop.f32.mrb[0].mxu0
  %v1683 = vpop.f32.mrb[0].mxu0
  %v1684 = vadd.f32 %v292, %v1683
  %v1685 = vpop.f32.mrb[0].mxu0
  %1686 = vmatprep.mubr.bf16.mxu0 0
  %1687 = vmatmul.mubr.bf16.gmra.mrb[0].mxu0 %v874
  %v1688 = vpop.f32.mrb[0].mxu0
  %v1689 = vadd.f32 %v292, %v1688
  %v1690 = vpop.f32.mrb[0].mxu0
  %v1691 = vpop.f32.mrb[0].mxu0
  %v1692 = vadd.f32 %v292, %v1691
  %v1693 = vpop.f32.mrb[0].mxu0
  %1694 = vmatprep.mubr.bf16.mxu0 0
  %1695 = vmatmul.mubr.bf16.gmra.mrb[0].mxu0 %v875
  %v1696 = vpop.f32.mrb[0].mxu0
  %v1697 = vadd.f32 %v292, %v1696
  %v1698 = vpop.f32.mrb[0].mxu0
  %v1699 = vpop.f32.mrb[0].mxu0
  %v1700 = vadd.f32 %v292, %v1699
  %v1701 = vpop.f32.mrb[0].mxu0
  %1702 = vmatprep.mubr.bf16.mxu0 0
  %1703 = vmatmul.mubr.bf16.gmra.mrb[0].mxu0 %v876
  %v1704 = vpop.f32.mrb[0].mxu0
  %v1705 = vadd.f32 %v292, %v1704
  %v1706 = vpop.f32.mrb[0].mxu0
  %v1707 = vpop.f32.mrb[0].mxu0
  %v1708 = vadd.f32 %v292, %v1707
  %v1709 = vpop.f32.mrb[0].mxu0
  %1710 = vmatprep.mubr.bf16.mxu0 0
  %1711 = vmatmul.mubr.bf16.gmra.mrb[0].mxu0 %v877
  %v1712 = vpop.f32.mrb[0].mxu0
  %v1713 = vadd.f32 %v292, %v1712
  %v1714 = vpop.f32.mrb[0].mxu0
  %v1715 = vpop.f32.mrb[0].mxu0
  %v1716 = vadd.f32 %v292, %v1715
  %v1717 = vpop.f32.mrb[0].mxu0
  %1718 = vmatprep.mubr.bf16.mxu0 0
  %1719 = vmatmul.mubr.bf16.gmra.mrb[0].mxu0 %v878
  %v1720 = vpop.f32.mrb[0].mxu0
  %v1721 = vadd.f32 %v292, %v1720
  %v1722 = vpop.f32.mrb[0].mxu0
  %v1723 = vpop.f32.mrb[0].mxu0
  %v1724 = vadd.f32 %v292, %v1723
  %v1725 = vpop.f32.mrb[0].mxu0
  %1726 = vmatprep.mubr.bf16.mxu0 0
  %1727 = vmatmul.mubr.bf16.gmra.mrb[0].mxu0 %v879
  %v1728 = vpop.f32.mrb[0].mxu0
  %v1729 = vadd.f32 %v292, %v1728
  %v1730 = vpop.f32.mrb[0].mxu0
  %v1731 = vpop.f32.mrb[0].mxu0
  %v1732 = vadd.f32 %v292, %v1731
  %v1733 = vpop.f32.mrb[0].mxu0
  %1734 = vmatprep.mubr.bf16.mxu0 0
  %1735 = vmatmul.mubr.bf16.gmra.mrb[0].mxu0 %v880
  %v1736 = vpop.f32.mrb[0].mxu0
  %v1737 = vadd.f32 %v292, %v1736
  %v1738 = vpop.f32.mrb[0].mxu0
  %v1739 = vpop.f32.mrb[0].mxu0
  %v1740 = vadd.f32 %v292, %v1739
  %v1741 = vpop.f32.mrb[0].mxu0
  %1742 = vmatprep.mubr.bf16.mxu0 0
  %1743 = vmatmul.mubr.bf16.gmra.mrb[0].mxu0 %v881
  %v1744 = vpop.f32.mrb[0].mxu0
  %v1745 = vadd.f32 %v292, %v1744
  %v1746 = vpop.f32.mrb[0].mxu0
  %v1747 = vpop.f32.mrb[0].mxu0
  %v1748 = vadd.f32 %v292, %v1747
  %v1749 = vpop.f32.mrb[0].mxu0
  %1750 = vmatprep.mubr.bf16.mxu0 0
  %1751 = vmatmul.mubr.bf16.gmra.mrb[0].mxu0 %v882
  %v1752 = vpop.f32.mrb[0].mxu0
  %v1753 = vadd.f32 %v292, %v1752
  %v1754 = vpop.f32.mrb[0].mxu0
  %v1755 = vpop.f32.mrb[0].mxu0
  %v1756 = vadd.f32 %v292, %v1755
  %v1757 = vpop.f32.mrb[0].mxu0
  %1758 = vmatprep.mubr.bf16.mxu0 0
  %1759 = vmatmul.mubr.bf16.gmra.mrb[0].mxu0 %v883
  %v1760 = vpop.f32.mrb[0].mxu0
  %v1761 = vadd.f32 %v292, %v1760
  %v1762 = vpop.f32.mrb[0].mxu0
  %v1763 = vpop.f32.mrb[0].mxu0
  %v1764 = vadd.f32 %v292, %v1763
  %v1765 = vpop.f32.mrb[0].mxu0
  %1766 = vmatprep.mubr.bf16.mxu0 0
  %1767 = vmatmul.mubr.bf16.gmra.mrb[0].mxu0 %v884
  %v1768 = vpop.f32.mrb[0].mxu0
  %v1769 = vadd.f32 %v292, %v1768
  %v1770 = vpop.f32.mrb[0].mxu0
  %v1771 = vpop.f32.mrb[0].mxu0
  %v1772 = vadd.f32 %v292, %v1771
  %v1773 = vpop.f32.mrb[0].mxu0
  %1774 = vmatprep.mubr.bf16.mxu0 0
  %1775 = vmatmul.mubr.bf16.gmra.mrb[0].mxu0 %v885
  %v1776 = vpop.f32.mrb[0].mxu0
  %v1777 = vadd.f32 %v292, %v1776
  %v1778 = vpop.f32.mrb[0].mxu0
  %v1779 = vpop.f32.mrb[0].mxu0
  %v1780 = vadd.f32 %v292, %v1779
  %v1781 = vpop.f32.mrb[0].mxu0
  %1782 = vmatprep.mubr.bf16.mxu0 0
  %1783 = vmatmul.mubr.bf16.gmra.mrb[0].mxu0 %v886
  %v1784 = vpop.f32.mrb[0].mxu0
  %v1785 = vadd.f32 %v292, %v1784
  %v1786 = vpop.f32.mrb[0].mxu0
  %v1787 = vpop.f32.mrb[0].mxu0
  %v1788 = vadd.f32 %v292, %v1787
  %v1789 = vpop.f32.mrb[0].mxu0
  %1790 = vmatprep.mubr.bf16.mxu0 0
  %1791 = vmatmul.mubr.bf16.gmra.mrb[0].mxu0 %v887
  %v1792 = vpop.f32.mrb[0].mxu0
  %v1793 = vadd.f32 %v292, %v1792
  %v1794 = vpop.f32.mrb[0].mxu0
  %v1795 = vpop.f32.mrb[0].mxu0
  %v1796 = vadd.f32 %v292, %v1795
  %v1797 = vpop.f32.mrb[0].mxu0
  %1798 = vmatprep.mubr.bf16.mxu0 0
  %1799 = vmatmul.mubr.bf16.gmra.mrb[0].mxu0 %v888
  %v1800 = vpop.f32.mrb[0].mxu0
  %v1801 = vadd.f32 %v292, %v1800
  %v1802 = vpop.f32.mrb[0].mxu0
  %v1803 = vpop.f32.mrb[0].mxu0
  %v1804 = vadd.f32 %v292, %v1803
  %v1805 = vpop.f32.mrb[0].mxu0
  %1806 = vmatprep.mubr.bf16.mxu0 0
  %1807 = vmatmul.mubr.bf16.gmra.mrb[0].mxu0 %v889
  %v1808 = vpop.f32.mrb[0].mxu0
  %v1809 = vadd.f32 %v292, %v1808
  %v1810 = vpop.f32.mrb[0].mxu0
  %v1811 = vpop.f32.mrb[0].mxu0
  %v1812 = vadd.f32 %v292, %v1811
  %v1813 = vpop.f32.mrb[0].mxu0
  %1814 = vmatprep.mubr.bf16.mxu0 0
  %1815 = vmatmul.mubr.bf16.gmra.mrb[0].mxu0 %v890
  %v1816 = vpop.f32.mrb[0].mxu0
  %v1817 = vadd.f32 %v292, %v1816
  %v1818 = vpop.f32.mrb[0].mxu0
  %v1819 = vpop.f32.mrb[0].mxu0
  %v1820 = vadd.f32 %v292, %v1819
  %v1821 = vpop.f32.mrb[0].mxu0
  %1822 = vmatprep.mubr.bf16.mxu0 0
  %1823 = vmatmul.mubr.bf16.gmra.mrb[0].mxu0 %v891
  %v1824 = vpop.f32.mrb[0].mxu0
  %v1825 = vadd.f32 %v292, %v1824
  %v1826 = vpop.f32.mrb[0].mxu0
  %v1827 = vpop.f32.mrb[0].mxu0
  %v1828 = vadd.f32 %v292, %v1827
  %v1829 = vpop.f32.mrb[0].mxu0
  %1830 = vmatprep.mubr.bf16.mxu0 0
  %1831 = vmatmul.mubr.bf16.gmra.mrb[0].mxu0 %v892
  %v1832 = vpop.f32.mrb[0].mxu0
  %v1833 = vadd.f32 %v292, %v1832
  %v1834 = vpop.f32.mrb[0].mxu0
  %v1835 = vpop.f32.mrb[0].mxu0
  %v1836 = vadd.f32 %v292, %v1835
  %v1837 = vpop.f32.mrb[0].mxu0
  %1838 = vmatprep.mubr.bf16.mxu0 0
  %1839 = vmatmul.mubr.bf16.gmra.mrb[0].mxu0 %v893
  %v1840 = vpop.f32.mrb[0].mxu0
  %v1841 = vadd.f32 %v292, %v1840
  %v1842 = vpop.f32.mrb[0].mxu0
  %v1843 = vpop.f32.mrb[0].mxu0
  %v1844 = vadd.f32 %v292, %v1843
  %v1845 = vpop.f32.mrb[0].mxu0
  %1846 = vmatprep.mubr.bf16.mxu0 0
  %1847 = vmatmul.mubr.bf16.gmra.mrb[0].mxu0 %v894
  %v1848 = vpop.f32.mrb[0].mxu0
  %v1849 = vadd.f32 %v292, %v1848
  %v1850 = vpop.f32.mrb[0].mxu0
  %v1851 = vpop.f32.mrb[0].mxu0
  %v1852 = vadd.f32 %v292, %v1851
  %v1853 = vpop.f32.mrb[0].mxu0
  %1854 = vmatprep.mubr.bf16.mxu0 0
  %1855 = vmatmul.mubr.bf16.gmra.mrb[0].mxu0 %v895
  %v1856 = vpop.f32.mrb[0].mxu0
  %v1857 = vadd.f32 %v292, %v1856
  %v1858 = vpop.f32.mrb[0].mxu0
  %v1859 = vpop.f32.mrb[0].mxu0
  %v1860 = vadd.f32 %v292, %v1859
  %v1861 = vpop.f32.mrb[0].mxu0
  %1862 = vmatprep.mubr.bf16.mxu0 0
  %1863 = vmatmul.mubr.bf16.gmra.mrb[0].mxu0 %v896
  %v1864 = vpop.f32.mrb[0].mxu0
  %v1865 = vadd.f32 %v292, %v1864
  %v1866 = vpop.f32.mrb[0].mxu0
  %v1867 = vpop.f32.mrb[0].mxu0
  %v1868 = vadd.f32 %v292, %v1867
  %v1869 = vpop.f32.mrb[0].mxu0
  %1870 = vmatprep.mubr.bf16.mxu0 0
  %1871 = vmatmul.mubr.bf16.gmra.mrb[0].mxu0 %v897
  %v1872 = vpop.f32.mrb[0].mxu0
  %v1873 = vadd.f32 %v292, %v1872
  %v1874 = vpop.f32.mrb[0].mxu0
  %v1875 = vpop.f32.mrb[0].mxu0
  %v1876 = vadd.f32 %v292, %v1875
  %v1877 = vpop.f32.mrb[0].mxu0
  %1878 = vmatprep.mubr.bf16.mxu0 0
  %1879 = vmatmul.mubr.bf16.gmra.mrb[0].mxu0 %v898
  %v1880 = vpop.f32.mrb[0].mxu0
  %v1881 = vadd.f32 %v292, %v1880
  %v1882 = vpop.f32.mrb[0].mxu0
  %v1883 = vpop.f32.mrb[0].mxu0
  %v1884 = vadd.f32 %v292, %v1883
  %v1885 = vpop.f32.mrb[0].mxu0
  %1886 = vmatprep.mubr.bf16.mxu0 0
  %1887 = vmatmul.mubr.bf16.gmra.mrb[0].mxu0 %v899
  %v1888 = vpop.f32.mrb[0].mxu0
  %v1889 = vadd.f32 %v292, %v1888
  %v1890 = vpop.f32.mrb[0].mxu0
  %v1891 = vpop.f32.mrb[0].mxu0
  %v1892 = vadd.f32 %v292, %v1891
  %v1893 = vpop.f32.mrb[0].mxu0
  %1894 = vmatprep.mubr.bf16.mxu0 0
  %1895 = vmatmul.mubr.bf16.gmra.mrb[0].mxu0 %v900
  %v1896 = vpop.f32.mrb[0].mxu0
  %v1897 = vadd.f32 %v292, %v1896
  %v1898 = vpop.f32.mrb[0].mxu0
  %v1899 = vpop.f32.mrb[0].mxu0
  %v1900 = vadd.f32 %v292, %v1899
  %v1901 = vpop.f32.mrb[0].mxu0
  %1902 = vmatprep.mubr.bf16.mxu0 0
  %1903 = vmatmul.mubr.bf16.gmra.mrb[0].mxu0 %v901
  %v1904 = vpop.f32.mrb[0].mxu0
  %v1905 = vadd.f32 %v292, %v1904
  %v1906 = vpop.f32.mrb[0].mxu0
  %v1907 = vpop.f32.mrb[0].mxu0
  %v1908 = vadd.f32 %v292, %v1907
  %v1909 = vpop.f32.mrb[0].mxu0
  %1910 = vmatprep.mubr.bf16.mxu0 0
  %1911 = vmatmul.mubr.bf16.gmra.mrb[0].mxu0 %v902
  %v1912 = vpop.f32.mrb[0].mxu0
  %v1913 = vadd.f32 %v292, %v1912
  %v1914 = vpop.f32.mrb[0].mxu0
  %v1915 = vpop.f32.mrb[0].mxu0
  %v1916 = vadd.f32 %v292, %v1915
  %v1917 = vpop.f32.mrb[0].mxu0
  %1918 = vmatprep.mubr.bf16.mxu0 0
  %1919 = vmatmul.mubr.bf16.gmra.mrb[0].mxu0 %v903
  %v1920 = vpop.f32.mrb[0].mxu0
  %v1921 = vadd.f32 %v292, %v1920
  %v1922 = vpop.f32.mrb[0].mxu0
  %v1923 = vpop.f32.mrb[0].mxu0
  %v1924 = vadd.f32 %v292, %v1923
  %v1925 = vpop.f32.mrb[0].mxu0
  %1926 = vmatprep.mubr.bf16.mxu0 0
  %1927 = vmatmul.mubr.bf16.gmra.mrb[0].mxu0 %v904
  %v1928 = vpop.f32.mrb[0].mxu0
  %v1929 = vadd.f32 %v292, %v1928
  %v1930 = vpop.f32.mrb[0].mxu0
  %v1931 = vpop.f32.mrb[0].mxu0
  %v1932 = vadd.f32 %v292, %v1931
  %v1933 = vpop.f32.mrb[0].mxu0
  %1934 = vmatprep.mubr.bf16.mxu0 0
  %1935 = vmatmul.mubr.bf16.gmra.mrb[0].mxu0 %v905
  %v1936 = vpop.f32.mrb[0].mxu0
  %v1937 = vadd.f32 %v292, %v1936
  %v1938 = vpop.f32.mrb[0].mxu0
  %v1939 = vpop.f32.mrb[0].mxu0
  %v1940 = vadd.f32 %v292, %v1939
  %v1941 = vpop.f32.mrb[0].mxu0
  %1942 = vmatprep.mubr.bf16.mxu0 0
  %1943 = vmatmul.mubr.bf16.gmra.mrb[0].mxu0 %v906
  %v1944 = vpop.f32.mrb[0].mxu0
  %v1945 = vadd.f32 %v292, %v1944
  %v1946 = vpop.f32.mrb[0].mxu0
  %v1947 = vpop.f32.mrb[0].mxu0
  %v1948 = vadd.f32 %v292, %v1947
  %v1949 = vpop.f32.mrb[0].mxu0
  %1950 = vmatprep.mubr.bf16.mxu0 0
  %1951 = vmatmul.mubr.bf16.gmra.mrb[0].mxu0 %v907
  %v1952 = vpop.f32.mrb[0].mxu0
  %v1953 = vadd.f32 %v292, %v1952
  %v1954 = vpop.f32.mrb[0].mxu0
  %v1955 = vpop.f32.mrb[0].mxu0
  %v1956 = vadd.f32 %v292, %v1955
  %v1957 = vpop.f32.mrb[0].mxu0
  %1958 = vmatprep.mubr.bf16.mxu0 0
  %1959 = vmatmul.mubr.bf16.gmra.mrb[0].mxu0 %v908
  %v1960 = vpop.f32.mrb[0].mxu0
  %v1961 = vadd.f32 %v292, %v1960
  %v1962 = vpop.f32.mrb[0].mxu0
  %v1963 = vpop.f32.mrb[0].mxu0
  %v1964 = vadd.f32 %v292, %v1963
  %v1965 = vpop.f32.mrb[0].mxu0
  %1966 = vmatprep.mubr.bf16.mxu0 0
  %1967 = vmatmul.mubr.bf16.gmra.mrb[0].mxu0 %v909
  %v1968 = vpop.f32.mrb[0].mxu0
  %v1969 = vadd.f32 %v292, %v1968
  %v1970 = vpop.f32.mrb[0].mxu0
  %v1971 = vpop.f32.mrb[0].mxu0
  %v1972 = vadd.f32 %v292, %v1971
  %v1973 = vpop.f32.mrb[0].mxu0
  %1974 = vmatprep.mubr.bf16.mxu0 0
  %1975 = vmatmul.mubr.bf16.gmra.mrb[0].mxu0 %v910
  %v1976 = vpop.f32.mrb[0].mxu0
  %v1977 = vadd.f32 %v292, %v1976
  %v1978 = vpop.f32.mrb[0].mxu0
  %v1979 = vpop.f32.mrb[0].mxu0
  %v1980 = vadd.f32 %v292, %v1979
  %v1981 = vpop.f32.mrb[0].mxu0
  %1982 = vmatprep.mubr.bf16.mxu0 0
  %1983 = vmatmul.mubr.bf16.gmra.mrb[0].mxu0 %v911
  %v1984 = vpop.f32.mrb[0].mxu0
  %v1985 = vadd.f32 %v292, %v1984
  %v1986 = vpop.f32.mrb[0].mxu0
  %v1987 = vpop.f32.mrb[0].mxu0
  %v1988 = vadd.f32 %v292, %v1987
  %v1989 = vpop.f32.mrb[0].mxu0
  %1990 = vmatprep.mubr.bf16.mxu0 0
  %1991 = vmatmul.mubr.bf16.gmra.mrb[0].mxu0 %v912
  %v1992 = vpop.f32.mrb[0].mxu0
  %v1993 = vadd.f32 %v292, %v1992
  %v1994 = vpop.f32.mrb[0].mxu0
  %v1995 = vpop.f32.mrb[0].mxu0
  %v1996 = vadd.f32 %v292, %v1995
  %v1997 = vpop.f32.mrb[0].mxu0
  %1998 = vmatprep.mubr.bf16.mxu0 0
  %1999 = vmatmul.mubr.bf16.gmra.mrb[0].mxu0 %v913
  %v2000 = vpop.f32.mrb[0].mxu0
  %v2001 = vadd.f32 %v292, %v2000
  %v2002 = vpop.f32.mrb[0].mxu0
  %v2003 = vpop.f32.mrb[0].mxu0
  %v2004 = vadd.f32 %v292, %v2003
  %v2005 = vpop.f32.mrb[0].mxu0
  %2006 = vmatprep.mubr.bf16.mxu0 0
  %2007 = vmatmul.mubr.bf16.gmra.mrb[0].mxu0 %v914
  %v2008 = vpop.f32.mrb[0].mxu0
  %v2009 = vadd.f32 %v292, %v2008
  %v2010 = vpop.f32.mrb[0].mxu0
  %v2011 = vpop.f32.mrb[0].mxu0
  %v2012 = vadd.f32 %v292, %v2011
  %v2013 = vpop.f32.mrb[0].mxu0
  %2014 = vmatprep.mubr.bf16.mxu0 0
  %2015 = vmatmul.mubr.bf16.gmra.mrb[0].mxu0 %v915
  %v2016 = vpop.f32.mrb[0].mxu0
  %v2017 = vadd.f32 %v292, %v2016
  %v2018 = vpop.f32.mrb[0].mxu0
  %v2019 = vpop.f32.mrb[0].mxu0
  %v2020 = vadd.f32 %v292, %v2019
  %v2021 = vpop.f32.mrb[0].mxu0
  %2022 = vmatprep.mubr.bf16.mxu0 0
  %2023 = vmatmul.mubr.bf16.gmra.mrb[0].mxu0 %v916
  %v2024 = vpop.f32.mrb[0].mxu0
  %v2025 = vadd.f32 %v292, %v2024
  %v2026 = vpop.f32.mrb[0].mxu0
  %v2027 = vpop.f32.mrb[0].mxu0
  %v2028 = vadd.f32 %v292, %v2027
  %v2029 = vpop.f32.mrb[0].mxu0
  %2030 = vmatprep.mubr.bf16.mxu0 0
  %2031 = vmatmul.mubr.bf16.gmra.mrb[0].mxu0 %v917
  %v2032 = vpop.f32.mrb[0].mxu0
  %v2033 = vadd.f32 %v292, %v2032
  %v2034 = vpop.f32.mrb[0].mxu0
  %v2035 = vpop.f32.mrb[0].mxu0
  %v2036 = vadd.f32 %v292, %v2035
  %v2037 = vpop.f32.mrb[0].mxu0
  %2038 = vmatprep.mubr.bf16.mxu0 0
  %2039 = vmatmul.mubr.bf16.gmra.mrb[0].mxu0 %v918
  %v2040 = vpop.f32.mrb[0].mxu0
  %v2041 = vadd.f32 %v292, %v2040
  %v2042 = vpop.f32.mrb[0].mxu0
  %v2043 = vpop.f32.mrb[0].mxu0
  %v2044 = vadd.f32 %v292, %v2043
  %v2045 = vpop.f32.mrb[0].mxu0
  %2046 = vmatprep.mubr.bf16.mxu0 0
  %2047 = vmatmul.mubr.bf16.gmra.mrb[0].mxu0 %v919
  %v2048 = vpop.f32.mrb[0].mxu0
  %v2049 = vadd.f32 %v292, %v2048
  %v2050 = vpop.f32.mrb[0].mxu0
  %v2051 = vpop.f32.mrb[0].mxu0
  %v2052 = vadd.f32 %v292, %v2051
  %v2053 = vpop.f32.mrb[0].mxu0
  %2054 = vmatprep.mubr.bf16.mxu0 0
  %2055 = vmatmul.mubr.bf16.gmra.mrb[0].mxu0 %v920
  %v2056 = vpop.f32.mrb[0].mxu0
  %v2057 = vadd.f32 %v292, %v2056
  %v2058 = vpop.f32.mrb[0].mxu0
  %v2059 = vpop.f32.mrb[0].mxu0
  %v2060 = vadd.f32 %v292, %v2059
  %v2061 = vpop.f32.mrb[0].mxu0
  %2062 = vmatprep.mubr.bf16.mxu0 0
  %2063 = vmatmul.mubr.bf16.gmra.mrb[0].mxu0 %v921
  %v2064 = vpop.f32.mrb[0].mxu0
  %v2065 = vadd.f32 %v292, %v2064
  %v2066 = vpop.f32.mrb[0].mxu0
  %v2067 = vpop.f32.mrb[0].mxu0
  %v2068 = vadd.f32 %v292, %v2067
  %v2069 = vpop.f32.mrb[0].mxu0
  %2070 = vmatprep.mubr.bf16.mxu0 0
  %2071 = vmatmul.mubr.bf16.gmra.mrb[0].mxu0 %v922
  %v2072 = vpop.f32.mrb[0].mxu0
  %v2073 = vadd.f32 %v292, %v2072
  %v2074 = vpop.f32.mrb[0].mxu0
  %v2075 = vpop.f32.mrb[0].mxu0
  %v2076 = vadd.f32 %v292, %v2075
  %v2077 = vpop.f32.mrb[0].mxu0
  %2078 = vmatprep.mubr.bf16.mxu0 0
  %2079 = vmatmul.mubr.bf16.gmra.mrb[0].mxu0 %v923
  %v2080 = vpop.f32.mrb[0].mxu0
  %v2081 = vadd.f32 %v292, %v2080
  %v2082 = vpop.f32.mrb[0].mxu0
  %v2083 = vpop.f32.mrb[0].mxu0
  %v2084 = vadd.f32 %v292, %v2083
  %v2085 = vpop.f32.mrb[0].mxu0
  %2086 = vmatprep.mubr.bf16.mxu0 0
  %2087 = vmatmul.mubr.bf16.gmra.mrb[0].mxu0 %v924
  %v2088 = vpop.f32.mrb[0].mxu0
  %v2089 = vadd.f32 %v292, %v2088
  %v2090 = vpop.f32.mrb[0].mxu0
  %v2091 = vpop.f32.mrb[0].mxu0
  %v2092 = vadd.f32 %v292, %v2091
  %v2093 = vpop.f32.mrb[0].mxu0
  %2094 = vmatprep.mubr.bf16.mxu0 0
  %2095 = vmatmul.mubr.bf16.gmra.mrb[0].mxu0 %v925
  %v2096 = vpop.f32.mrb[0].mxu0
  %v2097 = vadd.f32 %v292, %v2096
  %v2098 = vpop.f32.mrb[0].mxu0
  %v2099 = vpop.f32.mrb[0].mxu0
  %v2100 = vadd.f32 %v292, %v2099
  %v2101 = vpop.f32.mrb[0].mxu0
  %2102 = vmatprep.mubr.bf16.mxu0 0
  %2103 = vmatmul.mubr.bf16.gmra.mrb[0].mxu0 %v926
  %v2104 = vpop.f32.mrb[0].mxu0
  %v2105 = vadd.f32 %v292, %v2104
  %v2106 = vpop.f32.mrb[0].mxu0
  %v2107 = vpop.f32.mrb[0].mxu0
  %v2108 = vadd.f32 %v292, %v2107
  %v2109 = vpop.f32.mrb[0].mxu0
  %2110 = vmatprep.mubr.bf16.mxu0 0
  %2111 = vmatmul.mubr.bf16.gmra.mrb[0].mxu0 %v927
  %v2112 = vpop.f32.mrb[0].mxu0
  %v2113 = vadd.f32 %v292, %v2112
  %v2114 = vpop.f32.mrb[0].mxu0
  %v2115 = vpop.f32.mrb[0].mxu0
  %v2116 = vadd.f32 %v292, %v2115
  %v2117 = vpop.f32.mrb[0].mxu0
  %2118 = vmatprep.mubr.bf16.mxu0 0
  %2119 = vmatmul.mubr.bf16.gmra.mrb[0].mxu0 %v928
  %v2120 = vpop.f32.mrb[0].mxu0
  %v2121 = vadd.f32 %v292, %v2120
  %v2122 = vpop.f32.mrb[0].mxu0
  %v2123 = vpop.f32.mrb[0].mxu0
  %v2124 = vadd.f32 %v292, %v2123
  %v2125 = vpop.f32.mrb[0].mxu0
  %2126 = vmatprep.mubr.bf16.mxu0 0
  %2127 = vmatmul.mubr.bf16.gmra.mrb[0].mxu0 %v929
  %v2128 = vpop.f32.mrb[0].mxu0
  %v2129 = vadd.f32 %v292, %v2128
  %v2130 = vpop.f32.mrb[0].mxu0
  %v2131 = vpop.f32.mrb[0].mxu0
  %v2132 = vadd.f32 %v292, %v2131
  %v2133 = vpop.f32.mrb[0].mxu0
  %2134 = vmatprep.mubr.bf16.mxu0 0
  %2135 = vmatmul.mubr.bf16.gmra.mrb[0].mxu0 %v930
  %v2136 = vpop.f32.mrb[0].mxu0
  %v2137 = vadd.f32 %v292, %v2136
  %v2138 = vpop.f32.mrb[0].mxu0
  %v2139 = vpop.f32.mrb[0].mxu0
  %v2140 = vadd.f32 %v292, %v2139
  %v2141 = vpop.f32.mrb[0].mxu0
  %2142 = vmatprep.mubr.bf16.mxu0 0
  %2143 = vmatmul.mubr.bf16.gmra.mrb[0].mxu0 %v931
  %v2144 = vpop.f32.mrb[0].mxu0
  %v2145 = vadd.f32 %v292, %v2144
  %v2146 = vpop.f32.mrb[0].mxu0
  %v2147 = vpop.f32.mrb[0].mxu0
  %v2148 = vadd.f32 %v292, %v2147
  %v2149 = vpop.f32.mrb[0].mxu0
  %2150 = vmatprep.mubr.bf16.mxu0 0
  %2151 = vmatmul.mubr.bf16.gmra.mrb[0].mxu0 %v932
  %v2152 = vpop.f32.mrb[0].mxu0
  %v2153 = vadd.f32 %v292, %v2152
  %v2154 = vpop.f32.mrb[0].mxu0
  %v2155 = vpop.f32.mrb[0].mxu0
  %v2156 = vadd.f32 %v292, %v2155
  %v2157 = vpop.f32.mrb[0].mxu0
  %2158 = vmatprep.mubr.bf16.mxu0 0
  %2159 = vmatmul.mubr.bf16.gmra.mrb[0].mxu0 %v933
  %v2160 = vpop.f32.mrb[0].mxu0
  %v2161 = vadd.f32 %v292, %v2160
  %v2162 = vpop.f32.mrb[0].mxu0
  %v2163 = vpop.f32.mrb[0].mxu0
  %v2164 = vadd.f32 %v292, %v2163
  %v2165 = vpop.f32.mrb[0].mxu0
  %2166 = vdwg.mxu0
  %vm2167 = vcmp.ge.f32.partialorder %v1145, 0.0
  %vm2168 = vcmp.ge.f32.partialorder %v1148, 0.0
  %vm2169 = vcmp.ge.f32.partialorder %v1153, 0.0
  %vm2170 = vcmp.ge.f32.partialorder %v1156, 0.0
  %vm2171 = vcmp.ge.f32.partialorder %v1161, 0.0
  %vm2172 = vcmp.ge.f32.partialorder %v1164, 0.0
  %vm2173 = vcmp.ge.f32.partialorder %v1169, 0.0
  %vm2174 = vcmp.ge.f32.partialorder %v1172, 0.0
  %vm2175 = vcmp.ge.f32.partialorder %v1177, 0.0
  %vm2176 = vcmp.ge.f32.partialorder %v1180, 0.0
  %vm2177 = vcmp.ge.f32.partialorder %v1185, 0.0
  %vm2178 = vcmp.ge.f32.partialorder %v1188, 0.0
  %vm2179 = vcmp.ge.f32.partialorder %v1193, 0.0
  %vm2180 = vcmp.ge.f32.partialorder %v1196, 0.0
  %vm2181 = vcmp.ge.f32.partialorder %v1201, 0.0
  %vm2182 = vcmp.ge.f32.partialorder %v1204, 0.0
  %vm2183 = vcmp.ge.f32.partialorder %v1209, 0.0
  %vm2184 = vcmp.ge.f32.partialorder %v1212, 0.0
  %vm2185 = vcmp.ge.f32.partialorder %v1217, 0.0
  %vm2186 = vcmp.ge.f32.partialorder %v1220, 0.0
  %vm2187 = vcmp.ge.f32.partialorder %v1225, 0.0
  %vm2188 = vcmp.ge.f32.partialorder %v1228, 0.0
  %vm2189 = vcmp.ge.f32.partialorder %v1233, 0.0
  %vm2190 = vcmp.ge.f32.partialorder %v1236, 0.0
  %vm2191 = vcmp.ge.f32.partialorder %v1241, 0.0
  %vm2192 = vcmp.ge.f32.partialorder %v1244, 0.0
  %vm2193 = vcmp.ge.f32.partialorder %v1249, 0.0
  %vm2194 = vcmp.ge.f32.partialorder %v1252, 0.0
  %vm2195 = vcmp.ge.f32.partialorder %v1257, 0.0
  %vm2196 = vcmp.ge.f32.partialorder %v1260, 0.0
  %vm2197 = vcmp.ge.f32.partialorder %v1265, 0.0
  %vm2198 = vcmp.ge.f32.partialorder %v1268, 0.0
  %vm2199 = vcmp.ge.f32.partialorder %v1273, 0.0
  %vm2200 = vcmp.ge.f32.partialorder %v1276, 0.0
  %vm2201 = vcmp.ge.f32.partialorder %v1281, 0.0
  %vm2202 = vcmp.ge.f32.partialorder %v1284, 0.0
  %vm2203 = vcmp.ge.f32.partialorder %v1289, 0.0
  %vm2204 = vcmp.ge.f32.partialorder %v1292, 0.0
  %vm2205 = vcmp.ge.f32.partialorder %v1297, 0.0
  %vm2206 = vcmp.ge.f32.partialorder %v1300, 0.0
  %vm2207 = vcmp.ge.f32.partialorder %v1305, 0.0
  %vm2208 = vcmp.ge.f32.partialorder %v1308, 0.0
  %vm2209 = vcmp.ge.f32.partialorder %v1313, 0.0
  %vm2210 = vcmp.ge.f32.partialorder %v1316, 0.0
  %vm2211 = vcmp.ge.f32.partialorder %v1321, 0.0
  %vm2212 = vcmp.ge.f32.partialorder %v1324, 0.0
  %vm2213 = vcmp.ge.f32.partialorder %v1329, 0.0
  %vm2214 = vcmp.ge.f32.partialorder %v1332, 0.0
  %vm2215 = vcmp.ge.f32.partialorder %v1337, 0.0
  %vm2216 = vcmp.ge.f32.partialorder %v1340, 0.0
  %vm2217 = vcmp.ge.f32.partialorder %v1345, 0.0
  %vm2218 = vcmp.ge.f32.partialorder %v1348, 0.0
  %vm2219 = vcmp.ge.f32.partialorder %v1353, 0.0
  %vm2220 = vcmp.ge.f32.partialorder %v1356, 0.0
  %vm2221 = vcmp.ge.f32.partialorder %v1361, 0.0
  %vm2222 = vcmp.ge.f32.partialorder %v1364, 0.0
  %vm2223 = vcmp.ge.f32.partialorder %v1369, 0.0
  %vm2224 = vcmp.ge.f32.partialorder %v1372, 0.0
  %vm2225 = vcmp.ge.f32.partialorder %v1377, 0.0
  %vm2226 = vcmp.ge.f32.partialorder %v1380, 0.0
  %vm2227 = vcmp.ge.f32.partialorder %v1385, 0.0
  %vm2228 = vcmp.ge.f32.partialorder %v1388, 0.0
  %vm2229 = vcmp.ge.f32.partialorder %v1393, 0.0
  %vm2230 = vcmp.ge.f32.partialorder %v1396, 0.0
  %vm2231 = vcmp.ge.f32.partialorder %v1401, 0.0
  %vm2232 = vcmp.ge.f32.partialorder %v1404, 0.0
  %vm2233 = vcmp.ge.f32.partialorder %v1409, 0.0
  %vm2234 = vcmp.ge.f32.partialorder %v1412, 0.0
  %vm2235 = vcmp.ge.f32.partialorder %v1417, 0.0
  %vm2236 = vcmp.ge.f32.partialorder %v1420, 0.0
  %vm2237 = vcmp.ge.f32.partialorder %v1425, 0.0
  %vm2238 = vcmp.ge.f32.partialorder %v1428, 0.0
  %vm2239 = vcmp.ge.f32.partialorder %v1433, 0.0
  %vm2240 = vcmp.ge.f32.partialorder %v1436, 0.0
  %vm2241 = vcmp.ge.f32.partialorder %v1441, 0.0
  %vm2242 = vcmp.ge.f32.partialorder %v1444, 0.0
  %vm2243 = vcmp.ge.f32.partialorder %v1449, 0.0
  %vm2244 = vcmp.ge.f32.partialorder %v1452, 0.0
  %vm2245 = vcmp.ge.f32.partialorder %v1457, 0.0
  %vm2246 = vcmp.ge.f32.partialorder %v1460, 0.0
  %vm2247 = vcmp.ge.f32.partialorder %v1465, 0.0
  %vm2248 = vcmp.ge.f32.partialorder %v1468, 0.0
  %vm2249 = vcmp.ge.f32.partialorder %v1473, 0.0
  %vm2250 = vcmp.ge.f32.partialorder %v1476, 0.0
  %vm2251 = vcmp.ge.f32.partialorder %v1481, 0.0
  %vm2252 = vcmp.ge.f32.partialorder %v1484, 0.0
  %vm2253 = vcmp.ge.f32.partialorder %v1489, 0.0
  %vm2254 = vcmp.ge.f32.partialorder %v1492, 0.0
  %vm2255 = vcmp.ge.f32.partialorder %v1497, 0.0
  %vm2256 = vcmp.ge.f32.partialorder %v1500, 0.0
  %vm2257 = vcmp.ge.f32.partialorder %v1505, 0.0
  %vm2258 = vcmp.ge.f32.partialorder %v1508, 0.0
  %vm2259 = vcmp.ge.f32.partialorder %v1513, 0.0
  %vm2260 = vcmp.ge.f32.partialorder %v1516, 0.0
  %vm2261 = vcmp.ge.f32.partialorder %v1521, 0.0
  %vm2262 = vcmp.ge.f32.partialorder %v1524, 0.0
  %vm2263 = vcmp.ge.f32.partialorder %v1529, 0.0
  %vm2264 = vcmp.ge.f32.partialorder %v1532, 0.0
  %vm2265 = vcmp.ge.f32.partialorder %v1537, 0.0
  %vm2266 = vcmp.ge.f32.partialorder %v1540, 0.0
  %vm2267 = vcmp.ge.f32.partialorder %v1545, 0.0
  %vm2268 = vcmp.ge.f32.partialorder %v1548, 0.0
  %vm2269 = vcmp.ge.f32.partialorder %v1553, 0.0
  %vm2270 = vcmp.ge.f32.partialorder %v1556, 0.0
  %vm2271 = vcmp.ge.f32.partialorder %v1561, 0.0
  %vm2272 = vcmp.ge.f32.partialorder %v1564, 0.0
  %vm2273 = vcmp.ge.f32.partialorder %v1569, 0.0
  %vm2274 = vcmp.ge.f32.partialorder %v1572, 0.0
  %vm2275 = vcmp.ge.f32.partialorder %v1577, 0.0
  %vm2276 = vcmp.ge.f32.partialorder %v1580, 0.0
  %vm2277 = vcmp.ge.f32.partialorder %v1585, 0.0
  %vm2278 = vcmp.ge.f32.partialorder %v1588, 0.0
  %vm2279 = vcmp.ge.f32.partialorder %v1593, 0.0
  %vm2280 = vcmp.ge.f32.partialorder %v1596, 0.0
  %vm2281 = vcmp.ge.f32.partialorder %v1601, 0.0
  %vm2282 = vcmp.ge.f32.partialorder %v1604, 0.0
  %vm2283 = vcmp.ge.f32.partialorder %v1609, 0.0
  %vm2284 = vcmp.ge.f32.partialorder %v1612, 0.0
  %vm2285 = vcmp.ge.f32.partialorder %v1617, 0.0
  %vm2286 = vcmp.ge.f32.partialorder %v1620, 0.0
  %vm2287 = vcmp.ge.f32.partialorder %v1625, 0.0
  %vm2288 = vcmp.ge.f32.partialorder %v1628, 0.0
  %vm2289 = vcmp.ge.f32.partialorder %v1633, 0.0
  %vm2290 = vcmp.ge.f32.partialorder %v1636, 0.0
  %vm2291 = vcmp.ge.f32.partialorder %v1641, 0.0
  %vm2292 = vcmp.ge.f32.partialorder %v1644, 0.0
  %vm2293 = vcmp.ge.f32.partialorder %v1649, 0.0
  %vm2294 = vcmp.ge.f32.partialorder %v1652, 0.0
  %vm2295 = vcmp.ge.f32.partialorder %v1657, 0.0
  %vm2296 = vcmp.ge.f32.partialorder %v1660, 0.0
  %vm2297 = vcmp.ge.f32.partialorder %v1665, 0.0
  %vm2298 = vcmp.ge.f32.partialorder %v1668, 0.0
  %vm2299 = vcmp.ge.f32.partialorder %v1673, 0.0
  %vm2300 = vcmp.ge.f32.partialorder %v1676, 0.0
  %vm2301 = vcmp.ge.f32.partialorder %v1681, 0.0
  %vm2302 = vcmp.ge.f32.partialorder %v1684, 0.0
  %vm2303 = vcmp.ge.f32.partialorder %v1689, 0.0
  %vm2304 = vcmp.ge.f32.partialorder %v1692, 0.0
  %vm2305 = vcmp.ge.f32.partialorder %v1697, 0.0
  %vm2306 = vcmp.ge.f32.partialorder %v1700, 0.0
  %vm2307 = vcmp.ge.f32.partialorder %v1705, 0.0
  %vm2308 = vcmp.ge.f32.partialorder %v1708, 0.0
  %vm2309 = vcmp.ge.f32.partialorder %v1713, 0.0
  %vm2310 = vcmp.ge.f32.partialorder %v1716, 0.0
  %vm2311 = vcmp.ge.f32.partialorder %v1721, 0.0
  %vm2312 = vcmp.ge.f32.partialorder %v1724, 0.0
  %vm2313 = vcmp.ge.f32.partialorder %v1729, 0.0
  %vm2314 = vcmp.ge.f32.partialorder %v1732, 0.0
  %vm2315 = vcmp.ge.f32.partialorder %v1737, 0.0
  %vm2316 = vcmp.ge.f32.partialorder %v1740, 0.0
  %vm2317 = vcmp.ge.f32.partialorder %v1745, 0.0
  %vm2318 = vcmp.ge.f32.partialorder %v1748, 0.0
  %vm2319 = vcmp.ge.f32.partialorder %v1753, 0.0
  %vm2320 = vcmp.ge.f32.partialorder %v1756, 0.0
  %vm2321 = vcmp.ge.f32.partialorder %v1761, 0.0
  %vm2322 = vcmp.ge.f32.partialorder %v1764, 0.0
  %vm2323 = vcmp.ge.f32.partialorder %v1769, 0.0
  %vm2324 = vcmp.ge.f32.partialorder %v1772, 0.0
  %vm2325 = vcmp.ge.f32.partialorder %v1777, 0.0
  %vm2326 = vcmp.ge.f32.partialorder %v1780, 0.0
  %vm2327 = vcmp.ge.f32.partialorder %v1785, 0.0
  %vm2328 = vcmp.ge.f32.partialorder %v1788, 0.0
  %vm2329 = vcmp.ge.f32.partialorder %v1793, 0.0
  %vm2330 = vcmp.ge.f32.partialorder %v1796, 0.0
  %vm2331 = vcmp.ge.f32.partialorder %v1801, 0.0
  %vm2332 = vcmp.ge.f32.partialorder %v1804, 0.0
  %vm2333 = vcmp.ge.f32.partialorder %v1809, 0.0
  %vm2334 = vcmp.ge.f32.partialorder %v1812, 0.0
  %vm2335 = vcmp.ge.f32.partialorder %v1817, 0.0
  %vm2336 = vcmp.ge.f32.partialorder %v1820, 0.0
  %vm2337 = vcmp.ge.f32.partialorder %v1825, 0.0
  %vm2338 = vcmp.ge.f32.partialorder %v1828, 0.0
  %vm2339 = vcmp.ge.f32.partialorder %v1833, 0.0
  %vm2340 = vcmp.ge.f32.partialorder %v1836, 0.0
  %vm2341 = vcmp.ge.f32.partialorder %v1841, 0.0
  %vm2342 = vcmp.ge.f32.partialorder %v1844, 0.0
  %vm2343 = vcmp.ge.f32.partialorder %v1849, 0.0
  %vm2344 = vcmp.ge.f32.partialorder %v1852, 0.0
  %vm2345 = vcmp.ge.f32.partialorder %v1857, 0.0
  %vm2346 = vcmp.ge.f32.partialorder %v1860, 0.0
  %vm2347 = vcmp.ge.f32.partialorder %v1865, 0.0
  %vm2348 = vcmp.ge.f32.partialorder %v1868, 0.0
  %vm2349 = vcmp.ge.f32.partialorder %v1873, 0.0
  %vm2350 = vcmp.ge.f32.partialorder %v1876, 0.0
  %vm2351 = vcmp.ge.f32.partialorder %v1881, 0.0
  %vm2352 = vcmp.ge.f32.partialorder %v1884, 0.0
  %vm2353 = vcmp.ge.f32.partialorder %v1889, 0.0
  %vm2354 = vcmp.ge.f32.partialorder %v1892, 0.0
  %vm2355 = vcmp.ge.f32.partialorder %v1897, 0.0
  %vm2356 = vcmp.ge.f32.partialorder %v1900, 0.0
  %vm2357 = vcmp.ge.f32.partialorder %v1905, 0.0
  %vm2358 = vcmp.ge.f32.partialorder %v1908, 0.0
  %vm2359 = vcmp.ge.f32.partialorder %v1913, 0.0
  %vm2360 = vcmp.ge.f32.partialorder %v1916, 0.0
  %vm2361 = vcmp.ge.f32.partialorder %v1921, 0.0
  %vm2362 = vcmp.ge.f32.partialorder %v1924, 0.0
  %vm2363 = vcmp.ge.f32.partialorder %v1929, 0.0
  %vm2364 = vcmp.ge.f32.partialorder %v1932, 0.0
  %vm2365 = vcmp.ge.f32.partialorder %v1937, 0.0
  %vm2366 = vcmp.ge.f32.partialorder %v1940, 0.0
  %vm2367 = vcmp.ge.f32.partialorder %v1945, 0.0
  %vm2368 = vcmp.ge.f32.partialorder %v1948, 0.0
  %vm2369 = vcmp.ge.f32.partialorder %v1953, 0.0
  %vm2370 = vcmp.ge.f32.partialorder %v1956, 0.0
  %vm2371 = vcmp.ge.f32.partialorder %v1961, 0.0
  %vm2372 = vcmp.ge.f32.partialorder %v1964, 0.0
  %vm2373 = vcmp.ge.f32.partialorder %v1969, 0.0
  %vm2374 = vcmp.ge.f32.partialorder %v1972, 0.0
  %vm2375 = vcmp.ge.f32.partialorder %v1977, 0.0
  %vm2376 = vcmp.ge.f32.partialorder %v1980, 0.0
  %vm2377 = vcmp.ge.f32.partialorder %v1985, 0.0
  %vm2378 = vcmp.ge.f32.partialorder %v1988, 0.0
  %vm2379 = vcmp.ge.f32.partialorder %v1993, 0.0
  %vm2380 = vcmp.ge.f32.partialorder %v1996, 0.0
  %vm2381 = vcmp.ge.f32.partialorder %v2001, 0.0
  %vm2382 = vcmp.ge.f32.partialorder %v2004, 0.0
  %vm2383 = vcmp.ge.f32.partialorder %v2009, 0.0
  %vm2384 = vcmp.ge.f32.partialorder %v2012, 0.0
  %vm2385 = vcmp.ge.f32.partialorder %v2017, 0.0
  %vm2386 = vcmp.ge.f32.partialorder %v2020, 0.0
  %vm2387 = vcmp.ge.f32.partialorder %v2025, 0.0
  %vm2388 = vcmp.ge.f32.partialorder %v2028, 0.0
  %vm2389 = vcmp.ge.f32.partialorder %v2033, 0.0
  %vm2390 = vcmp.ge.f32.partialorder %v2036, 0.0
  %vm2391 = vcmp.ge.f32.partialorder %v2041, 0.0
  %vm2392 = vcmp.ge.f32.partialorder %v2044, 0.0
  %vm2393 = vcmp.ge.f32.partialorder %v2049, 0.0
  %vm2394 = vcmp.ge.f32.partialorder %v2052, 0.0
  %vm2395 = vcmp.ge.f32.partialorder %v2057, 0.0
  %vm2396 = vcmp.ge.f32.partialorder %v2060, 0.0
  %vm2397 = vcmp.ge.f32.partialorder %v2065, 0.0
  %vm2398 = vcmp.ge.f32.partialorder %v2068, 0.0
  %vm2399 = vcmp.ge.f32.partialorder %v2073, 0.0
  %vm2400 = vcmp.ge.f32.partialorder %v2076, 0.0
  %vm2401 = vcmp.ge.f32.partialorder %v2081, 0.0
  %vm2402 = vcmp.ge.f32.partialorder %v2084, 0.0
  %vm2403 = vcmp.ge.f32.partialorder %v2089, 0.0
  %vm2404 = vcmp.ge.f32.partialorder %v2092, 0.0
  %vm2405 = vcmp.ge.f32.partialorder %v2097, 0.0
  %vm2406 = vcmp.ge.f32.partialorder %v2100, 0.0
  %vm2407 = vcmp.ge.f32.partialorder %v2105, 0.0
  %vm2408 = vcmp.ge.f32.partialorder %v2108, 0.0
  %vm2409 = vcmp.ge.f32.partialorder %v2113, 0.0
  %vm2410 = vcmp.ge.f32.partialorder %v2116, 0.0
  %vm2411 = vcmp.ge.f32.partialorder %v2121, 0.0
  %vm2412 = vcmp.ge.f32.partialorder %v2124, 0.0
  %vm2413 = vcmp.ge.f32.partialorder %v2129, 0.0
  %vm2414 = vcmp.ge.f32.partialorder %v2132, 0.0
  %vm2415 = vcmp.ge.f32.partialorder %v2137, 0.0
  %vm2416 = vcmp.ge.f32.partialorder %v2140, 0.0
  %vm2417 = vcmp.ge.f32.partialorder %v2145, 0.0
  %vm2418 = vcmp.ge.f32.partialorder %v2148, 0.0
  %vm2419 = vcmp.ge.f32.partialorder %v2153, 0.0
  %vm2420 = vcmp.ge.f32.partialorder %v2156, 0.0
  %vm2421 = vcmp.ge.f32.partialorder %v2161, 0.0
  %vm2422 = vcmp.ge.f32.partialorder %v2164, 0.0
  %v2423 = vmul.f32 %v1145, 0.2
  %v2424 = vmul.f32 %v1148, 0.2
  %v2425 = vmul.f32 %v1153, 0.2
  %v2426 = vmul.f32 %v1156, 0.2
  %v2427 = vmul.f32 %v1161, 0.2
  %v2428 = vmul.f32 %v1164, 0.2
  %v2429 = vmul.f32 %v1169, 0.2
  %v2430 = vmul.f32 %v1172, 0.2
  %v2431 = vmul.f32 %v1177, 0.2
  %v2432 = vmul.f32 %v1180, 0.2
  %v2433 = vmul.f32 %v1185, 0.2
  %v2434 = vmul.f32 %v1188, 0.2
  %v2435 = vmul.f32 %v1193, 0.2
  %v2436 = vmul.f32 %v1196, 0.2
  %v2437 = vmul.f32 %v1201, 0.2
  %v2438 = vmul.f32 %v1204, 0.2
  %v2439 = vmul.f32 %v1209, 0.2
  %v2440 = vmul.f32 %v1212, 0.2
  %v2441 = vmul.f32 %v1217, 0.2
  %v2442 = vmul.f32 %v1220, 0.2
  %v2443 = vmul.f32 %v1225, 0.2
  %v2444 = vmul.f32 %v1228, 0.2
  %v2445 = vmul.f32 %v1233, 0.2
  %v2446 = vmul.f32 %v1236, 0.2
  %v2447 = vmul.f32 %v1241, 0.2
  %v2448 = vmul.f32 %v1244, 0.2
  %v2449 = vmul.f32 %v1249, 0.2
  %v2450 = vmul.f32 %v1252, 0.2
  %v2451 = vmul.f32 %v1257, 0.2
  %v2452 = vmul.f32 %v1260, 0.2
  %v2453 = vmul.f32 %v1265, 0.2
  %v2454 = vmul.f32 %v1268, 0.2
  %v2455 = vmul.f32 %v1273, 0.2
  %v2456 = vmul.f32 %v1276, 0.2
  %v2457 = vmul.f32 %v1281, 0.2
  %v2458 = vmul.f32 %v1284, 0.2
  %v2459 = vmul.f32 %v1289, 0.2
  %v2460 = vmul.f32 %v1292, 0.2
  %v2461 = vmul.f32 %v1297, 0.2
  %v2462 = vmul.f32 %v1300, 0.2
  %v2463 = vmul.f32 %v1305, 0.2
  %v2464 = vmul.f32 %v1308, 0.2
  %v2465 = vmul.f32 %v1313, 0.2
  %v2466 = vmul.f32 %v1316, 0.2
  %v2467 = vmul.f32 %v1321, 0.2
  %v2468 = vmul.f32 %v1324, 0.2
  %v2469 = vmul.f32 %v1329, 0.2
  %v2470 = vmul.f32 %v1332, 0.2
  %v2471 = vmul.f32 %v1337, 0.2
  %v2472 = vmul.f32 %v1340, 0.2
  %v2473 = vmul.f32 %v1345, 0.2
  %v2474 = vmul.f32 %v1348, 0.2
  %v2475 = vmul.f32 %v1353, 0.2
  %v2476 = vmul.f32 %v1356, 0.2
  %v2477 = vmul.f32 %v1361, 0.2
  %v2478 = vmul.f32 %v1364, 0.2
  %v2479 = vmul.f32 %v1369, 0.2
  %v2480 = vmul.f32 %v1372, 0.2
  %v2481 = vmul.f32 %v1377, 0.2
  %v2482 = vmul.f32 %v1380, 0.2
  %v2483 = vmul.f32 %v1385, 0.2
  %v2484 = vmul.f32 %v1388, 0.2
  %v2485 = vmul.f32 %v1393, 0.2
  %v2486 = vmul.f32 %v1396, 0.2
  %v2487 = vmul.f32 %v1401, 0.2
  %v2488 = vmul.f32 %v1404, 0.2
  %v2489 = vmul.f32 %v1409, 0.2
  %v2490 = vmul.f32 %v1412, 0.2
  %v2491 = vmul.f32 %v1417, 0.2
  %v2492 = vmul.f32 %v1420, 0.2
  %v2493 = vmul.f32 %v1425, 0.2
  %v2494 = vmul.f32 %v1428, 0.2
  %v2495 = vmul.f32 %v1433, 0.2
  %v2496 = vmul.f32 %v1436, 0.2
  %v2497 = vmul.f32 %v1441, 0.2
  %v2498 = vmul.f32 %v1444, 0.2
  %v2499 = vmul.f32 %v1449, 0.2
  %v2500 = vmul.f32 %v1452, 0.2
  %v2501 = vmul.f32 %v1457, 0.2
  %v2502 = vmul.f32 %v1460, 0.2
  %v2503 = vmul.f32 %v1465, 0.2
  %v2504 = vmul.f32 %v1468, 0.2
  %v2505 = vmul.f32 %v1473, 0.2
  %v2506 = vmul.f32 %v1476, 0.2
  %v2507 = vmul.f32 %v1481, 0.2
  %v2508 = vmul.f32 %v1484, 0.2
  %v2509 = vmul.f32 %v1489, 0.2
  %v2510 = vmul.f32 %v1492, 0.2
  %v2511 = vmul.f32 %v1497, 0.2
  %v2512 = vmul.f32 %v1500, 0.2
  %v2513 = vmul.f32 %v1505, 0.2
  %v2514 = vmul.f32 %v1508, 0.2
  %v2515 = vmul.f32 %v1513, 0.2
  %v2516 = vmul.f32 %v1516, 0.2
  %v2517 = vmul.f32 %v1521, 0.2
  %v2518 = vmul.f32 %v1524, 0.2
  %v2519 = vmul.f32 %v1529, 0.2
  %v2520 = vmul.f32 %v1532, 0.2
  %v2521 = vmul.f32 %v1537, 0.2
  %v2522 = vmul.f32 %v1540, 0.2
  %v2523 = vmul.f32 %v1545, 0.2
  %v2524 = vmul.f32 %v1548, 0.2
  %v2525 = vmul.f32 %v1553, 0.2
  %v2526 = vmul.f32 %v1556, 0.2
  %v2527 = vmul.f32 %v1561, 0.2
  %v2528 = vmul.f32 %v1564, 0.2
  %v2529 = vmul.f32 %v1569, 0.2
  %v2530 = vmul.f32 %v1572, 0.2
  %v2531 = vmul.f32 %v1577, 0.2
  %v2532 = vmul.f32 %v1580, 0.2
  %v2533 = vmul.f32 %v1585, 0.2
  %v2534 = vmul.f32 %v1588, 0.2
  %v2535 = vmul.f32 %v1593, 0.2
  %v2536 = vmul.f32 %v1596, 0.2
  %v2537 = vmul.f32 %v1601, 0.2
  %v2538 = vmul.f32 %v1604, 0.2
  %v2539 = vmul.f32 %v1609, 0.2
  %v2540 = vmul.f32 %v1612, 0.2
  %v2541 = vmul.f32 %v1617, 0.2
  %v2542 = vmul.f32 %v1620, 0.2
  %v2543 = vmul.f32 %v1625, 0.2
  %v2544 = vmul.f32 %v1628, 0.2
  %v2545 = vmul.f32 %v1633, 0.2
  %v2546 = vmul.f32 %v1636, 0.2
  %v2547 = vmul.f32 %v1641, 0.2
  %v2548 = vmul.f32 %v1644, 0.2
  %v2549 = vmul.f32 %v1649, 0.2
  %v2550 = vmul.f32 %v1652, 0.2
  %v2551 = vmul.f32 %v1657, 0.2
  %v2552 = vmul.f32 %v1660, 0.2
  %v2553 = vmul.f32 %v1665, 0.2
  %v2554 = vmul.f32 %v1668, 0.2
  %v2555 = vmul.f32 %v1673, 0.2
  %v2556 = vmul.f32 %v1676, 0.2
  %v2557 = vmul.f32 %v1681, 0.2
  %v2558 = vmul.f32 %v1684, 0.2
  %v2559 = vmul.f32 %v1689, 0.2
  %v2560 = vmul.f32 %v1692, 0.2
  %v2561 = vmul.f32 %v1697, 0.2
  %v2562 = vmul.f32 %v1700, 0.2
  %v2563 = vmul.f32 %v1705, 0.2
  %v2564 = vmul.f32 %v1708, 0.2
  %v2565 = vmul.f32 %v1713, 0.2
  %v2566 = vmul.f32 %v1716, 0.2
  %v2567 = vmul.f32 %v1721, 0.2
  %v2568 = vmul.f32 %v1724, 0.2
  %v2569 = vmul.f32 %v1729, 0.2
  %v2570 = vmul.f32 %v1732, 0.2
  %v2571 = vmul.f32 %v1737, 0.2
  %v2572 = vmul.f32 %v1740, 0.2
  %v2573 = vmul.f32 %v1745, 0.2
  %v2574 = vmul.f32 %v1748, 0.2
  %v2575 = vmul.f32 %v1753, 0.2
  %v2576 = vmul.f32 %v1756, 0.2
  %v2577 = vmul.f32 %v1761, 0.2
  %v2578 = vmul.f32 %v1764, 0.2
  %v2579 = vmul.f32 %v1769, 0.2
  %v2580 = vmul.f32 %v1772, 0.2
  %v2581 = vmul.f32 %v1777, 0.2
  %v2582 = vmul.f32 %v1780, 0.2
  %v2583 = vmul.f32 %v1785, 0.2
  %v2584 = vmul.f32 %v1788, 0.2
  %v2585 = vmul.f32 %v1793, 0.2
  %v2586 = vmul.f32 %v1796, 0.2
  %v2587 = vmul.f32 %v1801, 0.2
  %v2588 = vmul.f32 %v1804, 0.2
  %v2589 = vmul.f32 %v1809, 0.2
  %v2590 = vmul.f32 %v1812, 0.2
  %v2591 = vmul.f32 %v1817, 0.2
  %v2592 = vmul.f32 %v1820, 0.2
  %v2593 = vmul.f32 %v1825, 0.2
  %v2594 = vmul.f32 %v1828, 0.2
  %v2595 = vmul.f32 %v1833, 0.2
  %v2596 = vmul.f32 %v1836, 0.2
  %v2597 = vmul.f32 %v1841, 0.2
  %v2598 = vmul.f32 %v1844, 0.2
  %v2599 = vmul.f32 %v1849, 0.2
  %v2600 = vmul.f32 %v1852, 0.2
  %v2601 = vmul.f32 %v1857, 0.2
  %v2602 = vmul.f32 %v1860, 0.2
  %v2603 = vmul.f32 %v1865, 0.2
  %v2604 = vmul.f32 %v1868, 0.2
  %v2605 = vmul.f32 %v1873, 0.2
  %v2606 = vmul.f32 %v1876, 0.2
  %v2607 = vmul.f32 %v1881, 0.2
  %v2608 = vmul.f32 %v1884, 0.2
  %v2609 = vmul.f32 %v1889, 0.2
  %v2610 = vmul.f32 %v1892, 0.2
  %v2611 = vmul.f32 %v1897, 0.2
  %v2612 = vmul.f32 %v1900, 0.2
  %v2613 = vmul.f32 %v1905, 0.2
  %v2614 = vmul.f32 %v1908, 0.2
  %v2615 = vmul.f32 %v1913, 0.2
  %v2616 = vmul.f32 %v1916, 0.2
  %v2617 = vmul.f32 %v1921, 0.2
  %v2618 = vmul.f32 %v1924, 0.2
  %v2619 = vmul.f32 %v1929, 0.2
  %v2620 = vmul.f32 %v1932, 0.2
  %v2621 = vmul.f32 %v1937, 0.2
  %v2622 = vmul.f32 %v1940, 0.2
  %v2623 = vmul.f32 %v1945, 0.2
  %v2624 = vmul.f32 %v1948, 0.2
  %v2625 = vmul.f32 %v1953, 0.2
  %v2626 = vmul.f32 %v1956, 0.2
  %v2627 = vmul.f32 %v1961, 0.2
  %v2628 = vmul.f32 %v1964, 0.2
  %v2629 = vmul.f32 %v1969, 0.2
  %v2630 = vmul.f32 %v1972, 0.2
  %v2631 = vmul.f32 %v1977, 0.2
  %v2632 = vmul.f32 %v1980, 0.2
  %v2633 = vmul.f32 %v1985, 0.2
  %v2634 = vmul.f32 %v1988, 0.2
  %v2635 = vmul.f32 %v1993, 0.2
  %v2636 = vmul.f32 %v1996, 0.2
  %v2637 = vmul.f32 %v2001, 0.2
  %v2638 = vmul.f32 %v2004, 0.2
  %v2639 = vmul.f32 %v2009, 0.2
  %v2640 = vmul.f32 %v2012, 0.2
  %v2641 = vmul.f32 %v2017, 0.2
  %v2642 = vmul.f32 %v2020, 0.2
  %v2643 = vmul.f32 %v2025, 0.2
  %v2644 = vmul.f32 %v2028, 0.2
  %v2645 = vmul.f32 %v2033, 0.2
  %v2646 = vmul.f32 %v2036, 0.2
  %v2647 = vmul.f32 %v2041, 0.2
  %v2648 = vmul.f32 %v2044, 0.2
  %v2649 = vmul.f32 %v2049, 0.2
  %v2650 = vmul.f32 %v2052, 0.2
  %v2651 = vmul.f32 %v2057, 0.2
  %v2652 = vmul.f32 %v2060, 0.2
  %v2653 = vmul.f32 %v2065, 0.2
  %v2654 = vmul.f32 %v2068, 0.2
  %v2655 = vmul.f32 %v2073, 0.2
  %v2656 = vmul.f32 %v2076, 0.2
  %v2657 = vmul.f32 %v2081, 0.2
  %v2658 = vmul.f32 %v2084, 0.2
  %v2659 = vmul.f32 %v2089, 0.2
  %v2660 = vmul.f32 %v2092, 0.2
  %v2661 = vmul.f32 %v2097, 0.2
  %v2662 = vmul.f32 %v2100, 0.2
  %v2663 = vmul.f32 %v2105, 0.2
  %v2664 = vmul.f32 %v2108, 0.2
  %v2665 = vmul.f32 %v2113, 0.2
  %v2666 = vmul.f32 %v2116, 0.2
  %v2667 = vmul.f32 %v2121, 0.2
  %v2668 = vmul.f32 %v2124, 0.2
  %v2669 = vmul.f32 %v2129, 0.2
  %v2670 = vmul.f32 %v2132, 0.2
  %v2671 = vmul.f32 %v2137, 0.2
  %v2672 = vmul.f32 %v2140, 0.2
  %v2673 = vmul.f32 %v2145, 0.2
  %v2674 = vmul.f32 %v2148, 0.2
  %v2675 = vmul.f32 %v2153, 0.2
  %v2676 = vmul.f32 %v2156, 0.2
  %v2677 = vmul.f32 %v2161, 0.2
  %v2678 = vmul.f32 %v2164, 0.2
  %v2679 = vsel %vm2167, %v1145, %v2423
  %v2680 = vsel %vm2168, %v1148, %v2424
  %v2681 = vsel %vm2169, %v1153, %v2425
  %v2682 = vsel %vm2170, %v1156, %v2426
  %v2683 = vsel %vm2171, %v1161, %v2427
  %v2684 = vsel %vm2172, %v1164, %v2428
  %v2685 = vsel %vm2173, %v1169, %v2429
  %v2686 = vsel %vm2174, %v1172, %v2430
  %v2687 = vsel %vm2175, %v1177, %v2431
  %v2688 = vsel %vm2176, %v1180, %v2432
  %v2689 = vsel %vm2177, %v1185, %v2433
  %v2690 = vsel %vm2178, %v1188, %v2434
  %v2691 = vsel %vm2179, %v1193, %v2435
  %v2692 = vsel %vm2180, %v1196, %v2436
  %v2693 = vsel %vm2181, %v1201, %v2437
  %v2694 = vsel %vm2182, %v1204, %v2438
  %v2695 = vsel %vm2183, %v1209, %v2439
  %v2696 = vsel %vm2184, %v1212, %v2440
  %v2697 = vsel %vm2185, %v1217, %v2441
  %v2698 = vsel %vm2186, %v1220, %v2442
  %v2699 = vsel %vm2187, %v1225, %v2443
  %v2700 = vsel %vm2188, %v1228, %v2444
  %v2701 = vsel %vm2189, %v1233, %v2445
  %v2702 = vsel %vm2190, %v1236, %v2446
  %v2703 = vsel %vm2191, %v1241, %v2447
  %v2704 = vsel %vm2192, %v1244, %v2448
  %v2705 = vsel %vm2193, %v1249, %v2449
  %v2706 = vsel %vm2194, %v1252, %v2450
  %v2707 = vsel %vm2195, %v1257, %v2451
  %v2708 = vsel %vm2196, %v1260, %v2452
  %v2709 = vsel %vm2197, %v1265, %v2453
  %v2710 = vsel %vm2198, %v1268, %v2454
  %v2711 = vsel %vm2199, %v1273, %v2455
  %v2712 = vsel %vm2200, %v1276, %v2456
  %v2713 = vsel %vm2201, %v1281, %v2457
  %v2714 = vsel %vm2202, %v1284, %v2458
  %v2715 = vsel %vm2203, %v1289, %v2459
  %v2716 = vsel %vm2204, %v1292, %v2460
  %v2717 = vsel %vm2205, %v1297, %v2461
  %v2718 = vsel %vm2206, %v1300, %v2462
  %v2719 = vsel %vm2207, %v1305, %v2463
  %v2720 = vsel %vm2208, %v1308, %v2464
  %v2721 = vsel %vm2209, %v1313, %v2465
  %v2722 = vsel %vm2210, %v1316, %v2466
  %v2723 = vsel %vm2211, %v1321, %v2467
  %v2724 = vsel %vm2212, %v1324, %v2468
  %v2725 = vsel %vm2213, %v1329, %v2469
  %v2726 = vsel %vm2214, %v1332, %v2470
  %v2727 = vsel %vm2215, %v1337, %v2471
  %v2728 = vsel %vm2216, %v1340, %v2472
  %v2729 = vsel %vm2217, %v1345, %v2473
  %v2730 = vsel %vm2218, %v1348, %v2474
  %v2731 = vsel %vm2219, %v1353, %v2475
  %v2732 = vsel %vm2220, %v1356, %v2476
  %v2733 = vsel %vm2221, %v1361, %v2477
  %v2734 = vsel %vm2222, %v1364, %v2478
  %v2735 = vsel %vm2223, %v1369, %v2479
  %v2736 = vsel %vm2224, %v1372, %v2480
  %v2737 = vsel %vm2225, %v1377, %v2481
  %v2738 = vsel %vm2226, %v1380, %v2482
  %v2739 = vsel %vm2227, %v1385, %v2483
  %v2740 = vsel %vm2228, %v1388, %v2484
  %v2741 = vsel %vm2229, %v1393, %v2485
  %v2742 = vsel %vm2230, %v1396, %v2486
  %v2743 = vsel %vm2231, %v1401, %v2487
  %v2744 = vsel %vm2232, %v1404, %v2488
  %v2745 = vsel %vm2233, %v1409, %v2489
  %v2746 = vsel %vm2234, %v1412, %v2490
  %v2747 = vsel %vm2235, %v1417, %v2491
  %v2748 = vsel %vm2236, %v1420, %v2492
  %v2749 = vsel %vm2237, %v1425, %v2493
  %v2750 = vsel %vm2238, %v1428, %v2494
  %v2751 = vsel %vm2239, %v1433, %v2495
  %v2752 = vsel %vm2240, %v1436, %v2496
  %v2753 = vsel %vm2241, %v1441, %v2497
  %v2754 = vsel %vm2242, %v1444, %v2498
  %v2755 = vsel %vm2243, %v1449, %v2499
  %v2756 = vsel %vm2244, %v1452, %v2500
  %v2757 = vsel %vm2245, %v1457, %v2501
  %v2758 = vsel %vm2246, %v1460, %v2502
  %v2759 = vsel %vm2247, %v1465, %v2503
  %v2760 = vsel %vm2248, %v1468, %v2504
  %v2761 = vsel %vm2249, %v1473, %v2505
  %v2762 = vsel %vm2250, %v1476, %v2506
  %v2763 = vsel %vm2251, %v1481, %v2507
  %v2764 = vsel %vm2252, %v1484, %v2508
  %v2765 = vsel %vm2253, %v1489, %v2509
  %v2766 = vsel %vm2254, %v1492, %v2510
  %v2767 = vsel %vm2255, %v1497, %v2511
  %v2768 = vsel %vm2256, %v1500, %v2512
  %v2769 = vsel %vm2257, %v1505, %v2513
  %v2770 = vsel %vm2258, %v1508, %v2514
  %v2771 = vsel %vm2259, %v1513, %v2515
  %v2772 = vsel %vm2260, %v1516, %v2516
  %v2773 = vsel %vm2261, %v1521, %v2517
  %v2774 = vsel %vm2262, %v1524, %v2518
  %v2775 = vsel %vm2263, %v1529, %v2519
  %v2776 = vsel %vm2264, %v1532, %v2520
  %v2777 = vsel %vm2265, %v1537, %v2521
  %v2778 = vsel %vm2266, %v1540, %v2522
  %v2779 = vsel %vm2267, %v1545, %v2523
  %v2780 = vsel %vm2268, %v1548, %v2524
  %v2781 = vsel %vm2269, %v1553, %v2525
  %v2782 = vsel %vm2270, %v1556, %v2526
  %v2783 = vsel %vm2271, %v1561, %v2527
  %v2784 = vsel %vm2272, %v1564, %v2528
  %v2785 = vsel %vm2273, %v1569, %v2529
  %v2786 = vsel %vm2274, %v1572, %v2530
  %v2787 = vsel %vm2275, %v1577, %v2531
  %v2788 = vsel %vm2276, %v1580, %v2532
  %v2789 = vsel %vm2277, %v1585, %v2533
  %v2790 = vsel %vm2278, %v1588, %v2534
  %v2791 = vsel %vm2279, %v1593, %v2535
  %v2792 = vsel %vm2280, %v1596, %v2536
  %v2793 = vsel %vm2281, %v1601, %v2537
  %v2794 = vsel %vm2282, %v1604, %v2538
  %v2795 = vsel %vm2283, %v1609, %v2539
  %v2796 = vsel %vm2284, %v1612, %v2540
  %v2797 = vsel %vm2285, %v1617, %v2541
  %v2798 = vsel %vm2286, %v1620, %v2542
  %v2799 = vsel %vm2287, %v1625, %v2543
  %v2800 = vsel %vm2288, %v1628, %v2544
  %v2801 = vsel %vm2289, %v1633, %v2545
  %v2802 = vsel %vm2290, %v1636, %v2546
  %v2803 = vsel %vm2291, %v1641, %v2547
  %v2804 = vsel %vm2292, %v1644, %v2548
  %v2805 = vsel %vm2293, %v1649, %v2549
  %v2806 = vsel %vm2294, %v1652, %v2550
  %v2807 = vsel %vm2295, %v1657, %v2551
  %v2808 = vsel %vm2296, %v1660, %v2552
  %v2809 = vsel %vm2297, %v1665, %v2553
  %v2810 = vsel %vm2298, %v1668, %v2554
  %v2811 = vsel %vm2299, %v1673, %v2555
  %v2812 = vsel %vm2300, %v1676, %v2556
  %v2813 = vsel %vm2301, %v1681, %v2557
  %v2814 = vsel %vm2302, %v1684, %v2558
  %v2815 = vsel %vm2303, %v1689, %v2559
  %v2816 = vsel %vm2304, %v1692, %v2560
  %v2817 = vsel %vm2305, %v1697, %v2561
  %v2818 = vsel %vm2306, %v1700, %v2562
  %v2819 = vsel %vm2307, %v1705, %v2563
  %v2820 = vsel %vm2308, %v1708, %v2564
  %v2821 = vsel %vm2309, %v1713, %v2565
  %v2822 = vsel %vm2310, %v1716, %v2566
  %v2823 = vsel %vm2311, %v1721, %v2567
  %v2824 = vsel %vm2312, %v1724, %v2568
  %v2825 = vsel %vm2313, %v1729, %v2569
  %v2826 = vsel %vm2314, %v1732, %v2570
  %v2827 = vsel %vm2315, %v1737, %v2571
  %v2828 = vsel %vm2316, %v1740, %v2572
  %v2829 = vsel %vm2317, %v1745, %v2573
  %v2830 = vsel %vm2318, %v1748, %v2574
  %v2831 = vsel %vm2319, %v1753, %v2575
  %v2832 = vsel %vm2320, %v1756, %v2576
  %v2833 = vsel %vm2321, %v1761, %v2577
  %v2834 = vsel %vm2322, %v1764, %v2578
  %v2835 = vsel %vm2323, %v1769, %v2579
  %v2836 = vsel %vm2324, %v1772, %v2580
  %v2837 = vsel %vm2325, %v1777, %v2581
  %v2838 = vsel %vm2326, %v1780, %v2582
  %v2839 = vsel %vm2327, %v1785, %v2583
  %v2840 = vsel %vm2328, %v1788, %v2584
  %v2841 = vsel %vm2329, %v1793, %v2585
  %v2842 = vsel %vm2330, %v1796, %v2586
  %v2843 = vsel %vm2331, %v1801, %v2587
  %v2844 = vsel %vm2332, %v1804, %v2588
  %v2845 = vsel %vm2333, %v1809, %v2589
  %v2846 = vsel %vm2334, %v1812, %v2590
  %v2847 = vsel %vm2335, %v1817, %v2591
  %v2848 = vsel %vm2336, %v1820, %v2592
  %v2849 = vsel %vm2337, %v1825, %v2593
  %v2850 = vsel %vm2338, %v1828, %v2594
  %v2851 = vsel %vm2339, %v1833, %v2595
  %v2852 = vsel %vm2340, %v1836, %v2596
  %v2853 = vsel %vm2341, %v1841, %v2597
  %v2854 = vsel %vm2342, %v1844, %v2598
  %v2855 = vsel %vm2343, %v1849, %v2599
  %v2856 = vsel %vm2344, %v1852, %v2600
  %v2857 = vsel %vm2345, %v1857, %v2601
  %v2858 = vsel %vm2346, %v1860, %v2602
  %v2859 = vsel %vm2347, %v1865, %v2603
  %v2860 = vsel %vm2348, %v1868, %v2604
  %v2861 = vsel %vm2349, %v1873, %v2605
  %v2862 = vsel %vm2350, %v1876, %v2606
  %v2863 = vsel %vm2351, %v1881, %v2607
  %v2864 = vsel %vm2352, %v1884, %v2608
  %v2865 = vsel %vm2353, %v1889, %v2609
  %v2866 = vsel %vm2354, %v1892, %v2610
  %v2867 = vsel %vm2355, %v1897, %v2611
  %v2868 = vsel %vm2356, %v1900, %v2612
  %v2869 = vsel %vm2357, %v1905, %v2613
  %v2870 = vsel %vm2358, %v1908, %v2614
  %v2871 = vsel %vm2359, %v1913, %v2615
  %v2872 = vsel %vm2360, %v1916, %v2616
  %v2873 = vsel %vm2361, %v1921, %v2617
  %v2874 = vsel %vm2362, %v1924, %v2618
  %v2875 = vsel %vm2363, %v1929, %v2619
  %v2876 = vsel %vm2364, %v1932, %v2620
  %v2877 = vsel %vm2365, %v1937, %v2621
  %v2878 = vsel %vm2366, %v1940, %v2622
  %v2879 = vsel %vm2367, %v1945, %v2623
  %v2880 = vsel %vm2368, %v1948, %v2624
  %v2881 = vsel %vm2369, %v1953, %v2625
  %v2882 = vsel %vm2370, %v1956, %v2626
  %v2883 = vsel %vm2371, %v1961, %v2627
  %v2884 = vsel %vm2372, %v1964, %v2628
  %v2885 = vsel %vm2373, %v1969, %v2629
  %v2886 = vsel %vm2374, %v1972, %v2630
  %v2887 = vsel %vm2375, %v1977, %v2631
  %v2888 = vsel %vm2376, %v1980, %v2632
  %v2889 = vsel %vm2377, %v1985, %v2633
  %v2890 = vsel %vm2378, %v1988, %v2634
  %v2891 = vsel %vm2379, %v1993, %v2635
  %v2892 = vsel %vm2380, %v1996, %v2636
  %v2893 = vsel %vm2381, %v2001, %v2637
  %v2894 = vsel %vm2382, %v2004, %v2638
  %v2895 = vsel %vm2383, %v2009, %v2639
  %v2896 = vsel %vm2384, %v2012, %v2640
  %v2897 = vsel %vm2385, %v2017, %v2641
  %v2898 = vsel %vm2386, %v2020, %v2642
  %v2899 = vsel %vm2387, %v2025, %v2643
  %v2900 = vsel %vm2388, %v2028, %v2644
  %v2901 = vsel %vm2389, %v2033, %v2645
  %v2902 = vsel %vm2390, %v2036, %v2646
  %v2903 = vsel %vm2391, %v2041, %v2647
  %v2904 = vsel %vm2392, %v2044, %v2648
  %v2905 = vsel %vm2393, %v2049, %v2649
  %v2906 = vsel %vm2394, %v2052, %v2650
  %v2907 = vsel %vm2395, %v2057, %v2651
  %v2908 = vsel %vm2396, %v2060, %v2652
  %v2909 = vsel %vm2397, %v2065, %v2653
  %v2910 = vsel %vm2398, %v2068, %v2654
  %v2911 = vsel %vm2399, %v2073, %v2655
  %v2912 = vsel %vm2400, %v2076, %v2656
  %v2913 = vsel %vm2401, %v2081, %v2657
  %v2914 = vsel %vm2402, %v2084, %v2658
  %v2915 = vsel %vm2403, %v2089, %v2659
  %v2916 = vsel %vm2404, %v2092, %v2660
  %v2917 = vsel %vm2405, %v2097, %v2661
  %v2918 = vsel %vm2406, %v2100, %v2662
  %v2919 = vsel %vm2407, %v2105, %v2663
  %v2920 = vsel %vm2408, %v2108, %v2664
  %v2921 = vsel %vm2409, %v2113, %v2665
  %v2922 = vsel %vm2410, %v2116, %v2666
  %v2923 = vsel %vm2411, %v2121, %v2667
  %v2924 = vsel %vm2412, %v2124, %v2668
  %v2925 = vsel %vm2413, %v2129, %v2669
  %v2926 = vsel %vm2414, %v2132, %v2670
  %v2927 = vsel %vm2415, %v2137, %v2671
  %v2928 = vsel %vm2416, %v2140, %v2672
  %v2929 = vsel %vm2417, %v2145, %v2673
  %v2930 = vsel %vm2418, %v2148, %v2674
  %v2931 = vsel %vm2419, %v2153, %v2675
  %v2932 = vsel %vm2420, %v2156, %v2676
  %v2933 = vsel %vm2421, %v2161, %v2677
  %v2934 = vsel %vm2422, %v2164, %v2678
  %v2935 = vpack.c.bf16 %v2680, %v2679
  %v2936 = vpack.c.bf16 %v2682, %v2681
  %v2937 = vpack.c.bf16 %v2684, %v2683
  %v2938 = vpack.c.bf16 %v2686, %v2685
  %v2939 = vpack.c.bf16 %v2688, %v2687
  %v2940 = vpack.c.bf16 %v2690, %v2689
  %v2941 = vpack.c.bf16 %v2692, %v2691
  %v2942 = vpack.c.bf16 %v2694, %v2693
  %v2943 = vpack.c.bf16 %v2696, %v2695
  %v2944 = vpack.c.bf16 %v2698, %v2697
  %v2945 = vpack.c.bf16 %v2700, %v2699
  %v2946 = vpack.c.bf16 %v2702, %v2701
  %v2947 = vpack.c.bf16 %v2704, %v2703
  %v2948 = vpack.c.bf16 %v2706, %v2705
  %v2949 = vpack.c.bf16 %v2708, %v2707
  %v2950 = vpack.c.bf16 %v2710, %v2709
  %v2951 = vpack.c.bf16 %v2712, %v2711
  %v2952 = vpack.c.bf16 %v2714, %v2713
  %v2953 = vpack.c.bf16 %v2716, %v2715
  %v2954 = vpack.c.bf16 %v2718, %v2717
  %v2955 = vpack.c.bf16 %v2720, %v2719
  %v2956 = vpack.c.bf16 %v2722, %v2721
  %v2957 = vpack.c.bf16 %v2724, %v2723
  %v2958 = vpack.c.bf16 %v2726, %v2725
  %v2959 = vpack.c.bf16 %v2728, %v2727
  %v2960 = vpack.c.bf16 %v2730, %v2729
  %v2961 = vpack.c.bf16 %v2732, %v2731
  %v2962 = vpack.c.bf16 %v2734, %v2733
  %v2963 = vpack.c.bf16 %v2736, %v2735
  %v2964 = vpack.c.bf16 %v2738, %v2737
  %v2965 = vpack.c.bf16 %v2740, %v2739
  %v2966 = vpack.c.bf16 %v2742, %v2741
  %v2967 = vpack.c.bf16 %v2744, %v2743
  %v2968 = vpack.c.bf16 %v2746, %v2745
  %v2969 = vpack.c.bf16 %v2748, %v2747
  %v2970 = vpack.c.bf16 %v2750, %v2749
  %v2971 = vpack.c.bf16 %v2752, %v2751
  %v2972 = vpack.c.bf16 %v2754, %v2753
  %v2973 = vpack.c.bf16 %v2756, %v2755
  %v2974 = vpack.c.bf16 %v2758, %v2757
  %v2975 = vpack.c.bf16 %v2760, %v2759
  %v2976 = vpack.c.bf16 %v2762, %v2761
  %v2977 = vpack.c.bf16 %v2764, %v2763
  %v2978 = vpack.c.bf16 %v2766, %v2765
  %v2979 = vpack.c.bf16 %v2768, %v2767
  %v2980 = vpack.c.bf16 %v2770, %v2769
  %v2981 = vpack.c.bf16 %v2772, %v2771
  %v2982 = vpack.c.bf16 %v2774, %v2773
  %v2983 = vpack.c.bf16 %v2776, %v2775
  %v2984 = vpack.c.bf16 %v2778, %v2777
  %v2985 = vpack.c.bf16 %v2780, %v2779
  %v2986 = vpack.c.bf16 %v2782, %v2781
  %v2987 = vpack.c.bf16 %v2784, %v2783
  %v2988 = vpack.c.bf16 %v2786, %v2785
  %v2989 = vpack.c.bf16 %v2788, %v2787
  %v2990 = vpack.c.bf16 %v2790, %v2789
  %v2991 = vpack.c.bf16 %v2792, %v2791
  %v2992 = vpack.c.bf16 %v2794, %v2793
  %v2993 = vpack.c.bf16 %v2796, %v2795
  %v2994 = vpack.c.bf16 %v2798, %v2797
  %v2995 = vpack.c.bf16 %v2800, %v2799
  %v2996 = vpack.c.bf16 %v2802, %v2801
  %v2997 = vpack.c.bf16 %v2804, %v2803
  %v2998 = vpack.c.bf16 %v2806, %v2805
  %v2999 = vpack.c.bf16 %v2808, %v2807
  %v3000 = vpack.c.bf16 %v2810, %v2809
  %v3001 = vpack.c.bf16 %v2812, %v2811
  %v3002 = vpack.c.bf16 %v2814, %v2813
  %v3003 = vpack.c.bf16 %v2816, %v2815
  %v3004 = vpack.c.bf16 %v2818, %v2817
  %v3005 = vpack.c.bf16 %v2820, %v2819
  %v3006 = vpack.c.bf16 %v2822, %v2821
  %v3007 = vpack.c.bf16 %v2824, %v2823
  %v3008 = vpack.c.bf16 %v2826, %v2825
  %v3009 = vpack.c.bf16 %v2828, %v2827
  %v3010 = vpack.c.bf16 %v2830, %v2829
  %v3011 = vpack.c.bf16 %v2832, %v2831
  %v3012 = vpack.c.bf16 %v2834, %v2833
  %v3013 = vpack.c.bf16 %v2836, %v2835
  %v3014 = vpack.c.bf16 %v2838, %v2837
  %v3015 = vpack.c.bf16 %v2840, %v2839
  %v3016 = vpack.c.bf16 %v2842, %v2841
  %v3017 = vpack.c.bf16 %v2844, %v2843
  %v3018 = vpack.c.bf16 %v2846, %v2845
  %v3019 = vpack.c.bf16 %v2848, %v2847
  %v3020 = vpack.c.bf16 %v2850, %v2849
  %v3021 = vpack.c.bf16 %v2852, %v2851
  %v3022 = vpack.c.bf16 %v2854, %v2853
  %v3023 = vpack.c.bf16 %v2856, %v2855
  %v3024 = vpack.c.bf16 %v2858, %v2857
  %v3025 = vpack.c.bf16 %v2860, %v2859
  %v3026 = vpack.c.bf16 %v2862, %v2861
  %v3027 = vpack.c.bf16 %v2864, %v2863
  %v3028 = vpack.c.bf16 %v2866, %v2865
  %v3029 = vpack.c.bf16 %v2868, %v2867
  %v3030 = vpack.c.bf16 %v2870, %v2869
  %v3031 = vpack.c.bf16 %v2872, %v2871
  %v3032 = vpack.c.bf16 %v2874, %v2873
  %v3033 = vpack.c.bf16 %v2876, %v2875
  %v3034 = vpack.c.bf16 %v2878, %v2877
  %v3035 = vpack.c.bf16 %v2880, %v2879
  %v3036 = vpack.c.bf16 %v2882, %v2881
  %v3037 = vpack.c.bf16 %v2884, %v2883
  %v3038 = vpack.c.bf16 %v2886, %v2885
  %v3039 = vpack.c.bf16 %v2888, %v2887
  %v3040 = vpack.c.bf16 %v2890, %v2889
  %v3041 = vpack.c.bf16 %v2892, %v2891
  %v3042 = vpack.c.bf16 %v2894, %v2893
  %v3043 = vpack.c.bf16 %v2896, %v2895
  %v3044 = vpack.c.bf16 %v2898, %v2897
  %v3045 = vpack.c.bf16 %v2900, %v2899
  %v3046 = vpack.c.bf16 %v2902, %v2901
  %v3047 = vpack.c.bf16 %v2904, %v2903
  %v3048 = vpack.c.bf16 %v2906, %v2905
  %v3049 = vpack.c.bf16 %v2908, %v2907
  %v3050 = vpack.c.bf16 %v2910, %v2909
  %v3051 = vpack.c.bf16 %v2912, %v2911
  %v3052 = vpack.c.bf16 %v2914, %v2913
  %v3053 = vpack.c.bf16 %v2916, %v2915
  %v3054 = vpack.c.bf16 %v2918, %v2917
  %v3055 = vpack.c.bf16 %v2920, %v2919
  %v3056 = vpack.c.bf16 %v2922, %v2921
  %v3057 = vpack.c.bf16 %v2924, %v2923
  %v3058 = vpack.c.bf16 %v2926, %v2925
  %v3059 = vpack.c.bf16 %v2928, %v2927
  %v3060 = vpack.c.bf16 %v2930, %v2929
  %v3061 = vpack.c.bf16 %v2932, %v2931
  %v3062 = vpack.c.bf16 %v2934, %v2933
  %v3191 = vunpack.c.l.b16 %v2935
  %v3192 = vunpack.c.h.b16 %v2935
  %v3193 = vunpack.c.l.b16 %v2936
  %v3194 = vunpack.c.h.b16 %v2936
  %v3195 = vunpack.c.l.b16 %v2937
  %v3196 = vunpack.c.h.b16 %v2937
  %v3197 = vunpack.c.l.b16 %v2938
  %v3198 = vunpack.c.h.b16 %v2938
  %v3199 = vunpack.c.l.b16 %v2939
  %v3200 = vunpack.c.h.b16 %v2939
  %v3201 = vunpack.c.l.b16 %v2940
  %v3202 = vunpack.c.h.b16 %v2940
  %v3203 = vunpack.c.l.b16 %v2941
  %v3204 = vunpack.c.h.b16 %v2941
  %v3205 = vunpack.c.l.b16 %v2942
  %v3206 = vunpack.c.h.b16 %v2942
  %v3207 = vunpack.c.l.b16 %v2943
  %v3208 = vunpack.c.h.b16 %v2943
  %v3209 = vunpack.c.l.b16 %v2944
  %v3210 = vunpack.c.h.b16 %v2944
  %v3211 = vunpack.c.l.b16 %v2945
  %v3212 = vunpack.c.h.b16 %v2945
  %v3213 = vunpack.c.l.b16 %v2946
  %v3214 = vunpack.c.h.b16 %v2946
  %v3215 = vunpack.c.l.b16 %v2947
  %v3216 = vunpack.c.h.b16 %v2947
  %v3217 = vunpack.c.l.b16 %v2948
  %v3218 = vunpack.c.h.b16 %v2948
  %v3219 = vunpack.c.l.b16 %v2949
  %v3220 = vunpack.c.h.b16 %v2949
  %v3221 = vunpack.c.l.b16 %v2950
  %v3222 = vunpack.c.h.b16 %v2950
  %v3223 = vunpack.c.l.b16 %v2951
  %v3224 = vunpack.c.h.b16 %v2951
  %v3225 = vunpack.c.l.b16 %v2952
  %v3226 = vunpack.c.h.b16 %v2952
  %v3227 = vunpack.c.l.b16 %v2953
  %v3228 = vunpack.c.h.b16 %v2953
  %v3229 = vunpack.c.l.b16 %v2954
  %v3230 = vunpack.c.h.b16 %v2954
  %v3231 = vunpack.c.l.b16 %v2955
  %v3232 = vunpack.c.h.b16 %v2955
  %v3233 = vunpack.c.l.b16 %v2956
  %v3234 = vunpack.c.h.b16 %v2956
  %v3235 = vunpack.c.l.b16 %v2957
  %v3236 = vunpack.c.h.b16 %v2957
  %v3237 = vunpack.c.l.b16 %v2958
  %v3238 = vunpack.c.h.b16 %v2958
  %v3239 = vunpack.c.l.b16 %v2959
  %v3240 = vunpack.c.h.b16 %v2959
  %v3241 = vunpack.c.l.b16 %v2960
  %v3242 = vunpack.c.h.b16 %v2960
  %v3243 = vunpack.c.l.b16 %v2961
  %v3244 = vunpack.c.h.b16 %v2961
  %v3245 = vunpack.c.l.b16 %v2962
  %v3246 = vunpack.c.h.b16 %v2962
  %v3247 = vunpack.c.l.b16 %v2963
  %v3248 = vunpack.c.h.b16 %v2963
  %v3249 = vunpack.c.l.b16 %v2964
  %v3250 = vunpack.c.h.b16 %v2964
  %v3251 = vunpack.c.l.b16 %v2965
  %v3252 = vunpack.c.h.b16 %v2965
  %v3253 = vunpack.c.l.b16 %v2966
  %v3254 = vunpack.c.h.b16 %v2966
  %v3255 = vunpack.c.l.b16 %v2967
  %v3256 = vunpack.c.h.b16 %v2967
  %v3257 = vunpack.c.l.b16 %v2968
  %v3258 = vunpack.c.h.b16 %v2968
  %v3259 = vunpack.c.l.b16 %v2969
  %v3260 = vunpack.c.h.b16 %v2969
  %v3261 = vunpack.c.l.b16 %v2970
  %v3262 = vunpack.c.h.b16 %v2970
  %v3263 = vunpack.c.l.b16 %v2971
  %v3264 = vunpack.c.h.b16 %v2971
  %v3265 = vunpack.c.l.b16 %v2972
  %v3266 = vunpack.c.h.b16 %v2972
  %v3267 = vunpack.c.l.b16 %v2973
  %v3268 = vunpack.c.h.b16 %v2973
  %v3269 = vunpack.c.l.b16 %v2974
  %v3270 = vunpack.c.h.b16 %v2974
  %v3271 = vunpack.c.l.b16 %v2975
  %v3272 = vunpack.c.h.b16 %v2975
  %v3273 = vunpack.c.l.b16 %v2976
  %v3274 = vunpack.c.h.b16 %v2976
  %v3275 = vunpack.c.l.b16 %v2977
  %v3276 = vunpack.c.h.b16 %v2977
  %v3277 = vunpack.c.l.b16 %v2978
  %v3278 = vunpack.c.h.b16 %v2978
  %v3279 = vunpack.c.l.b16 %v2979
  %v3280 = vunpack.c.h.b16 %v2979
  %v3281 = vunpack.c.l.b16 %v2980
  %v3282 = vunpack.c.h.b16 %v2980
  %v3283 = vunpack.c.l.b16 %v2981
  %v3284 = vunpack.c.h.b16 %v2981
  %v3285 = vunpack.c.l.b16 %v2982
  %v3286 = vunpack.c.h.b16 %v2982
  %v3287 = vunpack.c.l.b16 %v2983
  %v3288 = vunpack.c.h.b16 %v2983
  %v3289 = vunpack.c.l.b16 %v2984
  %v3290 = vunpack.c.h.b16 %v2984
  %v3291 = vunpack.c.l.b16 %v2985
  %v3292 = vunpack.c.h.b16 %v2985
  %v3293 = vunpack.c.l.b16 %v2986
  %v3294 = vunpack.c.h.b16 %v2986
  %v3295 = vunpack.c.l.b16 %v2987
  %v3296 = vunpack.c.h.b16 %v2987
  %v3297 = vunpack.c.l.b16 %v2988
  %v3298 = vunpack.c.h.b16 %v2988
  %v3299 = vunpack.c.l.b16 %v2989
  %v3300 = vunpack.c.h.b16 %v2989
  %v3301 = vunpack.c.l.b16 %v2990
  %v3302 = vunpack.c.h.b16 %v2990
  %v3303 = vunpack.c.l.b16 %v2991
  %v3304 = vunpack.c.h.b16 %v2991
  %v3305 = vunpack.c.l.b16 %v2992
  %v3306 = vunpack.c.h.b16 %v2992
  %v3307 = vunpack.c.l.b16 %v2993
  %v3308 = vunpack.c.h.b16 %v2993
  %v3309 = vunpack.c.l.b16 %v2994
  %v3310 = vunpack.c.h.b16 %v2994
  %v3311 = vunpack.c.l.b16 %v2995
  %v3312 = vunpack.c.h.b16 %v2995
  %v3313 = vunpack.c.l.b16 %v2996
  %v3314 = vunpack.c.h.b16 %v2996
  %v3315 = vunpack.c.l.b16 %v2997
  %v3316 = vunpack.c.h.b16 %v2997
  %v3317 = vunpack.c.l.b16 %v2998
  %v3318 = vunpack.c.h.b16 %v2998
  %v3319 = vunpack.c.l.b16 %v2999
  %v3320 = vunpack.c.h.b16 %v2999
  %v3321 = vunpack.c.l.b16 %v3000
  %v3322 = vunpack.c.h.b16 %v3000
  %v3323 = vunpack.c.l.b16 %v3001
  %v3324 = vunpack.c.h.b16 %v3001
  %v3325 = vunpack.c.l.b16 %v3002
  %v3326 = vunpack.c.h.b16 %v3002
  %v3327 = vunpack.c.l.b16 %v3003
  %v3328 = vunpack.c.h.b16 %v3003
  %v3329 = vunpack.c.l.b16 %v3004
  %v3330 = vunpack.c.h.b16 %v3004
  %v3331 = vunpack.c.l.b16 %v3005
  %v3332 = vunpack.c.h.b16 %v3005
  %v3333 = vunpack.c.l.b16 %v3006
  %v3334 = vunpack.c.h.b16 %v3006
  %v3335 = vunpack.c.l.b16 %v3007
  %v3336 = vunpack.c.h.b16 %v3007
  %v3337 = vunpack.c.l.b16 %v3008
  %v3338 = vunpack.c.h.b16 %v3008
  %v3339 = vunpack.c.l.b16 %v3009
  %v3340 = vunpack.c.h.b16 %v3009
  %v3341 = vunpack.c.l.b16 %v3010
  %v3342 = vunpack.c.h.b16 %v3010
  %v3343 = vunpack.c.l.b16 %v3011
  %v3344 = vunpack.c.h.b16 %v3011
  %v3345 = vunpack.c.l.b16 %v3012
  %v3346 = vunpack.c.h.b16 %v3012
  %v3347 = vunpack.c.l.b16 %v3013
  %v3348 = vunpack.c.h.b16 %v3013
  %v3349 = vunpack.c.l.b16 %v3014
  %v3350 = vunpack.c.h.b16 %v3014
  %v3351 = vunpack.c.l.b16 %v3015
  %v3352 = vunpack.c.h.b16 %v3015
  %v3353 = vunpack.c.l.b16 %v3016
  %v3354 = vunpack.c.h.b16 %v3016
  %v3355 = vunpack.c.l.b16 %v3017
  %v3356 = vunpack.c.h.b16 %v3017
  %v3357 = vunpack.c.l.b16 %v3018
  %v3358 = vunpack.c.h.b16 %v3018
  %v3359 = vunpack.c.l.b16 %v3019
  %v3360 = vunpack.c.h.b16 %v3019
  %v3361 = vunpack.c.l.b16 %v3020
  %v3362 = vunpack.c.h.b16 %v3020
  %v3363 = vunpack.c.l.b16 %v3021
  %v3364 = vunpack.c.h.b16 %v3021
  %v3365 = vunpack.c.l.b16 %v3022
  %v3366 = vunpack.c.h.b16 %v3022
  %v3367 = vunpack.c.l.b16 %v3023
  %v3368 = vunpack.c.h.b16 %v3023
  %v3369 = vunpack.c.l.b16 %v3024
  %v3370 = vunpack.c.h.b16 %v3024
  %v3371 = vunpack.c.l.b16 %v3025
  %v3372 = vunpack.c.h.b16 %v3025
  %v3373 = vunpack.c.l.b16 %v3026
  %v3374 = vunpack.c.h.b16 %v3026
  %v3375 = vunpack.c.l.b16 %v3027
  %v3376 = vunpack.c.h.b16 %v3027
  %v3377 = vunpack.c.l.b16 %v3028
  %v3378 = vunpack.c.h.b16 %v3028
  %v3379 = vunpack.c.l.b16 %v3029
  %v3380 = vunpack.c.h.b16 %v3029
  %v3381 = vunpack.c.l.b16 %v3030
  %v3382 = vunpack.c.h.b16 %v3030
  %v3383 = vunpack.c.l.b16 %v3031
  %v3384 = vunpack.c.h.b16 %v3031
  %v3385 = vunpack.c.l.b16 %v3032
  %v3386 = vunpack.c.h.b16 %v3032
  %v3387 = vunpack.c.l.b16 %v3033
  %v3388 = vunpack.c.h.b16 %v3033
  %v3389 = vunpack.c.l.b16 %v3034
  %v3390 = vunpack.c.h.b16 %v3034
  %v3391 = vunpack.c.l.b16 %v3035
  %v3392 = vunpack.c.h.b16 %v3035
  %v3393 = vunpack.c.l.b16 %v3036
  %v3394 = vunpack.c.h.b16 %v3036
  %v3395 = vunpack.c.l.b16 %v3037
  %v3396 = vunpack.c.h.b16 %v3037
  %v3397 = vunpack.c.l.b16 %v3038
  %v3398 = vunpack.c.h.b16 %v3038
  %v3399 = vunpack.c.l.b16 %v3039
  %v3400 = vunpack.c.h.b16 %v3039
  %v3401 = vunpack.c.l.b16 %v3040
  %v3402 = vunpack.c.h.b16 %v3040
  %v3403 = vunpack.c.l.b16 %v3041
  %v3404 = vunpack.c.h.b16 %v3041
  %v3405 = vunpack.c.l.b16 %v3042
  %v3406 = vunpack.c.h.b16 %v3042
  %v3407 = vunpack.c.l.b16 %v3043
  %v3408 = vunpack.c.h.b16 %v3043
  %v3409 = vunpack.c.l.b16 %v3044
  %v3410 = vunpack.c.h.b16 %v3044
  %v3411 = vunpack.c.l.b16 %v3045
  %v3412 = vunpack.c.h.b16 %v3045
  %v3413 = vunpack.c.l.b16 %v3046
  %v3414 = vunpack.c.h.b16 %v3046
  %v3415 = vunpack.c.l.b16 %v3047
  %v3416 = vunpack.c.h.b16 %v3047
  %v3417 = vunpack.c.l.b16 %v3048
  %v3418 = vunpack.c.h.b16 %v3048
  %v3419 = vunpack.c.l.b16 %v3049
  %v3420 = vunpack.c.h.b16 %v3049
  %v3421 = vunpack.c.l.b16 %v3050
  %v3422 = vunpack.c.h.b16 %v3050
  %v3423 = vunpack.c.l.b16 %v3051
  %v3424 = vunpack.c.h.b16 %v3051
  %v3425 = vunpack.c.l.b16 %v3052
  %v3426 = vunpack.c.h.b16 %v3052
  %v3427 = vunpack.c.l.b16 %v3053
  %v3428 = vunpack.c.h.b16 %v3053
  %v3429 = vunpack.c.l.b16 %v3054
  %v3430 = vunpack.c.h.b16 %v3054
  %v3431 = vunpack.c.l.b16 %v3055
  %v3432 = vunpack.c.h.b16 %v3055
  %v3433 = vunpack.c.l.b16 %v3056
  %v3434 = vunpack.c.h.b16 %v3056
  %v3435 = vunpack.c.l.b16 %v3057
  %v3436 = vunpack.c.h.b16 %v3057
  %v3437 = vunpack.c.l.b16 %v3058
  %v3438 = vunpack.c.h.b16 %v3058
  %v3439 = vunpack.c.l.b16 %v3059
  %v3440 = vunpack.c.h.b16 %v3059
  %v3441 = vunpack.c.l.b16 %v3060
  %v3442 = vunpack.c.h.b16 %v3060
  %v3443 = vunpack.c.l.b16 %v3061
  %v3444 = vunpack.c.h.b16 %v3061
  %v3445 = vunpack.c.l.b16 %v3062
  %v3446 = vunpack.c.h.b16 %v3062
  %v3447 = vpack.c.b16 %v3191, %v3191
  %v3448 = vpack.c.b16 %v3192, %v3192
  %v3449 = vpack.c.b16 %v3193, %v3193
  %v3450 = vpack.c.b16 %v3194, %v3194
  %v3451 = vpack.c.b16 %v3195, %v3195
  %v3452 = vpack.c.b16 %v3196, %v3196
  %v3453 = vpack.c.b16 %v3197, %v3197
  %v3454 = vpack.c.b16 %v3198, %v3198
  %v3455 = vpack.c.b16 %v3199, %v3199
  %v3456 = vpack.c.b16 %v3200, %v3200
  %v3457 = vpack.c.b16 %v3201, %v3201
  %v3458 = vpack.c.b16 %v3202, %v3202
  %v3459 = vpack.c.b16 %v3203, %v3203
  %v3460 = vpack.c.b16 %v3204, %v3204
  %v3461 = vpack.c.b16 %v3205, %v3205
  %v3462 = vpack.c.b16 %v3206, %v3206
  %v3463 = vpack.c.b16 %v3207, %v3207
  %v3464 = vpack.c.b16 %v3208, %v3208
  %v3465 = vpack.c.b16 %v3209, %v3209
  %v3466 = vpack.c.b16 %v3210, %v3210
  %v3467 = vpack.c.b16 %v3211, %v3211
  %v3468 = vpack.c.b16 %v3212, %v3212
  %v3469 = vpack.c.b16 %v3213, %v3213
  %v3470 = vpack.c.b16 %v3214, %v3214
  %v3471 = vpack.c.b16 %v3215, %v3215
  %v3472 = vpack.c.b16 %v3216, %v3216
  %v3473 = vpack.c.b16 %v3217, %v3217
  %v3474 = vpack.c.b16 %v3218, %v3218
  %v3475 = vpack.c.b16 %v3219, %v3219
  %v3476 = vpack.c.b16 %v3220, %v3220
  %v3477 = vpack.c.b16 %v3221, %v3221
  %v3478 = vpack.c.b16 %v3222, %v3222
  %v3479 = vpack.c.b16 %v3223, %v3223
  %v3480 = vpack.c.b16 %v3224, %v3224
  %v3481 = vpack.c.b16 %v3225, %v3225
  %v3482 = vpack.c.b16 %v3226, %v3226
  %v3483 = vpack.c.b16 %v3227, %v3227
  %v3484 = vpack.c.b16 %v3228, %v3228
  %v3485 = vpack.c.b16 %v3229, %v3229
  %v3486 = vpack.c.b16 %v3230, %v3230
  %v3487 = vpack.c.b16 %v3231, %v3231
  %v3488 = vpack.c.b16 %v3232, %v3232
  %v3489 = vpack.c.b16 %v3233, %v3233
  %v3490 = vpack.c.b16 %v3234, %v3234
  %v3491 = vpack.c.b16 %v3235, %v3235
  %v3492 = vpack.c.b16 %v3236, %v3236
  %v3493 = vpack.c.b16 %v3237, %v3237
  %v3494 = vpack.c.b16 %v3238, %v3238
  %v3495 = vpack.c.b16 %v3239, %v3239
  %v3496 = vpack.c.b16 %v3240, %v3240
  %v3497 = vpack.c.b16 %v3241, %v3241
  %v3498 = vpack.c.b16 %v3242, %v3242
  %v3499 = vpack.c.b16 %v3243, %v3243
  %v3500 = vpack.c.b16 %v3244, %v3244
  %v3501 = vpack.c.b16 %v3245, %v3245
  %v3502 = vpack.c.b16 %v3246, %v3246
  %v3503 = vpack.c.b16 %v3247, %v3247
  %v3504 = vpack.c.b16 %v3248, %v3248
  %v3505 = vpack.c.b16 %v3249, %v3249
  %v3506 = vpack.c.b16 %v3250, %v3250
  %v3507 = vpack.c.b16 %v3251, %v3251
  %v3508 = vpack.c.b16 %v3252, %v3252
  %v3509 = vpack.c.b16 %v3253, %v3253
  %v3510 = vpack.c.b16 %v3254, %v3254
  %v3511 = vpack.c.b16 %v3255, %v3255
  %v3512 = vpack.c.b16 %v3256, %v3256
  %v3513 = vpack.c.b16 %v3257, %v3257
  %v3514 = vpack.c.b16 %v3258, %v3258
  %v3515 = vpack.c.b16 %v3259, %v3259
  %v3516 = vpack.c.b16 %v3260, %v3260
  %v3517 = vpack.c.b16 %v3261, %v3261
  %v3518 = vpack.c.b16 %v3262, %v3262
  %v3519 = vpack.c.b16 %v3263, %v3263
  %v3520 = vpack.c.b16 %v3264, %v3264
  %v3521 = vpack.c.b16 %v3265, %v3265
  %v3522 = vpack.c.b16 %v3266, %v3266
  %v3523 = vpack.c.b16 %v3267, %v3267
  %v3524 = vpack.c.b16 %v3268, %v3268
  %v3525 = vpack.c.b16 %v3269, %v3269
  %v3526 = vpack.c.b16 %v3270, %v3270
  %v3527 = vpack.c.b16 %v3271, %v3271
  %v3528 = vpack.c.b16 %v3272, %v3272
  %v3529 = vpack.c.b16 %v3273, %v3273
  %v3530 = vpack.c.b16 %v3274, %v3274
  %v3531 = vpack.c.b16 %v3275, %v3275
  %v3532 = vpack.c.b16 %v3276, %v3276
  %v3533 = vpack.c.b16 %v3277, %v3277
  %v3534 = vpack.c.b16 %v3278, %v3278
  %v3535 = vpack.c.b16 %v3279, %v3279
  %v3536 = vpack.c.b16 %v3280, %v3280
  %v3537 = vpack.c.b16 %v3281, %v3281
  %v3538 = vpack.c.b16 %v3282, %v3282
  %v3539 = vpack.c.b16 %v3283, %v3283
  %v3540 = vpack.c.b16 %v3284, %v3284
  %v3541 = vpack.c.b16 %v3285, %v3285
  %v3542 = vpack.c.b16 %v3286, %v3286
  %v3543 = vpack.c.b16 %v3287, %v3287
  %v3544 = vpack.c.b16 %v3288, %v3288
  %v3545 = vpack.c.b16 %v3289, %v3289
  %v3546 = vpack.c.b16 %v3290, %v3290
  %v3547 = vpack.c.b16 %v3291, %v3291
  %v3548 = vpack.c.b16 %v3292, %v3292
  %v3549 = vpack.c.b16 %v3293, %v3293
  %v3550 = vpack.c.b16 %v3294, %v3294
  %v3551 = vpack.c.b16 %v3295, %v3295
  %v3552 = vpack.c.b16 %v3296, %v3296
  %v3553 = vpack.c.b16 %v3297, %v3297
  %v3554 = vpack.c.b16 %v3298, %v3298
  %v3555 = vpack.c.b16 %v3299, %v3299
  %v3556 = vpack.c.b16 %v3300, %v3300
  %v3557 = vpack.c.b16 %v3301, %v3301
  %v3558 = vpack.c.b16 %v3302, %v3302
  %v3559 = vpack.c.b16 %v3303, %v3303
  %v3560 = vpack.c.b16 %v3304, %v3304
  %v3561 = vpack.c.b16 %v3305, %v3305
  %v3562 = vpack.c.b16 %v3306, %v3306
  %v3563 = vpack.c.b16 %v3307, %v3307
  %v3564 = vpack.c.b16 %v3308, %v3308
  %v3565 = vpack.c.b16 %v3309, %v3309
  %v3566 = vpack.c.b16 %v3310, %v3310
  %v3567 = vpack.c.b16 %v3311, %v3311
  %v3568 = vpack.c.b16 %v3312, %v3312
  %v3569 = vpack.c.b16 %v3313, %v3313
  %v3570 = vpack.c.b16 %v3314, %v3314
  %v3571 = vpack.c.b16 %v3315, %v3315
  %v3572 = vpack.c.b16 %v3316, %v3316
  %v3573 = vpack.c.b16 %v3317, %v3317
  %v3574 = vpack.c.b16 %v3318, %v3318
  %v3575 = vpack.c.b16 %v3319, %v3319
  %v3576 = vpack.c.b16 %v3320, %v3320
  %v3577 = vpack.c.b16 %v3321, %v3321
  %v3578 = vpack.c.b16 %v3322, %v3322
  %v3579 = vpack.c.b16 %v3323, %v3323
  %v3580 = vpack.c.b16 %v3324, %v3324
  %v3581 = vpack.c.b16 %v3325, %v3325
  %v3582 = vpack.c.b16 %v3326, %v3326
  %v3583 = vpack.c.b16 %v3327, %v3327
  %v3584 = vpack.c.b16 %v3328, %v3328
  %v3585 = vpack.c.b16 %v3329, %v3329
  %v3586 = vpack.c.b16 %v3330, %v3330
  %v3587 = vpack.c.b16 %v3331, %v3331
  %v3588 = vpack.c.b16 %v3332, %v3332
  %v3589 = vpack.c.b16 %v3333, %v3333
  %v3590 = vpack.c.b16 %v3334, %v3334
  %v3591 = vpack.c.b16 %v3335, %v3335
  %v3592 = vpack.c.b16 %v3336, %v3336
  %v3593 = vpack.c.b16 %v3337, %v3337
  %v3594 = vpack.c.b16 %v3338, %v3338
  %v3595 = vpack.c.b16 %v3339, %v3339
  %v3596 = vpack.c.b16 %v3340, %v3340
  %v3597 = vpack.c.b16 %v3341, %v3341
  %v3598 = vpack.c.b16 %v3342, %v3342
  %v3599 = vpack.c.b16 %v3343, %v3343
  %v3600 = vpack.c.b16 %v3344, %v3344
  %v3601 = vpack.c.b16 %v3345, %v3345
  %v3602 = vpack.c.b16 %v3346, %v3346
  %v3603 = vpack.c.b16 %v3347, %v3347
  %v3604 = vpack.c.b16 %v3348, %v3348
  %v3605 = vpack.c.b16 %v3349, %v3349
  %v3606 = vpack.c.b16 %v3350, %v3350
  %v3607 = vpack.c.b16 %v3351, %v3351
  %v3608 = vpack.c.b16 %v3352, %v3352
  %v3609 = vpack.c.b16 %v3353, %v3353
  %v3610 = vpack.c.b16 %v3354, %v3354
  %v3611 = vpack.c.b16 %v3355, %v3355
  %v3612 = vpack.c.b16 %v3356, %v3356
  %v3613 = vpack.c.b16 %v3357, %v3357
  %v3614 = vpack.c.b16 %v3358, %v3358
  %v3615 = vpack.c.b16 %v3359, %v3359
  %v3616 = vpack.c.b16 %v3360, %v3360
  %v3617 = vpack.c.b16 %v3361, %v3361
  %v3618 = vpack.c.b16 %v3362, %v3362
  %v3619 = vpack.c.b16 %v3363, %v3363
  %v3620 = vpack.c.b16 %v3364, %v3364
  %v3621 = vpack.c.b16 %v3365, %v3365
  %v3622 = vpack.c.b16 %v3366, %v3366
  %v3623 = vpack.c.b16 %v3367, %v3367
  %v3624 = vpack.c.b16 %v3368, %v3368
  %v3625 = vpack.c.b16 %v3369, %v3369
  %v3626 = vpack.c.b16 %v3370, %v3370
  %v3627 = vpack.c.b16 %v3371, %v3371
  %v3628 = vpack.c.b16 %v3372, %v3372
  %v3629 = vpack.c.b16 %v3373, %v3373
  %v3630 = vpack.c.b16 %v3374, %v3374
  %v3631 = vpack.c.b16 %v3375, %v3375
  %v3632 = vpack.c.b16 %v3376, %v3376
  %v3633 = vpack.c.b16 %v3377, %v3377
  %v3634 = vpack.c.b16 %v3378, %v3378
  %v3635 = vpack.c.b16 %v3379, %v3379
  %v3636 = vpack.c.b16 %v3380, %v3380
  %v3637 = vpack.c.b16 %v3381, %v3381
  %v3638 = vpack.c.b16 %v3382, %v3382
  %v3639 = vpack.c.b16 %v3383, %v3383
  %v3640 = vpack.c.b16 %v3384, %v3384
  %v3641 = vpack.c.b16 %v3385, %v3385
  %v3642 = vpack.c.b16 %v3386, %v3386
  %v3643 = vpack.c.b16 %v3387, %v3387
  %v3644 = vpack.c.b16 %v3388, %v3388
  %v3645 = vpack.c.b16 %v3389, %v3389
  %v3646 = vpack.c.b16 %v3390, %v3390
  %v3647 = vpack.c.b16 %v3391, %v3391
  %v3648 = vpack.c.b16 %v3392, %v3392
  %v3649 = vpack.c.b16 %v3393, %v3393
  %v3650 = vpack.c.b16 %v3394, %v3394
  %v3651 = vpack.c.b16 %v3395, %v3395
  %v3652 = vpack.c.b16 %v3396, %v3396
  %v3653 = vpack.c.b16 %v3397, %v3397
  %v3654 = vpack.c.b16 %v3398, %v3398
  %v3655 = vpack.c.b16 %v3399, %v3399
  %v3656 = vpack.c.b16 %v3400, %v3400
  %v3657 = vpack.c.b16 %v3401, %v3401
  %v3658 = vpack.c.b16 %v3402, %v3402
  %v3659 = vpack.c.b16 %v3403, %v3403
  %v3660 = vpack.c.b16 %v3404, %v3404
  %v3661 = vpack.c.b16 %v3405, %v3405
  %v3662 = vpack.c.b16 %v3406, %v3406
  %v3663 = vpack.c.b16 %v3407, %v3407
  %v3664 = vpack.c.b16 %v3408, %v3408
  %v3665 = vpack.c.b16 %v3409, %v3409
  %v3666 = vpack.c.b16 %v3410, %v3410
  %v3667 = vpack.c.b16 %v3411, %v3411
  %v3668 = vpack.c.b16 %v3412, %v3412
  %v3669 = vpack.c.b16 %v3413, %v3413
  %v3670 = vpack.c.b16 %v3414, %v3414
  %v3671 = vpack.c.b16 %v3415, %v3415
  %v3672 = vpack.c.b16 %v3416, %v3416
  %v3673 = vpack.c.b16 %v3417, %v3417
  %v3674 = vpack.c.b16 %v3418, %v3418
  %v3675 = vpack.c.b16 %v3419, %v3419
  %v3676 = vpack.c.b16 %v3420, %v3420
  %v3677 = vpack.c.b16 %v3421, %v3421
  %v3678 = vpack.c.b16 %v3422, %v3422
  %v3679 = vpack.c.b16 %v3423, %v3423
  %v3680 = vpack.c.b16 %v3424, %v3424
  %v3681 = vpack.c.b16 %v3425, %v3425
  %v3682 = vpack.c.b16 %v3426, %v3426
  %v3683 = vpack.c.b16 %v3427, %v3427
  %v3684 = vpack.c.b16 %v3428, %v3428
  %v3685 = vpack.c.b16 %v3429, %v3429
  %v3686 = vpack.c.b16 %v3430, %v3430
  %v3687 = vpack.c.b16 %v3431, %v3431
  %v3688 = vpack.c.b16 %v3432, %v3432
  %v3689 = vpack.c.b16 %v3433, %v3433
  %v3690 = vpack.c.b16 %v3434, %v3434
  %v3691 = vpack.c.b16 %v3435, %v3435
  %v3692 = vpack.c.b16 %v3436, %v3436
  %v3693 = vpack.c.b16 %v3437, %v3437
  %v3694 = vpack.c.b16 %v3438, %v3438
  %v3695 = vpack.c.b16 %v3439, %v3439
  %v3696 = vpack.c.b16 %v3440, %v3440
  %v3697 = vpack.c.b16 %v3441, %v3441
  %v3698 = vpack.c.b16 %v3442, %v3442
  %v3699 = vpack.c.b16 %v3443, %v3443
  %v3700 = vpack.c.b16 %v3444, %v3444
  %v3701 = vpack.c.b16 %v3445, %v3445
  %v3702 = vpack.c.b16 %v3446, %v3446
  %3959 = vst [vmem:[%s3] sm:$0xf] %v3447
  %3960 = vst [vmem:[%s3 + $0x4] sm:$0xf] %v3448
  %3961 = vst [vmem:[%s3 + $0x8] sm:$0xf] %v3449
  %3962 = vst [vmem:[%s3 + $0xc] sm:$0xf] %v3450
  %3963 = vst [vmem:[%s3 + $0x10] sm:$0xf] %v3451
  %3964 = vst [vmem:[%s3 + $0x14] sm:$0xf] %v3452
  %3965 = vst [vmem:[%s3 + $0x18] sm:$0xf] %v3453
  %3966 = vst [vmem:[%s3 + $0x1c] sm:$0xf] %v3454
  %3967 = vst [vmem:[%s3 + $0x20] sm:$0xf] %v3455
  %3968 = vst [vmem:[%s3 + $0x24] sm:$0xf] %v3456
  %3969 = vst [vmem:[%s3 + $0x28] sm:$0xf] %v3457
  %3970 = vst [vmem:[%s3 + $0x2c] sm:$0xf] %v3458
  %3971 = vst [vmem:[%s3 + $0x30] sm:$0xf] %v3459
  %3972 = vst [vmem:[%s3 + $0x34] sm:$0xf] %v3460
  %3973 = vst [vmem:[%s3 + $0x38] sm:$0xf] %v3461
  %3974 = vst [vmem:[%s3 + $0x3c] sm:$0xf] %v3462
  %3975 = vst [vmem:[%s3 + $0x40] sm:$0xf] %v3463
  %3976 = vst [vmem:[%s3 + $0x44] sm:$0xf] %v3464
  %3977 = vst [vmem:[%s3 + $0x48] sm:$0xf] %v3465
  %3978 = vst [vmem:[%s3 + $0x4c] sm:$0xf] %v3466
  %3979 = vst [vmem:[%s3 + $0x50] sm:$0xf] %v3467
  %3980 = vst [vmem:[%s3 + $0x54] sm:$0xf] %v3468
  %3981 = vst [vmem:[%s3 + $0x58] sm:$0xf] %v3469
  %3982 = vst [vmem:[%s3 + $0x5c] sm:$0xf] %v3470
  %3983 = vst [vmem:[%s3 + $0x60] sm:$0xf] %v3471
  %3984 = vst [vmem:[%s3 + $0x64] sm:$0xf] %v3472
  %3985 = vst [vmem:[%s3 + $0x68] sm:$0xf] %v3473
  %3986 = vst [vmem:[%s3 + $0x6c] sm:$0xf] %v3474
  %3987 = vst [vmem:[%s3 + $0x70] sm:$0xf] %v3475
  %3988 = vst [vmem:[%s3 + $0x74] sm:$0xf] %v3476
  %3989 = vst [vmem:[%s3 + $0x78] sm:$0xf] %v3477
  %3990 = vst [vmem:[%s3 + $0x7c] sm:$0xf] %v3478
  %3991 = vst [vmem:[%s3 + $0x80] sm:$0xf] %v3479
  %3992 = vst [vmem:[%s3 + $0x84] sm:$0xf] %v3480
  %3993 = vst [vmem:[%s3 + $0x88] sm:$0xf] %v3481
  %3994 = vst [vmem:[%s3 + $0x8c] sm:$0xf] %v3482
  %3995 = vst [vmem:[%s3 + $0x90] sm:$0xf] %v3483
  %3996 = vst [vmem:[%s3 + $0x94] sm:$0xf] %v3484
  %3997 = vst [vmem:[%s3 + $0x98] sm:$0xf] %v3485
  %3998 = vst [vmem:[%s3 + $0x9c] sm:$0xf] %v3486
  %3999 = vst [vmem:[%s3 + $0xa0] sm:$0xf] %v3487
  %4000 = vst [vmem:[%s3 + $0xa4] sm:$0xf] %v3488
  %4001 = vst [vmem:[%s3 + $0xa8] sm:$0xf] %v3489
  %4002 = vst [vmem:[%s3 + $0xac] sm:$0xf] %v3490
  %4003 = vst [vmem:[%s3 + $0xb0] sm:$0xf] %v3491
  %4004 = vst [vmem:[%s3 + $0xb4] sm:$0xf] %v3492
  %4005 = vst [vmem:[%s3 + $0xb8] sm:$0xf] %v3493
  %4006 = vst [vmem:[%s3 + $0xbc] sm:$0xf] %v3494
  %4007 = vst [vmem:[%s3 + $0xc0] sm:$0xf] %v3495
  %4008 = vst [vmem:[%s3 + $0xc4] sm:$0xf] %v3496
  %4009 = vst [vmem:[%s3 + $0xc8] sm:$0xf] %v3497
  %4010 = vst [vmem:[%s3 + $0xcc] sm:$0xf] %v3498
  %4011 = vst [vmem:[%s3 + $0xd0] sm:$0xf] %v3499
  %4012 = vst [vmem:[%s3 + $0xd4] sm:$0xf] %v3500
  %4013 = vst [vmem:[%s3 + $0xd8] sm:$0xf] %v3501
  %4014 = vst [vmem:[%s3 + $0xdc] sm:$0xf] %v3502
  %4015 = vst [vmem:[%s3 + $0xe0] sm:$0xf] %v3503
  %4016 = vst [vmem:[%s3 + $0xe4] sm:$0xf] %v3504
  %4017 = vst [vmem:[%s3 + $0xe8] sm:$0xf] %v3505
  %4018 = vst [vmem:[%s3 + $0xec] sm:$0xf] %v3506
  %4019 = vst [vmem:[%s3 + $0xf0] sm:$0xf] %v3507
  %4020 = vst [vmem:[%s3 + $0xf4] sm:$0xf] %v3508
  %4021 = vst [vmem:[%s3 + $0xf8] sm:$0xf] %v3509
  %4022 = vst [vmem:[%s3 + $0xfc] sm:$0xf] %v3510
  %4023 = vst [vmem:[%s3 + $0x100] sm:$0xf] %v3511
  %4024 = vst [vmem:[%s3 + $0x104] sm:$0xf] %v3512
  %4025 = vst [vmem:[%s3 + $0x108] sm:$0xf] %v3513
  %4026 = vst [vmem:[%s3 + $0x10c] sm:$0xf] %v3514
  %4027 = vst [vmem:[%s3 + $0x110] sm:$0xf] %v3515
  %4028 = vst [vmem:[%s3 + $0x114] sm:$0xf] %v3516
  %4029 = vst [vmem:[%s3 + $0x118] sm:$0xf] %v3517
  %4030 = vst [vmem:[%s3 + $0x11c] sm:$0xf] %v3518
  %4031 = vst [vmem:[%s3 + $0x120] sm:$0xf] %v3519
  %4032 = vst [vmem:[%s3 + $0x124] sm:$0xf] %v3520
  %4033 = vst [vmem:[%s3 + $0x128] sm:$0xf] %v3521
  %4034 = vst [vmem:[%s3 + $0x12c] sm:$0xf] %v3522
  %4035 = vst [vmem:[%s3 + $0x130] sm:$0xf] %v3523
  %4036 = vst [vmem:[%s3 + $0x134] sm:$0xf] %v3524
  %4037 = vst [vmem:[%s3 + $0x138] sm:$0xf] %v3525
  %4038 = vst [vmem:[%s3 + $0x13c] sm:$0xf] %v3526
  %4039 = vst [vmem:[%s3 + $0x140] sm:$0xf] %v3527
  %4040 = vst [vmem:[%s3 + $0x144] sm:$0xf] %v3528
  %4041 = vst [vmem:[%s3 + $0x148] sm:$0xf] %v3529
  %4042 = vst [vmem:[%s3 + $0x14c] sm:$0xf] %v3530
  %4043 = vst [vmem:[%s3 + $0x150] sm:$0xf] %v3531
  %4044 = vst [vmem:[%s3 + $0x154] sm:$0xf] %v3532
  %4045 = vst [vmem:[%s3 + $0x158] sm:$0xf] %v3533
  %4046 = vst [vmem:[%s3 + $0x15c] sm:$0xf] %v3534
  %4047 = vst [vmem:[%s3 + $0x160] sm:$0xf] %v3535
  %4048 = vst [vmem:[%s3 + $0x164] sm:$0xf] %v3536
  %4049 = vst [vmem:[%s3 + $0x168] sm:$0xf] %v3537
  %4050 = vst [vmem:[%s3 + $0x16c] sm:$0xf] %v3538
  %4051 = vst [vmem:[%s3 + $0x170] sm:$0xf] %v3539
  %4052 = vst [vmem:[%s3 + $0x174] sm:$0xf] %v3540
  %4053 = vst [vmem:[%s3 + $0x178] sm:$0xf] %v3541
  %4054 = vst [vmem:[%s3 + $0x17c] sm:$0xf] %v3542
  %4055 = vst [vmem:[%s3 + $0x180] sm:$0xf] %v3543
  %4056 = vst [vmem:[%s3 + $0x184] sm:$0xf] %v3544
  %4057 = vst [vmem:[%s3 + $0x188] sm:$0xf] %v3545
  %4058 = vst [vmem:[%s3 + $0x18c] sm:$0xf] %v3546
  %4059 = vst [vmem:[%s3 + $0x190] sm:$0xf] %v3547
  %4060 = vst [vmem:[%s3 + $0x194] sm:$0xf] %v3548
  %4061 = vst [vmem:[%s3 + $0x198] sm:$0xf] %v3549
  %4062 = vst [vmem:[%s3 + $0x19c] sm:$0xf] %v3550
  %4063 = vst [vmem:[%s3 + $0x1a0] sm:$0xf] %v3551
  %4064 = vst [vmem:[%s3 + $0x1a4] sm:$0xf] %v3552
  %4065 = vst [vmem:[%s3 + $0x1a8] sm:$0xf] %v3553
  %4066 = vst [vmem:[%s3 + $0x1ac] sm:$0xf] %v3554
  %4067 = vst [vmem:[%s3 + $0x1b0] sm:$0xf] %v3555
  %4068 = vst [vmem:[%s3 + $0x1b4] sm:$0xf] %v3556
  %4069 = vst [vmem:[%s3 + $0x1b8] sm:$0xf] %v3557
  %4070 = vst [vmem:[%s3 + $0x1bc] sm:$0xf] %v3558
  %4071 = vst [vmem:[%s3 + $0x1c0] sm:$0xf] %v3559
  %4072 = vst [vmem:[%s3 + $0x1c4] sm:$0xf] %v3560
  %4073 = vst [vmem:[%s3 + $0x1c8] sm:$0xf] %v3561
  %4074 = vst [vmem:[%s3 + $0x1cc] sm:$0xf] %v3562
  %4075 = vst [vmem:[%s3 + $0x1d0] sm:$0xf] %v3563
  %4076 = vst [vmem:[%s3 + $0x1d4] sm:$0xf] %v3564
  %4077 = vst [vmem:[%s3 + $0x1d8] sm:$0xf] %v3565
  %4078 = vst [vmem:[%s3 + $0x1dc] sm:$0xf] %v3566
  %4079 = vst [vmem:[%s3 + $0x1e0] sm:$0xf] %v3567
  %4080 = vst [vmem:[%s3 + $0x1e4] sm:$0xf] %v3568
  %4081 = vst [vmem:[%s3 + $0x1e8] sm:$0xf] %v3569
  %4082 = vst [vmem:[%s3 + $0x1ec] sm:$0xf] %v3570
  %4083 = vst [vmem:[%s3 + $0x1f0] sm:$0xf] %v3571
  %4084 = vst [vmem:[%s3 + $0x1f4] sm:$0xf] %v3572
  %4085 = vst [vmem:[%s3 + $0x1f8] sm:$0xf] %v3573
  %4086 = vst [vmem:[%s3 + $0x1fc] sm:$0xf] %v3574
  %4087 = vst [vmem:[%s3 + $0x200] sm:$0xf] %v3575
  %4088 = vst [vmem:[%s3 + $0x204] sm:$0xf] %v3576
  %4089 = vst [vmem:[%s3 + $0x208] sm:$0xf] %v3577
  %4090 = vst [vmem:[%s3 + $0x20c] sm:$0xf] %v3578
  %4091 = vst [vmem:[%s3 + $0x210] sm:$0xf] %v3579
  %4092 = vst [vmem:[%s3 + $0x214] sm:$0xf] %v3580
  %4093 = vst [vmem:[%s3 + $0x218] sm:$0xf] %v3581
  %4094 = vst [vmem:[%s3 + $0x21c] sm:$0xf] %v3582
  %4095 = vst [vmem:[%s3 + $0x220] sm:$0xf] %v3583
  %4096 = vst [vmem:[%s3 + $0x224] sm:$0xf] %v3584
  %4097 = vst [vmem:[%s3 + $0x228] sm:$0xf] %v3585
  %4098 = vst [vmem:[%s3 + $0x22c] sm:$0xf] %v3586
  %4099 = vst [vmem:[%s3 + $0x230] sm:$0xf] %v3587
  %4100 = vst [vmem:[%s3 + $0x234] sm:$0xf] %v3588
  %4101 = vst [vmem:[%s3 + $0x238] sm:$0xf] %v3589
  %4102 = vst [vmem:[%s3 + $0x23c] sm:$0xf] %v3590
  %4103 = vst [vmem:[%s3 + $0x240] sm:$0xf] %v3591
  %4104 = vst [vmem:[%s3 + $0x244] sm:$0xf] %v3592
  %4105 = vst [vmem:[%s3 + $0x248] sm:$0xf] %v3593
  %4106 = vst [vmem:[%s3 + $0x24c] sm:$0xf] %v3594
  %4107 = vst [vmem:[%s3 + $0x250] sm:$0xf] %v3595
  %4108 = vst [vmem:[%s3 + $0x254] sm:$0xf] %v3596
  %4109 = vst [vmem:[%s3 + $0x258] sm:$0xf] %v3597
  %4110 = vst [vmem:[%s3 + $0x25c] sm:$0xf] %v3598
  %4111 = vst [vmem:[%s3 + $0x260] sm:$0xf] %v3599
  %4112 = vst [vmem:[%s3 + $0x264] sm:$0xf] %v3600
  %4113 = vst [vmem:[%s3 + $0x268] sm:$0xf] %v3601
  %4114 = vst [vmem:[%s3 + $0x26c] sm:$0xf] %v3602
  %4115 = vst [vmem:[%s3 + $0x270] sm:$0xf] %v3603
  %4116 = vst [vmem:[%s3 + $0x274] sm:$0xf] %v3604
  %4117 = vst [vmem:[%s3 + $0x278] sm:$0xf] %v3605
  %4118 = vst [vmem:[%s3 + $0x27c] sm:$0xf] %v3606
  %4119 = vst [vmem:[%s3 + $0x280] sm:$0xf] %v3607
  %4120 = vst [vmem:[%s3 + $0x284] sm:$0xf] %v3608
  %4121 = vst [vmem:[%s3 + $0x288] sm:$0xf] %v3609
  %4122 = vst [vmem:[%s3 + $0x28c] sm:$0xf] %v3610
  %4123 = vst [vmem:[%s3 + $0x290] sm:$0xf] %v3611
  %4124 = vst [vmem:[%s3 + $0x294] sm:$0xf] %v3612
  %4125 = vst [vmem:[%s3 + $0x298] sm:$0xf] %v3613
  %4126 = vst [vmem:[%s3 + $0x29c] sm:$0xf] %v3614
  %4127 = vst [vmem:[%s3 + $0x2a0] sm:$0xf] %v3615
  %4128 = vst [vmem:[%s3 + $0x2a4] sm:$0xf] %v3616
  %4129 = vst [vmem:[%s3 + $0x2a8] sm:$0xf] %v3617
  %4130 = vst [vmem:[%s3 + $0x2ac] sm:$0xf] %v3618
  %4131 = vst [vmem:[%s3 + $0x2b0] sm:$0xf] %v3619
  %4132 = vst [vmem:[%s3 + $0x2b4] sm:$0xf] %v3620
  %4133 = vst [vmem:[%s3 + $0x2b8] sm:$0xf] %v3621
  %4134 = vst [vmem:[%s3 + $0x2bc] sm:$0xf] %v3622
  %4135 = vst [vmem:[%s3 + $0x2c0] sm:$0xf] %v3623
  %4136 = vst [vmem:[%s3 + $0x2c4] sm:$0xf] %v3624
  %4137 = vst [vmem:[%s3 + $0x2c8] sm:$0xf] %v3625
  %4138 = vst [vmem:[%s3 + $0x2cc] sm:$0xf] %v3626
  %4139 = vst [vmem:[%s3 + $0x2d0] sm:$0xf] %v3627
  %4140 = vst [vmem:[%s3 + $0x2d4] sm:$0xf] %v3628
  %4141 = vst [vmem:[%s3 + $0x2d8] sm:$0xf] %v3629
  %4142 = vst [vmem:[%s3 + $0x2dc] sm:$0xf] %v3630
  %4143 = vst [vmem:[%s3 + $0x2e0] sm:$0xf] %v3631
  %4144 = vst [vmem:[%s3 + $0x2e4] sm:$0xf] %v3632
  %4145 = vst [vmem:[%s3 + $0x2e8] sm:$0xf] %v3633
  %4146 = vst [vmem:[%s3 + $0x2ec] sm:$0xf] %v3634
  %4147 = vst [vmem:[%s3 + $0x2f0] sm:$0xf] %v3635
  %4148 = vst [vmem:[%s3 + $0x2f4] sm:$0xf] %v3636
  %4149 = vst [vmem:[%s3 + $0x2f8] sm:$0xf] %v3637
  %4150 = vst [vmem:[%s3 + $0x2fc] sm:$0xf] %v3638
  %4151 = vst [vmem:[%s3 + $0x300] sm:$0xf] %v3639
  %4152 = vst [vmem:[%s3 + $0x304] sm:$0xf] %v3640
  %4153 = vst [vmem:[%s3 + $0x308] sm:$0xf] %v3641
  %4154 = vst [vmem:[%s3 + $0x30c] sm:$0xf] %v3642
  %4155 = vst [vmem:[%s3 + $0x310] sm:$0xf] %v3643
  %4156 = vst [vmem:[%s3 + $0x314] sm:$0xf] %v3644
  %4157 = vst [vmem:[%s3 + $0x318] sm:$0xf] %v3645
  %4158 = vst [vmem:[%s3 + $0x31c] sm:$0xf] %v3646
  %4159 = vst [vmem:[%s3 + $0x320] sm:$0xf] %v3647
  %4160 = vst [vmem:[%s3 + $0x324] sm:$0xf] %v3648
  %4161 = vst [vmem:[%s3 + $0x328] sm:$0xf] %v3649
  %4162 = vst [vmem:[%s3 + $0x32c] sm:$0xf] %v3650
  %4163 = vst [vmem:[%s3 + $0x330] sm:$0xf] %v3651
  %4164 = vst [vmem:[%s3 + $0x334] sm:$0xf] %v3652
  %4165 = vst [vmem:[%s3 + $0x338] sm:$0xf] %v3653
  %4166 = vst [vmem:[%s3 + $0x33c] sm:$0xf] %v3654
  %4167 = vst [vmem:[%s3 + $0x340] sm:$0xf] %v3655
  %4168 = vst [vmem:[%s3 + $0x344] sm:$0xf] %v3656
  %4169 = vst [vmem:[%s3 + $0x348] sm:$0xf] %v3657
  %4170 = vst [vmem:[%s3 + $0x34c] sm:$0xf] %v3658
  %4171 = vst [vmem:[%s3 + $0x350] sm:$0xf] %v3659
  %4172 = vst [vmem:[%s3 + $0x354] sm:$0xf] %v3660
  %4173 = vst [vmem:[%s3 + $0x358] sm:$0xf] %v3661
  %4174 = vst [vmem:[%s3 + $0x35c] sm:$0xf] %v3662
  %4175 = vst [vmem:[%s3 + $0x360] sm:$0xf] %v3663
  %4176 = vst [vmem:[%s3 + $0x364] sm:$0xf] %v3664
  %4177 = vst [vmem:[%s3 + $0x368] sm:$0xf] %v3665
  %4178 = vst [vmem:[%s3 + $0x36c] sm:$0xf] %v3666
  %4179 = vst [vmem:[%s3 + $0x370] sm:$0xf] %v3667
  %4180 = vst [vmem:[%s3 + $0x374] sm:$0xf] %v3668
  %4181 = vst [vmem:[%s3 + $0x378] sm:$0xf] %v3669
  %4182 = vst [vmem:[%s3 + $0x37c] sm:$0xf] %v3670
  %4183 = vst [vmem:[%s3 + $0x380] sm:$0xf] %v3671
  %4184 = vst [vmem:[%s3 + $0x384] sm:$0xf] %v3672
  %4185 = vst [vmem:[%s3 + $0x388] sm:$0xf] %v3673
  %4186 = vst [vmem:[%s3 + $0x38c] sm:$0xf] %v3674
  %4187 = vst [vmem:[%s3 + $0x390] sm:$0xf] %v3675
  %4188 = vst [vmem:[%s3 + $0x394] sm:$0xf] %v3676
  %4189 = vst [vmem:[%s3 + $0x398] sm:$0xf] %v3677
  %4190 = vst [vmem:[%s3 + $0x39c] sm:$0xf] %v3678
  %4191 = vst [vmem:[%s3 + $0x3a0] sm:$0xf] %v3679
  %4192 = vst [vmem:[%s3 + $0x3a4] sm:$0xf] %v3680
  %4193 = vst [vmem:[%s3 + $0x3a8] sm:$0xf] %v3681
  %4194 = vst [vmem:[%s3 + $0x3ac] sm:$0xf] %v3682
  %4195 = vst [vmem:[%s3 + $0x3b0] sm:$0xf] %v3683
  %4196 = vst [vmem:[%s3 + $0x3b4] sm:$0xf] %v3684
  %4197 = vst [vmem:[%s3 + $0x3b8] sm:$0xf] %v3685
  %4198 = vst [vmem:[%s3 + $0x3bc] sm:$0xf] %v3686
  %4199 = vst [vmem:[%s3 + $0x3c0] sm:$0xf] %v3687
  %4200 = vst [vmem:[%s3 + $0x3c4] sm:$0xf] %v3688
  %4201 = vst [vmem:[%s3 + $0x3c8] sm:$0xf] %v3689
  %4202 = vst [vmem:[%s3 + $0x3cc] sm:$0xf] %v3690
  %4203 = vst [vmem:[%s3 + $0x3d0] sm:$0xf] %v3691
  %4204 = vst [vmem:[%s3 + $0x3d4] sm:$0xf] %v3692
  %4205 = vst [vmem:[%s3 + $0x3d8] sm:$0xf] %v3693
  %4206 = vst [vmem:[%s3 + $0x3dc] sm:$0xf] %v3694
  %4207 = vst [vmem:[%s3 + $0x3e0] sm:$0xf] %v3695
  %4208 = vst [vmem:[%s3 + $0x3e4] sm:$0xf] %v3696
  %4209 = vst [vmem:[%s3 + $0x3e8] sm:$0xf] %v3697
  %4210 = vst [vmem:[%s3 + $0x3ec] sm:$0xf] %v3698
  %4211 = vst [vmem:[%s3 + $0x3f0] sm:$0xf] %v3699
  %4212 = vst [vmem:[%s3 + $0x3f4] sm:$0xf] %v3700
  %4213 = vst [vmem:[%s3 + $0x3f8] sm:$0xf] %v3701
  %4214 = vst [vmem:[%s3 + $0x3fc] sm:$0xf] %v3702
  // Predicated region
  $region14: #{discriminator_forward.4} parent=0 // pred_check
    _
  $region15: #{discriminator_forward.4} parent=0 // pred_check_branch
    %4216 = sbr.rel (0) target = $region17
  $region16: #{discriminator_forward.4} parent=0 // pred_region
    _
  $region17: #{discriminator_forward.4} parent=0 // pred_fallthru
    _
  // Predicated region
  $region18: #{discriminator_forward.4} parent=0 // pred_check
    _
  $region19: #{discriminator_forward.4} parent=0 // pred_check_branch
    %4218 = sbr.rel (0) target = $region21
  $region20: #{discriminator_forward.4} parent=0 // pred_region
    _
  $region21: #{discriminator_forward.4} parent=0 // pred_fallthru
    _

// kernel: discriminator_forward.5
$region0: #{discriminator_forward.5}
  #allocation0 [shape = 'u32[]', space=smem, size = 0x4, offset = 0x4, fixed_abs, tag = 'smem constant byte address 0x4 - core index']
  #allocation1 [shape = 'u32[144,128]{1,0:T(1,128)}', space=vmem, size = 0x12000, scoped, tag = 'internal scratch']
  #allocation2 [shape = 'f32[512,128]{1,0:T(8,128)}', space=vmem, size = 0x40000, scoped, tag = 'scratch operand']
  %s0 = inlined_call_operand.vmem [shape: bf16[512,128], index: 0, kind: input, shape index: {}]
  %s1 = inlined_call_operand.vmem [shape: bf16[128,128], index: 1, kind: input, shape index: {}]
  %s2 = inlined_call_operand.vmem [shape: f32[1,128], index: 2, kind: input, shape index: {}]
  %s3 = inlined_call_operand.vmem [shape: f32[1,128], index: 3, kind: input, shape index: {}]
  %s4 = inlined_call_operand.vmem [shape: bf16[512,128], index: 4, kind: output, shape index: {}]
  %s5 = sld [smem:[#allocation0]]
  $region34: #{discriminator_forward.5} parent=0
    _
  %s7 = ssub.s32 1, %s5
  %s8 = scalar_select 0, %s7, %s5
  // Predicated region
  $region2: #{discriminator_forward.5} parent=0 // pred_check
    _
  $region3: #{discriminator_forward.5} parent=0 // pred_check_branch
    %10 = sbr.rel (0) target = $region5
  $region4: #{discriminator_forward.5} parent=0 // pred_region
    _
  $region5: #{discriminator_forward.5} parent=0 // pred_fallthru
    _
  // Predicated region
  $region6: #{discriminator_forward.5} parent=0 // pred_check
    _
  $region7: #{discriminator_forward.5} parent=0 // pred_check_branch
    %12 = sbr.rel (0) target = $region9
  $region8: #{discriminator_forward.5} parent=0 // pred_region
    _
  $region9: #{discriminator_forward.5} parent=0 // pred_fallthru
    _
  // Predicated region
  $region10: #{discriminator_forward.5} parent=0 // pred_check
    _
  $region11: #{discriminator_forward.5} parent=0 // pred_check_branch
    %14 = sbr.rel (0) target = $region13
  $region12: #{discriminator_forward.5} parent=0 // pred_region
    _
  $region13: #{discriminator_forward.5} parent=0 // pred_fallthru
    _
  // Predicated region
  $region14: #{discriminator_forward.5} parent=0 // pred_check
    _
  $region15: #{discriminator_forward.5} parent=0 // pred_check_branch
    %16 = sbr.rel (0) target = $region17
  $region16: #{discriminator_forward.5} parent=0 // pred_region
    _
  $region17: #{discriminator_forward.5} parent=0 // pred_fallthru
    _
  %p18 = scmp.eq.s32.totalorder 0, 0
  // Predicated region
  $region18: #{discriminator_forward.5} parent=0 // pred_check
    %p19 = pneg %p18
  $region19: #{discriminator_forward.5} parent=0 // pred_check_branch
    %21 = sbr.rel (%p19) target = $region21
  $region20: #{discriminator_forward.5} parent=0 // pred_region
    %22 = vst [vmem:[#allocation2] sm:$0xff] 0.0
    %23 = vst [vmem:[#allocation2 + $0x8] sm:$0xff] 0.0
    %24 = vst [vmem:[#allocation2 + $0x10] sm:$0xff] 0.0
    %25 = vst [vmem:[#allocation2 + $0x18] sm:$0xff] 0.0
    %26 = vst [vmem:[#allocation2 + $0x20] sm:$0xff] 0.0
    %27 = vst [vmem:[#allocation2 + $0x28] sm:$0xff] 0.0
    %28 = vst [vmem:[#allocation2 + $0x30] sm:$0xff] 0.0
    %29 = vst [vmem:[#allocation2 + $0x38] sm:$0xff] 0.0
    %30 = vst [vmem:[#allocation2 + $0x40] sm:$0xff] 0.0
    %31 = vst [vmem:[#allocation2 + $0x48] sm:$0xff] 0.0
    %32 = vst [vmem:[#allocation2 + $0x50] sm:$0xff] 0.0
    %33 = vst [vmem:[#allocation2 + $0x58] sm:$0xff] 0.0
    %34 = vst [vmem:[#allocation2 + $0x60] sm:$0xff] 0.0
    %35 = vst [vmem:[#allocation2 + $0x68] sm:$0xff] 0.0
    %36 = vst [vmem:[#allocation2 + $0x70] sm:$0xff] 0.0
    %37 = vst [vmem:[#allocation2 + $0x78] sm:$0xff] 0.0
    %38 = vst [vmem:[#allocation2 + $0x80] sm:$0xff] 0.0
    %39 = vst [vmem:[#allocation2 + $0x88] sm:$0xff] 0.0
    %40 = vst [vmem:[#allocation2 + $0x90] sm:$0xff] 0.0
    %41 = vst [vmem:[#allocation2 + $0x98] sm:$0xff] 0.0
    %42 = vst [vmem:[#allocation2 + $0xa0] sm:$0xff] 0.0
    %43 = vst [vmem:[#allocation2 + $0xa8] sm:$0xff] 0.0
    %44 = vst [vmem:[#allocation2 + $0xb0] sm:$0xff] 0.0
    %45 = vst [vmem:[#allocation2 + $0xb8] sm:$0xff] 0.0
    %46 = vst [vmem:[#allocation2 + $0xc0] sm:$0xff] 0.0
    %47 = vst [vmem:[#allocation2 + $0xc8] sm:$0xff] 0.0
    %48 = vst [vmem:[#allocation2 + $0xd0] sm:$0xff] 0.0
    %49 = vst [vmem:[#allocation2 + $0xd8] sm:$0xff] 0.0
    %50 = vst [vmem:[#allocation2 + $0xe0] sm:$0xff] 0.0
    %51 = vst [vmem:[#allocation2 + $0xe8] sm:$0xff] 0.0
    %52 = vst [vmem:[#allocation2 + $0xf0] sm:$0xff] 0.0
    %53 = vst [vmem:[#allocation2 + $0xf8] sm:$0xff] 0.0
    %54 = vst [vmem:[#allocation2 + $0x100] sm:$0xff] 0.0
    %55 = vst [vmem:[#allocation2 + $0x108] sm:$0xff] 0.0
    %56 = vst [vmem:[#allocation2 + $0x110] sm:$0xff] 0.0
    %57 = vst [vmem:[#allocation2 + $0x118] sm:$0xff] 0.0
    %58 = vst [vmem:[#allocation2 + $0x120] sm:$0xff] 0.0
    %59 = vst [vmem:[#allocation2 + $0x128] sm:$0xff] 0.0
    %60 = vst [vmem:[#allocation2 + $0x130] sm:$0xff] 0.0
    %61 = vst [vmem:[#allocation2 + $0x138] sm:$0xff] 0.0
    %62 = vst [vmem:[#allocation2 + $0x140] sm:$0xff] 0.0
    %63 = vst [vmem:[#allocation2 + $0x148] sm:$0xff] 0.0
    %64 = vst [vmem:[#allocation2 + $0x150] sm:$0xff] 0.0
    %65 = vst [vmem:[#allocation2 + $0x158] sm:$0xff] 0.0
    %66 = vst [vmem:[#allocation2 + $0x160] sm:$0xff] 0.0
    %67 = vst [vmem:[#allocation2 + $0x168] sm:$0xff] 0.0
    %68 = vst [vmem:[#allocation2 + $0x170] sm:$0xff] 0.0
    %69 = vst [vmem:[#allocation2 + $0x178] sm:$0xff] 0.0
    %70 = vst [vmem:[#allocation2 + $0x180] sm:$0xff] 0.0
    %71 = vst [vmem:[#allocation2 + $0x188] sm:$0xff] 0.0
    %72 = vst [vmem:[#allocation2 + $0x190] sm:$0xff] 0.0
    %73 = vst [vmem:[#allocation2 + $0x198] sm:$0xff] 0.0
    %74 = vst [vmem:[#allocation2 + $0x1a0] sm:$0xff] 0.0
    %75 = vst [vmem:[#allocation2 + $0x1a8] sm:$0xff] 0.0
    %76 = vst [vmem:[#allocation2 + $0x1b0] sm:$0xff] 0.0
    %77 = vst [vmem:[#allocation2 + $0x1b8] sm:$0xff] 0.0
    %78 = vst [vmem:[#allocation2 + $0x1c0] sm:$0xff] 0.0
    %79 = vst [vmem:[#allocation2 + $0x1c8] sm:$0xff] 0.0
    %80 = vst [vmem:[#allocation2 + $0x1d0] sm:$0xff] 0.0
    %81 = vst [vmem:[#allocation2 + $0x1d8] sm:$0xff] 0.0
    %82 = vst [vmem:[#allocation2 + $0x1e0] sm:$0xff] 0.0
    %83 = vst [vmem:[#allocation2 + $0x1e8] sm:$0xff] 0.0
    %84 = vst [vmem:[#allocation2 + $0x1f0] sm:$0xff] 0.0
    %85 = vst [vmem:[#allocation2 + $0x1f8] sm:$0xff] 0.0
  $region21: #{discriminator_forward.5} parent=0 // pred_fallthru
    _
  %v86 = vld [vmem:[#allocation2] sm:$0xff]
  %v87 = vld [vmem:[#allocation2 + $0x8] sm:$0xff]
  %v88 = vld [vmem:[#allocation2 + $0x10] sm:$0xff]
  %v89 = vld [vmem:[#allocation2 + $0x18] sm:$0xff]
  %v90 = vld [vmem:[#allocation2 + $0x20] sm:$0xff]
  %v91 = vld [vmem:[#allocation2 + $0x28] sm:$0xff]
  %v92 = vld [vmem:[#allocation2 + $0x30] sm:$0xff]
  %v93 = vld [vmem:[#allocation2 + $0x38] sm:$0xff]
  %v94 = vld [vmem:[#allocation2 + $0x40] sm:$0xff]
  %v95 = vld [vmem:[#allocation2 + $0x48] sm:$0xff]
  %v96 = vld [vmem:[#allocation2 + $0x50] sm:$0xff]
  %v97 = vld [vmem:[#allocation2 + $0x58] sm:$0xff]
  %v98 = vld [vmem:[#allocation2 + $0x60] sm:$0xff]
  %v99 = vld [vmem:[#allocation2 + $0x68] sm:$0xff]
  %v100 = vld [vmem:[#allocation2 + $0x70] sm:$0xff]
  %v101 = vld [vmem:[#allocation2 + $0x78] sm:$0xff]
  %v102 = vld [vmem:[#allocation2 + $0x80] sm:$0xff]
  %v103 = vld [vmem:[#allocation2 + $0x88] sm:$0xff]
  %v104 = vld [vmem:[#allocation2 + $0x90] sm:$0xff]
  %v105 = vld [vmem:[#allocation2 + $0x98] sm:$0xff]
  %v106 = vld [vmem:[#allocation2 + $0xa0] sm:$0xff]
  %v107 = vld [vmem:[#allocation2 + $0xa8] sm:$0xff]
  %v108 = vld [vmem:[#allocation2 + $0xb0] sm:$0xff]
  %v109 = vld [vmem:[#allocation2 + $0xb8] sm:$0xff]
  %v110 = vld [vmem:[#allocation2 + $0xc0] sm:$0xff]
  %v111 = vld [vmem:[#allocation2 + $0xc8] sm:$0xff]
  %v112 = vld [vmem:[#allocation2 + $0xd0] sm:$0xff]
  %v113 = vld [vmem:[#allocation2 + $0xd8] sm:$0xff]
  %v114 = vld [vmem:[#allocation2 + $0xe0] sm:$0xff]
  %v115 = vld [vmem:[#allocation2 + $0xe8] sm:$0xff]
  %v116 = vld [vmem:[#allocation2 + $0xf0] sm:$0xff]
  %v117 = vld [vmem:[#allocation2 + $0xf8] sm:$0xff]
  %v118 = vld [vmem:[#allocation2 + $0x100] sm:$0xff]
  %v119 = vld [vmem:[#allocation2 + $0x108] sm:$0xff]
  %v120 = vld [vmem:[#allocation2 + $0x110] sm:$0xff]
  %v121 = vld [vmem:[#allocation2 + $0x118] sm:$0xff]
  %v122 = vld [vmem:[#allocation2 + $0x120] sm:$0xff]
  %v123 = vld [vmem:[#allocation2 + $0x128] sm:$0xff]
  %v124 = vld [vmem:[#allocation2 + $0x130] sm:$0xff]
  %v125 = vld [vmem:[#allocation2 + $0x138] sm:$0xff]
  %v126 = vld [vmem:[#allocation2 + $0x140] sm:$0xff]
  %v127 = vld [vmem:[#allocation2 + $0x148] sm:$0xff]
  %v128 = vld [vmem:[#allocation2 + $0x150] sm:$0xff]
  %v129 = vld [vmem:[#allocation2 + $0x158] sm:$0xff]
  %v130 = vld [vmem:[#allocation2 + $0x160] sm:$0xff]
  %v131 = vld [vmem:[#allocation2 + $0x168] sm:$0xff]
  %v132 = vld [vmem:[#allocation2 + $0x170] sm:$0xff]
  %v133 = vld [vmem:[#allocation2 + $0x178] sm:$0xff]
  %v134 = vld [vmem:[#allocation2 + $0x180] sm:$0xff]
  %v135 = vld [vmem:[#allocation2 + $0x188] sm:$0xff]
  %v136 = vld [vmem:[#allocation2 + $0x190] sm:$0xff]
  %v137 = vld [vmem:[#allocation2 + $0x198] sm:$0xff]
  %v138 = vld [vmem:[#allocation2 + $0x1a0] sm:$0xff]
  %v139 = vld [vmem:[#allocation2 + $0x1a8] sm:$0xff]
  %v140 = vld [vmem:[#allocation2 + $0x1b0] sm:$0xff]
  %v141 = vld [vmem:[#allocation2 + $0x1b8] sm:$0xff]
  %v142 = vld [vmem:[#allocation2 + $0x1c0] sm:$0xff]
  %v143 = vld [vmem:[#allocation2 + $0x1c8] sm:$0xff]
  %v144 = vld [vmem:[#allocation2 + $0x1d0] sm:$0xff]
  %v145 = vld [vmem:[#allocation2 + $0x1d8] sm:$0xff]
  %v146 = vld [vmem:[#allocation2 + $0x1e0] sm:$0xff]
  %v147 = vld [vmem:[#allocation2 + $0x1e8] sm:$0xff]
  %v148 = vld [vmem:[#allocation2 + $0x1f0] sm:$0xff]
  %v149 = vld [vmem:[#allocation2 + $0x1f8] sm:$0xff]
  %v150 = vld [vmem:[%s0] sm:$0xf]
  %v151 = vld [vmem:[%s0 + $0x4] sm:$0xf]
  %v152 = vld [vmem:[%s0 + $0x8] sm:$0xf]
  %v153 = vld [vmem:[%s0 + $0xc] sm:$0xf]
  %v154 = vld [vmem:[%s0 + $0x10] sm:$0xf]
  %v155 = vld [vmem:[%s0 + $0x14] sm:$0xf]
  %v156 = vld [vmem:[%s0 + $0x18] sm:$0xf]
  %v157 = vld [vmem:[%s0 + $0x1c] sm:$0xf]
  %v158 = vld [vmem:[%s0 + $0x20] sm:$0xf]
  %v159 = vld [vmem:[%s0 + $0x24] sm:$0xf]
  %v160 = vld [vmem:[%s0 + $0x28] sm:$0xf]
  %v161 = vld [vmem:[%s0 + $0x2c] sm:$0xf]
  %v162 = vld [vmem:[%s0 + $0x30] sm:$0xf]
  %v163 = vld [vmem:[%s0 + $0x34] sm:$0xf]
  %v164 = vld [vmem:[%s0 + $0x38] sm:$0xf]
  %v165 = vld [vmem:[%s0 + $0x3c] sm:$0xf]
  %v166 = vld [vmem:[%s0 + $0x40] sm:$0xf]
  %v167 = vld [vmem:[%s0 + $0x44] sm:$0xf]
  %v168 = vld [vmem:[%s0 + $0x48] sm:$0xf]
  %v169 = vld [vmem:[%s0 + $0x4c] sm:$0xf]
  %v170 = vld [vmem:[%s0 + $0x50] sm:$0xf]
  %v171 = vld [vmem:[%s0 + $0x54] sm:$0xf]
  %v172 = vld [vmem:[%s0 + $0x58] sm:$0xf]
  %v173 = vld [vmem:[%s0 + $0x5c] sm:$0xf]
  %v174 = vld [vmem:[%s0 + $0x60] sm:$0xf]
  %v175 = vld [vmem:[%s0 + $0x64] sm:$0xf]
  %v176 = vld [vmem:[%s0 + $0x68] sm:$0xf]
  %v177 = vld [vmem:[%s0 + $0x6c] sm:$0xf]
  %v178 = vld [vmem:[%s0 + $0x70] sm:$0xf]
  %v179 = vld [vmem:[%s0 + $0x74] sm:$0xf]
  %v180 = vld [vmem:[%s0 + $0x78] sm:$0xf]
  %v181 = vld [vmem:[%s0 + $0x7c] sm:$0xf]
  %v182 = vld [vmem:[%s0 + $0x80] sm:$0xf]
  %v183 = vld [vmem:[%s0 + $0x84] sm:$0xf]
  %v184 = vld [vmem:[%s0 + $0x88] sm:$0xf]
  %v185 = vld [vmem:[%s0 + $0x8c] sm:$0xf]
  %v186 = vld [vmem:[%s0 + $0x90] sm:$0xf]
  %v187 = vld [vmem:[%s0 + $0x94] sm:$0xf]
  %v188 = vld [vmem:[%s0 + $0x98] sm:$0xf]
  %v189 = vld [vmem:[%s0 + $0x9c] sm:$0xf]
  %v190 = vld [vmem:[%s0 + $0xa0] sm:$0xf]
  %v191 = vld [vmem:[%s0 + $0xa4] sm:$0xf]
  %v192 = vld [vmem:[%s0 + $0xa8] sm:$0xf]
  %v193 = vld [vmem:[%s0 + $0xac] sm:$0xf]
  %v194 = vld [vmem:[%s0 + $0xb0] sm:$0xf]
  %v195 = vld [vmem:[%s0 + $0xb4] sm:$0xf]
  %v196 = vld [vmem:[%s0 + $0xb8] sm:$0xf]
  %v197 = vld [vmem:[%s0 + $0xbc] sm:$0xf]
  %v198 = vld [vmem:[%s0 + $0xc0] sm:$0xf]
  %v199 = vld [vmem:[%s0 + $0xc4] sm:$0xf]
  %v200 = vld [vmem:[%s0 + $0xc8] sm:$0xf]
  %v201 = vld [vmem:[%s0 + $0xcc] sm:$0xf]
  %v202 = vld [vmem:[%s0 + $0xd0] sm:$0xf]
  %v203 = vld [vmem:[%s0 + $0xd4] sm:$0xf]
  %v204 = vld [vmem:[%s0 + $0xd8] sm:$0xf]
  %v205 = vld [vmem:[%s0 + $0xdc] sm:$0xf]
  %v206 = vld [vmem:[%s0 + $0xe0] sm:$0xf]
  %v207 = vld [vmem:[%s0 + $0xe4] sm:$0xf]
  %v208 = vld [vmem:[%s0 + $0xe8] sm:$0xf]
  %v209 = vld [vmem:[%s0 + $0xec] sm:$0xf]
  %v210 = vld [vmem:[%s0 + $0xf0] sm:$0xf]
  %v211 = vld [vmem:[%s0 + $0xf4] sm:$0xf]
  %v212 = vld [vmem:[%s0 + $0xf8] sm:$0xf]
  %v213 = vld [vmem:[%s0 + $0xfc] sm:$0xf]
  %v214 = vld [vmem:[%s1] sm:$0xf]
  %v215 = vld [vmem:[%s1 + $0x4] sm:$0xf]
  %v216 = vld [vmem:[%s1 + $0x8] sm:$0xf]
  %v217 = vld [vmem:[%s1 + $0xc] sm:$0xf]
  %v218 = vld [vmem:[%s1 + $0x10] sm:$0xf]
  %v219 = vld [vmem:[%s1 + $0x14] sm:$0xf]
  %v220 = vld [vmem:[%s1 + $0x18] sm:$0xf]
  %v221 = vld [vmem:[%s1 + $0x1c] sm:$0xf]
  %v222 = vld [vmem:[%s1 + $0x20] sm:$0xf]
  %v223 = vld [vmem:[%s1 + $0x24] sm:$0xf]
  %v224 = vld [vmem:[%s1 + $0x28] sm:$0xf]
  %v225 = vld [vmem:[%s1 + $0x2c] sm:$0xf]
  %v226 = vld [vmem:[%s1 + $0x30] sm:$0xf]
  %v227 = vld [vmem:[%s1 + $0x34] sm:$0xf]
  %v228 = vld [vmem:[%s1 + $0x38] sm:$0xf]
  %v229 = vld [vmem:[%s1 + $0x3c] sm:$0xf]
  %v294 = vunpack.c.l.b16 %v150
  %v295 = vunpack.c.l.b16 %v151
  %v296 = vunpack.c.l.b16 %v152
  %v297 = vunpack.c.l.b16 %v153
  %v298 = vunpack.c.l.b16 %v154
  %v299 = vunpack.c.l.b16 %v155
  %v300 = vunpack.c.l.b16 %v156
  %v301 = vunpack.c.l.b16 %v157
  %v302 = vunpack.c.l.b16 %v158
  %v303 = vunpack.c.l.b16 %v159
  %v304 = vunpack.c.l.b16 %v160
  %v305 = vunpack.c.l.b16 %v161
  %v306 = vunpack.c.l.b16 %v162
  %v307 = vunpack.c.l.b16 %v163
  %v308 = vunpack.c.l.b16 %v164
  %v309 = vunpack.c.l.b16 %v165
  %v310 = vunpack.c.l.b16 %v166
  %v311 = vunpack.c.l.b16 %v167
  %v312 = vunpack.c.l.b16 %v168
  %v313 = vunpack.c.l.b16 %v169
  %v314 = vunpack.c.l.b16 %v170
  %v315 = vunpack.c.l.b16 %v171
  %v316 = vunpack.c.l.b16 %v172
  %v317 = vunpack.c.l.b16 %v173
  %v318 = vunpack.c.l.b16 %v174
  %v319 = vunpack.c.l.b16 %v175
  %v320 = vunpack.c.l.b16 %v176
  %v321 = vunpack.c.l.b16 %v177
  %v322 = vunpack.c.l.b16 %v178
  %v323 = vunpack.c.l.b16 %v179
  %v324 = vunpack.c.l.b16 %v180
  %v325 = vunpack.c.l.b16 %v181
  %v326 = vunpack.c.l.b16 %v182
  %v327 = vunpack.c.l.b16 %v183
  %v328 = vunpack.c.l.b16 %v184
  %v329 = vunpack.c.l.b16 %v185
  %v330 = vunpack.c.l.b16 %v186
  %v331 = vunpack.c.l.b16 %v187
  %v332 = vunpack.c.l.b16 %v188
  %v333 = vunpack.c.l.b16 %v189
  %v334 = vunpack.c.l.b16 %v190
  %v335 = vunpack.c.l.b16 %v191
  %v336 = vunpack.c.l.b16 %v192
  %v337 = vunpack.c.l.b16 %v193
  %v338 = vunpack.c.l.b16 %v194
  %v339 = vunpack.c.l.b16 %v195
  %v340 = vunpack.c.l.b16 %v196
  %v341 = vunpack.c.l.b16 %v197
  %v342 = vunpack.c.l.b16 %v198
  %v343 = vunpack.c.l.b16 %v199
  %v344 = vunpack.c.l.b16 %v200
  %v345 = vunpack.c.l.b16 %v201
  %v346 = vunpack.c.l.b16 %v202
  %v347 = vunpack.c.l.b16 %v203
  %v348 = vunpack.c.l.b16 %v204
  %v349 = vunpack.c.l.b16 %v205
  %v350 = vunpack.c.l.b16 %v206
  %v351 = vunpack.c.l.b16 %v207
  %v352 = vunpack.c.l.b16 %v208
  %v353 = vunpack.c.l.b16 %v209
  %v354 = vunpack.c.l.b16 %v210
  %v355 = vunpack.c.l.b16 %v211
  %v356 = vunpack.c.l.b16 %v212
  %v357 = vunpack.c.l.b16 %v213
  %v358 = vpack.c.b16 %v295, %v294
  %v359 = vpack.c.b16 %v297, %v296
  %v360 = vpack.c.b16 %v299, %v298
  %v361 = vpack.c.b16 %v301, %v300
  %v362 = vpack.c.b16 %v303, %v302
  %v363 = vpack.c.b16 %v305, %v304
  %v364 = vpack.c.b16 %v307, %v306
  %v365 = vpack.c.b16 %v309, %v308
  %v366 = vpack.c.b16 %v311, %v310
  %v367 = vpack.c.b16 %v313, %v312
  %v368 = vpack.c.b16 %v315, %v314
  %v369 = vpack.c.b16 %v317, %v316
  %v370 = vpack.c.b16 %v319, %v318
  %v371 = vpack.c.b16 %v321, %v320
  %v372 = vpack.c.b16 %v323, %v322
  %v373 = vpack.c.b16 %v325, %v324
  %v374 = vpack.c.b16 %v327, %v326
  %v375 = vpack.c.b16 %v329, %v328
  %v376 = vpack.c.b16 %v331, %v330
  %v377 = vpack.c.b16 %v333, %v332
  %v378 = vpack.c.b16 %v335, %v334
  %v379 = vpack.c.b16 %v337, %v336
  %v380 = vpack.c.b16 %v339, %v338
  %v381 = vpack.c.b16 %v341, %v340
  %v382 = vpack.c.b16 %v343, %v342
  %v383 = vpack.c.b16 %v345, %v344
  %v384 = vpack.c.b16 %v347, %v346
  %v385 = vpack.c.b16 %v349, %v348
  %v386 = vpack.c.b16 %v351, %v350
  %v387 = vpack.c.b16 %v353, %v352
  %v388 = vpack.c.b16 %v355, %v354
  %v389 = vpack.c.b16 %v357, %v356
  %v438 = vunpack.c.l.b16 %v214
  %v439 = vunpack.c.l.b16 %v215
  %v440 = vunpack.c.l.b16 %v216
  %v441 = vunpack.c.l.b16 %v217
  %v442 = vunpack.c.l.b16 %v218
  %v443 = vunpack.c.l.b16 %v219
  %v444 = vunpack.c.l.b16 %v220
  %v445 = vunpack.c.l.b16 %v221
  %v446 = vunpack.c.l.b16 %v222
  %v447 = vunpack.c.l.b16 %v223
  %v448 = vunpack.c.l.b16 %v224
  %v449 = vunpack.c.l.b16 %v225
  %v450 = vunpack.c.l.b16 %v226
  %v451 = vunpack.c.l.b16 %v227
  %v452 = vunpack.c.l.b16 %v228
  %v453 = vunpack.c.l.b16 %v229
  %v454 = vpack.c.b16 %v439, %v438
  %v455 = vpack.c.b16 %v441, %v440
  %v456 = vpack.c.b16 %v443, %v442
  %v457 = vpack.c.b16 %v445, %v444
  %v458 = vpack.c.b16 %v447, %v446
  %v459 = vpack.c.b16 %v449, %v448
  %v460 = vpack.c.b16 %v451, %v450
  %v461 = vpack.c.b16 %v453, %v452
  %470 = vmatprep.subr.bf16.mxu0 0
  %471 = vmatpush1.bf16.msra.mxu0 %v454
  %472 = vmatprep.subr.bf16.mxu0 0
  %473 = vmatpush1.bf16.msra.mxu0 %v455
  %474 = vmatprep.subr.bf16.mxu0 0
  %475 = vmatpush1.bf16.msra.mxu0 %v456
  %476 = vmatprep.subr.bf16.mxu0 0
  %477 = vmatpush1.bf16.msra.mxu0 %v457
  %478 = vmatprep.subr.bf16.mxu0 0
  %479 = vmatpush1.bf16.msra.mxu0 %v458
  %480 = vmatprep.subr.bf16.mxu0 0
  %481 = vmatpush1.bf16.msra.mxu0 %v459
  %482 = vmatprep.subr.bf16.mxu0 0
  %483 = vmatpush1.bf16.msra.mxu0 %v460
  %484 = vmatprep.subr.bf16.mxu0 0
  %485 = vmatpush1.bf16.msra.mxu0 %v461
  %486 = vmatprep.subr.bf16.mxu0 0
  %487 = vmatpush1.bf16.msra.mxu0 0
  %488 = vmatprep.subr.bf16.mxu0 0
  %489 = vmatpush1.bf16.msra.mxu0 0
  %490 = vmatprep.subr.bf16.mxu0 0
  %491 = vmatpush1.bf16.msra.mxu0 0
  %492 = vmatprep.subr.bf16.mxu0 0
  %493 = vmatpush1.bf16.msra.mxu0 0
  %494 = vmatprep.subr.bf16.mxu0 0
  %495 = vmatpush1.bf16.msra.mxu0 0
  %496 = vmatprep.subr.bf16.mxu0 0
  %497 = vmatpush1.bf16.msra.mxu0 0
  %498 = vmatprep.subr.bf16.mxu0 0
  %499 = vmatpush1.bf16.msra.mxu0 0
  %500 = vmatprep.subr.bf16.mxu0 0
  %501 = vmatpush1.bf16.msra.mxu0 0
  %502 = vmatprep.mubr.bf16.mxu0 0
  %503 = vmatmul.mubr.bf16.gmra.mrb[0].mxu0 %v358
  %v504 = vpop.f32.mrb[0].mxu0
  %v505 = vadd.f32 0.0, %v504
  %v506 = vpop.f32.mrb[0].mxu0
  %v507 = vpop.f32.mrb[0].mxu0
  %v508 = vadd.f32 0.0, %v507
  %v509 = vpop.f32.mrb[0].mxu0
  %510 = vmatprep.mubr.bf16.mxu0 0
  %511 = vmatmul.mubr.bf16.gmra.mrb[0].mxu0 %v359
  %v512 = vpop.f32.mrb[0].mxu0
  %v513 = vadd.f32 0.0, %v512
  %v514 = vpop.f32.mrb[0].mxu0
  %v515 = vpop.f32.mrb[0].mxu0
  %v516 = vadd.f32 0.0, %v515
  %v517 = vpop.f32.mrb[0].mxu0
  %518 = vmatprep.mubr.bf16.mxu0 0
  %519 = vmatmul.mubr.bf16.gmra.mrb[0].mxu0 %v360
  %v520 = vpop.f32.mrb[0].mxu0
  %v521 = vadd.f32 0.0, %v520
  %v522 = vpop.f32.mrb[0].mxu0
  %v523 = vpop.f32.mrb[0].mxu0
  %v524 = vadd.f32 0.0, %v523
  %v525 = vpop.f32.mrb[0].mxu0
  %526 = vmatprep.mubr.bf16.mxu0 0
  %527 = vmatmul.mubr.bf16.gmra.mrb[0].mxu0 %v361
  %v528 = vpop.f32.mrb[0].mxu0
  %v529 = vadd.f32 0.0, %v528
  %v530 = vpop.f32.mrb[0].mxu0
  %v531 = vpop.f32.mrb[0].mxu0
  %v532 = vadd.f32 0.0, %v531
  %v533 = vpop.f32.mrb[0].mxu0
  %534 = vmatprep.mubr.bf16.mxu0 0
  %535 = vmatmul.mubr.bf16.gmra.mrb[0].mxu0 %v362
  %v536 = vpop.f32.mrb[0].mxu0
  %v537 = vadd.f32 0.0, %v536
  %v538 = vpop.f32.mrb[0].mxu0
  %v539 = vpop.f32.mrb[0].mxu0
  %v540 = vadd.f32 0.0, %v539
  %v541 = vpop.f32.mrb[0].mxu0
  %542 = vmatprep.mubr.bf16.mxu0 0
  %543 = vmatmul.mubr.bf16.gmra.mrb[0].mxu0 %v363
  %v544 = vpop.f32.mrb[0].mxu0
  %v545 = vadd.f32 0.0, %v544
  %v546 = vpop.f32.mrb[0].mxu0
  %v547 = vpop.f32.mrb[0].mxu0
  %v548 = vadd.f32 0.0, %v547
  %v549 = vpop.f32.mrb[0].mxu0
  %550 = vmatprep.mubr.bf16.mxu0 0
  %551 = vmatmul.mubr.bf16.gmra.mrb[0].mxu0 %v364
  %v552 = vpop.f32.mrb[0].mxu0
  %v553 = vadd.f32 0.0, %v552
  %v554 = vpop.f32.mrb[0].mxu0
  %v555 = vpop.f32.mrb[0].mxu0
  %v556 = vadd.f32 0.0, %v555
  %v557 = vpop.f32.mrb[0].mxu0
  %558 = vmatprep.mubr.bf16.mxu0 0
  %559 = vmatmul.mubr.bf16.gmra.mrb[0].mxu0 %v365
  %v560 = vpop.f32.mrb[0].mxu0
  %v561 = vadd.f32 0.0, %v560
  %v562 = vpop.f32.mrb[0].mxu0
  %v563 = vpop.f32.mrb[0].mxu0
  %v564 = vadd.f32 0.0, %v563
  %v565 = vpop.f32.mrb[0].mxu0
  %566 = vmatprep.mubr.bf16.mxu0 0
  %567 = vmatmul.mubr.bf16.gmra.mrb[0].mxu0 %v366
  %v568 = vpop.f32.mrb[0].mxu0
  %v569 = vadd.f32 0.0, %v568
  %v570 = vpop.f32.mrb[0].mxu0
  %v571 = vpop.f32.mrb[0].mxu0
  %v572 = vadd.f32 0.0, %v571
  %v573 = vpop.f32.mrb[0].mxu0
  %574 = vmatprep.mubr.bf16.mxu0 0
  %575 = vmatmul.mubr.bf16.gmra.mrb[0].mxu0 %v367
  %v576 = vpop.f32.mrb[0].mxu0
  %v577 = vadd.f32 0.0, %v576
  %v578 = vpop.f32.mrb[0].mxu0
  %v579 = vpop.f32.mrb[0].mxu0
  %v580 = vadd.f32 0.0, %v579
  %v581 = vpop.f32.mrb[0].mxu0
  %582 = vmatprep.mubr.bf16.mxu0 0
  %583 = vmatmul.mubr.bf16.gmra.mrb[0].mxu0 %v368
  %v584 = vpop.f32.mrb[0].mxu0
  %v585 = vadd.f32 0.0, %v584
  %v586 = vpop.f32.mrb[0].mxu0
  %v587 = vpop.f32.mrb[0].mxu0
  %v588 = vadd.f32 0.0, %v587
  %v589 = vpop.f32.mrb[0].mxu0
  %590 = vmatprep.mubr.bf16.mxu0 0
  %591 = vmatmul.mubr.bf16.gmra.mrb[0].mxu0 %v369
  %v592 = vpop.f32.mrb[0].mxu0
  %v593 = vadd.f32 0.0, %v592
  %v594 = vpop.f32.mrb[0].mxu0
  %v595 = vpop.f32.mrb[0].mxu0
  %v596 = vadd.f32 0.0, %v595
  %v597 = vpop.f32.mrb[0].mxu0
  %598 = vmatprep.mubr.bf16.mxu0 0
  %599 = vmatmul.mubr.bf16.gmra.mrb[0].mxu0 %v370
  %v600 = vpop.f32.mrb[0].mxu0
  %v601 = vadd.f32 0.0, %v600
  %v602 = vpop.f32.mrb[0].mxu0
  %v603 = vpop.f32.mrb[0].mxu0
  %v604 = vadd.f32 0.0, %v603
  %v605 = vpop.f32.mrb[0].mxu0
  %606 = vmatprep.mubr.bf16.mxu0 0
  %607 = vmatmul.mubr.bf16.gmra.mrb[0].mxu0 %v371
  %v608 = vpop.f32.mrb[0].mxu0
  %v609 = vadd.f32 0.0, %v608
  %v610 = vpop.f32.mrb[0].mxu0
  %v611 = vpop.f32.mrb[0].mxu0
  %v612 = vadd.f32 0.0, %v611
  %v613 = vpop.f32.mrb[0].mxu0
  %614 = vmatprep.mubr.bf16.mxu0 0
  %615 = vmatmul.mubr.bf16.gmra.mrb[0].mxu0 %v372
  %v616 = vpop.f32.mrb[0].mxu0
  %v617 = vadd.f32 0.0, %v616
  %v618 = vpop.f32.mrb[0].mxu0
  %v619 = vpop.f32.mrb[0].mxu0
  %v620 = vadd.f32 0.0, %v619
  %v621 = vpop.f32.mrb[0].mxu0
  %622 = vmatprep.mubr.bf16.mxu0 0
  %623 = vmatmul.mubr.bf16.gmra.mrb[0].mxu0 %v373
  %v624 = vpop.f32.mrb[0].mxu0
  %v625 = vadd.f32 0.0, %v624
  %v626 = vpop.f32.mrb[0].mxu0
  %v627 = vpop.f32.mrb[0].mxu0
  %v628 = vadd.f32 0.0, %v627
  %v629 = vpop.f32.mrb[0].mxu0
  %630 = vmatprep.mubr.bf16.mxu0 0
  %631 = vmatmul.mubr.bf16.gmra.mrb[0].mxu0 %v374
  %v632 = vpop.f32.mrb[0].mxu0
  %v633 = vadd.f32 0.0, %v632
  %v634 = vpop.f32.mrb[0].mxu0
  %v635 = vpop.f32.mrb[0].mxu0
  %v636 = vadd.f32 0.0, %v635
  %v637 = vpop.f32.mrb[0].mxu0
  %638 = vmatprep.mubr.bf16.mxu0 0
  %639 = vmatmul.mubr.bf16.gmra.mrb[0].mxu0 %v375
  %v640 = vpop.f32.mrb[0].mxu0
  %v641 = vadd.f32 0.0, %v640
  %v642 = vpop.f32.mrb[0].mxu0
  %v643 = vpop.f32.mrb[0].mxu0
  %v644 = vadd.f32 0.0, %v643
  %v645 = vpop.f32.mrb[0].mxu0
  %646 = vmatprep.mubr.bf16.mxu0 0
  %647 = vmatmul.mubr.bf16.gmra.mrb[0].mxu0 %v376
  %v648 = vpop.f32.mrb[0].mxu0
  %v649 = vadd.f32 0.0, %v648
  %v650 = vpop.f32.mrb[0].mxu0
  %v651 = vpop.f32.mrb[0].mxu0
  %v652 = vadd.f32 0.0, %v651
  %v653 = vpop.f32.mrb[0].mxu0
  %654 = vmatprep.mubr.bf16.mxu0 0
  %655 = vmatmul.mubr.bf16.gmra.mrb[0].mxu0 %v377
  %v656 = vpop.f32.mrb[0].mxu0
  %v657 = vadd.f32 0.0, %v656
  %v658 = vpop.f32.mrb[0].mxu0
  %v659 = vpop.f32.mrb[0].mxu0
  %v660 = vadd.f32 0.0, %v659
  %v661 = vpop.f32.mrb[0].mxu0
  %662 = vmatprep.mubr.bf16.mxu0 0
  %663 = vmatmul.mubr.bf16.gmra.mrb[0].mxu0 %v378
  %v664 = vpop.f32.mrb[0].mxu0
  %v665 = vadd.f32 0.0, %v664
  %v666 = vpop.f32.mrb[0].mxu0
  %v667 = vpop.f32.mrb[0].mxu0
  %v668 = vadd.f32 0.0, %v667
  %v669 = vpop.f32.mrb[0].mxu0
  %670 = vmatprep.mubr.bf16.mxu0 0
  %671 = vmatmul.mubr.bf16.gmra.mrb[0].mxu0 %v379
  %v672 = vpop.f32.mrb[0].mxu0
  %v673 = vadd.f32 0.0, %v672
  %v674 = vpop.f32.mrb[0].mxu0
  %v675 = vpop.f32.mrb[0].mxu0
  %v676 = vadd.f32 0.0, %v675
  %v677 = vpop.f32.mrb[0].mxu0
  %678 = vmatprep.mubr.bf16.mxu0 0
  %679 = vmatmul.mubr.bf16.gmra.mrb[0].mxu0 %v380
  %v680 = vpop.f32.mrb[0].mxu0
  %v681 = vadd.f32 0.0, %v680
  %v682 = vpop.f32.mrb[0].mxu0
  %v683 = vpop.f32.mrb[0].mxu0
  %v684 = vadd.f32 0.0, %v683
  %v685 = vpop.f32.mrb[0].mxu0
  %686 = vmatprep.mubr.bf16.mxu0 0
  %687 = vmatmul.mubr.bf16.gmra.mrb[0].mxu0 %v381
  %v688 = vpop.f32.mrb[0].mxu0
  %v689 = vadd.f32 0.0, %v688
  %v690 = vpop.f32.mrb[0].mxu0
  %v691 = vpop.f32.mrb[0].mxu0
  %v692 = vadd.f32 0.0, %v691
  %v693 = vpop.f32.mrb[0].mxu0
  %694 = vmatprep.mubr.bf16.mxu0 0
  %695 = vmatmul.mubr.bf16.gmra.mrb[0].mxu0 %v382
  %v696 = vpop.f32.mrb[0].mxu0
  %v697 = vadd.f32 0.0, %v696
  %v698 = vpop.f32.mrb[0].mxu0
  %v699 = vpop.f32.mrb[0].mxu0
  %v700 = vadd.f32 0.0, %v699
  %v701 = vpop.f32.mrb[0].mxu0
  %702 = vmatprep.mubr.bf16.mxu0 0
  %703 = vmatmul.mubr.bf16.gmra.mrb[0].mxu0 %v383
  %v704 = vpop.f32.mrb[0].mxu0
  %v705 = vadd.f32 0.0, %v704
  %v706 = vpop.f32.mrb[0].mxu0
  %v707 = vpop.f32.mrb[0].mxu0
  %v708 = vadd.f32 0.0, %v707
  %v709 = vpop.f32.mrb[0].mxu0
  %710 = vmatprep.mubr.bf16.mxu0 0
  %711 = vmatmul.mubr.bf16.gmra.mrb[0].mxu0 %v384
  %v712 = vpop.f32.mrb[0].mxu0
  %v713 = vadd.f32 0.0, %v712
  %v714 = vpop.f32.mrb[0].mxu0
  %v715 = vpop.f32.mrb[0].mxu0
  %v716 = vadd.f32 0.0, %v715
  %v717 = vpop.f32.mrb[0].mxu0
  %718 = vmatprep.mubr.bf16.mxu0 0
  %719 = vmatmul.mubr.bf16.gmra.mrb[0].mxu0 %v385
  %v720 = vpop.f32.mrb[0].mxu0
  %v721 = vadd.f32 0.0, %v720
  %v722 = vpop.f32.mrb[0].mxu0
  %v723 = vpop.f32.mrb[0].mxu0
  %v724 = vadd.f32 0.0, %v723
  %v725 = vpop.f32.mrb[0].mxu0
  %726 = vmatprep.mubr.bf16.mxu0 0
  %727 = vmatmul.mubr.bf16.gmra.mrb[0].mxu0 %v386
  %v728 = vpop.f32.mrb[0].mxu0
  %v729 = vadd.f32 0.0, %v728
  %v730 = vpop.f32.mrb[0].mxu0
  %v731 = vpop.f32.mrb[0].mxu0
  %v732 = vadd.f32 0.0, %v731
  %v733 = vpop.f32.mrb[0].mxu0
  %734 = vmatprep.mubr.bf16.mxu0 0
  %735 = vmatmul.mubr.bf16.gmra.mrb[0].mxu0 %v387
  %v736 = vpop.f32.mrb[0].mxu0
  %v737 = vadd.f32 0.0, %v736
  %v738 = vpop.f32.mrb[0].mxu0
  %v739 = vpop.f32.mrb[0].mxu0
  %v740 = vadd.f32 0.0, %v739
  %v741 = vpop.f32.mrb[0].mxu0
  %742 = vmatprep.mubr.bf16.mxu0 0
  %743 = vmatmul.mubr.bf16.gmra.mrb[0].mxu0 %v388
  %v744 = vpop.f32.mrb[0].mxu0
  %v745 = vadd.f32 0.0, %v744
  %v746 = vpop.f32.mrb[0].mxu0
  %v747 = vpop.f32.mrb[0].mxu0
  %v748 = vadd.f32 0.0, %v747
  %v749 = vpop.f32.mrb[0].mxu0
  %750 = vmatprep.mubr.bf16.mxu0 0
  %751 = vmatmul.mubr.bf16.gmra.mrb[0].mxu0 %v389
  %v752 = vpop.f32.mrb[0].mxu0
  %v753 = vadd.f32 0.0, %v752
  %v754 = vpop.f32.mrb[0].mxu0
  %v755 = vpop.f32.mrb[0].mxu0
  %v756 = vadd.f32 0.0, %v755
  %v757 = vpop.f32.mrb[0].mxu0
  %758 = vdwg.mxu0
  %v759 = vadd.f32 %v86, %v505
  %v760 = vadd.f32 %v87, %v508
  %v761 = vadd.f32 %v88, %v513
  %v762 = vadd.f32 %v89, %v516
  %v763 = vadd.f32 %v90, %v521
  %v764 = vadd.f32 %v91, %v524
  %v765 = vadd.f32 %v92, %v529
  %v766 = vadd.f32 %v93, %v532
  %v767 = vadd.f32 %v94, %v537
  %v768 = vadd.f32 %v95, %v540
  %v769 = vadd.f32 %v96, %v545
  %v770 = vadd.f32 %v97, %v548
  %v771 = vadd.f32 %v98, %v553
  %v772 = vadd.f32 %v99, %v556
  %v773 = vadd.f32 %v100, %v561
  %v774 = vadd.f32 %v101, %v564
  %v775 = vadd.f32 %v102, %v569
  %v776 = vadd.f32 %v103, %v572
  %v777 = vadd.f32 %v104, %v577
  %v778 = vadd.f32 %v105, %v580
  %v779 = vadd.f32 %v106, %v585
  %v780 = vadd.f32 %v107, %v588
  %v781 = vadd.f32 %v108, %v593
  %v782 = vadd.f32 %v109, %v596
  %v783 = vadd.f32 %v110, %v601
  %v784 = vadd.f32 %v111, %v604
  %v785 = vadd.f32 %v112, %v609
  %v786 = vadd.f32 %v113, %v612
  %v787 = vadd.f32 %v114, %v617
  %v788 = vadd.f32 %v115, %v620
  %v789 = vadd.f32 %v116, %v625
  %v790 = vadd.f32 %v117, %v628
  %v791 = vadd.f32 %v118, %v633
  %v792 = vadd.f32 %v119, %v636
  %v793 = vadd.f32 %v120, %v641
  %v794 = vadd.f32 %v121, %v644
  %v795 = vadd.f32 %v122, %v649
  %v796 = vadd.f32 %v123, %v652
  %v797 = vadd.f32 %v124, %v657
  %v798 = vadd.f32 %v125, %v660
  %v799 = vadd.f32 %v126, %v665
  %v800 = vadd.f32 %v127, %v668
  %v801 = vadd.f32 %v128, %v673
  %v802 = vadd.f32 %v129, %v676
  %v803 = vadd.f32 %v130, %v681
  %v804 = vadd.f32 %v131, %v684
  %v805 = vadd.f32 %v132, %v689
  %v806 = vadd.f32 %v133, %v692
  %v807 = vadd.f32 %v134, %v697
  %v808 = vadd.f32 %v135, %v700
  %v809 = vadd.f32 %v136, %v705
  %v810 = vadd.f32 %v137, %v708
  %v811 = vadd.f32 %v138, %v713
  %v812 = vadd.f32 %v139, %v716
  %v813 = vadd.f32 %v140, %v721
  %v814 = vadd.f32 %v141, %v724
  %v815 = vadd.f32 %v142, %v729
  %v816 = vadd.f32 %v143, %v732
  %v817 = vadd.f32 %v144, %v737
  %v818 = vadd.f32 %v145, %v740
  %v819 = vadd.f32 %v146, %v745
  %v820 = vadd.f32 %v147, %v748
  %v821 = vadd.f32 %v148, %v753
  %v822 = vadd.f32 %v149, %v756
  %823 = vst [vmem:[#allocation2] sm:$0xff] %v759
  %824 = vst [vmem:[#allocation2 + $0x8] sm:$0xff] %v760
  %825 = vst [vmem:[#allocation2 + $0x10] sm:$0xff] %v761
  %826 = vst [vmem:[#allocation2 + $0x18] sm:$0xff] %v762
  %827 = vst [vmem:[#allocation2 + $0x20] sm:$0xff] %v763
  %828 = vst [vmem:[#allocation2 + $0x28] sm:$0xff] %v764
  %829 = vst [vmem:[#allocation2 + $0x30] sm:$0xff] %v765
  %830 = vst [vmem:[#allocation2 + $0x38] sm:$0xff] %v766
  %831 = vst [vmem:[#allocation2 + $0x40] sm:$0xff] %v767
  %832 = vst [vmem:[#allocation2 + $0x48] sm:$0xff] %v768
  %833 = vst [vmem:[#allocation2 + $0x50] sm:$0xff] %v769
  %834 = vst [vmem:[#allocation2 + $0x58] sm:$0xff] %v770
  %835 = vst [vmem:[#allocation2 + $0x60] sm:$0xff] %v771
  %836 = vst [vmem:[#allocation2 + $0x68] sm:$0xff] %v772
  %837 = vst [vmem:[#allocation2 + $0x70] sm:$0xff] %v773
  %838 = vst [vmem:[#allocation2 + $0x78] sm:$0xff] %v774
  %839 = vst [vmem:[#allocation2 + $0x80] sm:$0xff] %v775
  %840 = vst [vmem:[#allocation2 + $0x88] sm:$0xff] %v776
  %841 = vst [vmem:[#allocation2 + $0x90] sm:$0xff] %v777
  %842 = vst [vmem:[#allocation2 + $0x98] sm:$0xff] %v778
  %843 = vst [vmem:[#allocation2 + $0xa0] sm:$0xff] %v779
  %844 = vst [vmem:[#allocation2 + $0xa8] sm:$0xff] %v780
  %845 = vst [vmem:[#allocation2 + $0xb0] sm:$0xff] %v781
  %846 = vst [vmem:[#allocation2 + $0xb8] sm:$0xff] %v782
  %847 = vst [vmem:[#allocation2 + $0xc0] sm:$0xff] %v783
  %848 = vst [vmem:[#allocation2 + $0xc8] sm:$0xff] %v784
  %849 = vst [vmem:[#allocation2 + $0xd0] sm:$0xff] %v785
  %850 = vst [vmem:[#allocation2 + $0xd8] sm:$0xff] %v786
  %851 = vst [vmem:[#allocation2 + $0xe0] sm:$0xff] %v787
  %852 = vst [vmem:[#allocation2 + $0xe8] sm:$0xff] %v788
  %853 = vst [vmem:[#allocation2 + $0xf0] sm:$0xff] %v789
  %854 = vst [vmem:[#allocation2 + $0xf8] sm:$0xff] %v790
  %855 = vst [vmem:[#allocation2 + $0x100] sm:$0xff] %v791
  %856 = vst [vmem:[#allocation2 + $0x108] sm:$0xff] %v792
  %857 = vst [vmem:[#allocation2 + $0x110] sm:$0xff] %v793
  %858 = vst [vmem:[#allocation2 + $0x118] sm:$0xff] %v794
  %859 = vst [vmem:[#allocation2 + $0x120] sm:$0xff] %v795
  %860 = vst [vmem:[#allocation2 + $0x128] sm:$0xff] %v796
  %861 = vst [vmem:[#allocation2 + $0x130] sm:$0xff] %v797
  %862 = vst [vmem:[#allocation2 + $0x138] sm:$0xff] %v798
  %863 = vst [vmem:[#allocation2 + $0x140] sm:$0xff] %v799
  %864 = vst [vmem:[#allocation2 + $0x148] sm:$0xff] %v800
  %865 = vst [vmem:[#allocation2 + $0x150] sm:$0xff] %v801
  %866 = vst [vmem:[#allocation2 + $0x158] sm:$0xff] %v802
  %867 = vst [vmem:[#allocation2 + $0x160] sm:$0xff] %v803
  %868 = vst [vmem:[#allocation2 + $0x168] sm:$0xff] %v804
  %869 = vst [vmem:[#allocation2 + $0x170] sm:$0xff] %v805
  %870 = vst [vmem:[#allocation2 + $0x178] sm:$0xff] %v806
  %871 = vst [vmem:[#allocation2 + $0x180] sm:$0xff] %v807
  %872 = vst [vmem:[#allocation2 + $0x188] sm:$0xff] %v808
  %873 = vst [vmem:[#allocation2 + $0x190] sm:$0xff] %v809
  %874 = vst [vmem:[#allocation2 + $0x198] sm:$0xff] %v810
  %875 = vst [vmem:[#allocation2 + $0x1a0] sm:$0xff] %v811
  %876 = vst [vmem:[#allocation2 + $0x1a8] sm:$0xff] %v812
  %877 = vst [vmem:[#allocation2 + $0x1b0] sm:$0xff] %v813
  %878 = vst [vmem:[#allocation2 + $0x1b8] sm:$0xff] %v814
  %879 = vst [vmem:[#allocation2 + $0x1c0] sm:$0xff] %v815
  %880 = vst [vmem:[#allocation2 + $0x1c8] sm:$0xff] %v816
  %881 = vst [vmem:[#allocation2 + $0x1d0] sm:$0xff] %v817
  %882 = vst [vmem:[#allocation2 + $0x1d8] sm:$0xff] %v818
  %883 = vst [vmem:[#allocation2 + $0x1e0] sm:$0xff] %v819
  %884 = vst [vmem:[#allocation2 + $0x1e8] sm:$0xff] %v820
  %885 = vst [vmem:[#allocation2 + $0x1f0] sm:$0xff] %v821
  %886 = vst [vmem:[#allocation2 + $0x1f8] sm:$0xff] %v822
  // Predicated region
  $region22: #{discriminator_forward.5} parent=0 // pred_check
    %p887 = pneg %p18
  $region23: #{discriminator_forward.5} parent=0 // pred_check_branch
    %889 = sbr.rel (%p887) target = $region25
  $region24: #{discriminator_forward.5} parent=0 // pred_region
    %v890 = vld [vmem:[#allocation2] sm:$0xff]
    %v891 = vld [vmem:[#allocation2 + $0x8] sm:$0xff]
    %v892 = vld [vmem:[#allocation2 + $0x10] sm:$0xff]
    %v893 = vld [vmem:[#allocation2 + $0x18] sm:$0xff]
    %v894 = vld [vmem:[#allocation2 + $0x20] sm:$0xff]
    %v895 = vld [vmem:[#allocation2 + $0x28] sm:$0xff]
    %v896 = vld [vmem:[#allocation2 + $0x30] sm:$0xff]
    %v897 = vld [vmem:[#allocation2 + $0x38] sm:$0xff]
    %v898 = vld [vmem:[#allocation2 + $0x40] sm:$0xff]
    %v899 = vld [vmem:[#allocation2 + $0x48] sm:$0xff]
    %v900 = vld [vmem:[#allocation2 + $0x50] sm:$0xff]
    %v901 = vld [vmem:[#allocation2 + $0x58] sm:$0xff]
    %v902 = vld [vmem:[#allocation2 + $0x60] sm:$0xff]
    %v903 = vld [vmem:[#allocation2 + $0x68] sm:$0xff]
    %v904 = vld [vmem:[#allocation2 + $0x70] sm:$0xff]
    %v905 = vld [vmem:[#allocation2 + $0x78] sm:$0xff]
    %v906 = vld [vmem:[#allocation2 + $0x80] sm:$0xff]
    %v907 = vld [vmem:[#allocation2 + $0x88] sm:$0xff]
    %v908 = vld [vmem:[#allocation2 + $0x90] sm:$0xff]
    %v909 = vld [vmem:[#allocation2 + $0x98] sm:$0xff]
    %v910 = vld [vmem:[#allocation2 + $0xa0] sm:$0xff]
    %v911 = vld [vmem:[#allocation2 + $0xa8] sm:$0xff]
    %v912 = vld [vmem:[#allocation2 + $0xb0] sm:$0xff]
    %v913 = vld [vmem:[#allocation2 + $0xb8] sm:$0xff]
    %v914 = vld [vmem:[#allocation2 + $0xc0] sm:$0xff]
    %v915 = vld [vmem:[#allocation2 + $0xc8] sm:$0xff]
    %v916 = vld [vmem:[#allocation2 + $0xd0] sm:$0xff]
    %v917 = vld [vmem:[#allocation2 + $0xd8] sm:$0xff]
    %v918 = vld [vmem:[#allocation2 + $0xe0] sm:$0xff]
    %v919 = vld [vmem:[#allocation2 + $0xe8] sm:$0xff]
    %v920 = vld [vmem:[#allocation2 + $0xf0] sm:$0xff]
    %v921 = vld [vmem:[#allocation2 + $0xf8] sm:$0xff]
    %v922 = vld [vmem:[#allocation2 + $0x100] sm:$0xff]
    %v923 = vld [vmem:[#allocation2 + $0x108] sm:$0xff]
    %v924 = vld [vmem:[#allocation2 + $0x110] sm:$0xff]
    %v925 = vld [vmem:[#allocation2 + $0x118] sm:$0xff]
    %v926 = vld [vmem:[#allocation2 + $0x120] sm:$0xff]
    %v927 = vld [vmem:[#allocation2 + $0x128] sm:$0xff]
    %v928 = vld [vmem:[#allocation2 + $0x130] sm:$0xff]
    %v929 = vld [vmem:[#allocation2 + $0x138] sm:$0xff]
    %v930 = vld [vmem:[#allocation2 + $0x140] sm:$0xff]
    %v931 = vld [vmem:[#allocation2 + $0x148] sm:$0xff]
    %v932 = vld [vmem:[#allocation2 + $0x150] sm:$0xff]
    %v933 = vld [vmem:[#allocation2 + $0x158] sm:$0xff]
    %v934 = vld [vmem:[#allocation2 + $0x160] sm:$0xff]
    %v935 = vld [vmem:[#allocation2 + $0x168] sm:$0xff]
    %v936 = vld [vmem:[#allocation2 + $0x170] sm:$0xff]
    %v937 = vld [vmem:[#allocation2 + $0x178] sm:$0xff]
    %v938 = vld [vmem:[#allocation2 + $0x180] sm:$0xff]
    %v939 = vld [vmem:[#allocation2 + $0x188] sm:$0xff]
    %v940 = vld [vmem:[#allocation2 + $0x190] sm:$0xff]
    %v941 = vld [vmem:[#allocation2 + $0x198] sm:$0xff]
    %v942 = vld [vmem:[#allocation2 + $0x1a0] sm:$0xff]
    %v943 = vld [vmem:[#allocation2 + $0x1a8] sm:$0xff]
    %v944 = vld [vmem:[#allocation2 + $0x1b0] sm:$0xff]
    %v945 = vld [vmem:[#allocation2 + $0x1b8] sm:$0xff]
    %v946 = vld [vmem:[#allocation2 + $0x1c0] sm:$0xff]
    %v947 = vld [vmem:[#allocation2 + $0x1c8] sm:$0xff]
    %v948 = vld [vmem:[#allocation2 + $0x1d0] sm:$0xff]
    %v949 = vld [vmem:[#allocation2 + $0x1d8] sm:$0xff]
    %v950 = vld [vmem:[#allocation2 + $0x1e0] sm:$0xff]
    %v951 = vld [vmem:[#allocation2 + $0x1e8] sm:$0xff]
    %v952 = vld [vmem:[#allocation2 + $0x1f0] sm:$0xff]
    %v953 = vld [vmem:[#allocation2 + $0x1f8] sm:$0xff]
    %v954 = vadd.f32 %v890, %v891
    %v955 = vadd.f32 %v954, %v892
    %v956 = vadd.f32 %v955, %v893
    %v957 = vadd.f32 %v956, %v894
    %v958 = vadd.f32 %v957, %v895
    %v959 = vadd.f32 %v958, %v896
    %v960 = vadd.f32 %v959, %v897
    %v961 = vadd.f32 %v960, %v898
    %v962 = vadd.f32 %v961, %v899
    %v963 = vadd.f32 %v962, %v900
    %v964 = vadd.f32 %v963, %v901
    %v965 = vadd.f32 %v964, %v902
    %v966 = vadd.f32 %v965, %v903
    %v967 = vadd.f32 %v966, %v904
    %v968 = vadd.f32 %v967, %v905
    %v969 = vadd.f32 %v968, %v906
    %v970 = vadd.f32 %v969, %v907
    %v971 = vadd.f32 %v970, %v908
    %v972 = vadd.f32 %v971, %v909
    %v973 = vadd.f32 %v972, %v910
    %v974 = vadd.f32 %v973, %v911
    %v975 = vadd.f32 %v974, %v912
    %v976 = vadd.f32 %v975, %v913
    %v977 = vadd.f32 %v976, %v914
    %v978 = vadd.f32 %v977, %v915
    %v979 = vadd.f32 %v978, %v916
    %v980 = vadd.f32 %v979, %v917
    %v981 = vadd.f32 %v980, %v918
    %v982 = vadd.f32 %v981, %v919
    %v983 = vadd.f32 %v982, %v920
    %v984 = vadd.f32 %v983, %v921
    %v985 = vadd.f32 %v984, %v922
    %v986 = vadd.f32 %v985, %v923
    %v987 = vadd.f32 %v986, %v924
    %v988 = vadd.f32 %v987, %v925
    %v989 = vadd.f32 %v988, %v926
    %v990 = vadd.f32 %v989, %v927
    %v991 = vadd.f32 %v990, %v928
    %v992 = vadd.f32 %v991, %v929
    %v993 = vadd.f32 %v992, %v930
    %v994 = vadd.f32 %v993, %v931
    %v995 = vadd.f32 %v994, %v932
    %v996 = vadd.f32 %v995, %v933
    %v997 = vadd.f32 %v996, %v934
    %v998 = vadd.f32 %v997, %v935
    %v999 = vadd.f32 %v998, %v936
    %v1000 = vadd.f32 %v999, %v937
    %v1001 = vadd.f32 %v1000, %v938
    %v1002 = vadd.f32 %v1001, %v939
    %v1003 = vadd.f32 %v1002, %v940
    %v1004 = vadd.f32 %v1003, %v941
    %v1005 = vadd.f32 %v1004, %v942
    %v1006 = vadd.f32 %v1005, %v943
    %v1007 = vadd.f32 %v1006, %v944
    %v1008 = vadd.f32 %v1007, %v945
    %v1009 = vadd.f32 %v1008, %v946
    %v1010 = vadd.f32 %v1009, %v947
    %v1011 = vadd.f32 %v1010, %v948
    %v1012 = vadd.f32 %v1011, %v949
    %v1013 = vadd.f32 %v1012, %v950
    %v1014 = vadd.f32 %v1013, %v951
    %v1015 = vadd.f32 %v1014, %v952
    %v1016 = vadd.f32 %v1015, %v953
    %v1017 = vrot.slane %v1016, 4
    %v1018 = vadd.f32 %v1016, %v1017
    %v1019 = vrot.slane %v1018, 2
    %v1020 = vadd.f32 %v1018, %v1019
    %v1021 = vrot.slane %v1020, 1
    %v1022 = vadd.f32 %v1020, %v1021
    %v1023 = vmul.f32 %v1022, 0.001953125
    %v1024 = vsub.f32 %v890, %v1023
    %v1025 = vsub.f32 %v891, %v1023
    %v1026 = vsub.f32 %v892, %v1023
    %v1027 = vsub.f32 %v893, %v1023
    %v1028 = vsub.f32 %v894, %v1023
    %v1029 = vsub.f32 %v895, %v1023
    %v1030 = vsub.f32 %v896, %v1023
    %v1031 = vsub.f32 %v897, %v1023
    %v1032 = vsub.f32 %v898, %v1023
    %v1033 = vsub.f32 %v899, %v1023
    %v1034 = vsub.f32 %v900, %v1023
    %v1035 = vsub.f32 %v901, %v1023
    %v1036 = vsub.f32 %v902, %v1023
    %v1037 = vsub.f32 %v903, %v1023
    %v1038 = vsub.f32 %v904, %v1023
    %v1039 = vsub.f32 %v905, %v1023
    %v1040 = vsub.f32 %v906, %v1023
    %v1041 = vsub.f32 %v907, %v1023
    %v1042 = vsub.f32 %v908, %v1023
    %v1043 = vsub.f32 %v909, %v1023
    %v1044 = vsub.f32 %v910, %v1023
    %v1045 = vsub.f32 %v911, %v1023
    %v1046 = vsub.f32 %v912, %v1023
    %v1047 = vsub.f32 %v913, %v1023
    %v1048 = vsub.f32 %v914, %v1023
    %v1049 = vsub.f32 %v915, %v1023
    %v1050 = vsub.f32 %v916, %v1023
    %v1051 = vsub.f32 %v917, %v1023
    %v1052 = vsub.f32 %v918, %v1023
    %v1053 = vsub.f32 %v919, %v1023
    %v1054 = vsub.f32 %v920, %v1023
    %v1055 = vsub.f32 %v921, %v1023
    %v1056 = vsub.f32 %v922, %v1023
    %v1057 = vsub.f32 %v923, %v1023
    %v1058 = vsub.f32 %v924, %v1023
    %v1059 = vsub.f32 %v925, %v1023
    %v1060 = vsub.f32 %v926, %v1023
    %v1061 = vsub.f32 %v927, %v1023
    %v1062 = vsub.f32 %v928, %v1023
    %v1063 = vsub.f32 %v929, %v1023
    %v1064 = vsub.f32 %v930, %v1023
    %v1065 = vsub.f32 %v931, %v1023
    %v1066 = vsub.f32 %v932, %v1023
    %v1067 = vsub.f32 %v933, %v1023
    %v1068 = vsub.f32 %v934, %v1023
    %v1069 = vsub.f32 %v935, %v1023
    %v1070 = vsub.f32 %v936, %v1023
    %v1071 = vsub.f32 %v937, %v1023
    %v1072 = vsub.f32 %v938, %v1023
    %v1073 = vsub.f32 %v939, %v1023
    %v1074 = vsub.f32 %v940, %v1023
    %v1075 = vsub.f32 %v941, %v1023
    %v1076 = vsub.f32 %v942, %v1023
    %v1077 = vsub.f32 %v943, %v1023
    %v1078 = vsub.f32 %v944, %v1023
    %v1079 = vsub.f32 %v945, %v1023
    %v1080 = vsub.f32 %v946, %v1023
    %v1081 = vsub.f32 %v947, %v1023
    %v1082 = vsub.f32 %v948, %v1023
    %v1083 = vsub.f32 %v949, %v1023
    %v1084 = vsub.f32 %v950, %v1023
    %v1085 = vsub.f32 %v951, %v1023
    %v1086 = vsub.f32 %v952, %v1023
    %v1087 = vsub.f32 %v953, %v1023
    %v1088 = vmul.f32 %v1024, %v1024
    %v1089 = vmul.f32 %v1025, %v1025
    %v1090 = vmul.f32 %v1026, %v1026
    %v1091 = vmul.f32 %v1027, %v1027
    %v1092 = vmul.f32 %v1028, %v1028
    %v1093 = vmul.f32 %v1029, %v1029
    %v1094 = vmul.f32 %v1030, %v1030
    %v1095 = vmul.f32 %v1031, %v1031
    %v1096 = vmul.f32 %v1032, %v1032
    %v1097 = vmul.f32 %v1033, %v1033
    %v1098 = vmul.f32 %v1034, %v1034
    %v1099 = vmul.f32 %v1035, %v1035
    %v1100 = vmul.f32 %v1036, %v1036
    %v1101 = vmul.f32 %v1037, %v1037
    %v1102 = vmul.f32 %v1038, %v1038
    %v1103 = vmul.f32 %v1039, %v1039
    %v1104 = vmul.f32 %v1040, %v1040
    %v1105 = vmul.f32 %v1041, %v1041
    %v1106 = vmul.f32 %v1042, %v1042
    %v1107 = vmul.f32 %v1043, %v1043
    %v1108 = vmul.f32 %v1044, %v1044
    %v1109 = vmul.f32 %v1045, %v1045
    %v1110 = vmul.f32 %v1046, %v1046
    %v1111 = vmul.f32 %v1047, %v1047
    %v1112 = vmul.f32 %v1048, %v1048
    %v1113 = vmul.f32 %v1049, %v1049
    %v1114 = vmul.f32 %v1050, %v1050
    %v1115 = vmul.f32 %v1051, %v1051
    %v1116 = vmul.f32 %v1052, %v1052
    %v1117 = vmul.f32 %v1053, %v1053
    %v1118 = vmul.f32 %v1054, %v1054
    %v1119 = vmul.f32 %v1055, %v1055
    %v1120 = vmul.f32 %v1056, %v1056
    %v1121 = vmul.f32 %v1057, %v1057
    %v1122 = vmul.f32 %v1058, %v1058
    %v1123 = vmul.f32 %v1059, %v1059
    %v1124 = vmul.f32 %v1060, %v1060
    %v1125 = vmul.f32 %v1061, %v1061
    %v1126 = vmul.f32 %v1062, %v1062
    %v1127 = vmul.f32 %v1063, %v1063
    %v1128 = vmul.f32 %v1064, %v1064
    %v1129 = vmul.f32 %v1065, %v1065
    %v1130 = vmul.f32 %v1066, %v1066
    %v1131 = vmul.f32 %v1067, %v1067
    %v1132 = vmul.f32 %v1068, %v1068
    %v1133 = vmul.f32 %v1069, %v1069
    %v1134 = vmul.f32 %v1070, %v1070
    %v1135 = vmul.f32 %v1071, %v1071
    %v1136 = vmul.f32 %v1072, %v1072
    %v1137 = vmul.f32 %v1073, %v1073
    %v1138 = vmul.f32 %v1074, %v1074
    %v1139 = vmul.f32 %v1075, %v1075
    %v1140 = vmul.f32 %v1076, %v1076
    %v1141 = vmul.f32 %v1077, %v1077
    %v1142 = vmul.f32 %v1078, %v1078
    %v1143 = vmul.f32 %v1079, %v1079
    %v1144 = vmul.f32 %v1080, %v1080
    %v1145 = vmul.f32 %v1081, %v1081
    %v1146 = vmul.f32 %v1082, %v1082
    %v1147 = vmul.f32 %v1083, %v1083
    %v1148 = vmul.f32 %v1084, %v1084
    %v1149 = vmul.f32 %v1085, %v1085
    %v1150 = vmul.f32 %v1086, %v1086
    %v1151 = vmul.f32 %v1087, %v1087
    %v1152 = vadd.f32 %v1088, %v1089
    %v1153 = vadd.f32 %v1152, %v1090
    %v1154 = vadd.f32 %v1153, %v1091
    %v1155 = vadd.f32 %v1154, %v1092
    %v1156 = vadd.f32 %v1155, %v1093
    %v1157 = vadd.f32 %v1156, %v1094
    %v1158 = vadd.f32 %v1157, %v1095
    %v1159 = vadd.f32 %v1158, %v1096
    %v1160 = vadd.f32 %v1159, %v1097
    %v1161 = vadd.f32 %v1160, %v1098
    %v1162 = vadd.f32 %v1161, %v1099
    %v1163 = vadd.f32 %v1162, %v1100
    %v1164 = vadd.f32 %v1163, %v1101
    %v1165 = vadd.f32 %v1164, %v1102
    %v1166 = vadd.f32 %v1165, %v1103
    %v1167 = vadd.f32 %v1166, %v1104
    %v1168 = vadd.f32 %v1167, %v1105
    %v1169 = vadd.f32 %v1168, %v1106
    %v1170 = vadd.f32 %v1169, %v1107
    %v1171 = vadd.f32 %v1170, %v1108
    %v1172 = vadd.f32 %v1171, %v1109
    %v1173 = vadd.f32 %v1172, %v1110
    %v1174 = vadd.f32 %v1173, %v1111
    %v1175 = vadd.f32 %v1174, %v1112
    %v1176 = vadd.f32 %v1175, %v1113
    %v1177 = vadd.f32 %v1176, %v1114
    %v1178 = vadd.f32 %v1177, %v1115
    %v1179 = vadd.f32 %v1178, %v1116
    %v1180 = vadd.f32 %v1179, %v1117
    %v1181 = vadd.f32 %v1180, %v1118
    %v1182 = vadd.f32 %v1181, %v1119
    %v1183 = vadd.f32 %v1182, %v1120
    %v1184 = vadd.f32 %v1183, %v1121
    %v1185 = vadd.f32 %v1184, %v1122
    %v1186 = vadd.f32 %v1185, %v1123
    %v1187 = vadd.f32 %v1186, %v1124
    %v1188 = vadd.f32 %v1187, %v1125
    %v1189 = vadd.f32 %v1188, %v1126
    %v1190 = vadd.f32 %v1189, %v1127
    %v1191 = vadd.f32 %v1190, %v1128
    %v1192 = vadd.f32 %v1191, %v1129
    %v1193 = vadd.f32 %v1192, %v1130
    %v1194 = vadd.f32 %v1193, %v1131
    %v1195 = vadd.f32 %v1194, %v1132
    %v1196 = vadd.f32 %v1195, %v1133
    %v1197 = vadd.f32 %v1196, %v1134
    %v1198 = vadd.f32 %v1197, %v1135
    %v1199 = vadd.f32 %v1198, %v1136
    %v1200 = vadd.f32 %v1199, %v1137
    %v1201 = vadd.f32 %v1200, %v1138
    %v1202 = vadd.f32 %v1201, %v1139
    %v1203 = vadd.f32 %v1202, %v1140
    %v1204 = vadd.f32 %v1203, %v1141
    %v1205 = vadd.f32 %v1204, %v1142
    %v1206 = vadd.f32 %v1205, %v1143
    %v1207 = vadd.f32 %v1206, %v1144
    %v1208 = vadd.f32 %v1207, %v1145
    %v1209 = vadd.f32 %v1208, %v1146
    %v1210 = vadd.f32 %v1209, %v1147
    %v1211 = vadd.f32 %v1210, %v1148
    %v1212 = vadd.f32 %v1211, %v1149
    %v1213 = vadd.f32 %v1212, %v1150
    %v1214 = vadd.f32 %v1213, %v1151
    %v1215 = vrot.slane %v1214, 4
    %v1216 = vadd.f32 %v1214, %v1215
    %v1217 = vrot.slane %v1216, 2
    %v1218 = vadd.f32 %v1216, %v1217
    %v1219 = vrot.slane %v1218, 1
    %v1220 = vadd.f32 %v1218, %v1219
    %v1221 = vmul.f32 %v1220, 0.001953125
    %v1222 = vld [vmem:[%s2] sm:$0x1]
    %v1223 = vadd.f32 %v1221, 1e-05
    %v1224 = vrsqrt.pop %v1223
    %v1225 = vmul.f32 %v1222, %v1224
    %v1227 = vlaneseq
    %v1228 = vshrl.u32 %v1227, 7
    %v1229 = vsub.s32 0, %v1228
    %v1230 = vrot.slane %v1225, %v1229
    %v1232 = vmul.f32 %v1024, %v1230
    %v1233 = vmul.f32 %v1025, %v1230
    %v1234 = vmul.f32 %v1026, %v1230
    %v1235 = vmul.f32 %v1027, %v1230
    %v1236 = vmul.f32 %v1028, %v1230
    %v1237 = vmul.f32 %v1029, %v1230
    %v1238 = vmul.f32 %v1030, %v1230
    %v1239 = vmul.f32 %v1031, %v1230
    %v1240 = vmul.f32 %v1032, %v1230
    %v1241 = vmul.f32 %v1033, %v1230
    %v1242 = vmul.f32 %v1034, %v1230
    %v1243 = vmul.f32 %v1035, %v1230
    %v1244 = vmul.f32 %v1036, %v1230
    %v1245 = vmul.f32 %v1037, %v1230
    %v1246 = vmul.f32 %v1038, %v1230
    %v1247 = vmul.f32 %v1039, %v1230
    %v1248 = vmul.f32 %v1040, %v1230
    %v1249 = vmul.f32 %v1041, %v1230
    %v1250 = vmul.f32 %v1042, %v1230
    %v1251 = vmul.f32 %v1043, %v1230
    %v1252 = vmul.f32 %v1044, %v1230
    %v1253 = vmul.f32 %v1045, %v1230
    %v1254 = vmul.f32 %v1046, %v1230
    %v1255 = vmul.f32 %v1047, %v1230
    %v1256 = vmul.f32 %v1048, %v1230
    %v1257 = vmul.f32 %v1049, %v1230
    %v1258 = vmul.f32 %v1050, %v1230
    %v1259 = vmul.f32 %v1051, %v1230
    %v1260 = vmul.f32 %v1052, %v1230
    %v1261 = vmul.f32 %v1053, %v1230
    %v1262 = vmul.f32 %v1054, %v1230
    %v1263 = vmul.f32 %v1055, %v1230
    %v1264 = vmul.f32 %v1056, %v1230
    %v1265 = vmul.f32 %v1057, %v1230
    %v1266 = vmul.f32 %v1058, %v1230
    %v1267 = vmul.f32 %v1059, %v1230
    %v1268 = vmul.f32 %v1060, %v1230
    %v1269 = vmul.f32 %v1061, %v1230
    %v1270 = vmul.f32 %v1062, %v1230
    %v1271 = vmul.f32 %v1063, %v1230
    %v1272 = vmul.f32 %v1064, %v1230
    %v1273 = vmul.f32 %v1065, %v1230
    %v1274 = vmul.f32 %v1066, %v1230
    %v1275 = vmul.f32 %v1067, %v1230
    %v1276 = vmul.f32 %v1068, %v1230
    %v1277 = vmul.f32 %v1069, %v1230
    %v1278 = vmul.f32 %v1070, %v1230
    %v1279 = vmul.f32 %v1071, %v1230
    %v1280 = vmul.f32 %v1072, %v1230
    %v1281 = vmul.f32 %v1073, %v1230
    %v1282 = vmul.f32 %v1074, %v1230
    %v1283 = vmul.f32 %v1075, %v1230
    %v1284 = vmul.f32 %v1076, %v1230
    %v1285 = vmul.f32 %v1077, %v1230
    %v1286 = vmul.f32 %v1078, %v1230
    %v1287 = vmul.f32 %v1079, %v1230
    %v1288 = vmul.f32 %v1080, %v1230
    %v1289 = vmul.f32 %v1081, %v1230
    %v1290 = vmul.f32 %v1082, %v1230
    %v1291 = vmul.f32 %v1083, %v1230
    %v1292 = vmul.f32 %v1084, %v1230
    %v1293 = vmul.f32 %v1085, %v1230
    %v1294 = vmul.f32 %v1086, %v1230
    %v1295 = vmul.f32 %v1087, %v1230
    %v1296 = vld [vmem:[%s3] sm:$0x1]
    %v1298 = vlaneseq
    %v1299 = vshrl.u32 %v1298, 7
    %v1300 = vsub.s32 0, %v1299
    %v1301 = vrot.slane %v1296, %v1300
    %v1303 = vadd.f32 %v1232, %v1301
    %v1304 = vadd.f32 %v1233, %v1301
    %v1305 = vadd.f32 %v1234, %v1301
    %v1306 = vadd.f32 %v1235, %v1301
    %v1307 = vadd.f32 %v1236, %v1301
    %v1308 = vadd.f32 %v1237, %v1301
    %v1309 = vadd.f32 %v1238, %v1301
    %v1310 = vadd.f32 %v1239, %v1301
    %v1311 = vadd.f32 %v1240, %v1301
    %v1312 = vadd.f32 %v1241, %v1301
    %v1313 = vadd.f32 %v1242, %v1301
    %v1314 = vadd.f32 %v1243, %v1301
    %v1315 = vadd.f32 %v1244, %v1301
    %v1316 = vadd.f32 %v1245, %v1301
    %v1317 = vadd.f32 %v1246, %v1301
    %v1318 = vadd.f32 %v1247, %v1301
    %v1319 = vadd.f32 %v1248, %v1301
    %v1320 = vadd.f32 %v1249, %v1301
    %v1321 = vadd.f32 %v1250, %v1301
    %v1322 = vadd.f32 %v1251, %v1301
    %v1323 = vadd.f32 %v1252, %v1301
    %v1324 = vadd.f32 %v1253, %v1301
    %v1325 = vadd.f32 %v1254, %v1301
    %v1326 = vadd.f32 %v1255, %v1301
    %v1327 = vadd.f32 %v1256, %v1301
    %v1328 = vadd.f32 %v1257, %v1301
    %v1329 = vadd.f32 %v1258, %v1301
    %v1330 = vadd.f32 %v1259, %v1301
    %v1331 = vadd.f32 %v1260, %v1301
    %v1332 = vadd.f32 %v1261, %v1301
    %v1333 = vadd.f32 %v1262, %v1301
    %v1334 = vadd.f32 %v1263, %v1301
    %v1335 = vadd.f32 %v1264, %v1301
    %v1336 = vadd.f32 %v1265, %v1301
    %v1337 = vadd.f32 %v1266, %v1301
    %v1338 = vadd.f32 %v1267, %v1301
    %v1339 = vadd.f32 %v1268, %v1301
    %v1340 = vadd.f32 %v1269, %v1301
    %v1341 = vadd.f32 %v1270, %v1301
    %v1342 = vadd.f32 %v1271, %v1301
    %v1343 = vadd.f32 %v1272, %v1301
    %v1344 = vadd.f32 %v1273, %v1301
    %v1345 = vadd.f32 %v1274, %v1301
    %v1346 = vadd.f32 %v1275, %v1301
    %v1347 = vadd.f32 %v1276, %v1301
    %v1348 = vadd.f32 %v1277, %v1301
    %v1349 = vadd.f32 %v1278, %v1301
    %v1350 = vadd.f32 %v1279, %v1301
    %v1351 = vadd.f32 %v1280, %v1301
    %v1352 = vadd.f32 %v1281, %v1301
    %v1353 = vadd.f32 %v1282, %v1301
    %v1354 = vadd.f32 %v1283, %v1301
    %v1355 = vadd.f32 %v1284, %v1301
    %v1356 = vadd.f32 %v1285, %v1301
    %v1357 = vadd.f32 %v1286, %v1301
    %v1358 = vadd.f32 %v1287, %v1301
    %v1359 = vadd.f32 %v1288, %v1301
    %v1360 = vadd.f32 %v1289, %v1301
    %v1361 = vadd.f32 %v1290, %v1301
    %v1362 = vadd.f32 %v1291, %v1301
    %v1363 = vadd.f32 %v1292, %v1301
    %v1364 = vadd.f32 %v1293, %v1301
    %v1365 = vadd.f32 %v1294, %v1301
    %v1366 = vadd.f32 %v1295, %v1301
    %vm1367 = vcmp.ge.f32.partialorder %v1303, 0.0
    %vm1368 = vcmp.ge.f32.partialorder %v1304, 0.0
    %vm1369 = vcmp.ge.f32.partialorder %v1305, 0.0
    %vm1370 = vcmp.ge.f32.partialorder %v1306, 0.0
    %vm1371 = vcmp.ge.f32.partialorder %v1307, 0.0
    %vm1372 = vcmp.ge.f32.partialorder %v1308, 0.0
    %vm1373 = vcmp.ge.f32.partialorder %v1309, 0.0
    %vm1374 = vcmp.ge.f32.partialorder %v1310, 0.0
    %vm1375 = vcmp.ge.f32.partialorder %v1311, 0.0
    %vm1376 = vcmp.ge.f32.partialorder %v1312, 0.0
    %vm1377 = vcmp.ge.f32.partialorder %v1313, 0.0
    %vm1378 = vcmp.ge.f32.partialorder %v1314, 0.0
    %vm1379 = vcmp.ge.f32.partialorder %v1315, 0.0
    %vm1380 = vcmp.ge.f32.partialorder %v1316, 0.0
    %vm1381 = vcmp.ge.f32.partialorder %v1317, 0.0
    %vm1382 = vcmp.ge.f32.partialorder %v1318, 0.0
    %vm1383 = vcmp.ge.f32.partialorder %v1319, 0.0
    %vm1384 = vcmp.ge.f32.partialorder %v1320, 0.0
    %vm1385 = vcmp.ge.f32.partialorder %v1321, 0.0
    %vm1386 = vcmp.ge.f32.partialorder %v1322, 0.0
    %vm1387 = vcmp.ge.f32.partialorder %v1323, 0.0
    %vm1388 = vcmp.ge.f32.partialorder %v1324, 0.0
    %vm1389 = vcmp.ge.f32.partialorder %v1325, 0.0
    %vm1390 = vcmp.ge.f32.partialorder %v1326, 0.0
    %vm1391 = vcmp.ge.f32.partialorder %v1327, 0.0
    %vm1392 = vcmp.ge.f32.partialorder %v1328, 0.0
    %vm1393 = vcmp.ge.f32.partialorder %v1329, 0.0
    %vm1394 = vcmp.ge.f32.partialorder %v1330, 0.0
    %vm1395 = vcmp.ge.f32.partialorder %v1331, 0.0
    %vm1396 = vcmp.ge.f32.partialorder %v1332, 0.0
    %vm1397 = vcmp.ge.f32.partialorder %v1333, 0.0
    %vm1398 = vcmp.ge.f32.partialorder %v1334, 0.0
    %vm1399 = vcmp.ge.f32.partialorder %v1335, 0.0
    %vm1400 = vcmp.ge.f32.partialorder %v1336, 0.0
    %vm1401 = vcmp.ge.f32.partialorder %v1337, 0.0
    %vm1402 = vcmp.ge.f32.partialorder %v1338, 0.0
    %vm1403 = vcmp.ge.f32.partialorder %v1339, 0.0
    %vm1404 = vcmp.ge.f32.partialorder %v1340, 0.0
    %vm1405 = vcmp.ge.f32.partialorder %v1341, 0.0
    %vm1406 = vcmp.ge.f32.partialorder %v1342, 0.0
    %vm1407 = vcmp.ge.f32.partialorder %v1343, 0.0
    %vm1408 = vcmp.ge.f32.partialorder %v1344, 0.0
    %vm1409 = vcmp.ge.f32.partialorder %v1345, 0.0
    %vm1410 = vcmp.ge.f32.partialorder %v1346, 0.0
    %vm1411 = vcmp.ge.f32.partialorder %v1347, 0.0
    %vm1412 = vcmp.ge.f32.partialorder %v1348, 0.0
    %vm1413 = vcmp.ge.f32.partialorder %v1349, 0.0
    %vm1414 = vcmp.ge.f32.partialorder %v1350, 0.0
    %vm1415 = vcmp.ge.f32.partialorder %v1351, 0.0
    %vm1416 = vcmp.ge.f32.partialorder %v1352, 0.0
    %vm1417 = vcmp.ge.f32.partialorder %v1353, 0.0
    %vm1418 = vcmp.ge.f32.partialorder %v1354, 0.0
    %vm1419 = vcmp.ge.f32.partialorder %v1355, 0.0
    %vm1420 = vcmp.ge.f32.partialorder %v1356, 0.0
    %vm1421 = vcmp.ge.f32.partialorder %v1357, 0.0
    %vm1422 = vcmp.ge.f32.partialorder %v1358, 0.0
    %vm1423 = vcmp.ge.f32.partialorder %v1359, 0.0
    %vm1424 = vcmp.ge.f32.partialorder %v1360, 0.0
    %vm1425 = vcmp.ge.f32.partialorder %v1361, 0.0
    %vm1426 = vcmp.ge.f32.partialorder %v1362, 0.0
    %vm1427 = vcmp.ge.f32.partialorder %v1363, 0.0
    %vm1428 = vcmp.ge.f32.partialorder %v1364, 0.0
    %vm1429 = vcmp.ge.f32.partialorder %v1365, 0.0
    %vm1430 = vcmp.ge.f32.partialorder %v1366, 0.0
    %v1431 = vmul.f32 %v1303, 0.2
    %v1432 = vmul.f32 %v1304, 0.2
    %v1433 = vmul.f32 %v1305, 0.2
    %v1434 = vmul.f32 %v1306, 0.2
    %v1435 = vmul.f32 %v1307, 0.2
    %v1436 = vmul.f32 %v1308, 0.2
    %v1437 = vmul.f32 %v1309, 0.2
    %v1438 = vmul.f32 %v1310, 0.2
    %v1439 = vmul.f32 %v1311, 0.2
    %v1440 = vmul.f32 %v1312, 0.2
    %v1441 = vmul.f32 %v1313, 0.2
    %v1442 = vmul.f32 %v1314, 0.2
    %v1443 = vmul.f32 %v1315, 0.2
    %v1444 = vmul.f32 %v1316, 0.2
    %v1445 = vmul.f32 %v1317, 0.2
    %v1446 = vmul.f32 %v1318, 0.2
    %v1447 = vmul.f32 %v1319, 0.2
    %v1448 = vmul.f32 %v1320, 0.2
    %v1449 = vmul.f32 %v1321, 0.2
    %v1450 = vmul.f32 %v1322, 0.2
    %v1451 = vmul.f32 %v1323, 0.2
    %v1452 = vmul.f32 %v1324, 0.2
    %v1453 = vmul.f32 %v1325, 0.2
    %v1454 = vmul.f32 %v1326, 0.2
    %v1455 = vmul.f32 %v1327, 0.2
    %v1456 = vmul.f32 %v1328, 0.2
    %v1457 = vmul.f32 %v1329, 0.2
    %v1458 = vmul.f32 %v1330, 0.2
    %v1459 = vmul.f32 %v1331, 0.2
    %v1460 = vmul.f32 %v1332, 0.2
    %v1461 = vmul.f32 %v1333, 0.2
    %v1462 = vmul.f32 %v1334, 0.2
    %v1463 = vmul.f32 %v1335, 0.2
    %v1464 = vmul.f32 %v1336, 0.2
    %v1465 = vmul.f32 %v1337, 0.2
    %v1466 = vmul.f32 %v1338, 0.2
    %v1467 = vmul.f32 %v1339, 0.2
    %v1468 = vmul.f32 %v1340, 0.2
    %v1469 = vmul.f32 %v1341, 0.2
    %v1470 = vmul.f32 %v1342, 0.2
    %v1471 = vmul.f32 %v1343, 0.2
    %v1472 = vmul.f32 %v1344, 0.2
    %v1473 = vmul.f32 %v1345, 0.2
    %v1474 = vmul.f32 %v1346, 0.2
    %v1475 = vmul.f32 %v1347, 0.2
    %v1476 = vmul.f32 %v1348, 0.2
    %v1477 = vmul.f32 %v1349, 0.2
    %v1478 = vmul.f32 %v1350, 0.2
    %v1479 = vmul.f32 %v1351, 0.2
    %v1480 = vmul.f32 %v1352, 0.2
    %v1481 = vmul.f32 %v1353, 0.2
    %v1482 = vmul.f32 %v1354, 0.2
    %v1483 = vmul.f32 %v1355, 0.2
    %v1484 = vmul.f32 %v1356, 0.2
    %v1485 = vmul.f32 %v1357, 0.2
    %v1486 = vmul.f32 %v1358, 0.2
    %v1487 = vmul.f32 %v1359, 0.2
    %v1488 = vmul.f32 %v1360, 0.2
    %v1489 = vmul.f32 %v1361, 0.2
    %v1490 = vmul.f32 %v1362, 0.2
    %v1491 = vmul.f32 %v1363, 0.2
    %v1492 = vmul.f32 %v1364, 0.2
    %v1493 = vmul.f32 %v1365, 0.2
    %v1494 = vmul.f32 %v1366, 0.2
    %v1495 = vsel %vm1367, %v1303, %v1431
    %v1496 = vsel %vm1368, %v1304, %v1432
    %v1497 = vsel %vm1369, %v1305, %v1433
    %v1498 = vsel %vm1370, %v1306, %v1434
    %v1499 = vsel %vm1371, %v1307, %v1435
    %v1500 = vsel %vm1372, %v1308, %v1436
    %v1501 = vsel %vm1373, %v1309, %v1437
    %v1502 = vsel %vm1374, %v1310, %v1438
    %v1503 = vsel %vm1375, %v1311, %v1439
    %v1504 = vsel %vm1376, %v1312, %v1440
    %v1505 = vsel %vm1377, %v1313, %v1441
    %v1506 = vsel %vm1378, %v1314, %v1442
    %v1507 = vsel %vm1379, %v1315, %v1443
    %v1508 = vsel %vm1380, %v1316, %v1444
    %v1509 = vsel %vm1381, %v1317, %v1445
    %v1510 = vsel %vm1382, %v1318, %v1446
    %v1511 = vsel %vm1383, %v1319, %v1447
    %v1512 = vsel %vm1384, %v1320, %v1448
    %v1513 = vsel %vm1385, %v1321, %v1449
    %v1514 = vsel %vm1386, %v1322, %v1450
    %v1515 = vsel %vm1387, %v1323, %v1451
    %v1516 = vsel %vm1388, %v1324, %v1452
    %v1517 = vsel %vm1389, %v1325, %v1453
    %v1518 = vsel %vm1390, %v1326, %v1454
    %v1519 = vsel %vm1391, %v1327, %v1455
    %v1520 = vsel %vm1392, %v1328, %v1456
    %v1521 = vsel %vm1393, %v1329, %v1457
    %v1522 = vsel %vm1394, %v1330, %v1458
    %v1523 = vsel %vm1395, %v1331, %v1459
    %v1524 = vsel %vm1396, %v1332, %v1460
    %v1525 = vsel %vm1397, %v1333, %v1461
    %v1526 = vsel %vm1398, %v1334, %v1462
    %v1527 = vsel %vm1399, %v1335, %v1463
    %v1528 = vsel %vm1400, %v1336, %v1464
    %v1529 = vsel %vm1401, %v1337, %v1465
    %v1530 = vsel %vm1402, %v1338, %v1466
    %v1531 = vsel %vm1403, %v1339, %v1467
    %v1532 = vsel %vm1404, %v1340, %v1468
    %v1533 = vsel %vm1405, %v1341, %v1469
    %v1534 = vsel %vm1406, %v1342, %v1470
    %v1535 = vsel %vm1407, %v1343, %v1471
    %v1536 = vsel %vm1408, %v1344, %v1472
    %v1537 = vsel %vm1409, %v1345, %v1473
    %v1538 = vsel %vm1410, %v1346, %v1474
    %v1539 = vsel %vm1411, %v1347, %v1475
    %v1540 = vsel %vm1412, %v1348, %v1476
    %v1541 = vsel %vm1413, %v1349, %v1477
    %v1542 = vsel %vm1414, %v1350, %v1478
    %v1543 = vsel %vm1415, %v1351, %v1479
    %v1544 = vsel %vm1416, %v1352, %v1480
    %v1545 = vsel %vm1417, %v1353, %v1481
    %v1546 = vsel %vm1418, %v1354, %v1482
    %v1547 = vsel %vm1419, %v1355, %v1483
    %v1548 = vsel %vm1420, %v1356, %v1484
    %v1549 = vsel %vm1421, %v1357, %v1485
    %v1550 = vsel %vm1422, %v1358, %v1486
    %v1551 = vsel %vm1423, %v1359, %v1487
    %v1552 = vsel %vm1424, %v1360, %v1488
    %v1553 = vsel %vm1425, %v1361, %v1489
    %v1554 = vsel %vm1426, %v1362, %v1490
    %v1555 = vsel %vm1427, %v1363, %v1491
    %v1556 = vsel %vm1428, %v1364, %v1492
    %v1557 = vsel %vm1429, %v1365, %v1493
    %v1558 = vsel %vm1430, %v1366, %v1494
    %v1559 = vpack.c.bf16 %v1496, %v1495
    %v1560 = vpack.c.bf16 %v1498, %v1497
    %v1561 = vpack.c.bf16 %v1500, %v1499
    %v1562 = vpack.c.bf16 %v1502, %v1501
    %v1563 = vpack.c.bf16 %v1504, %v1503
    %v1564 = vpack.c.bf16 %v1506, %v1505
    %v1565 = vpack.c.bf16 %v1508, %v1507
    %v1566 = vpack.c.bf16 %v1510, %v1509
    %v1567 = vpack.c.bf16 %v1512, %v1511
    %v1568 = vpack.c.bf16 %v1514, %v1513
    %v1569 = vpack.c.bf16 %v1516, %v1515
    %v1570 = vpack.c.bf16 %v1518, %v1517
    %v1571 = vpack.c.bf16 %v1520, %v1519
    %v1572 = vpack.c.bf16 %v1522, %v1521
    %v1573 = vpack.c.bf16 %v1524, %v1523
    %v1574 = vpack.c.bf16 %v1526, %v1525
    %v1575 = vpack.c.bf16 %v1528, %v1527
    %v1576 = vpack.c.bf16 %v1530, %v1529
    %v1577 = vpack.c.bf16 %v1532, %v1531
    %v1578 = vpack.c.bf16 %v1534, %v1533
    %v1579 = vpack.c.bf16 %v1536, %v1535
    %v1580 = vpack.c.bf16 %v1538, %v1537
    %v1581 = vpack.c.bf16 %v1540, %v1539
    %v1582 = vpack.c.bf16 %v1542, %v1541
    %v1583 = vpack.c.bf16 %v1544, %v1543
    %v1584 = vpack.c.bf16 %v1546, %v1545
    %v1585 = vpack.c.bf16 %v1548, %v1547
    %v1586 = vpack.c.bf16 %v1550, %v1549
    %v1587 = vpack.c.bf16 %v1552, %v1551
    %v1588 = vpack.c.bf16 %v1554, %v1553
    %v1589 = vpack.c.bf16 %v1556, %v1555
    %v1590 = vpack.c.bf16 %v1558, %v1557
    %v1623 = vunpack.c.l.b16 %v1559
    %v1624 = vunpack.c.h.b16 %v1559
    %v1625 = vunpack.c.l.b16 %v1560
    %v1626 = vunpack.c.h.b16 %v1560
    %v1627 = vunpack.c.l.b16 %v1561
    %v1628 = vunpack.c.h.b16 %v1561
    %v1629 = vunpack.c.l.b16 %v1562
    %v1630 = vunpack.c.h.b16 %v1562
    %v1631 = vunpack.c.l.b16 %v1563
    %v1632 = vunpack.c.h.b16 %v1563
    %v1633 = vunpack.c.l.b16 %v1564
    %v1634 = vunpack.c.h.b16 %v1564
    %v1635 = vunpack.c.l.b16 %v1565
    %v1636 = vunpack.c.h.b16 %v1565
    %v1637 = vunpack.c.l.b16 %v1566
    %v1638 = vunpack.c.h.b16 %v1566
    %v1639 = vunpack.c.l.b16 %v1567
    %v1640 = vunpack.c.h.b16 %v1567
    %v1641 = vunpack.c.l.b16 %v1568
    %v1642 = vunpack.c.h.b16 %v1568
    %v1643 = vunpack.c.l.b16 %v1569
    %v1644 = vunpack.c.h.b16 %v1569
    %v1645 = vunpack.c.l.b16 %v1570
    %v1646 = vunpack.c.h.b16 %v1570
    %v1647 = vunpack.c.l.b16 %v1571
    %v1648 = vunpack.c.h.b16 %v1571
    %v1649 = vunpack.c.l.b16 %v1572
    %v1650 = vunpack.c.h.b16 %v1572
    %v1651 = vunpack.c.l.b16 %v1573
    %v1652 = vunpack.c.h.b16 %v1573
    %v1653 = vunpack.c.l.b16 %v1574
    %v1654 = vunpack.c.h.b16 %v1574
    %v1655 = vunpack.c.l.b16 %v1575
    %v1656 = vunpack.c.h.b16 %v1575
    %v1657 = vunpack.c.l.b16 %v1576
    %v1658 = vunpack.c.h.b16 %v1576
    %v1659 = vunpack.c.l.b16 %v1577
    %v1660 = vunpack.c.h.b16 %v1577
    %v1661 = vunpack.c.l.b16 %v1578
    %v1662 = vunpack.c.h.b16 %v1578
    %v1663 = vunpack.c.l.b16 %v1579
    %v1664 = vunpack.c.h.b16 %v1579
    %v1665 = vunpack.c.l.b16 %v1580
    %v1666 = vunpack.c.h.b16 %v1580
    %v1667 = vunpack.c.l.b16 %v1581
    %v1668 = vunpack.c.h.b16 %v1581
    %v1669 = vunpack.c.l.b16 %v1582
    %v1670 = vunpack.c.h.b16 %v1582
    %v1671 = vunpack.c.l.b16 %v1583
    %v1672 = vunpack.c.h.b16 %v1583
    %v1673 = vunpack.c.l.b16 %v1584
    %v1674 = vunpack.c.h.b16 %v1584
    %v1675 = vunpack.c.l.b16 %v1585
    %v1676 = vunpack.c.h.b16 %v1585
    %v1677 = vunpack.c.l.b16 %v1586
    %v1678 = vunpack.c.h.b16 %v1586
    %v1679 = vunpack.c.l.b16 %v1587
    %v1680 = vunpack.c.h.b16 %v1587
    %v1681 = vunpack.c.l.b16 %v1588
    %v1682 = vunpack.c.h.b16 %v1588
    %v1683 = vunpack.c.l.b16 %v1589
    %v1684 = vunpack.c.h.b16 %v1589
    %v1685 = vunpack.c.l.b16 %v1590
    %v1686 = vunpack.c.h.b16 %v1590
    %v1687 = vpack.c.b16 %v1623, %v1623
    %v1688 = vpack.c.b16 %v1624, %v1624
    %v1689 = vpack.c.b16 %v1625, %v1625
    %v1690 = vpack.c.b16 %v1626, %v1626
    %v1691 = vpack.c.b16 %v1627, %v1627
    %v1692 = vpack.c.b16 %v1628, %v1628
    %v1693 = vpack.c.b16 %v1629, %v1629
    %v1694 = vpack.c.b16 %v1630, %v1630
    %v1695 = vpack.c.b16 %v1631, %v1631
    %v1696 = vpack.c.b16 %v1632, %v1632
    %v1697 = vpack.c.b16 %v1633, %v1633
    %v1698 = vpack.c.b16 %v1634, %v1634
    %v1699 = vpack.c.b16 %v1635, %v1635
    %v1700 = vpack.c.b16 %v1636, %v1636
    %v1701 = vpack.c.b16 %v1637, %v1637
    %v1702 = vpack.c.b16 %v1638, %v1638
    %v1703 = vpack.c.b16 %v1639, %v1639
    %v1704 = vpack.c.b16 %v1640, %v1640
    %v1705 = vpack.c.b16 %v1641, %v1641
    %v1706 = vpack.c.b16 %v1642, %v1642
    %v1707 = vpack.c.b16 %v1643, %v1643
    %v1708 = vpack.c.b16 %v1644, %v1644
    %v1709 = vpack.c.b16 %v1645, %v1645
    %v1710 = vpack.c.b16 %v1646, %v1646
    %v1711 = vpack.c.b16 %v1647, %v1647
    %v1712 = vpack.c.b16 %v1648, %v1648
    %v1713 = vpack.c.b16 %v1649, %v1649
    %v1714 = vpack.c.b16 %v1650, %v1650
    %v1715 = vpack.c.b16 %v1651, %v1651
    %v1716 = vpack.c.b16 %v1652, %v1652
    %v1717 = vpack.c.b16 %v1653, %v1653
    %v1718 = vpack.c.b16 %v1654, %v1654
    %v1719 = vpack.c.b16 %v1655, %v1655
    %v1720 = vpack.c.b16 %v1656, %v1656
    %v1721 = vpack.c.b16 %v1657, %v1657
    %v1722 = vpack.c.b16 %v1658, %v1658
    %v1723 = vpack.c.b16 %v1659, %v1659
    %v1724 = vpack.c.b16 %v1660, %v1660
    %v1725 = vpack.c.b16 %v1661, %v1661
    %v1726 = vpack.c.b16 %v1662, %v1662
    %v1727 = vpack.c.b16 %v1663, %v1663
    %v1728 = vpack.c.b16 %v1664, %v1664
    %v1729 = vpack.c.b16 %v1665, %v1665
    %v1730 = vpack.c.b16 %v1666, %v1666
    %v1731 = vpack.c.b16 %v1667, %v1667
    %v1732 = vpack.c.b16 %v1668, %v1668
    %v1733 = vpack.c.b16 %v1669, %v1669
    %v1734 = vpack.c.b16 %v1670, %v1670
    %v1735 = vpack.c.b16 %v1671, %v1671
    %v1736 = vpack.c.b16 %v1672, %v1672
    %v1737 = vpack.c.b16 %v1673, %v1673
    %v1738 = vpack.c.b16 %v1674, %v1674
    %v1739 = vpack.c.b16 %v1675, %v1675
    %v1740 = vpack.c.b16 %v1676, %v1676
    %v1741 = vpack.c.b16 %v1677, %v1677
    %v1742 = vpack.c.b16 %v1678, %v1678
    %v1743 = vpack.c.b16 %v1679, %v1679
    %v1744 = vpack.c.b16 %v1680, %v1680
    %v1745 = vpack.c.b16 %v1681, %v1681
    %v1746 = vpack.c.b16 %v1682, %v1682
    %v1747 = vpack.c.b16 %v1683, %v1683
    %v1748 = vpack.c.b16 %v1684, %v1684
    %v1749 = vpack.c.b16 %v1685, %v1685
    %v1750 = vpack.c.b16 %v1686, %v1686
    %1815 = vst [vmem:[%s4] sm:$0xf] %v1687
    %1816 = vst [vmem:[%s4 + $0x4] sm:$0xf] %v1688
    %1817 = vst [vmem:[%s4 + $0x8] sm:$0xf] %v1689
    %1818 = vst [vmem:[%s4 + $0xc] sm:$0xf] %v1690
    %1819 = vst [vmem:[%s4 + $0x10] sm:$0xf] %v1691
    %1820 = vst [vmem:[%s4 + $0x14] sm:$0xf] %v1692
    %1821 = vst [vmem:[%s4 + $0x18] sm:$0xf] %v1693
    %1822 = vst [vmem:[%s4 + $0x1c] sm:$0xf] %v1694
    %1823 = vst [vmem:[%s4 + $0x20] sm:$0xf] %v1695
    %1824 = vst [vmem:[%s4 + $0x24] sm:$0xf] %v1696
    %1825 = vst [vmem:[%s4 + $0x28] sm:$0xf] %v1697
    %1826 = vst [vmem:[%s4 + $0x2c] sm:$0xf] %v1698
    %1827 = vst [vmem:[%s4 + $0x30] sm:$0xf] %v1699
    %1828 = vst [vmem:[%s4 + $0x34] sm:$0xf] %v1700
    %1829 = vst [vmem:[%s4 + $0x38] sm:$0xf] %v1701
    %1830 = vst [vmem:[%s4 + $0x3c] sm:$0xf] %v1702
    %1831 = vst [vmem:[%s4 + $0x40] sm:$0xf] %v1703
    %1832 = vst [vmem:[%s4 + $0x44] sm:$0xf] %v1704
    %1833 = vst [vmem:[%s4 + $0x48] sm:$0xf] %v1705
    %1834 = vst [vmem:[%s4 + $0x4c] sm:$0xf] %v1706
    %1835 = vst [vmem:[%s4 + $0x50] sm:$0xf] %v1707
    %1836 = vst [vmem:[%s4 + $0x54] sm:$0xf] %v1708
    %1837 = vst [vmem:[%s4 + $0x58] sm:$0xf] %v1709
    %1838 = vst [vmem:[%s4 + $0x5c] sm:$0xf] %v1710
    %1839 = vst [vmem:[%s4 + $0x60] sm:$0xf] %v1711
    %1840 = vst [vmem:[%s4 + $0x64] sm:$0xf] %v1712
    %1841 = vst [vmem:[%s4 + $0x68] sm:$0xf] %v1713
    %1842 = vst [vmem:[%s4 + $0x6c] sm:$0xf] %v1714
    %1843 = vst [vmem:[%s4 + $0x70] sm:$0xf] %v1715
    %1844 = vst [vmem:[%s4 + $0x74] sm:$0xf] %v1716
    %1845 = vst [vmem:[%s4 + $0x78] sm:$0xf] %v1717
    %1846 = vst [vmem:[%s4 + $0x7c] sm:$0xf] %v1718
    %1847 = vst [vmem:[%s4 + $0x80] sm:$0xf] %v1719
    %1848 = vst [vmem:[%s4 + $0x84] sm:$0xf] %v1720
    %1849 = vst [vmem:[%s4 + $0x88] sm:$0xf] %v1721
    %1850 = vst [vmem:[%s4 + $0x8c] sm:$0xf] %v1722
    %1851 = vst [vmem:[%s4 + $0x90] sm:$0xf] %v1723
    %1852 = vst [vmem:[%s4 + $0x94] sm:$0xf] %v1724
    %1853 = vst [vmem:[%s4 + $0x98] sm:$0xf] %v1725
    %1854 = vst [vmem:[%s4 + $0x9c] sm:$0xf] %v1726
    %1855 = vst [vmem:[%s4 + $0xa0] sm:$0xf] %v1727
    %1856 = vst [vmem:[%s4 + $0xa4] sm:$0xf] %v1728
    %1857 = vst [vmem:[%s4 + $0xa8] sm:$0xf] %v1729
    %1858 = vst [vmem:[%s4 + $0xac] sm:$0xf] %v1730
    %1859 = vst [vmem:[%s4 + $0xb0] sm:$0xf] %v1731
    %1860 = vst [vmem:[%s4 + $0xb4] sm:$0xf] %v1732
    %1861 = vst [vmem:[%s4 + $0xb8] sm:$0xf] %v1733
    %1862 = vst [vmem:[%s4 + $0xbc] sm:$0xf] %v1734
    %1863 = vst [vmem:[%s4 + $0xc0] sm:$0xf] %v1735
    %1864 = vst [vmem:[%s4 + $0xc4] sm:$0xf] %v1736
    %1865 = vst [vmem:[%s4 + $0xc8] sm:$0xf] %v1737
    %1866 = vst [vmem:[%s4 + $0xcc] sm:$0xf] %v1738
    %1867 = vst [vmem:[%s4 + $0xd0] sm:$0xf] %v1739
    %1868 = vst [vmem:[%s4 + $0xd4] sm:$0xf] %v1740
    %1869 = vst [vmem:[%s4 + $0xd8] sm:$0xf] %v1741
    %1870 = vst [vmem:[%s4 + $0xdc] sm:$0xf] %v1742
    %1871 = vst [vmem:[%s4 + $0xe0] sm:$0xf] %v1743
    %1872 = vst [vmem:[%s4 + $0xe4] sm:$0xf] %v1744
    %1873 = vst [vmem:[%s4 + $0xe8] sm:$0xf] %v1745
    %1874 = vst [vmem:[%s4 + $0xec] sm:$0xf] %v1746
    %1875 = vst [vmem:[%s4 + $0xf0] sm:$0xf] %v1747
    %1876 = vst [vmem:[%s4 + $0xf4] sm:$0xf] %v1748
    %1877 = vst [vmem:[%s4 + $0xf8] sm:$0xf] %v1749
    %1878 = vst [vmem:[%s4 + $0xfc] sm:$0xf] %v1750
  $region25: #{discriminator_forward.5} parent=0 // pred_fallthru
    _
  // Predicated region
  $region26: #{discriminator_forward.5} parent=0 // pred_check
    _
  $region27: #{discriminator_forward.5} parent=0 // pred_check_branch
    %1880 = sbr.rel (0) target = $region29
  $region28: #{discriminator_forward.5} parent=0 // pred_region
    _
  $region29: #{discriminator_forward.5} parent=0 // pred_fallthru
    _
  // Predicated region
  $region30: #{discriminator_forward.5} parent=0 // pred_check
    _
  $region31: #{discriminator_forward.5} parent=0 // pred_check_branch
    %1882 = sbr.rel (0) target = $region33
  $region32: #{discriminator_forward.5} parent=0 // pred_region
    _
  $region33: #{discriminator_forward.5} parent=0 // pred_fallthru
    _

// kernel: discriminator_forward.6
$region0: #{discriminator_forward.6}
  #allocation0 [shape = 'u32[]', space=smem, size = 0x4, offset = 0x4, fixed_abs, tag = 'smem constant byte address 0x4 - core index']
  #allocation1 [shape = 'u32[144,128]{1,0:T(1,128)}', space=vmem, size = 0x12000, scoped, tag = 'internal scratch']
  #allocation2 [shape = 'f32[128,128]{1,0:T(8,128)}', space=vmem, size = 0x10000, scoped, tag = 'scratch operand']
  %s0 = inlined_call_operand.vmem [shape: bf16[128,256], index: 0, kind: input, shape index: {}]
  %s1 = inlined_call_operand.vmem [shape: bf16[256,128], index: 1, kind: input, shape index: {}]
  %s2 = inlined_call_operand.vmem [shape: f32[1,128], index: 2, kind: input, shape index: {}]
  %s3 = inlined_call_operand.vmem [shape: f32[1,128], index: 3, kind: input, shape index: {}]
  %s4 = inlined_call_operand.vmem [shape: bf16[128,128], index: 4, kind: output, shape index: {}]
  %s5 = sld [smem:[#allocation0]]
  $region98: #{discriminator_forward.6} parent=0
    _
  %s7 = ssub.s32 1, %s5
  %s8 = scalar_select 0, %s7, %s5
  $region1: #{discriminator_forward.6} parent=0
    #allocation3 [shape = 'u8[65536]{0}', space=vmem, size = 0x10000, scoped, tag = 'input window, operand 0']
    loop: start=0, step=1, limit=4
    $region2: #{discriminator_forward.6} parent=1 // loop_pre_header
      _
    $region3: #{discriminator_forward.6} parent=1 // loop_header
      %s10 = sphi 0, %s14
      %p11 = scmp.ge.s32.totalorder %s10, 4
      %s20 = sphi 0, %s22
      %s23 = sphi 0, %s20
      %s24 = sphi 0, %s23
      %s40 = sphi 0, %s24
      %s46 = sphi 0, %s48
      %s49 = sphi 0, %s46
      %s50 = sphi 0, %s49
      %s66 = sphi 0, %s50
      %s70 = sphi 0, %s70
      %s72 = sphi 0, %s70
      %s73 = sphi 0, %s72
      %s87 = sphi 0, %s73
      %s91 = sphi 0, %s91
      %s93 = sphi 0, %s91
      %s94 = sphi 0, %s93
      %s108 = sphi 0, %s94
      %s112 = sphi 0, %s112
      %s114 = sphi 0, %s112
      %s115 = sphi 0, %s114
      %s129 = sphi 0, %s115
    $region4: #{discriminator_forward.6} parent=1 // loop_header_branch
      %13 = sbr.rel (%p11) target = $region8
    $region5: #{discriminator_forward.6} parent=1 // loop_body
      %s15 = ssub.s32 %s10, 1
      %s16 = ssub.s32 %s10, 2
      %s17 = sadd.s32 %s10, 1
      %s18 = ssub.s32 %s10, %s17
      %p19 = scmp.eq.s32.totalorder %s18, 0
      %s21 = sadd.s32 %s20, 1
      %s22 = scalar_select %p19, %s20, %s21
      %p25 = pneg %p19
      %p26 = scmp.eq.s32.totalorder %s10, 1
      %p27 = por %p25, %p26
      %p28 = scmp.ne.s32.totalorder %s20, %s23
      %p29 = scmp.eq.s32.totalorder %s10, 0
      %p30 = por %p28, %p29
      %p31 = scmp.ne.s32.totalorder %s20, %s23
      %p32 = scmp.eq.s32.totalorder %s15, 1
      %p33 = por %p31, %p32
      %p34 = scmp.ne.s32.totalorder %s23, %s24
      %p35 = scmp.eq.s32.totalorder %s15, 0
      %p36 = por %p34, %p35
      %p37 = scmp.ne.s32.totalorder %s23, %s24
      %p38 = scmp.eq.s32.totalorder %s16, 1
      %p39 = por %p37, %p38
      %p41 = scmp.ne.s32.totalorder %s24, %s40
      %p42 = scmp.eq.s32.totalorder %s16, 0
      %p43 = por %p41, %p42
      %s44 = ssub.s32 %s10, %s17
      %p45 = scmp.eq.s32.totalorder %s44, 0
      %s47 = sadd.s32 %s46, 1
      %s48 = scalar_select %p45, %s46, %s47
      %p51 = pneg %p45
      %p52 = scmp.eq.s32.totalorder %s10, 1
      %p53 = por %p51, %p52
      %p54 = scmp.ne.s32.totalorder %s46, %s49
      %p55 = scmp.eq.s32.totalorder %s10, 0
      %p56 = por %p54, %p55
      %p57 = scmp.ne.s32.totalorder %s46, %s49
      %p58 = scmp.eq.s32.totalorder %s15, 1
      %p59 = por %p57, %p58
      %p60 = scmp.ne.s32.totalorder %s49, %s50
      %p61 = scmp.eq.s32.totalorder %s15, 0
      %p62 = por %p60, %p61
      %p63 = scmp.ne.s32.totalorder %s49, %s50
      %p64 = scmp.eq.s32.totalorder %s16, 1
      %p65 = por %p63, %p64
      %p67 = scmp.ne.s32.totalorder %s50, %s66
      %p68 = scmp.eq.s32.totalorder %s16, 0
      %p69 = por %p67, %p68
      %s71 = sadd.s32 %s70, 1
      %p74 = scmp.eq.s32.totalorder %s10, 1
      %p75 = scmp.ne.s32.totalorder %s70, %s72
      %p76 = scmp.eq.s32.totalorder %s10, 0
      %p77 = por %p75, %p76
      %p78 = scmp.ne.s32.totalorder %s70, %s72
      %p79 = scmp.eq.s32.totalorder %s15, 1
      %p80 = por %p78, %p79
      %p81 = scmp.ne.s32.totalorder %s72, %s73
      %p82 = scmp.eq.s32.totalorder %s15, 0
      %p83 = por %p81, %p82
      %p84 = scmp.ne.s32.totalorder %s72, %s73
      %p85 = scmp.eq.s32.totalorder %s16, 1
      %p86 = por %p84, %p85
      %p88 = scmp.ne.s32.totalorder %s73, %s87
      %p89 = scmp.eq.s32.totalorder %s16, 0
      %p90 = por %p88, %p89
      %s92 = sadd.s32 %s91, 1
      %p95 = scmp.eq.s32.totalorder %s10, 1
      %p96 = scmp.ne.s32.totalorder %s91, %s93
      %p97 = scmp.eq.s32.totalorder %s10, 0
      %p98 = por %p96, %p97
      %p99 = scmp.ne.s32.totalorder %s91, %s93
      %p100 = scmp.eq.s32.totalorder %s15, 1
      %p101 = por %p99, %p100
      %p102 = scmp.ne.s32.totalorder %s93, %s94
      %p103 = scmp.eq.s32.totalorder %s15, 0
      %p104 = por %p102, %p103
      %p105 = scmp.ne.s32.totalorder %s93, %s94
      %p106 = scmp.eq.s32.totalorder %s16, 1
      %p107 = por %p105, %p106
      %p109 = scmp.ne.s32.totalorder %s94, %s108
      %p110 = scmp.eq.s32.totalorder %s16, 0
      %p111 = por %p109, %p110
      %s113 = sadd.s32 %s112, 1
      %p116 = scmp.eq.s32.totalorder %s10, 1
      %p117 = scmp.ne.s32.totalorder %s112, %s114
      %p118 = scmp.eq.s32.totalorder %s10, 0
      %p119 = por %p117, %p118
      %p120 = scmp.ne.s32.totalorder %s112, %s114
      %p121 = scmp.eq.s32.totalorder %s15, 1
      %p122 = por %p120, %p121
      %p123 = scmp.ne.s32.totalorder %s114, %s115
      %p124 = scmp.eq.s32.totalorder %s15, 0
      %p125 = por %p123, %p124
      %p126 = scmp.ne.s32.totalorder %s114, %s115
      %p127 = scmp.eq.s32.totalorder %s16, 1
      %p128 = por %p126, %p127
      %p130 = scmp.ne.s32.totalorder %s115, %s129
      %p131 = scmp.eq.s32.totalorder %s16, 0
      %p132 = por %p130, %p131
      %p133 = scmp.le.s32.totalorder 1, %s10
      %p134 = scmp.lt.s32.totalorder %s10, 3
      %p135 = pnand %p133, %p134
      %p136 = pneg %p135
      // Predicated region
      $region9: #{discriminator_forward.6} parent=5 // pred_check
        _
      $region10: #{discriminator_forward.6} parent=5 // pred_check_branch
        %138 = sbr.rel (%p135) target = $region12
      $region11: #{discriminator_forward.6} parent=5 // pred_region
        %s139 = ssub.s32 %s10, 1
        // Predicated region
        $region13: #{discriminator_forward.6} parent=11 // pred_check
          %p140 = pneg %p83
        $region14: #{discriminator_forward.6} parent=11 // pred_check_branch
          %142 = sbr.rel (%p140) target = $region16
        $region15: #{discriminator_forward.6} parent=11 // pred_region
          _
        $region16: #{discriminator_forward.6} parent=11 // pred_fallthru
          _
        // Predicated region
        $region17: #{discriminator_forward.6} parent=11 // pred_check
          %p143 = pneg %p104
        $region18: #{discriminator_forward.6} parent=11 // pred_check_branch
          %145 = sbr.rel (%p143) target = $region20
        $region19: #{discriminator_forward.6} parent=11 // pred_region
          _
        $region20: #{discriminator_forward.6} parent=11 // pred_fallthru
          _
      $region12: #{discriminator_forward.6} parent=5 // pred_fallthru
        _
      %p146 = scmp.lt.s32.totalorder %s10, 2
      // Predicated region
      $region21: #{discriminator_forward.6} parent=5 // pred_check
        %p147 = pneg %p146
      $region22: #{discriminator_forward.6} parent=5 // pred_check_branch
        %149 = sbr.rel (%p147) target = $region24
      $region23: #{discriminator_forward.6} parent=5 // pred_region
        // Predicated region
        $region25: #{discriminator_forward.6} parent=23 // pred_check
          %p150 = pneg %p30
        $region26: #{discriminator_forward.6} parent=23 // pred_check_branch
          %152 = sbr.rel (%p150) target = $region28
        $region27: #{discriminator_forward.6} parent=23 // pred_region
          %s153 = sand.u32 %s20, 1
          %s154 = sand.u32 %s20, 1
          %s155 = smul.addr %s154, 64
          %s156 = scalar_lea.vmem [#allocation3], %s155
          %s157 = smul.addr %s10, 4
          %s158 = scalar_lea.vmem %s0, %s157
          // Predicated region
          $region29: #{discriminator_forward.6} parent=27 // pred_check
            _
          $region30: #{discriminator_forward.6} parent=27 // pred_check_branch
            %160 = sbr.rel (0) target = $region32
          $region31: #{discriminator_forward.6} parent=27 // pred_region
            // Predicated region
            $region33: #{discriminator_forward.6} parent=31 // pred_check
              _
            $region34: #{discriminator_forward.6} parent=31 // pred_check_branch
              %162 = sbr.rel target = $region36
            $region35: #{discriminator_forward.6} parent=31 // pred_region
              // Predicated region
              $region48: #{discriminator_forward.6} parent=35 // pred_check
                _
              $region49: #{discriminator_forward.6} parent=35 // pred_check_branch
                %207 = sbr.rel (0) target = $region51
              $region50: #{discriminator_forward.6} parent=35 // pred_region
                loop: start=0, step=1, limit=1
                $region52: #{discriminator_forward.6} parent=50 // loop_pre_header
                  _
                $region53: #{discriminator_forward.6} parent=50 // loop_header
                  %s209 = sphi 0, %s213
                  %p210 = scmp.ge.s32.totalorder %s209, 1
                  %s214 = sphi %s158, %s158
                  %s215 = sphi %s156, %s156
                $region54: #{discriminator_forward.6} parent=50 // loop_header_branch
                  %212 = sbr.rel (%p210) target = $region58
                $region55: #{discriminator_forward.6} parent=50 // loop_body
                  _
                $region56: #{discriminator_forward.6} parent=50 // loop_footer
                  %s213 = sadd.s32 1, %s209
                $region57: #{discriminator_forward.6} parent=50 // loop_footer_branch
                  %208 = sbr.rel target = $region53
                $region58: #{discriminator_forward.6} parent=50 // loop_exit
                  _
                loop: start=0, step=1, limit=1
                $region59: #{discriminator_forward.6} parent=50 // loop_pre_header
                  _
                $region60: #{discriminator_forward.6} parent=50 // loop_header
                  %s218 = sphi 0, %s222
                  %p219 = scmp.ge.s32.totalorder %s218, 1
                  %s223 = sphi %s158, %s158
                  %s224 = sphi %s156, %s156
                $region61: #{discriminator_forward.6} parent=50 // loop_header_branch
                  %221 = sbr.rel (%p219) target = $region65
                $region62: #{discriminator_forward.6} parent=50 // loop_body
                  %v225 = vld [vmem:[%s223] sm:$0xf]
                  %226 = vst [vmem:[%s224] sm:$0xf] %v225
                  %v227 = vld [vmem:[%s223 + $0x8] sm:$0xf]
                  %228 = vst [vmem:[%s224 + $0x4] sm:$0xf] %v227
                  %v229 = vld [vmem:[%s223 + $0x10] sm:$0xf]
                  %230 = vst [vmem:[%s224 + $0x8] sm:$0xf] %v229
                  %v231 = vld [vmem:[%s223 + $0x18] sm:$0xf]
                  %232 = vst [vmem:[%s224 + $0xc] sm:$0xf] %v231
                  %v233 = vld [vmem:[%s223 + $0x20] sm:$0xf]
                  %234 = vst [vmem:[%s224 + $0x10] sm:$0xf] %v233
                  %v235 = vld [vmem:[%s223 + $0x28] sm:$0xf]
                  %236 = vst [vmem:[%s224 + $0x14] sm:$0xf] %v235
                  %v237 = vld [vmem:[%s223 + $0x30] sm:$0xf]
                  %238 = vst [vmem:[%s224 + $0x18] sm:$0xf] %v237
                  %v239 = vld [vmem:[%s223 + $0x38] sm:$0xf]
                  %240 = vst [vmem:[%s224 + $0x1c] sm:$0xf] %v239
                  %v241 = vld [vmem:[%s223 + $0x40] sm:$0xf]
                  %242 = vst [vmem:[%s224 + $0x20] sm:$0xf] %v241
                  %v243 = vld [vmem:[%s223 + $0x48] sm:$0xf]
                  %244 = vst [vmem:[%s224 + $0x24] sm:$0xf] %v243
                  %v245 = vld [vmem:[%s223 + $0x50] sm:$0xf]
                  %246 = vst [vmem:[%s224 + $0x28] sm:$0xf] %v245
                  %v247 = vld [vmem:[%s223 + $0x58] sm:$0xf]
                  %248 = vst [vmem:[%s224 + $0x2c] sm:$0xf] %v247
                  %v249 = vld [vmem:[%s223 + $0x60] sm:$0xf]
                  %250 = vst [vmem:[%s224 + $0x30] sm:$0xf] %v249
                  %v251 = vld [vmem:[%s223 + $0x68] sm:$0xf]
                  %252 = vst [vmem:[%s224 + $0x34] sm:$0xf] %v251
                  %v253 = vld [vmem:[%s223 + $0x70] sm:$0xf]
                  %254 = vst [vmem:[%s224 + $0x38] sm:$0xf] %v253
                  %v255 = vld [vmem:[%s223 + $0x78] sm:$0xf]
                  %256 = vst [vmem:[%s224 + $0x3c] sm:$0xf] %v255
                $region63: #{discriminator_forward.6} parent=50 // loop_footer
                  %s222 = sadd.s32 1, %s218
                $region64: #{discriminator_forward.6} parent=50 // loop_footer_branch
                  %217 = sbr.rel target = $region60
                $region65: #{discriminator_forward.6} parent=50 // loop_exit
                  _
              $region51: #{discriminator_forward.6} parent=35 // pred_fallthru
                _
            $region36: #{discriminator_forward.6} parent=31 // pred_fallthru
              _
            // Predicated region
            $region37: #{discriminator_forward.6} parent=31 // pred_check
              _
            $region38: #{discriminator_forward.6} parent=31 // pred_check_branch
              %164 = sbr.rel (0) target = $region40
            $region39: #{discriminator_forward.6} parent=31 // pred_region
              loop: start=0, step=1, limit=1
              $region41: #{discriminator_forward.6} parent=39 // loop_pre_header
                _
              $region42: #{discriminator_forward.6} parent=39 // loop_header
                %s167 = sphi 0, %s171
                %p168 = scmp.ge.s32.totalorder %s167, 1
                %s172 = sphi %s158, %s158
                %s173 = sphi %s156, %s156
              $region43: #{discriminator_forward.6} parent=39 // loop_header_branch
                %170 = sbr.rel (%p168) target = $region47
              $region44: #{discriminator_forward.6} parent=39 // loop_body
                %v174 = vld [vmem:[%s172] sm:$0xf]
                %175 = vst [vmem:[%s173] sm:$0xf] %v174
                %v176 = vld [vmem:[%s172 + $0x8] sm:$0xf]
                %177 = vst [vmem:[%s173 + $0x4] sm:$0xf] %v176
                %v178 = vld [vmem:[%s172 + $0x10] sm:$0xf]
                %179 = vst [vmem:[%s173 + $0x8] sm:$0xf] %v178
                %v180 = vld [vmem:[%s172 + $0x18] sm:$0xf]
                %181 = vst [vmem:[%s173 + $0xc] sm:$0xf] %v180
                %v182 = vld [vmem:[%s172 + $0x20] sm:$0xf]
                %183 = vst [vmem:[%s173 + $0x10] sm:$0xf] %v182
                %v184 = vld [vmem:[%s172 + $0x28] sm:$0xf]
                %185 = vst [vmem:[%s173 + $0x14] sm:$0xf] %v184
                %v186 = vld [vmem:[%s172 + $0x30] sm:$0xf]
                %187 = vst [vmem:[%s173 + $0x18] sm:$0xf] %v186
                %v188 = vld [vmem:[%s172 + $0x38] sm:$0xf]
                %189 = vst [vmem:[%s173 + $0x1c] sm:$0xf] %v188
                %v190 = vld [vmem:[%s172 + $0x40] sm:$0xf]
                %191 = vst [vmem:[%s173 + $0x20] sm:$0xf] %v190
                %v192 = vld [vmem:[%s172 + $0x48] sm:$0xf]
                %193 = vst [vmem:[%s173 + $0x24] sm:$0xf] %v192
                %v194 = vld [vmem:[%s172 + $0x50] sm:$0xf]
                %195 = vst [vmem:[%s173 + $0x28] sm:$0xf] %v194
                %v196 = vld [vmem:[%s172 + $0x58] sm:$0xf]
                %197 = vst [vmem:[%s173 + $0x2c] sm:$0xf] %v196
                %v198 = vld [vmem:[%s172 + $0x60] sm:$0xf]
                %199 = vst [vmem:[%s173 + $0x30] sm:$0xf] %v198
                %v200 = vld [vmem:[%s172 + $0x68] sm:$0xf]
                %201 = vst [vmem:[%s173 + $0x34] sm:$0xf] %v200
                %v202 = vld [vmem:[%s172 + $0x70] sm:$0xf]
                %203 = vst [vmem:[%s173 + $0x38] sm:$0xf] %v202
                %v204 = vld [vmem:[%s172 + $0x78] sm:$0xf]
                %205 = vst [vmem:[%s173 + $0x3c] sm:$0xf] %v204
              $region45: #{discriminator_forward.6} parent=39 // loop_footer
                %s171 = sadd.s32 1, %s167
              $region46: #{discriminator_forward.6} parent=39 // loop_footer_branch
                %166 = sbr.rel target = $region42
              $region47: #{discriminator_forward.6} parent=39 // loop_exit
                _
            $region40: #{discriminator_forward.6} parent=31 // pred_fallthru
              _
          $region32: #{discriminator_forward.6} parent=27 // pred_fallthru
            _
          %257 = vnop
        $region28: #{discriminator_forward.6} parent=23 // pred_fallthru
          _
        // Predicated region
        $region66: #{discriminator_forward.6} parent=23 // pred_check
          %p258 = pneg %p56
        $region67: #{discriminator_forward.6} parent=23 // pred_check_branch
          %260 = sbr.rel (%p258) target = $region69
        $region68: #{discriminator_forward.6} parent=23 // pred_region
          %s261 = smul.u32 16, %s10
          %p262 = scmp.lt.s32.totalorder %s261, 31
          %s263 = scalar_select %p262, %s261, 31
          %s264 = smul.addr %s263, 4
          %s265 = scalar_lea.vmem %s1, %s264
          %s266 = smul.u32 16, %s10
        $region69: #{discriminator_forward.6} parent=23 // pred_fallthru
          _
      $region24: #{discriminator_forward.6} parent=5 // pred_fallthru
        _
      %p267 = scmp.le.s32.totalorder 1, %s10
      %p268 = scmp.lt.s32.totalorder %s10, 3
      %p269 = pnand %p267, %p268
      %p270 = pneg %p269
      // Predicated region
      $region70: #{discriminator_forward.6} parent=5 // pred_check
        _
      $region71: #{discriminator_forward.6} parent=5 // pred_check_branch
        %272 = sbr.rel (%p269) target = $region73
      $region72: #{discriminator_forward.6} parent=5 // pred_region
        %s273 = ssub.s32 %s10, 1
        %s274 = sand.u32 %s23, 1
        %s275 = sand.u32 %s23, 1
        %s276 = smul.addr %s275, 64
        %s277 = scalar_lea.vmem [#allocation3], %s276
        // Predicated region
        $region74: #{discriminator_forward.6} parent=72 // pred_check
          %p278 = pneg %p36
        $region75: #{discriminator_forward.6} parent=72 // pred_check_branch
          %280 = sbr.rel (%p278) target = $region77
        $region76: #{discriminator_forward.6} parent=72 // pred_region
          _
        $region77: #{discriminator_forward.6} parent=72 // pred_fallthru
          _
        %s281 = sand.u32 %s23, 1
        %s282 = sand.u32 %s23, 1
        %s283 = smul.addr %s282, 64
        %s284 = scalar_lea.vmem [#allocation3], %s283
        %p285 = pneg %p36
        %p286 = pneg %p33
        %s287 = smul.u32 16, %s15
        %p288 = scmp.lt.s32.totalorder %s287, 31
        %s289 = scalar_select %p288, %s287, 31
        %s290 = smul.addr %s289, 4
        %s291 = scalar_lea.vmem %s1, %s290
        %p292 = pneg %p62
        %p293 = pneg %p59
        %p294 = pneg %p83
        %p295 = pneg %p80
        %p296 = pneg %p104
        %p297 = pneg %p101
        %p298 = pneg %p125
        %p299 = pneg %p122
        %s300 = smul.u32 16, %s15
        %p301 = scmp.lt.s32.totalorder %s300, 31
        %s302 = scalar_select %p301, %s300, 31
        %s303 = smul.addr %s302, 4
        %s304 = scalar_lea.vmem %s1, %s303
        %s305 = smul.u32 16, %s15
        %p307 = scmp.eq.s32.totalorder %s15, 0
        // Predicated region
        $region78: #{discriminator_forward.6} parent=72 // pred_check
          %p308 = pneg %p307
        $region79: #{discriminator_forward.6} parent=72 // pred_check_branch
          %310 = sbr.rel (%p308) target = $region81
        $region80: #{discriminator_forward.6} parent=72 // pred_region
          %311 = vst [vmem:[#allocation2] sm:$0xff] 0.0
          %312 = vst [vmem:[#allocation2 + $0x8] sm:$0xff] 0.0
          %313 = vst [vmem:[#allocation2 + $0x10] sm:$0xff] 0.0
          %314 = vst [vmem:[#allocation2 + $0x18] sm:$0xff] 0.0
          %315 = vst [vmem:[#allocation2 + $0x20] sm:$0xff] 0.0
          %316 = vst [vmem:[#allocation2 + $0x28] sm:$0xff] 0.0
          %317 = vst [vmem:[#allocation2 + $0x30] sm:$0xff] 0.0
          %318 = vst [vmem:[#allocation2 + $0x38] sm:$0xff] 0.0
          %319 = vst [vmem:[#allocation2 + $0x40] sm:$0xff] 0.0
          %320 = vst [vmem:[#allocation2 + $0x48] sm:$0xff] 0.0
          %321 = vst [vmem:[#allocation2 + $0x50] sm:$0xff] 0.0
          %322 = vst [vmem:[#allocation2 + $0x58] sm:$0xff] 0.0
          %323 = vst [vmem:[#allocation2 + $0x60] sm:$0xff] 0.0
          %324 = vst [vmem:[#allocation2 + $0x68] sm:$0xff] 0.0
          %325 = vst [vmem:[#allocation2 + $0x70] sm:$0xff] 0.0
          %326 = vst [vmem:[#allocation2 + $0x78] sm:$0xff] 0.0
        $region81: #{discriminator_forward.6} parent=72 // pred_fallthru
          _
        %v327 = vld [vmem:[#allocation2] sm:$0xff]
        %v328 = vld [vmem:[#allocation2 + $0x8] sm:$0xff]
        %v329 = vld [vmem:[#allocation2 + $0x10] sm:$0xff]
        %v330 = vld [vmem:[#allocation2 + $0x18] sm:$0xff]
        %v331 = vld [vmem:[#allocation2 + $0x20] sm:$0xff]
        %v332 = vld [vmem:[#allocation2 + $0x28] sm:$0xff]
        %v333 = vld [vmem:[#allocation2 + $0x30] sm:$0xff]
        %v334 = vld [vmem:[#allocation2 + $0x38] sm:$0xff]
        %v335 = vld [vmem:[#allocation2 + $0x40] sm:$0xff]
        %v336 = vld [vmem:[#allocation2 + $0x48] sm:$0xff]
        %v337 = vld [vmem:[#allocation2 + $0x50] sm:$0xff]
        %v338 = vld [vmem:[#allocation2 + $0x58] sm:$0xff]
        %v339 = vld [vmem:[#allocation2 + $0x60] sm:$0xff]
        %v340 = vld [vmem:[#allocation2 + $0x68] sm:$0xff]
        %v341 = vld [vmem:[#allocation2 + $0x70] sm:$0xff]
        %v342 = vld [vmem:[#allocation2 + $0x78] sm:$0xff]
        %v343 = vld [vmem:[%s277] sm:$0xf]
        %v344 = vld [vmem:[%s277 + $0x4] sm:$0xf]
        %v345 = vld [vmem:[%s277 + $0x8] sm:$0xf]
        %v346 = vld [vmem:[%s277 + $0xc] sm:$0xf]
        %v347 = vld [vmem:[%s277 + $0x10] sm:$0xf]
        %v348 = vld [vmem:[%s277 + $0x14] sm:$0xf]
        %v349 = vld [vmem:[%s277 + $0x18] sm:$0xf]
        %v350 = vld [vmem:[%s277 + $0x1c] sm:$0xf]
        %v351 = vld [vmem:[%s277 + $0x20] sm:$0xf]
        %v352 = vld [vmem:[%s277 + $0x24] sm:$0xf]
        %v353 = vld [vmem:[%s277 + $0x28] sm:$0xf]
        %v354 = vld [vmem:[%s277 + $0x2c] sm:$0xf]
        %v355 = vld [vmem:[%s277 + $0x30] sm:$0xf]
        %v356 = vld [vmem:[%s277 + $0x34] sm:$0xf]
        %v357 = vld [vmem:[%s277 + $0x38] sm:$0xf]
        %v358 = vld [vmem:[%s277 + $0x3c] sm:$0xf]
        %v359 = vld [vmem:[%s304] sm:$0xf]
        %v360 = vld [vmem:[%s304 + $0x4] sm:$0xf]
        %v361 = vld [vmem:[%s304 + $0x8] sm:$0xf]
        %v362 = vld [vmem:[%s304 + $0xc] sm:$0xf]
        %v363 = vld [vmem:[%s304 + $0x10] sm:$0xf]
        %v364 = vld [vmem:[%s304 + $0x14] sm:$0xf]
        %v365 = vld [vmem:[%s304 + $0x18] sm:$0xf]
        %v366 = vld [vmem:[%s304 + $0x1c] sm:$0xf]
        %v367 = vld [vmem:[%s304 + $0x20] sm:$0xf]
        %v368 = vld [vmem:[%s304 + $0x24] sm:$0xf]
        %v369 = vld [vmem:[%s304 + $0x28] sm:$0xf]
        %v370 = vld [vmem:[%s304 + $0x2c] sm:$0xf]
        %v371 = vld [vmem:[%s304 + $0x30] sm:$0xf]
        %v372 = vld [vmem:[%s304 + $0x34] sm:$0xf]
        %v373 = vld [vmem:[%s304 + $0x38] sm:$0xf]
        %v374 = vld [vmem:[%s304 + $0x3c] sm:$0xf]
        %v391 = vunpack.c.l.b16 %v343
        %v392 = vunpack.c.l.b16 %v344
        %v393 = vunpack.c.l.b16 %v345
        %v394 = vunpack.c.l.b16 %v346
        %v395 = vunpack.c.l.b16 %v347
        %v396 = vunpack.c.l.b16 %v348
        %v397 = vunpack.c.l.b16 %v349
        %v398 = vunpack.c.l.b16 %v350
        %v399 = vunpack.c.l.b16 %v351
        %v400 = vunpack.c.l.b16 %v352
        %v401 = vunpack.c.l.b16 %v353
        %v402 = vunpack.c.l.b16 %v354
        %v403 = vunpack.c.l.b16 %v355
        %v404 = vunpack.c.l.b16 %v356
        %v405 = vunpack.c.l.b16 %v357
        %v406 = vunpack.c.l.b16 %v358
        %v407 = vpack.c.b16 %v392, %v391
        %v408 = vpack.c.b16 %v394, %v393
        %v409 = vpack.c.b16 %v396, %v395
        %v410 = vpack.c.b16 %v398, %v397
        %v411 = vpack.c.b16 %v400, %v399
        %v412 = vpack.c.b16 %v402, %v401
        %v413 = vpack.c.b16 %v404, %v403
        %v414 = vpack.c.b16 %v406, %v405
        %v439 = vunpack.c.l.b16 %v359
        %v440 = vunpack.c.l.b16 %v360
        %v441 = vunpack.c.l.b16 %v361
        %v442 = vunpack.c.l.b16 %v362
        %v443 = vunpack.c.l.b16 %v363
        %v444 = vunpack.c.l.b16 %v364
        %v445 = vunpack.c.l.b16 %v365
        %v446 = vunpack.c.l.b16 %v366
        %v447 = vunpack.c.l.b16 %v367
        %v448 = vunpack.c.l.b16 %v368
        %v449 = vunpack.c.l.b16 %v369
        %v450 = vunpack.c.l.b16 %v370
        %v451 = vunpack.c.l.b16 %v371
        %v452 = vunpack.c.l.b16 %v372
        %v453 = vunpack.c.l.b16 %v373
        %v454 = vunpack.c.l.b16 %v374
        %v455 = vpack.c.b16 %v440, %v439
        %v456 = vpack.c.b16 %v442, %v441
        %v457 = vpack.c.b16 %v444, %v443
        %v458 = vpack.c.b16 %v446, %v445
        %v459 = vpack.c.b16 %v448, %v447
        %v460 = vpack.c.b16 %v450, %v449
        %v461 = vpack.c.b16 %v452, %v451
        %v462 = vpack.c.b16 %v454, %v453
        %471 = vmatprep.subr.bf16.mxu0 0
        %472 = vmatpush1.bf16.msra.mxu0 %v455
        %473 = vmatprep.subr.bf16.mxu0 0
        %474 = vmatpush1.bf16.msra.mxu0 %v456
        %475 = vmatprep.subr.bf16.mxu0 0
        %476 = vmatpush1.bf16.msra.mxu0 %v457
        %477 = vmatprep.subr.bf16.mxu0 0
        %478 = vmatpush1.bf16.msra.mxu0 %v458
        %479 = vmatprep.subr.bf16.mxu0 0
        %480 = vmatpush1.bf16.msra.mxu0 %v459
        %481 = vmatprep.subr.bf16.mxu0 0
        %482 = vmatpush1.bf16.msra.mxu0 %v460
        %483 = vmatprep.subr.bf16.mxu0 0
        %484 = vmatpush1.bf16.msra.mxu0 %v461
        %485 = vmatprep.subr.bf16.mxu0 0
        %486 = vmatpush1.bf16.msra.mxu0 %v462
        %487 = vmatprep.subr.bf16.mxu0 0
        %488 = vmatpush1.bf16.msra.mxu0 0
        %489 = vmatprep.subr.bf16.mxu0 0
        %490 = vmatpush1.bf16.msra.mxu0 0
        %491 = vmatprep.subr.bf16.mxu0 0
        %492 = vmatpush1.bf16.msra.mxu0 0
        %493 = vmatprep.subr.bf16.mxu0 0
        %494 = vmatpush1.bf16.msra.mxu0 0
        %495 = vmatprep.subr.bf16.mxu0 0
        %496 = vmatpush1.bf16.msra.mxu0 0
        %497 = vmatprep.subr.bf16.mxu0 0
        %498 = vmatpush1.bf16.msra.mxu0 0
        %499 = vmatprep.subr.bf16.mxu0 0
        %500 = vmatpush1.bf16.msra.mxu0 0
        %501 = vmatprep.subr.bf16.mxu0 0
        %502 = vmatpush1.bf16.msra.mxu0 0
        %503 = vmatprep.mubr.bf16.mxu0 0
        %504 = vmatmul.mubr.bf16.gmra.mrb[0].mxu0 %v407
        %v505 = vpop.f32.mrb[0].mxu0
        %v506 = vadd.f32 0.0, %v505
        %v507 = vpop.f32.mrb[0].mxu0
        %v508 = vpop.f32.mrb[0].mxu0
        %v509 = vadd.f32 0.0, %v508
        %v510 = vpop.f32.mrb[0].mxu0
        %511 = vmatprep.mubr.bf16.mxu0 0
        %512 = vmatmul.mubr.bf16.gmra.mrb[0].mxu0 %v408
        %v513 = vpop.f32.mrb[0].mxu0
        %v514 = vadd.f32 0.0, %v513
        %v515 = vpop.f32.mrb[0].mxu0
        %v516 = vpop.f32.mrb[0].mxu0
        %v517 = vadd.f32 0.0, %v516
        %v518 = vpop.f32.mrb[0].mxu0
        %519 = vmatprep.mubr.bf16.mxu0 0
        %520 = vmatmul.mubr.bf16.gmra.mrb[0].mxu0 %v409
        %v521 = vpop.f32.mrb[0].mxu0
        %v522 = vadd.f32 0.0, %v521
        %v523 = vpop.f32.mrb[0].mxu0
        %v524 = vpop.f32.mrb[0].mxu0
        %v525 = vadd.f32 0.0, %v524
        %v526 = vpop.f32.mrb[0].mxu0
        %527 = vmatprep.mubr.bf16.mxu0 0
        %528 = vmatmul.mubr.bf16.gmra.mrb[0].mxu0 %v410
        %v529 = vpop.f32.mrb[0].mxu0
        %v530 = vadd.f32 0.0, %v529
        %v531 = vpop.f32.mrb[0].mxu0
        %v532 = vpop.f32.mrb[0].mxu0
        %v533 = vadd.f32 0.0, %v532
        %v534 = vpop.f32.mrb[0].mxu0
        %535 = vmatprep.mubr.bf16.mxu0 0
        %536 = vmatmul.mubr.bf16.gmra.mrb[0].mxu0 %v411
        %v537 = vpop.f32.mrb[0].mxu0
        %v538 = vadd.f32 0.0, %v537
        %v539 = vpop.f32.mrb[0].mxu0
        %v540 = vpop.f32.mrb[0].mxu0
        %v541 = vadd.f32 0.0, %v540
        %v542 = vpop.f32.mrb[0].mxu0
        %543 = vmatprep.mubr.bf16.mxu0 0
        %544 = vmatmul.mubr.bf16.gmra.mrb[0].mxu0 %v412
        %v545 = vpop.f32.mrb[0].mxu0
        %v546 = vadd.f32 0.0, %v545
        %v547 = vpop.f32.mrb[0].mxu0
        %v548 = vpop.f32.mrb[0].mxu0
        %v549 = vadd.f32 0.0, %v548
        %v550 = vpop.f32.mrb[0].mxu0
        %551 = vmatprep.mubr.bf16.mxu0 0
        %552 = vmatmul.mubr.bf16.gmra.mrb[0].mxu0 %v413
        %v553 = vpop.f32.mrb[0].mxu0
        %v554 = vadd.f32 0.0, %v553
        %v555 = vpop.f32.mrb[0].mxu0
        %v556 = vpop.f32.mrb[0].mxu0
        %v557 = vadd.f32 0.0, %v556
        %v558 = vpop.f32.mrb[0].mxu0
        %559 = vmatprep.mubr.bf16.mxu0 0
        %560 = vmatmul.mubr.bf16.gmra.mrb[0].mxu0 %v414
        %v561 = vpop.f32.mrb[0].mxu0
        %v562 = vadd.f32 0.0, %v561
        %v563 = vpop.f32.mrb[0].mxu0
        %v564 = vpop.f32.mrb[0].mxu0
        %v565 = vadd.f32 0.0, %v564
        %v566 = vpop.f32.mrb[0].mxu0
        %567 = vdwg.mxu0
        %v568 = vadd.f32 %v327, %v506
        %v569 = vadd.f32 %v328, %v509
        %v570 = vadd.f32 %v329, %v514
        %v571 = vadd.f32 %v330, %v517
        %v572 = vadd.f32 %v331, %v522
        %v573 = vadd.f32 %v332, %v525
        %v574 = vadd.f32 %v333, %v530
        %v575 = vadd.f32 %v334, %v533
        %v576 = vadd.f32 %v335, %v538
        %v577 = vadd.f32 %v336, %v541
        %v578 = vadd.f32 %v337, %v546
        %v579 = vadd.f32 %v338, %v549
        %v580 = vadd.f32 %v339, %v554
        %v581 = vadd.f32 %v340, %v557
        %v582 = vadd.f32 %v341, %v562
        %v583 = vadd.f32 %v342, %v565
        %584 = vst [vmem:[#allocation2] sm:$0xff] %v568
        %585 = vst [vmem:[#allocation2 + $0x8] sm:$0xff] %v569
        %586 = vst [vmem:[#allocation2 + $0x10] sm:$0xff] %v570
        %587 = vst [vmem:[#allocation2 + $0x18] sm:$0xff] %v571
        %588 = vst [vmem:[#allocation2 + $0x20] sm:$0xff] %v572
        %589 = vst [vmem:[#allocation2 + $0x28] sm:$0xff] %v573
        %590 = vst [vmem:[#allocation2 + $0x30] sm:$0xff] %v574
        %591 = vst [vmem:[#allocation2 + $0x38] sm:$0xff] %v575
        %592 = vst [vmem:[#allocation2 + $0x40] sm:$0xff] %v576
        %593 = vst [vmem:[#allocation2 + $0x48] sm:$0xff] %v577
        %594 = vst [vmem:[#allocation2 + $0x50] sm:$0xff] %v578
        %595 = vst [vmem:[#allocation2 + $0x58] sm:$0xff] %v579
        %596 = vst [vmem:[#allocation2 + $0x60] sm:$0xff] %v580
        %597 = vst [vmem:[#allocation2 + $0x68] sm:$0xff] %v581
        %598 = vst [vmem:[#allocation2 + $0x70] sm:$0xff] %v582
        %599 = vst [vmem:[#allocation2 + $0x78] sm:$0xff] %v583
        %p600 = scmp.eq.s32.totalorder %s15, 1
        // Predicated region
        $region82: #{discriminator_forward.6} parent=72 // pred_check
          %p601 = pneg %p600
        $region83: #{discriminator_forward.6} parent=72 // pred_check_branch
          %603 = sbr.rel (%p601) target = $region85
        $region84: #{discriminator_forward.6} parent=72 // pred_region
          %v604 = vld [vmem:[#allocation2] sm:$0xff]
          %v605 = vld [vmem:[#allocation2 + $0x8] sm:$0xff]
          %v606 = vld [vmem:[#allocation2 + $0x10] sm:$0xff]
          %v607 = vld [vmem:[#allocation2 + $0x18] sm:$0xff]
          %v608 = vld [vmem:[#allocation2 + $0x20] sm:$0xff]
          %v609 = vld [vmem:[#allocation2 + $0x28] sm:$0xff]
          %v610 = vld [vmem:[#allocation2 + $0x30] sm:$0xff]
          %v611 = vld [vmem:[#allocation2 + $0x38] sm:$0xff]
          %v612 = vld [vmem:[#allocation2 + $0x40] sm:$0xff]
          %v613 = vld [vmem:[#allocation2 + $0x48] sm:$0xff]
          %v614 = vld [vmem:[#allocation2 + $0x50] sm:$0xff]
          %v615 = vld [vmem:[#allocation2 + $0x58] sm:$0xff]
          %v616 = vld [vmem:[#allocation2 + $0x60] sm:$0xff]
          %v617 = vld [vmem:[#allocation2 + $0x68] sm:$0xff]
          %v618 = vld [vmem:[#allocation2 + $0x70] sm:$0xff]
          %v619 = vld [vmem:[#allocation2 + $0x78] sm:$0xff]
          %v620 = vadd.f32 %v604, %v605
          %v621 = vadd.f32 %v620, %v606
          %v622 = vadd.f32 %v621, %v607
          %v623 = vadd.f32 %v622, %v608
          %v624 = vadd.f32 %v623, %v609
          %v625 = vadd.f32 %v624, %v610
          %v626 = vadd.f32 %v625, %v611
          %v627 = vadd.f32 %v626, %v612
          %v628 = vadd.f32 %v627, %v613
          %v629 = vadd.f32 %v628, %v614
          %v630 = vadd.f32 %v629, %v615
          %v631 = vadd.f32 %v630, %v616
          %v632 = vadd.f32 %v631, %v617
          %v633 = vadd.f32 %v632, %v618
          %v634 = vadd.f32 %v633, %v619
          %v635 = vrot.slane %v634, 4
          %v636 = vadd.f32 %v634, %v635
          %v637 = vrot.slane %v636, 2
          %v638 = vadd.f32 %v636, %v637
          %v639 = vrot.slane %v638, 1
          %v640 = vadd.f32 %v638, %v639
          %v641 = vmul.f32 %v640, 0.0078125
          %v642 = vsub.f32 %v604, %v641
          %v643 = vsub.f32 %v605, %v641
          %v644 = vsub.f32 %v606, %v641
          %v645 = vsub.f32 %v607, %v641
          %v646 = vsub.f32 %v608, %v641
          %v647 = vsub.f32 %v609, %v641
          %v648 = vsub.f32 %v610, %v641
          %v649 = vsub.f32 %v611, %v641
          %v650 = vsub.f32 %v612, %v641
          %v651 = vsub.f32 %v613, %v641
          %v652 = vsub.f32 %v614, %v641
          %v653 = vsub.f32 %v615, %v641
          %v654 = vsub.f32 %v616, %v641
          %v655 = vsub.f32 %v617, %v641
          %v656 = vsub.f32 %v618, %v641
          %v657 = vsub.f32 %v619, %v641
          %v658 = vmul.f32 %v642, %v642
          %v659 = vmul.f32 %v643, %v643
          %v660 = vmul.f32 %v644, %v644
          %v661 = vmul.f32 %v645, %v645
          %v662 = vmul.f32 %v646, %v646
          %v663 = vmul.f32 %v647, %v647
          %v664 = vmul.f32 %v648, %v648
          %v665 = vmul.f32 %v649, %v649
          %v666 = vmul.f32 %v650, %v650
          %v667 = vmul.f32 %v651, %v651
          %v668 = vmul.f32 %v652, %v652
          %v669 = vmul.f32 %v653, %v653
          %v670 = vmul.f32 %v654, %v654
          %v671 = vmul.f32 %v655, %v655
          %v672 = vmul.f32 %v656, %v656
          %v673 = vmul.f32 %v657, %v657
          %v674 = vadd.f32 %v658, %v659
          %v675 = vadd.f32 %v674, %v660
          %v676 = vadd.f32 %v675, %v661
          %v677 = vadd.f32 %v676, %v662
          %v678 = vadd.f32 %v677, %v663
          %v679 = vadd.f32 %v678, %v664
          %v680 = vadd.f32 %v679, %v665
          %v681 = vadd.f32 %v680, %v666
          %v682 = vadd.f32 %v681, %v667
          %v683 = vadd.f32 %v682, %v668
          %v684 = vadd.f32 %v683, %v669
          %v685 = vadd.f32 %v684, %v670
          %v686 = vadd.f32 %v685, %v671
          %v687 = vadd.f32 %v686, %v672
          %v688 = vadd.f32 %v687, %v673
          %v689 = vrot.slane %v688, 4
          %v690 = vadd.f32 %v688, %v689
          %v691 = vrot.slane %v690, 2
          %v692 = vadd.f32 %v690, %v691
          %v693 = vrot.slane %v692, 1
          %v694 = vadd.f32 %v692, %v693
          %v695 = vmul.f32 %v694, 0.0078125
          %v696 = vld [vmem:[%s2] sm:$0x1]
          %v697 = vadd.f32 %v695, 1e-05
          %v698 = vrsqrt.pop %v697
          %v699 = vmul.f32 %v696, %v698
          %v701 = vlaneseq
          %v702 = vshrl.u32 %v701, 7
          %v703 = vsub.s32 0, %v702
          %v704 = vrot.slane %v699, %v703
          %v706 = vmul.f32 %v642, %v704
          %v707 = vmul.f32 %v643, %v704
          %v708 = vmul.f32 %v644, %v704
          %v709 = vmul.f32 %v645, %v704
          %v710 = vmul.f32 %v646, %v704
          %v711 = vmul.f32 %v647, %v704
          %v712 = vmul.f32 %v648, %v704
          %v713 = vmul.f32 %v649, %v704
          %v714 = vmul.f32 %v650, %v704
          %v715 = vmul.f32 %v651, %v704
          %v716 = vmul.f32 %v652, %v704
          %v717 = vmul.f32 %v653, %v704
          %v718 = vmul.f32 %v654, %v704
          %v719 = vmul.f32 %v655, %v704
          %v720 = vmul.f32 %v656, %v704
          %v721 = vmul.f32 %v657, %v704
          %v722 = vld [vmem:[%s3] sm:$0x1]
          %v724 = vlaneseq
          %v725 = vshrl.u32 %v724, 7
          %v726 = vsub.s32 0, %v725
          %v727 = vrot.slane %v722, %v726
          %v729 = vadd.f32 %v706, %v727
          %v730 = vadd.f32 %v707, %v727
          %v731 = vadd.f32 %v708, %v727
          %v732 = vadd.f32 %v709, %v727
          %v733 = vadd.f32 %v710, %v727
          %v734 = vadd.f32 %v711, %v727
          %v735 = vadd.f32 %v712, %v727
          %v736 = vadd.f32 %v713, %v727
          %v737 = vadd.f32 %v714, %v727
          %v738 = vadd.f32 %v715, %v727
          %v739 = vadd.f32 %v716, %v727
          %v740 = vadd.f32 %v717, %v727
          %v741 = vadd.f32 %v718, %v727
          %v742 = vadd.f32 %v719, %v727
          %v743 = vadd.f32 %v720, %v727
          %v744 = vadd.f32 %v721, %v727
          %vm745 = vcmp.ge.f32.partialorder %v729, 0.0
          %vm746 = vcmp.ge.f32.partialorder %v730, 0.0
          %vm747 = vcmp.ge.f32.partialorder %v731, 0.0
          %vm748 = vcmp.ge.f32.partialorder %v732, 0.0
          %vm749 = vcmp.ge.f32.partialorder %v733, 0.0
          %vm750 = vcmp.ge.f32.partialorder %v734, 0.0
          %vm751 = vcmp.ge.f32.partialorder %v735, 0.0
          %vm752 = vcmp.ge.f32.partialorder %v736, 0.0
          %vm753 = vcmp.ge.f32.partialorder %v737, 0.0
          %vm754 = vcmp.ge.f32.partialorder %v738, 0.0
          %vm755 = vcmp.ge.f32.partialorder %v739, 0.0
          %vm756 = vcmp.ge.f32.partialorder %v740, 0.0
          %vm757 = vcmp.ge.f32.partialorder %v741, 0.0
          %vm758 = vcmp.ge.f32.partialorder %v742, 0.0
          %vm759 = vcmp.ge.f32.partialorder %v743, 0.0
          %vm760 = vcmp.ge.f32.partialorder %v744, 0.0
          %v761 = vmul.f32 %v729, 0.2
          %v762 = vmul.f32 %v730, 0.2
          %v763 = vmul.f32 %v731, 0.2
          %v764 = vmul.f32 %v732, 0.2
          %v765 = vmul.f32 %v733, 0.2
          %v766 = vmul.f32 %v734, 0.2
          %v767 = vmul.f32 %v735, 0.2
          %v768 = vmul.f32 %v736, 0.2
          %v769 = vmul.f32 %v737, 0.2
          %v770 = vmul.f32 %v738, 0.2
          %v771 = vmul.f32 %v739, 0.2
          %v772 = vmul.f32 %v740, 0.2
          %v773 = vmul.f32 %v741, 0.2
          %v774 = vmul.f32 %v742, 0.2
          %v775 = vmul.f32 %v743, 0.2
          %v776 = vmul.f32 %v744, 0.2
          %v777 = vsel %vm745, %v729, %v761
          %v778 = vsel %vm746, %v730, %v762
          %v779 = vsel %vm747, %v731, %v763
          %v780 = vsel %vm748, %v732, %v764
          %v781 = vsel %vm749, %v733, %v765
          %v782 = vsel %vm750, %v734, %v766
          %v783 = vsel %vm751, %v735, %v767
          %v784 = vsel %vm752, %v736, %v768
          %v785 = vsel %vm753, %v737, %v769
          %v786 = vsel %vm754, %v738, %v770
          %v787 = vsel %vm755, %v739, %v771
          %v788 = vsel %vm756, %v740, %v772
          %v789 = vsel %vm757, %v741, %v773
          %v790 = vsel %vm758, %v742, %v774
          %v791 = vsel %vm759, %v743, %v775
          %v792 = vsel %vm760, %v744, %v776
          %v793 = vpack.c.bf16 %v778, %v777
          %v794 = vpack.c.bf16 %v780, %v779
          %v795 = vpack.c.bf16 %v782, %v781
          %v796 = vpack.c.bf16 %v784, %v783
          %v797 = vpack.c.bf16 %v786, %v785
          %v798 = vpack.c.bf16 %v788, %v787
          %v799 = vpack.c.bf16 %v790, %v789
          %v800 = vpack.c.bf16 %v792, %v791
          %v809 = vunpack.c.l.b16 %v793
          %v810 = vunpack.c.h.b16 %v793
          %v811 = vunpack.c.l.b16 %v794
          %v812 = vunpack.c.h.b16 %v794
          %v813 = vunpack.c.l.b16 %v795
          %v814 = vunpack.c.h.b16 %v795
          %v815 = vunpack.c.l.b16 %v796
          %v816 = vunpack.c.h.b16 %v796
          %v817 = vunpack.c.l.b16 %v797
          %v818 = vunpack.c.h.b16 %v797
          %v819 = vunpack.c.l.b16 %v798
          %v820 = vunpack.c.h.b16 %v798
          %v821 = vunpack.c.l.b16 %v799
          %v822 = vunpack.c.h.b16 %v799
          %v823 = vunpack.c.l.b16 %v800
          %v824 = vunpack.c.h.b16 %v800
          %v825 = vpack.c.b16 %v809, %v809
          %v826 = vpack.c.b16 %v810, %v810
          %v827 = vpack.c.b16 %v811, %v811
          %v828 = vpack.c.b16 %v812, %v812
          %v829 = vpack.c.b16 %v813, %v813
          %v830 = vpack.c.b16 %v814, %v814
          %v831 = vpack.c.b16 %v815, %v815
          %v832 = vpack.c.b16 %v816, %v816
          %v833 = vpack.c.b16 %v817, %v817
          %v834 = vpack.c.b16 %v818, %v818
          %v835 = vpack.c.b16 %v819, %v819
          %v836 = vpack.c.b16 %v820, %v820
          %v837 = vpack.c.b16 %v821, %v821
          %v838 = vpack.c.b16 %v822, %v822
          %v839 = vpack.c.b16 %v823, %v823
          %v840 = vpack.c.b16 %v824, %v824
          %857 = vst [vmem:[%s4] sm:$0xf] %v825
          %858 = vst [vmem:[%s4 + $0x4] sm:$0xf] %v826
          %859 = vst [vmem:[%s4 + $0x8] sm:$0xf] %v827
          %860 = vst [vmem:[%s4 + $0xc] sm:$0xf] %v828
          %861 = vst [vmem:[%s4 + $0x10] sm:$0xf] %v829
          %862 = vst [vmem:[%s4 + $0x14] sm:$0xf] %v830
          %863 = vst [vmem:[%s4 + $0x18] sm:$0xf] %v831
          %864 = vst [vmem:[%s4 + $0x1c] sm:$0xf] %v832
          %865 = vst [vmem:[%s4 + $0x20] sm:$0xf] %v833
          %866 = vst [vmem:[%s4 + $0x24] sm:$0xf] %v834
          %867 = vst [vmem:[%s4 + $0x28] sm:$0xf] %v835
          %868 = vst [vmem:[%s4 + $0x2c] sm:$0xf] %v836
          %869 = vst [vmem:[%s4 + $0x30] sm:$0xf] %v837
          %870 = vst [vmem:[%s4 + $0x34] sm:$0xf] %v838
          %871 = vst [vmem:[%s4 + $0x38] sm:$0xf] %v839
          %872 = vst [vmem:[%s4 + $0x3c] sm:$0xf] %v840
        $region85: #{discriminator_forward.6} parent=72 // pred_fallthru
          _
        // Predicated region
        $region86: #{discriminator_forward.6} parent=72 // pred_check
          %p873 = pneg %p122
        $region87: #{discriminator_forward.6} parent=72 // pred_check_branch
          %875 = sbr.rel (%p873) target = $region89
        $region88: #{discriminator_forward.6} parent=72 // pred_region
          _
        $region89: #{discriminator_forward.6} parent=72 // pred_fallthru
          _
        // Predicated region
        $region90: #{discriminator_forward.6} parent=72 // pred_check
          %p876 = pneg %p122
        $region91: #{discriminator_forward.6} parent=72 // pred_check_branch
          %878 = sbr.rel (%p876) target = $region93
        $region92: #{discriminator_forward.6} parent=72 // pred_region
          _
        $region93: #{discriminator_forward.6} parent=72 // pred_fallthru
          _
      $region73: #{discriminator_forward.6} parent=5 // pred_fallthru
        _
      %p879 = scmp.le.s32.totalorder 2, %s10
      // Predicated region
      $region94: #{discriminator_forward.6} parent=5 // pred_check
        %p880 = pneg %p879
      $region95: #{discriminator_forward.6} parent=5 // pred_check_branch
        %882 = sbr.rel (%p880) target = $region97
      $region96: #{discriminator_forward.6} parent=5 // pred_region
        %s883 = ssub.s32 %s10, 2
      $region97: #{discriminator_forward.6} parent=5 // pred_fallthru
        _
    $region6: #{discriminator_forward.6} parent=1 // loop_footer
      %s14 = sadd.s32 1, %s10
    $region7: #{discriminator_forward.6} parent=1 // loop_footer_branch
      %9 = sbr.rel target = $region3
    $region8: #{discriminator_forward.6} parent=1 // loop_exit
      _

// kernel: discriminator_forward.7
$region0: #{discriminator_forward.7}
  #allocation0 [shape = 'u32[]', space=smem, size = 0x4, offset = 0x4, fixed_abs, tag = 'smem constant byte address 0x4 - core index']
  #allocation1 [shape = 'u32[144,128]{1,0:T(1,128)}', space=vmem, size = 0x12000, scoped, tag = 'internal scratch']
  #allocation2 [shape = 'f32[32,128]{1,0:T(8,128)}', space=vmem, size = 0x4000, scoped, tag = 'scratch operand']
  %s0 = inlined_call_operand.vmem [shape: bf16[32,512], index: 0, kind: input, shape index: {}]
  %s1 = inlined_call_operand.vmem [shape: bf16[512,128], index: 1, kind: input, shape index: {}]
  %s2 = inlined_call_operand.vmem [shape: f32[1,128], index: 2, kind: input, shape index: {}]
  %s3 = inlined_call_operand.vmem [shape: f32[1,128], index: 3, kind: input, shape index: {}]
  %s4 = inlined_call_operand.vmem [shape: bf16[32,128], index: 4, kind: output, shape index: {}]
  %s5 = sld [smem:[#allocation0]]
  $region98: #{discriminator_forward.7} parent=0
    _
  %s7 = ssub.s32 1, %s5
  %s8 = scalar_select 0, %s7, %s5
  $region1: #{discriminator_forward.7} parent=0
    #allocation3 [shape = 'u8[16384]{0}', space=vmem, size = 0x4000, scoped, tag = 'input window, operand 0']
    loop: start=0, step=1, limit=6
    $region2: #{discriminator_forward.7} parent=1 // loop_pre_header
      _
    $region3: #{discriminator_forward.7} parent=1 // loop_header
      %s10 = sphi 0, %s14
      %p11 = scmp.ge.s32.totalorder %s10, 6
      %s20 = sphi 0, %s22
      %s23 = sphi 0, %s20
      %s24 = sphi 0, %s23
      %s40 = sphi 0, %s24
      %s46 = sphi 0, %s48
      %s49 = sphi 0, %s46
      %s50 = sphi 0, %s49
      %s66 = sphi 0, %s50
      %s70 = sphi 0, %s70
      %s72 = sphi 0, %s70
      %s73 = sphi 0, %s72
      %s87 = sphi 0, %s73
      %s91 = sphi 0, %s91
      %s93 = sphi 0, %s91
      %s94 = sphi 0, %s93
      %s108 = sphi 0, %s94
      %s112 = sphi 0, %s112
      %s114 = sphi 0, %s112
      %s115 = sphi 0, %s114
      %s129 = sphi 0, %s115
    $region4: #{discriminator_forward.7} parent=1 // loop_header_branch
      %13 = sbr.rel (%p11) target = $region8
    $region5: #{discriminator_forward.7} parent=1 // loop_body
      %s15 = ssub.s32 %s10, 1
      %s16 = ssub.s32 %s10, 2
      %s17 = sadd.s32 %s10, 1
      %s18 = ssub.s32 %s10, %s17
      %p19 = scmp.eq.s32.totalorder %s18, 0
      %s21 = sadd.s32 %s20, 1
      %s22 = scalar_select %p19, %s20, %s21
      %p25 = pneg %p19
      %p26 = scmp.eq.s32.totalorder %s10, 3
      %p27 = por %p25, %p26
      %p28 = scmp.ne.s32.totalorder %s20, %s23
      %p29 = scmp.eq.s32.totalorder %s10, 0
      %p30 = por %p28, %p29
      %p31 = scmp.ne.s32.totalorder %s20, %s23
      %p32 = scmp.eq.s32.totalorder %s15, 3
      %p33 = por %p31, %p32
      %p34 = scmp.ne.s32.totalorder %s23, %s24
      %p35 = scmp.eq.s32.totalorder %s15, 0
      %p36 = por %p34, %p35
      %p37 = scmp.ne.s32.totalorder %s23, %s24
      %p38 = scmp.eq.s32.totalorder %s16, 3
      %p39 = por %p37, %p38
      %p41 = scmp.ne.s32.totalorder %s24, %s40
      %p42 = scmp.eq.s32.totalorder %s16, 0
      %p43 = por %p41, %p42
      %s44 = ssub.s32 %s10, %s17
      %p45 = scmp.eq.s32.totalorder %s44, 0
      %s47 = sadd.s32 %s46, 1
      %s48 = scalar_select %p45, %s46, %s47
      %p51 = pneg %p45
      %p52 = scmp.eq.s32.totalorder %s10, 3
      %p53 = por %p51, %p52
      %p54 = scmp.ne.s32.totalorder %s46, %s49
      %p55 = scmp.eq.s32.totalorder %s10, 0
      %p56 = por %p54, %p55
      %p57 = scmp.ne.s32.totalorder %s46, %s49
      %p58 = scmp.eq.s32.totalorder %s15, 3
      %p59 = por %p57, %p58
      %p60 = scmp.ne.s32.totalorder %s49, %s50
      %p61 = scmp.eq.s32.totalorder %s15, 0
      %p62 = por %p60, %p61
      %p63 = scmp.ne.s32.totalorder %s49, %s50
      %p64 = scmp.eq.s32.totalorder %s16, 3
      %p65 = por %p63, %p64
      %p67 = scmp.ne.s32.totalorder %s50, %s66
      %p68 = scmp.eq.s32.totalorder %s16, 0
      %p69 = por %p67, %p68
      %s71 = sadd.s32 %s70, 1
      %p74 = scmp.eq.s32.totalorder %s10, 3
      %p75 = scmp.ne.s32.totalorder %s70, %s72
      %p76 = scmp.eq.s32.totalorder %s10, 0
      %p77 = por %p75, %p76
      %p78 = scmp.ne.s32.totalorder %s70, %s72
      %p79 = scmp.eq.s32.totalorder %s15, 3
      %p80 = por %p78, %p79
      %p81 = scmp.ne.s32.totalorder %s72, %s73
      %p82 = scmp.eq.s32.totalorder %s15, 0
      %p83 = por %p81, %p82
      %p84 = scmp.ne.s32.totalorder %s72, %s73
      %p85 = scmp.eq.s32.totalorder %s16, 3
      %p86 = por %p84, %p85
      %p88 = scmp.ne.s32.totalorder %s73, %s87
      %p89 = scmp.eq.s32.totalorder %s16, 0
      %p90 = por %p88, %p89
      %s92 = sadd.s32 %s91, 1
      %p95 = scmp.eq.s32.totalorder %s10, 3
      %p96 = scmp.ne.s32.totalorder %s91, %s93
      %p97 = scmp.eq.s32.totalorder %s10, 0
      %p98 = por %p96, %p97
      %p99 = scmp.ne.s32.totalorder %s91, %s93
      %p100 = scmp.eq.s32.totalorder %s15, 3
      %p101 = por %p99, %p100
      %p102 = scmp.ne.s32.totalorder %s93, %s94
      %p103 = scmp.eq.s32.totalorder %s15, 0
      %p104 = por %p102, %p103
      %p105 = scmp.ne.s32.totalorder %s93, %s94
      %p106 = scmp.eq.s32.totalorder %s16, 3
      %p107 = por %p105, %p106
      %p109 = scmp.ne.s32.totalorder %s94, %s108
      %p110 = scmp.eq.s32.totalorder %s16, 0
      %p111 = por %p109, %p110
      %s113 = sadd.s32 %s112, 1
      %p116 = scmp.eq.s32.totalorder %s10, 3
      %p117 = scmp.ne.s32.totalorder %s112, %s114
      %p118 = scmp.eq.s32.totalorder %s10, 0
      %p119 = por %p117, %p118
      %p120 = scmp.ne.s32.totalorder %s112, %s114
      %p121 = scmp.eq.s32.totalorder %s15, 3
      %p122 = por %p120, %p121
      %p123 = scmp.ne.s32.totalorder %s114, %s115
      %p124 = scmp.eq.s32.totalorder %s15, 0
      %p125 = por %p123, %p124
      %p126 = scmp.ne.s32.totalorder %s114, %s115
      %p127 = scmp.eq.s32.totalorder %s16, 3
      %p128 = por %p126, %p127
      %p130 = scmp.ne.s32.totalorder %s115, %s129
      %p131 = scmp.eq.s32.totalorder %s16, 0
      %p132 = por %p130, %p131
      %p133 = scmp.le.s32.totalorder 1, %s10
      %p134 = scmp.lt.s32.totalorder %s10, 5
      %p135 = pnand %p133, %p134
      %p136 = pneg %p135
      // Predicated region
      $region9: #{discriminator_forward.7} parent=5 // pred_check
        _
      $region10: #{discriminator_forward.7} parent=5 // pred_check_branch
        %138 = sbr.rel (%p135) target = $region12
      $region11: #{discriminator_forward.7} parent=5 // pred_region
        %s139 = ssub.s32 %s10, 1
        // Predicated region
        $region13: #{discriminator_forward.7} parent=11 // pred_check
          %p140 = pneg %p83
        $region14: #{discriminator_forward.7} parent=11 // pred_check_branch
          %142 = sbr.rel (%p140) target = $region16
        $region15: #{discriminator_forward.7} parent=11 // pred_region
          _
        $region16: #{discriminator_forward.7} parent=11 // pred_fallthru
          _
        // Predicated region
        $region17: #{discriminator_forward.7} parent=11 // pred_check
          %p143 = pneg %p104
        $region18: #{discriminator_forward.7} parent=11 // pred_check_branch
          %145 = sbr.rel (%p143) target = $region20
        $region19: #{discriminator_forward.7} parent=11 // pred_region
          _
        $region20: #{discriminator_forward.7} parent=11 // pred_fallthru
          _
      $region12: #{discriminator_forward.7} parent=5 // pred_fallthru
        _
      %p146 = scmp.lt.s32.totalorder %s10, 4
      // Predicated region
      $region21: #{discriminator_forward.7} parent=5 // pred_check
        %p147 = pneg %p146
      $region22: #{discriminator_forward.7} parent=5 // pred_check_branch
        %149 = sbr.rel (%p147) target = $region24
      $region23: #{discriminator_forward.7} parent=5 // pred_region
        // Predicated region
        $region25: #{discriminator_forward.7} parent=23 // pred_check
          %p150 = pneg %p30
        $region26: #{discriminator_forward.7} parent=23 // pred_check_branch
          %152 = sbr.rel (%p150) target = $region28
        $region27: #{discriminator_forward.7} parent=23 // pred_region
          %s153 = sand.u32 %s20, 1
          %s154 = sand.u32 %s20, 1
          %s155 = smul.addr %s154, 16
          %s156 = scalar_lea.vmem [#allocation3], %s155
          %s157 = smul.addr %s10, 4
          %s158 = scalar_lea.vmem %s0, %s157
          // Predicated region
          $region29: #{discriminator_forward.7} parent=27 // pred_check
            _
          $region30: #{discriminator_forward.7} parent=27 // pred_check_branch
            %160 = sbr.rel (0) target = $region32
          $region31: #{discriminator_forward.7} parent=27 // pred_region
            // Predicated region
            $region33: #{discriminator_forward.7} parent=31 // pred_check
              _
            $region34: #{discriminator_forward.7} parent=31 // pred_check_branch
              %162 = sbr.rel target = $region36
            $region35: #{discriminator_forward.7} parent=31 // pred_region
              // Predicated region
              $region48: #{discriminator_forward.7} parent=35 // pred_check
                _
              $region49: #{discriminator_forward.7} parent=35 // pred_check_branch
                %183 = sbr.rel (0) target = $region51
              $region50: #{discriminator_forward.7} parent=35 // pred_region
                loop: start=0, step=1, limit=1
                $region52: #{discriminator_forward.7} parent=50 // loop_pre_header
                  _
                $region53: #{discriminator_forward.7} parent=50 // loop_header
                  %s185 = sphi 0, %s189
                  %p186 = scmp.ge.s32.totalorder %s185, 1
                  %s190 = sphi %s158, %s158
                  %s191 = sphi %s156, %s156
                $region54: #{discriminator_forward.7} parent=50 // loop_header_branch
                  %188 = sbr.rel (%p186) target = $region58
                $region55: #{discriminator_forward.7} parent=50 // loop_body
                  _
                $region56: #{discriminator_forward.7} parent=50 // loop_footer
                  %s189 = sadd.s32 1, %s185
                $region57: #{discriminator_forward.7} parent=50 // loop_footer_branch
                  %184 = sbr.rel target = $region53
                $region58: #{discriminator_forward.7} parent=50 // loop_exit
                  _
                loop: start=0, step=1, limit=1
                $region59: #{discriminator_forward.7} parent=50 // loop_pre_header
                  _
                $region60: #{discriminator_forward.7} parent=50 // loop_header
                  %s194 = sphi 0, %s198
                  %p195 = scmp.ge.s32.totalorder %s194, 1
                  %s199 = sphi %s158, %s158
                  %s200 = sphi %s156, %s156
                $region61: #{discriminator_forward.7} parent=50 // loop_header_branch
                  %197 = sbr.rel (%p195) target = $region65
                $region62: #{discriminator_forward.7} parent=50 // loop_body
                  %v201 = vld [vmem:[%s199] sm:$0xf]
                  %202 = vst [vmem:[%s200] sm:$0xf] %v201
                  %v203 = vld [vmem:[%s199 + $0x10] sm:$0xf]
                  %204 = vst [vmem:[%s200 + $0x4] sm:$0xf] %v203
                  %v205 = vld [vmem:[%s199 + $0x20] sm:$0xf]
                  %206 = vst [vmem:[%s200 + $0x8] sm:$0xf] %v205
                  %v207 = vld [vmem:[%s199 + $0x30] sm:$0xf]
                  %208 = vst [vmem:[%s200 + $0xc] sm:$0xf] %v207
                $region63: #{discriminator_forward.7} parent=50 // loop_footer
                  %s198 = sadd.s32 1, %s194
                $region64: #{discriminator_forward.7} parent=50 // loop_footer_branch
                  %193 = sbr.rel target = $region60
                $region65: #{discriminator_forward.7} parent=50 // loop_exit
                  _
              $region51: #{discriminator_forward.7} parent=35 // pred_fallthru
                _
            $region36: #{discriminator_forward.7} parent=31 // pred_fallthru
              _
            // Predicated region
            $region37: #{discriminator_forward.7} parent=31 // pred_check
              _
            $region38: #{discriminator_forward.7} parent=31 // pred_check_branch
              %164 = sbr.rel (0) target = $region40
            $region39: #{discriminator_forward.7} parent=31 // pred_region
              loop: start=0, step=1, limit=1
              $region41: #{discriminator_forward.7} parent=39 // loop_pre_header
                _
              $region42: #{discriminator_forward.7} parent=39 // loop_header
                %s167 = sphi 0, %s171
                %p168 = scmp.ge.s32.totalorder %s167, 1
                %s172 = sphi %s158, %s158
                %s173 = sphi %s156, %s156
              $region43: #{discriminator_forward.7} parent=39 // loop_header_branch
                %170 = sbr.rel (%p168) target = $region47
              $region44: #{discriminator_forward.7} parent=39 // loop_body
                %v174 = vld [vmem:[%s172] sm:$0xf]
                %175 = vst [vmem:[%s173] sm:$0xf] %v174
                %v176 = vld [vmem:[%s172 + $0x10] sm:$0xf]
                %177 = vst [vmem:[%s173 + $0x4] sm:$0xf] %v176
                %v178 = vld [vmem:[%s172 + $0x20] sm:$0xf]
                %179 = vst [vmem:[%s173 + $0x8] sm:$0xf] %v178
                %v180 = vld [vmem:[%s172 + $0x30] sm:$0xf]
                %181 = vst [vmem:[%s173 + $0xc] sm:$0xf] %v180
              $region45: #{discriminator_forward.7} parent=39 // loop_footer
                %s171 = sadd.s32 1, %s167
              $region46: #{discriminator_forward.7} parent=39 // loop_footer_branch
                %166 = sbr.rel target = $region42
              $region47: #{discriminator_forward.7} parent=39 // loop_exit
                _
            $region40: #{discriminator_forward.7} parent=31 // pred_fallthru
              _
          $region32: #{discriminator_forward.7} parent=27 // pred_fallthru
            _
          %209 = vnop
        $region28: #{discriminator_forward.7} parent=23 // pred_fallthru
          _
        // Predicated region
        $region66: #{discriminator_forward.7} parent=23 // pred_check
          %p210 = pneg %p56
        $region67: #{discriminator_forward.7} parent=23 // pred_check_branch
          %212 = sbr.rel (%p210) target = $region69
        $region68: #{discriminator_forward.7} parent=23 // pred_region
          %s213 = smul.u32 16, %s10
          %p214 = scmp.lt.s32.totalorder %s213, 63
          %s215 = scalar_select %p214, %s213, 63
          %s216 = smul.addr %s215, 4
          %s217 = scalar_lea.vmem %s1, %s216
          %s218 = smul.u32 16, %s10
        $region69: #{discriminator_forward.7} parent=23 // pred_fallthru
          _
      $region24: #{discriminator_forward.7} parent=5 // pred_fallthru
        _
      %p219 = scmp.le.s32.totalorder 1, %s10
      %p220 = scmp.lt.s32.totalorder %s10, 5
      %p221 = pnand %p219, %p220
      %p222 = pneg %p221
      // Predicated region
      $region70: #{discriminator_forward.7} parent=5 // pred_check
        _
      $region71: #{discriminator_forward.7} parent=5 // pred_check_branch
        %224 = sbr.rel (%p221) target = $region73
      $region72: #{discriminator_forward.7} parent=5 // pred_region
        %s225 = ssub.s32 %s10, 1
        %s226 = sand.u32 %s23, 1
        %s227 = sand.u32 %s23, 1
        %s228 = smul.addr %s227, 16
        %s229 = scalar_lea.vmem [#allocation3], %s228
        // Predicated region
        $region74: #{discriminator_forward.7} parent=72 // pred_check
          %p230 = pneg %p36
        $region75: #{discriminator_forward.7} parent=72 // pred_check_branch
          %232 = sbr.rel (%p230) target = $region77
        $region76: #{discriminator_forward.7} parent=72 // pred_region
          _
        $region77: #{discriminator_forward.7} parent=72 // pred_fallthru
          _
        %s233 = sand.u32 %s23, 1
        %s234 = sand.u32 %s23, 1
        %s235 = smul.addr %s234, 16
        %s236 = scalar_lea.vmem [#allocation3], %s235
        %p237 = pneg %p36
        %p238 = pneg %p33
        %s239 = smul.u32 16, %s15
        %p240 = scmp.lt.s32.totalorder %s239, 63
        %s241 = scalar_select %p240, %s239, 63
        %s242 = smul.addr %s241, 4
        %s243 = scalar_lea.vmem %s1, %s242
        %p244 = pneg %p62
        %p245 = pneg %p59
        %p246 = pneg %p83
        %p247 = pneg %p80
        %p248 = pneg %p104
        %p249 = pneg %p101
        %p250 = pneg %p125
        %p251 = pneg %p122
        %s252 = smul.u32 16, %s15
        %p253 = scmp.lt.s32.totalorder %s252, 63
        %s254 = scalar_select %p253, %s252, 63
        %s255 = smul.addr %s254, 4
        %s256 = scalar_lea.vmem %s1, %s255
        %s257 = smul.u32 16, %s15
        %p259 = scmp.eq.s32.totalorder %s15, 0
        // Predicated region
        $region78: #{discriminator_forward.7} parent=72 // pred_check
          %p260 = pneg %p259
        $region79: #{discriminator_forward.7} parent=72 // pred_check_branch
          %262 = sbr.rel (%p260) target = $region81
        $region80: #{discriminator_forward.7} parent=72 // pred_region
          %263 = vst [vmem:[#allocation2] sm:$0xff] 0.0
          %264 = vst [vmem:[#allocation2 + $0x8] sm:$0xff] 0.0
          %265 = vst [vmem:[#allocation2 + $0x10] sm:$0xff] 0.0
          %266 = vst [vmem:[#allocation2 + $0x18] sm:$0xff] 0.0
        $region81: #{discriminator_forward.7} parent=72 // pred_fallthru
          _
        %v267 = vld [vmem:[#allocation2] sm:$0xff]
        %v268 = vld [vmem:[#allocation2 + $0x8] sm:$0xff]
        %v269 = vld [vmem:[#allocation2 + $0x10] sm:$0xff]
        %v270 = vld [vmem:[#allocation2 + $0x18] sm:$0xff]
        %v271 = vld [vmem:[%s229] sm:$0xf]
        %v272 = vld [vmem:[%s229 + $0x4] sm:$0xf]
        %v273 = vld [vmem:[%s229 + $0x8] sm:$0xf]
        %v274 = vld [vmem:[%s229 + $0xc] sm:$0xf]
        %v275 = vld [vmem:[%s256] sm:$0xf]
        %v276 = vld [vmem:[%s256 + $0x4] sm:$0xf]
        %v277 = vld [vmem:[%s256 + $0x8] sm:$0xf]
        %v278 = vld [vmem:[%s256 + $0xc] sm:$0xf]
        %v279 = vld [vmem:[%s256 + $0x10] sm:$0xf]
        %v280 = vld [vmem:[%s256 + $0x14] sm:$0xf]
        %v281 = vld [vmem:[%s256 + $0x18] sm:$0xf]
        %v282 = vld [vmem:[%s256 + $0x1c] sm:$0xf]
        %v283 = vld [vmem:[%s256 + $0x20] sm:$0xf]
        %v284 = vld [vmem:[%s256 + $0x24] sm:$0xf]
        %v285 = vld [vmem:[%s256 + $0x28] sm:$0xf]
        %v286 = vld [vmem:[%s256 + $0x2c] sm:$0xf]
        %v287 = vld [vmem:[%s256 + $0x30] sm:$0xf]
        %v288 = vld [vmem:[%s256 + $0x34] sm:$0xf]
        %v289 = vld [vmem:[%s256 + $0x38] sm:$0xf]
        %v290 = vld [vmem:[%s256 + $0x3c] sm:$0xf]
        %v295 = vunpack.c.l.b16 %v271
        %v296 = vunpack.c.l.b16 %v272
        %v297 = vunpack.c.l.b16 %v273
        %v298 = vunpack.c.l.b16 %v274
        %v299 = vpack.c.b16 %v296, %v295
        %v300 = vpack.c.b16 %v298, %v297
        %v319 = vunpack.c.l.b16 %v275
        %v320 = vunpack.c.l.b16 %v276
        %v321 = vunpack.c.l.b16 %v277
        %v322 = vunpack.c.l.b16 %v278
        %v323 = vunpack.c.l.b16 %v279
        %v324 = vunpack.c.l.b16 %v280
        %v325 = vunpack.c.l.b16 %v281
        %v326 = vunpack.c.l.b16 %v282
        %v327 = vunpack.c.l.b16 %v283
        %v328 = vunpack.c.l.b16 %v284
        %v329 = vunpack.c.l.b16 %v285
        %v330 = vunpack.c.l.b16 %v286
        %v331 = vunpack.c.l.b16 %v287
        %v332 = vunpack.c.l.b16 %v288
        %v333 = vunpack.c.l.b16 %v289
        %v334 = vunpack.c.l.b16 %v290
        %v335 = vpack.c.b16 %v320, %v319
        %v336 = vpack.c.b16 %v322, %v321
        %v337 = vpack.c.b16 %v324, %v323
        %v338 = vpack.c.b16 %v326, %v325
        %v339 = vpack.c.b16 %v328, %v327
        %v340 = vpack.c.b16 %v330, %v329
        %v341 = vpack.c.b16 %v332, %v331
        %v342 = vpack.c.b16 %v334, %v333
        %351 = vmatprep.subr.bf16.mxu0 0
        %352 = vmatpush1.bf16.msra.mxu0 %v335
        %353 = vmatprep.subr.bf16.mxu0 0
        %354 = vmatpush1.bf16.msra.mxu0 %v336
        %355 = vmatprep.subr.bf16.mxu0 0
        %356 = vmatpush1.bf16.msra.mxu0 %v337
        %357 = vmatprep.subr.bf16.mxu0 0
        %358 = vmatpush1.bf16.msra.mxu0 %v338
        %359 = vmatprep.subr.bf16.mxu0 0
        %360 = vmatpush1.bf16.msra.mxu0 %v339
        %361 = vmatprep.subr.bf16.mxu0 0
        %362 = vmatpush1.bf16.msra.mxu0 %v340
        %363 = vmatprep.subr.bf16.mxu0 0
        %364 = vmatpush1.bf16.msra.mxu0 %v341
        %365 = vmatprep.subr.bf16.mxu0 0
        %366 = vmatpush1.bf16.msra.mxu0 %v342
        %367 = vmatprep.subr.bf16.mxu0 0
        %368 = vmatpush1.bf16.msra.mxu0 0
        %369 = vmatprep.subr.bf16.mxu0 0
        %370 = vmatpush1.bf16.msra.mxu0 0
        %371 = vmatprep.subr.bf16.mxu0 0
        %372 = vmatpush1.bf16.msra.mxu0 0
        %373 = vmatprep.subr.bf16.mxu0 0
        %374 = vmatpush1.bf16.msra.mxu0 0
        %375 = vmatprep.subr.bf16.mxu0 0
        %376 = vmatpush1.bf16.msra.mxu0 0
        %377 = vmatprep.subr.bf16.mxu0 0
        %378 = vmatpush1.bf16.msra.mxu0 0
        %379 = vmatprep.subr.bf16.mxu0 0
        %380 = vmatpush1.bf16.msra.mxu0 0
        %381 = vmatprep.subr.bf16.mxu0 0
        %382 = vmatpush1.bf16.msra.mxu0 0
        %383 = vmatprep.mubr.bf16.mxu0 0
        %384 = vmatmul.mubr.bf16.gmra.mrb[0].mxu0 %v299
        %v385 = vpop.f32.mrb[0].mxu0
        %v386 = vadd.f32 0.0, %v385
        %v387 = vpop.f32.mrb[0].mxu0
        %v388 = vpop.f32.mrb[0].mxu0
        %v389 = vadd.f32 0.0, %v388
        %v390 = vpop.f32.mrb[0].mxu0
        %391 = vmatprep.mubr.bf16.mxu0 0
        %392 = vmatmul.mubr.bf16.gmra.mrb[0].mxu0 %v300
        %v393 = vpop.f32.mrb[0].mxu0
        %v394 = vadd.f32 0.0, %v393
        %v395 = vpop.f32.mrb[0].mxu0
        %v396 = vpop.f32.mrb[0].mxu0
        %v397 = vadd.f32 0.0, %v396
        %v398 = vpop.f32.mrb[0].mxu0
        %399 = vdwg.mxu0
        %v400 = vadd.f32 %v267, %v386
        %v401 = vadd.f32 %v268, %v389
        %v402 = vadd.f32 %v269, %v394
        %v403 = vadd.f32 %v270, %v397
        %404 = vst [vmem:[#allocation2] sm:$0xff] %v400
        %405 = vst [vmem:[#allocation2 + $0x8] sm:$0xff] %v401
        %406 = vst [vmem:[#allocation2 + $0x10] sm:$0xff] %v402
        %407 = vst [vmem:[#allocation2 + $0x18] sm:$0xff] %v403
        %p408 = scmp.eq.s32.totalorder %s15, 3
        // Predicated region
        $region82: #{discriminator_forward.7} parent=72 // pred_check
          %p409 = pneg %p408
        $region83: #{discriminator_forward.7} parent=72 // pred_check_branch
          %411 = sbr.rel (%p409) target = $region85
        $region84: #{discriminator_forward.7} parent=72 // pred_region
          %v412 = vld [vmem:[#allocation2] sm:$0xff]
          %v413 = vld [vmem:[#allocation2 + $0x8] sm:$0xff]
          %v414 = vld [vmem:[#allocation2 + $0x10] sm:$0xff]
          %v415 = vld [vmem:[#allocation2 + $0x18] sm:$0xff]
          %v416 = vadd.f32 %v412, %v413
          %v417 = vadd.f32 %v416, %v414
          %v418 = vadd.f32 %v417, %v415
          %v419 = vrot.slane %v418, 4
          %v420 = vadd.f32 %v418, %v419
          %v421 = vrot.slane %v420, 2
          %v422 = vadd.f32 %v420, %v421
          %v423 = vrot.slane %v422, 1
          %v424 = vadd.f32 %v422, %v423
          %v425 = vmul.f32 %v424, 0.03125
          %v426 = vsub.f32 %v412, %v425
          %v427 = vsub.f32 %v413, %v425
          %v428 = vsub.f32 %v414, %v425
          %v429 = vsub.f32 %v415, %v425
          %v430 = vmul.f32 %v426, %v426
          %v431 = vmul.f32 %v427, %v427
          %v432 = vmul.f32 %v428, %v428
          %v433 = vmul.f32 %v429, %v429
          %v434 = vadd.f32 %v430, %v431
          %v435 = vadd.f32 %v434, %v432
          %v436 = vadd.f32 %v435, %v433
          %v437 = vrot.slane %v436, 4
          %v438 = vadd.f32 %v436, %v437
          %v439 = vrot.slane %v438, 2
          %v440 = vadd.f32 %v438, %v439
          %v441 = vrot.slane %v440, 1
          %v442 = vadd.f32 %v440, %v441
          %v443 = vmul.f32 %v442, 0.03125
          %v444 = vld [vmem:[%s2] sm:$0x1]
          %v445 = vadd.f32 %v443, 1e-05
          %v446 = vrsqrt.pop %v445
          %v447 = vmul.f32 %v444, %v446
          %v449 = vlaneseq
          %v450 = vshrl.u32 %v449, 7
          %v451 = vsub.s32 0, %v450
          %v452 = vrot.slane %v447, %v451
          %v454 = vmul.f32 %v426, %v452
          %v455 = vmul.f32 %v427, %v452
          %v456 = vmul.f32 %v428, %v452
          %v457 = vmul.f32 %v429, %v452
          %v458 = vld [vmem:[%s3] sm:$0x1]
          %v460 = vlaneseq
          %v461 = vshrl.u32 %v460, 7
          %v462 = vsub.s32 0, %v461
          %v463 = vrot.slane %v458, %v462
          %v465 = vadd.f32 %v454, %v463
          %v466 = vadd.f32 %v455, %v463
          %v467 = vadd.f32 %v456, %v463
          %v468 = vadd.f32 %v457, %v463
          %vm469 = vcmp.ge.f32.partialorder %v465, 0.0
          %vm470 = vcmp.ge.f32.partialorder %v466, 0.0
          %vm471 = vcmp.ge.f32.partialorder %v467, 0.0
          %vm472 = vcmp.ge.f32.partialorder %v468, 0.0
          %v473 = vmul.f32 %v465, 0.2
          %v474 = vmul.f32 %v466, 0.2
          %v475 = vmul.f32 %v467, 0.2
          %v476 = vmul.f32 %v468, 0.2
          %v477 = vsel %vm469, %v465, %v473
          %v478 = vsel %vm470, %v466, %v474
          %v479 = vsel %vm471, %v467, %v475
          %v480 = vsel %vm472, %v468, %v476
          %v481 = vpack.c.bf16 %v478, %v477
          %v482 = vpack.c.bf16 %v480, %v479
          %v485 = vunpack.c.l.b16 %v481
          %v486 = vunpack.c.h.b16 %v481
          %v487 = vunpack.c.l.b16 %v482
          %v488 = vunpack.c.h.b16 %v482
          %v489 = vpack.c.b16 %v485, %v485
          %v490 = vpack.c.b16 %v486, %v486
          %v491 = vpack.c.b16 %v487, %v487
          %v492 = vpack.c.b16 %v488, %v488
          %497 = vst [vmem:[%s4] sm:$0xf] %v489
          %498 = vst [vmem:[%s4 + $0x4] sm:$0xf] %v490
          %499 = vst [vmem:[%s4 + $0x8] sm:$0xf] %v491
          %500 = vst [vmem:[%s4 + $0xc] sm:$0xf] %v492
        $region85: #{discriminator_forward.7} parent=72 // pred_fallthru
          _
        // Predicated region
        $region86: #{discriminator_forward.7} parent=72 // pred_check
          %p501 = pneg %p122
        $region87: #{discriminator_forward.7} parent=72 // pred_check_branch
          %503 = sbr.rel (%p501) target = $region89
        $region88: #{discriminator_forward.7} parent=72 // pred_region
          _
        $region89: #{discriminator_forward.7} parent=72 // pred_fallthru
          _
        // Predicated region
        $region90: #{discriminator_forward.7} parent=72 // pred_check
          %p504 = pneg %p122
        $region91: #{discriminator_forward.7} parent=72 // pred_check_branch
          %506 = sbr.rel (%p504) target = $region93
        $region92: #{discriminator_forward.7} parent=72 // pred_region
          _
        $region93: #{discriminator_forward.7} parent=72 // pred_fallthru
          _
      $region73: #{discriminator_forward.7} parent=5 // pred_fallthru
        _
      %p507 = scmp.le.s32.totalorder 2, %s10
      // Predicated region
      $region94: #{discriminator_forward.7} parent=5 // pred_check
        %p508 = pneg %p507
      $region95: #{discriminator_forward.7} parent=5 // pred_check_branch
        %510 = sbr.rel (%p508) target = $region97
      $region96: #{discriminator_forward.7} parent=5 // pred_region
        %s511 = ssub.s32 %s10, 2
      $region97: #{discriminator_forward.7} parent=5 // pred_fallthru
        _
    $region6: #{discriminator_forward.7} parent=1 // loop_footer
      %s14 = sadd.s32 1, %s10
    $region7: #{discriminator_forward.7} parent=1 // loop_footer_branch
      %9 = sbr.rel target = $region3
    $region8: #{discriminator_forward.7} parent=1 // loop_exit
      _

</llo_original>
